<compile_context>
chip_gen: v6e
topology: v6e:2x2x1
jax: 0.10.0
libtpu: 0.0.40
codegen_flags: <defaults>
</compile_context>

<pallas_src>
import functools

import jax
import jax.numpy as jnp
from jax.experimental import pallas as pl
from jax.experimental.pallas import tpu as pltpu
from jax.scipy.linalg import block_diag


SPARSITY_THRESHOLD = 0.01   # AFNO2D default softshrink lambda
_SQRT1_2 = 0.7071067811865476
LANE = 128                  # lane width: all kernel outputs padded to multiples of this

_PARAMS = pltpu.CompilerParams(
    dimension_semantics=("parallel",),
    vmem_limit_bytes=32 * 1024 * 1024,   # explicit scoped-VMEM budget (safe on v5e/v6e/v7x)
)

# Bound the widest live (t, width) f32 intermediate (GELU activation, LN temps)
# to ~512 KiB so it stays near the vreg file / comfortably inside VMEM.
_ROW_BUDGET_ELEMS = 128 * 1024


def _detect_min_grid():
    # v7x has 2 TensorCores: keep >= 2 grid steps so the 1-D token grid can be
    # sharded across them.  v5e/v6e have a single TC: a single whole-N tile
    # avoids per-step overhead and keeps weights resident for one step.
    try:
        kind = jax.devices()[0].device_kind.lower()
    except Exception:
        return 1
    return 2 if "v7" in kind else 1


_MIN_GRID = _detect_min_grid()


def _round_up(x, m):
    return ((x + m - 1) // m) * m


def _row_tile(n, width, *, multiple):
    """Row tile for the 1-D token grid: as large as the live-intermediate budget
    allows, a multiple of the dtype sublane tile, and split into >= _MIN_GRID
    grid steps on multi-TensorCore chips.  No whole-array fallback; callers pad
    rows to a multiple of the tile instead."""
    budget = max(multiple, (_ROW_BUDGET_ELEMS // max(width, LANE) // multiple) * multiple)
    t = min(budget, _round_up(max(n, 1), multiple))
    if _MIN_GRID > 1:
        cap = max(multiple, (((n + _MIN_GRID - 1) // _MIN_GRID) // multiple) * multiple)
        t = min(t, cap)
    return t


def _pad_rows(a, t):
    rem = (-a.shape[0]) % t
    return a if rem == 0 else jnp.pad(a, ((0, rem), (0, 0)))


# ----------------------------------------------------------------------------- #
# In-kernel math helpers
# ----------------------------------------------------------------------------- #

def _softshrink(v, lam):
    # PyTorch F.softshrink semantics
    return jnp.where(v > lam, v - lam, jnp.where(v < -lam, v + lam, 0.0))


def _erf_abs_poly(ax):
    # erf(ax) for ax >= 0 (Abramowitz & Stegun 7.1.26, |err| < 1.5e-7).
    # Only FMAs + EUP exp + approx-reciprocal -> co-issues under the MXU work.
    a1, a2, a3, a4, a5 = 0.254829592, -0.284496736, 1.421413741, -1.453152027, 1.061405429
    p = 0.3275911
    t = pl.reciprocal(1.0 + p * ax, approx=True)
    poly = ((((a5 * t + a4) * t + a3) * t + a2) * t + a1) * t
    return 1.0 - poly * jnp.exp(-ax * ax)


def _gelu_exact(x):
    # Exact-erf GELU (PyTorch nn.GELU default), select-free:
    #   x * erf(x/sqrt2) == |x| * erf(|x|/sqrt2)  =>  gelu = 0.5*(x + |x|*erf(|x|/sqrt2))
    # TODO(synk): on v6e/v7x the polynomial could run in bf16 (native VPU/EUP);
    # kept f32 for v5e portability and because hid=128 keeps it small here.
    ax = jnp.abs(x)
    return 0.5 * (x + ax * _erf_abs_poly(ax * _SQRT1_2))


# ----------------------------------------------------------------------------- #
# Pallas kernels
# ----------------------------------------------------------------------------- #

def _afno_freq_kernel(x_ref, w1_ref, b1_ref, w2_ref, b2_ref, o_ref, *, lam):
    # Block-diagonal complex 2-layer MLP in Fourier space (AFNO2D core), in
    # real-stacked form: input/output are packed [real | imag], each complex
    # layer is ONE dense dot with W = [[wr, wi], [-wi, wr]] (zero-padded to 128
    # lanes).  Input arrives as bf16 (MXU operand dtype); accumulate in f32.
    h = jnp.maximum(
        jnp.dot(x_ref[...], w1_ref[...], preferred_element_type=jnp.float32) + b1_ref[...],
        0.0)
    o = (jnp.dot(h.astype(jnp.bfloat16), w2_ref[...],
                 preferred_element_type=jnp.float32) + b2_ref[...])
    o_ref[...] = _softshrink(o, lam)


def _block_tail_kernel(x_ref, f_ref, g1_ref, b1_ref, g2_ref, b2_ref,
                       w1_ref, bb1_ref, w2_ref, bb2_ref, o_ref, *, inv_c):
    # Fused: LN1 recompute (y1), AFNO internal residual (+y1), block residual
    # (+x), LayerNorm2, MLP (Linear -> exact GELU -> Linear), final residual.
    # Channels >= C of the padded streams are exact zeros and LN gamma/beta,
    # weight columns and biases are zero-padded there, so:
    #   * sums over the 128 padded lanes equal sums over the real C channels
    #     (LN uses sum*inv_c and E[x^2]-mu^2), and
    #   * padded channels stay exactly zero through every op.
    x = x_ref[...]
    mu1 = jnp.sum(x, axis=-1, keepdims=True) * inv_c
    var1 = jnp.sum(x * x, axis=-1, keepdims=True) * inv_c - mu1 * mu1
    y1 = (x - mu1) * jax.lax.rsqrt(var1 + 1e-5) * g1_ref[...] + b1_ref[...]

    x2 = x + y1 + f_ref[...]                      # residual adds in f32

    mu2 = jnp.sum(x2, axis=-1, keepdims=True) * inv_c
    var2 = jnp.sum(x2 * x2, axis=-1, keepdims=True) * inv_c - mu2 * mu2
    z = (x2 - mu2) * jax.lax.rsqrt(var2 + 1e-5) * g2_ref[...] + b2_ref[...]

    h = (jnp.dot(z.astype(jnp.bfloat16), w1_ref[...],
                 preferred_element_type=jnp.float32) + bb1_ref[...])
    h = _gelu_exact(h)
    o_ref[...] = x2 + (jnp.dot(h.astype(jnp.bfloat16), w2_ref[...],
                               preferred_element_type=jnp.float32) + bb2_ref[...])


# ----------------------------------------------------------------------------- #
# Pallas wrappers
# ----------------------------------------------------------------------------- #

def afno_freq(x_ri, w1, b1, w2, b2, lam):
    n0, c2p = x_ri.shape        # packed [real | imag], zero-padded to 128 lanes, bf16
    fhp = w1.shape[1]
    fwp = w2.shape[1]
    t = _row_tile(n0, max(c2p, fhp, fwp), multiple=16)   # bf16 rows: 16-sublane tile
    x_ri = _pad_rows(x_ri, t)
    n = x_ri.shape[0]
    out = pl.pallas_call(
        functools.partial(_afno_freq_kernel, lam=lam),
        out_shape=jax.ShapeDtypeStruct((n, fwp), jnp.float32),
        grid=(n // t,),
        in_specs=[
            pl.BlockSpec((t, c2p), lambda i: (i, 0)),
            pl.BlockSpec((c2p, fhp), lambda i: (0, 0)),   # grid-invariant weights
            pl.BlockSpec((1, fhp), lambda i: (0, 0)),
            pl.BlockSpec((fhp, fwp), lambda i: (0, 0)),
            pl.BlockSpec((1, fwp), lambda i: (0, 0)),
        ],
        out_specs=pl.BlockSpec((t, fwp), lambda i: (i, 0)),
        compiler_params=_PARAMS,
    )(x_ri, w1, b1, w2, b2)
    return out[:n0]


def block_tail(x, filt, p, c):
    n0, cp = x.shape            # channel-padded (128-lane) f32 token streams
    hidp = p["fc1_w"].shape[1]
    t = _row_tile(n0, max(cp, hidp), multiple=8)
    x = _pad_rows(x, t)
    filt = _pad_rows(filt, t)
    n = x.shape[0]
    tok = pl.BlockSpec((t, cp), lambda i: (i, 0))
    vcp = pl.BlockSpec((1, cp), lambda i: (0, 0))
    out = pl.pallas_call(
        functools.partial(_block_tail_kernel, inv_c=1.0 / c),
        out_shape=jax.ShapeDtypeStruct((n, cp), jnp.float32),
        grid=(n // t,),
        in_specs=[tok, tok,
                  vcp, vcp, vcp, vcp,
                  pl.BlockSpec((cp, hidp), lambda i: (0, 0)),
                  pl.BlockSpec((1, hidp), lambda i: (0, 0)),
                  pl.BlockSpec((hidp, cp), lambda i: (0, 0)),
                  vcp],
        out_specs=tok,
        compiler_params=_PARAMS,
    )(x, filt, p["ln1_g"], p["ln1_b"], p["ln2_g"], p["ln2_b"],
      p["fc1_w"], p["fc1_b"], p["fc2_w"], p["fc2_b"])
    return out[:n0]


# ----------------------------------------------------------------------------- #
# Parameter construction (one-time transforms: fold, block-diag, stack, pad, bf16)
# ----------------------------------------------------------------------------- #

def _block_diag_dense(w):
    # (num_blocks, bs, bs) -> dense (num_blocks*bs, num_blocks*bs)
    return block_diag(*[w[i] for i in range(w.shape[0])]).astype(jnp.float32)


def _stack_complex(wr, wi):
    # [xr | xi] @ [[wr, wi], [-wi, wr]] == [xr@wr - xi@wi | xr@wi + xi@wr]
    top = jnp.concatenate([wr, wi], axis=1)
    bot = jnp.concatenate([-wi, wr], axis=1)
    return jnp.concatenate([top, bot], axis=0)


def _pad2(a, rows, cols):
    return jnp.pad(a, ((0, rows - a.shape[0]), (0, cols - a.shape[1])))


def _pad_vec(v, cols):
    return jnp.pad(v, (0, cols - v.shape[0])).reshape(1, cols).astype(jnp.float32)


def init_params(key, c_in, encoded_channels, embed_dim, depth,
                num_blocks=8, mlp_ratio=4):
    assert embed_dim % num_blocks == 0
    # TODO(synk): dense block-diagonal materialization is only used while
    # embed_dim <= 128; beyond that switch afno_freq to a per-block layout.
    assert embed_dim <= 128
    c = embed_dim
    bs = c // num_blocks
    cp = _round_up(c, LANE)       # lane-dense padded channel width
    c2 = 2 * c                    # packed [real | imag] width in Fourier space
    c2p = _round_up(c2, LANE)
    hid = mlp_ratio * c
    hidp = _round_up(hid, LANE)
    c_lat = encoded_channels // 2

    ks = iter(jax.random.split(key, 8 + depth * 8))
    nrm = lambda shape, s: (s * jax.random.normal(next(ks), shape)).astype(jnp.float32)

    # synthetic autoencoder encoder (external dependency of the module) + proj
    enc_w = nrm((c_in, encoded_channels), 0.5)
    enc_b = nrm((encoded_channels,), 0.1)
    proj_w = nrm((c_lat, embed_dim), 0.5)
    proj_b = nrm((embed_dim,), 0.1)

    params = {
        # encoder ("mean" half) folded with the 1x1 proj into ONE projection:
        #   x @ (enc_w[:, :c_lat] @ proj_w) + (enc_b[:c_lat] @ proj_w + proj_b)
        # K=c_in matmul stays in plain XLA (a standalone Pallas call was pure
        # launch overhead at K=4) and fuses with the channel pad / block-0 prep.
        "embed_w": (enc_w[:, :c_lat] @ proj_w).astype(jnp.float32),
        "embed_b": (enc_b[:c_lat] @ proj_w + proj_b).astype(jnp.float32),
        "blocks": [],
    }

    # LN gamma padded with ZEROS beyond C so padded channels stay exactly zero
    ones_pad = _pad_vec(jnp.ones((c,), jnp.float32), cp)
    zeros_pad = jnp.zeros((1, cp), jnp.float32)

    for _ in range(depth):
        # AFNO2D block-diagonal complex weights, scale 0.02 as in the reference
        w1 = nrm((2, num_blocks, bs, bs), 0.02)
        b1 = nrm((2, num_blocks, bs), 0.02)
        w2 = nrm((2, num_blocks, bs, bs), 0.02)
        b2 = nrm((2, num_blocks, bs), 0.02)
        fw1 = _stack_complex(_block_diag_dense(w1[0]), _block_diag_dense(w1[1]))  # (2C, 2C)
        fw2 = _stack_complex(_block_diag_dense(w2[0]), _block_diag_dense(w2[1]))  # (2C, 2C)
        blk = {
            "ln1_g": ones_pad, "ln1_b": zeros_pad,
            # real-stacked complex weights, zero-padded lane-dense, prepacked bf16
            "fw1": _pad2(fw1, c2p, c2p).astype(jnp.bfloat16),
            "fb1": _pad_vec(jnp.concatenate([b1[0].reshape(-1), b1[1].reshape(-1)]), c2p),
            "fw2": _pad2(fw2, c2p, c2p).astype(jnp.bfloat16),
            "fb2": _pad_vec(jnp.concatenate([b2[0].reshape(-1), b2[1].reshape(-1)]), c2p),
            "ln2_g": ones_pad, "ln2_b": zeros_pad,
            "fc1_w": _pad2(nrm((c, hid), 0.1), cp, hidp).astype(jnp.bfloat16),
            "fc1_b": _pad_vec(nrm((hid,), 0.02), hidp),
            "fc2_w": _pad2(nrm((hid, c), 0.1), hidp, cp).astype(jnp.bfloat16),
            "fc2_b": _pad_vec(nrm((c,), 0.02), cp),
        }
        params["blocks"].append(blk)
    return params


# ----------------------------------------------------------------------------- #
# Forward (hot path in Pallas; FFT + glue in plain JAX)
# ----------------------------------------------------------------------------- #

def afno_block_apply(x_pad, p, b, h, w, c):
    """One AFNOBlock2d on a (N, CP) channel-padded token stream (channels >= c
    are exact zeros): LN -> AFNO Fourier filter -> residual -> LN -> MLP -> residual."""
    n, cp = x_pad.shape
    x32 = x_pad[:, :c]

    # LayerNorm1 in plain jnp (fuses with the rfft2 input prep under jit); the
    # same LN1 is recomputed inside block_tail, so y1 never round-trips to HBM.
    mu = jnp.mean(x32, axis=-1, keepdims=True)
    var = jnp.mean(jnp.square(x32 - mu), axis=-1, keepdims=True)
    y1 = (x32 - mu) * jax.lax.rsqrt(var + 1e-5) * p["ln1_g"][0, :c] + p["ln1_b"][0, :c]

    # TODO(synk): rfft2/irfft2 have no Pallas TPU primitive; computed with jnp.fft
    # (norm="ortho", axes=(H, W)), matching torch.fft semantics.
    xf = jnp.fft.rfft2(y1.reshape(b, h, w, c), axes=(1, 2), norm="ortho")
    wf = w // 2 + 1
    c2p = p["fw1"].shape[0]
    x_ri = jnp.concatenate([jnp.real(xf), jnp.imag(xf)], axis=-1).reshape(-1, 2 * c)
    # bf16 token stream (MXU operand dtype), zero-padded lane-dense
    x_ri = jnp.pad(x_ri, ((0, 0), (0, c2p - 2 * c))).astype(jnp.bfloat16)

    # Block-diagonal complex MLP + ReLU + softshrink in Fourier space (Pallas)
    f_ri = afno_freq(x_ri, p["fw1"], p["fb1"], p["fw2"], p["fb2"], SPARSITY_THRESHOLD)
    f_ri = f_ri[:, :2 * c].reshape(b, h, wf, 2 * c)
    ff = jax.lax.complex(f_ri[..., :c], f_ri[..., c:])
    filt = jnp.fft.irfft2(ff, s=(h, w), axes=(1, 2), norm="ortho").reshape(n, c)
    filt_pad = jnp.pad(filt, ((0, 0), (0, cp - c))).astype(jnp.float32)

    # LN1-recompute + residuals + LayerNorm2 + MLP (exact GELU) + residual (Pallas)
    return block_tail(x_pad, filt_pad, p, c)


def fusion_block2d_forward(xs):
    """FusionBlock2d.forward for the configuration used here: size_ratios=(1,)
    -> every scale is nn.Identity; afno_fusion=False -> sum(x) over the sources.
    # TODO(synk): ConvTranspose2d upsampling (size_ratio > 1) and the
    # afno_fusion Linear+AFNO+Linear path are not exercised in this config.
    """
    out = xs[0]
    for xx in xs[1:]:
        out = out + xx
    return out


def afno_conditioner_forward(inputs, params, embed_dim):
    """Forward for a single (x, t_relative) input, x in NCHW.
    t_relative is unused by the base forward (faithful to the PyTorch code).
    Returns NCHW output of shape (B, embed_dim, H, W)."""
    x, _t_relative = inputs[0]
    b, c_in, h, w = x.shape
    cp = _round_up(embed_dim, LANE)

    # autoencoder.encode(x)[0] ("mean" half) + proj 1x1 conv, folded; per-pixel
    # matmul on channels-last tokens in plain XLA (fuses with the channel pad).
    x_tok = jnp.transpose(x, (0, 2, 3, 1)).reshape(-1, c_in).astype(jnp.float32)
    z = x_tok @ params["embed_w"] + params["embed_b"]          # (N, embed_dim) f32
    z = jnp.pad(z, ((0, 0), (0, cp - embed_dim)))              # lane-dense padded stream

    # analysis: stack of AFNOBlock2d operating channels-last
    for blk in params["blocks"]:
        z = afno_block_apply(z, blk, b, h, w, embed_dim)

    # FusionBlock2d (single source, size_ratio 1, no afno fusion) == identity
    z = fusion_block2d_forward([z])

    # drop channel padding; final permute(0, 3, 1, 2) as in the PyTorch module
    z = z[:, :embed_dim].reshape(b, h, w, embed_dim)
    return jnp.transpose(z, (0, 3, 1, 2))


# ----------------------------------------------------------------------------- #
# Main
# ----------------------------------------------------------------------------- #

if __name__ == "__main__":
    key = jax.random.PRNGKey(0)
    kx, kt, kp = jax.random.split(key, 3)

    # Small shapes consistent with the module
    B, C_IN, H, W = 2, 4, 16, 16
    ENCODED_CHANNELS = 8            # synthetic autoencoder (latent = 4 channels)
    EMBED_DIM = 32                  # embed_dim (divisible by AFNO num_blocks=8)
    DEPTH = 2                       # analysis_depth

    x = jax.random.normal(kx, (B, C_IN, H, W), jnp.float32)
    t_relative = jax.random.normal(kt, (B,), jnp.float32)   # unused in forward

    params = init_params(kp, C_IN, ENCODED_CHANNELS, EMBED_DIM, DEPTH)

    @jax.jit
    def run(xx, tt, pp):
        return afno_conditioner_forward([(xx, tt)], pp, EMBED_DIM)

    out = jax.block_until_ready(run(x, t_relative, params))

    assert out.shape == (B, EMBED_DIM, H, W), out.shape
    assert out.dtype == jnp.float32
    assert bool(jnp.all(jnp.isfinite(out)))
    print("KERNEL_OK")
</pallas_src>

<mosaic_0001>
module attributes {stable_mosaic.version = 11 : i64} {
  func.func @_afno_freq_kernel(%arg0: i32, %arg1: memref<288x128xbf16, #tpu.memory_space<vmem>>, %arg2: memref<128x128xbf16, #tpu.memory_space<vmem>>, %arg3: memref<1x128xf32, #tpu.memory_space<vmem>>, %arg4: memref<128x128xbf16, #tpu.memory_space<vmem>>, %arg5: memref<1x128xf32, #tpu.memory_space<vmem>>, %arg6: memref<288x128xf32, #tpu.memory_space<vmem>>) attributes {dimension_semantics = [#tpu.dimension_semantics<parallel>], iteration_bounds = array<i64: 1>, scalar_prefetch = 0 : i64, scratch_operands = 0 : i64, tpu.core_type = #tpu.core_type<tc>, window_params = [{transform_indices = @transform_0, window_bounds = array<i64: 288, 128>}, {pipeline_mode = #tpu.pipeline_mode<synchronous>, transform_indices = @transform_1, window_bounds = array<i64: 128, 128>}, {pipeline_mode = #tpu.pipeline_mode<synchronous>, transform_indices = @transform_2, window_bounds = array<i64: 1, 128>}, {pipeline_mode = #tpu.pipeline_mode<synchronous>, transform_indices = @transform_3, window_bounds = array<i64: 128, 128>}, {pipeline_mode = #tpu.pipeline_mode<synchronous>, transform_indices = @transform_4, window_bounds = array<i64: 1, 128>}, {transform_indices = @transform_5, window_bounds = array<i64: 288, 128>}]} {
    %c0 = arith.constant 0 : index
    %c0_0 = arith.constant 0 : index
    %0 = vector.load %arg1[%c0, %c0_0] : memref<288x128xbf16, #tpu.memory_space<vmem>>, vector<288x128xbf16>
    %c0_1 = arith.constant 0 : index
    %c0_2 = arith.constant 0 : index
    %1 = vector.load %arg2[%c0_1, %c0_2] : memref<128x128xbf16, #tpu.memory_space<vmem>>, vector<128x128xbf16>
    %cst = arith.constant dense<0.000000e+00> : vector<288x128xf32>
    %2 = tpu.matmul %0, %1, %cst {dimension_numbers = #tpu.dot_dimension_numbers<[1], [0], [0], [1], [0, 0, 1, 1], [], []>} : vector<288x128xbf16>, vector<128x128xbf16>, vector<288x128xf32> -> vector<288x128xf32>
    %c0_3 = arith.constant 0 : index
    %c0_4 = arith.constant 0 : index
    %3 = vector.load %arg3[%c0_3, %c0_4] : memref<1x128xf32, #tpu.memory_space<vmem>>, vector<1x128xf32>
    %4 = vector.broadcast %3 : vector<1x128xf32> to vector<288x128xf32>
    %5 = arith.addf %2, %4 : vector<288x128xf32>
    %cst_5 = arith.constant 0.000000e+00 : f32
    %6 = vector.broadcast %cst_5 : f32 to vector<288x128xf32>
    %7 = arith.maximumf %5, %6 : vector<288x128xf32>
    %8 = arith.truncf %7 : vector<288x128xf32> to vector<288x128xbf16>
    %c0_6 = arith.constant 0 : index
    %c0_7 = arith.constant 0 : index
    %9 = vector.load %arg4[%c0_6, %c0_7] : memref<128x128xbf16, #tpu.memory_space<vmem>>, vector<128x128xbf16>
    %cst_8 = arith.constant dense<0.000000e+00> : vector<288x128xf32>
    %10 = tpu.matmul %8, %9, %cst_8 {dimension_numbers = #tpu.dot_dimension_numbers<[1], [0], [0], [1], [0, 0, 1, 1], [], []>} : vector<288x128xbf16>, vector<128x128xbf16>, vector<288x128xf32> -> vector<288x128xf32>
    %c0_9 = arith.constant 0 : index
    %c0_10 = arith.constant 0 : index
    %11 = vector.load %arg5[%c0_9, %c0_10] : memref<1x128xf32, #tpu.memory_space<vmem>>, vector<1x128xf32>
    %12 = vector.broadcast %11 : vector<1x128xf32> to vector<288x128xf32>
    %13 = arith.addf %10, %12 : vector<288x128xf32>
    %cst_11 = arith.constant 0.00999999977 : f32
    %14 = vector.broadcast %cst_11 : f32 to vector<288x128xf32>
    %15 = arith.cmpf ogt, %13, %14 : vector<288x128xf32>
    %cst_12 = arith.constant 0.00999999977 : f32
    %16 = vector.broadcast %cst_12 : f32 to vector<288x128xf32>
    %17 = arith.subf %13, %16 : vector<288x128xf32>
    %cst_13 = arith.constant -0.00999999977 : f32
    %18 = vector.broadcast %cst_13 : f32 to vector<288x128xf32>
    %19 = arith.cmpf olt, %13, %18 : vector<288x128xf32>
    %cst_14 = arith.constant 0.00999999977 : f32
    %20 = vector.broadcast %cst_14 : f32 to vector<288x128xf32>
    %21 = arith.addf %13, %20 : vector<288x128xf32>
    %cst_15 = arith.constant 0.000000e+00 : f32
    %22 = vector.broadcast %cst_15 : f32 to vector<288x128xf32>
    %23 = arith.select %19, %21, %22 : vector<288x128xi1>, vector<288x128xf32>
    %24 = arith.select %15, %17, %23 : vector<288x128xi1>, vector<288x128xf32>
    %c0_16 = arith.constant 0 : index
    %c0_17 = arith.constant 0 : index
    %25 = vector.load %arg6[%c0_16, %c0_17] : memref<288x128xf32, #tpu.memory_space<vmem>>, vector<288x128xf32>
    tpu.vector_store %arg6[%c0_16, %c0_17], %24 {strides = array<i32>} : memref<288x128xf32, #tpu.memory_space<vmem>>, vector<288x128xf32>,
    return
  }
  func.func @transform_0(%arg0: i32) -> (i32, i32) {
    %c0_i32 = arith.constant 0 : i32
    %c0_i32_0 = arith.constant 0 : i32
    return %arg0, %c0_i32 : i32, i32
  }
  func.func @transform_1(%arg0: i32) -> (i32, i32) {
    %c0_i32 = arith.constant 0 : i32
    %c0_i32_0 = arith.constant 0 : i32
    %c0_i32_1 = arith.constant 0 : i32
    return %c0_i32, %c0_i32_0 : i32, i32
  }
  func.func @transform_2(%arg0: i32) -> (i32, i32) {
    %c0_i32 = arith.constant 0 : i32
    %c0_i32_0 = arith.constant 0 : i32
    %c0_i32_1 = arith.constant 0 : i32
    return %c0_i32, %c0_i32_0 : i32, i32
  }
  func.func @transform_3(%arg0: i32) -> (i32, i32) {
    %c0_i32 = arith.constant 0 : i32
    %c0_i32_0 = arith.constant 0 : i32
    %c0_i32_1 = arith.constant 0 : i32
    return %c0_i32, %c0_i32_0 : i32, i32
  }
  func.func @transform_4(%arg0: i32) -> (i32, i32) {
    %c0_i32 = arith.constant 0 : i32
    %c0_i32_0 = arith.constant 0 : i32
    %c0_i32_1 = arith.constant 0 : i32
    return %c0_i32, %c0_i32_0 : i32, i32
  }
  func.func @transform_5(%arg0: i32) -> (i32, i32) {
    %c0_i32 = arith.constant 0 : i32
    %c0_i32_0 = arith.constant 0 : i32
    return %arg0, %c0_i32 : i32, i32
  }
}

module attributes {stable_mosaic.version = 11 : i64} {
  func.func @_block_tail_kernel(%arg0: i32, %arg1: memref<512x128xf32, #tpu.memory_space<vmem>>, %arg2: memref<512x128xf32, #tpu.memory_space<vmem>>, %arg3: memref<1x128xf32, #tpu.memory_space<vmem>>, %arg4: memref<1x128xf32, #tpu.memory_space<vmem>>, %arg5: memref<1x128xf32, #tpu.memory_space<vmem>>, %arg6: memref<1x128xf32, #tpu.memory_space<vmem>>, %arg7: memref<128x128xbf16, #tpu.memory_space<vmem>>, %arg8: memref<1x128xf32, #tpu.memory_space<vmem>>, %arg9: memref<128x128xbf16, #tpu.memory_space<vmem>>, %arg10: memref<1x128xf32, #tpu.memory_space<vmem>>, %arg11: memref<512x128xf32, #tpu.memory_space<vmem>>) attributes {dimension_semantics = [#tpu.dimension_semantics<parallel>], iteration_bounds = array<i64: 1>, scalar_prefetch = 0 : i64, scratch_operands = 0 : i64, tpu.core_type = #tpu.core_type<tc>, window_params = [{transform_indices = @transform_0, window_bounds = array<i64: 512, 128>}, {transform_indices = @transform_1, window_bounds = array<i64: 512, 128>}, {pipeline_mode = #tpu.pipeline_mode<synchronous>, transform_indices = @transform_2, window_bounds = array<i64: 1, 128>}, {pipeline_mode = #tpu.pipeline_mode<synchronous>, transform_indices = @transform_3, window_bounds = array<i64: 1, 128>}, {pipeline_mode = #tpu.pipeline_mode<synchronous>, transform_indices = @transform_4, window_bounds = array<i64: 1, 128>}, {pipeline_mode = #tpu.pipeline_mode<synchronous>, transform_indices = @transform_5, window_bounds = array<i64: 1, 128>}, {pipeline_mode = #tpu.pipeline_mode<synchronous>, transform_indices = @transform_6, window_bounds = array<i64: 128, 128>}, {pipeline_mode = #tpu.pipeline_mode<synchronous>, transform_indices = @transform_7, window_bounds = array<i64: 1, 128>}, {pipeline_mode = #tpu.pipeline_mode<synchronous>, transform_indices = @transform_8, window_bounds = array<i64: 128, 128>}, {pipeline_mode = #tpu.pipeline_mode<synchronous>, transform_indices = @transform_9, window_bounds = array<i64: 1, 128>}, {transform_indices = @transform_10, window_bounds = array<i64: 512, 128>}]} {
    %c0 = arith.constant 0 : index
    %c0_0 = arith.constant 0 : index
    %0 = vector.load %arg1[%c0, %c0_0] : memref<512x128xf32, #tpu.memory_space<vmem>>, vector<512x128xf32>
    %cst = arith.constant dense<0.000000e+00> : vector<512xf32>
    %1 = vector.multi_reduction <add>, %0, %cst [1] : vector<512x128xf32> to vector<512xf32>
    %2 = vector.shape_cast %1 : vector<512xf32> to vector<512x1xf32>
    %cst_1 = arith.constant 3.125000e-02 : f32
    %3 = vector.broadcast %cst_1 : f32 to vector<512x1xf32>
    %4 = arith.mulf %2, %3 : vector<512x1xf32>
    %5 = arith.mulf %0, %0 : vector<512x128xf32>
    %cst_2 = arith.constant dense<0.000000e+00> : vector<512xf32>
    %6 = vector.multi_reduction <add>, %5, %cst_2 [1] : vector<512x128xf32> to vector<512xf32>
    %7 = vector.shape_cast %6 : vector<512xf32> to vector<512x1xf32>
    %cst_3 = arith.constant 3.125000e-02 : f32
    %8 = vector.broadcast %cst_3 : f32 to vector<512x1xf32>
    %9 = arith.mulf %7, %8 : vector<512x1xf32>
    %10 = arith.mulf %4, %4 : vector<512x1xf32>
    %11 = arith.subf %9, %10 : vector<512x1xf32>
    %12 = vector.broadcast %4 : vector<512x1xf32> to vector<512x128xf32>
    %13 = arith.subf %0, %12 : vector<512x128xf32>
    %cst_4 = arith.constant 9.99999974E-6 : f32
    %14 = vector.broadcast %cst_4 : f32 to vector<512x1xf32>
    %15 = arith.addf %11, %14 : vector<512x1xf32>
    %16 = math.rsqrt %15 : vector<512x1xf32>
    %17 = vector.broadcast %16 : vector<512x1xf32> to vector<512x128xf32>
    %18 = arith.mulf %13, %17 : vector<512x128xf32>
    %c0_5 = arith.constant 0 : index
    %c0_6 = arith.constant 0 : index
    %19 = vector.load %arg3[%c0_5, %c0_6] : memref<1x128xf32, #tpu.memory_space<vmem>>, vector<1x128xf32>
    %20 = vector.broadcast %19 : vector<1x128xf32> to vector<512x128xf32>
    %21 = arith.mulf %18, %20 : vector<512x128xf32>
    %c0_7 = arith.constant 0 : index
    %c0_8 = arith.constant 0 : index
    %22 = vector.load %arg4[%c0_7, %c0_8] : memref<1x128xf32, #tpu.memory_space<vmem>>, vector<1x128xf32>
    %23 = vector.broadcast %22 : vector<1x128xf32> to vector<512x128xf32>
    %24 = arith.addf %21, %23 : vector<512x128xf32>
    %25 = arith.addf %0, %24 : vector<512x128xf32>
    %c0_9 = arith.constant 0 : index
    %c0_10 = arith.constant 0 : index
    %26 = vector.load %arg2[%c0_9, %c0_10] : memref<512x128xf32, #tpu.memory_space<vmem>>, vector<512x128xf32>
    %27 = arith.addf %25, %26 : vector<512x128xf32>
    %cst_11 = arith.constant dense<0.000000e+00> : vector<512xf32>
    %28 = vector.multi_reduction <add>, %27, %cst_11 [1] : vector<512x128xf32> to vector<512xf32>
    %29 = vector.shape_cast %28 : vector<512xf32> to vector<512x1xf32>
    %cst_12 = arith.constant 3.125000e-02 : f32
    %30 = vector.broadcast %cst_12 : f32 to vector<512x1xf32>
    %31 = arith.mulf %29, %30 : vector<512x1xf32>
    %32 = arith.mulf %27, %27 : vector<512x128xf32>
    %cst_13 = arith.constant dense<0.000000e+00> : vector<512xf32>
    %33 = vector.multi_reduction <add>, %32, %cst_13 [1] : vector<512x128xf32> to vector<512xf32>
    %34 = vector.shape_cast %33 : vector<512xf32> to vector<512x1xf32>
    %cst_14 = arith.constant 3.125000e-02 : f32
    %35 = vector.broadcast %cst_14 : f32 to vector<512x1xf32>
    %36 = arith.mulf %34, %35 : vector<512x1xf32>
    %37 = arith.mulf %31, %31 : vector<512x1xf32>
    %38 = arith.subf %36, %37 : vector<512x1xf32>
    %39 = vector.broadcast %31 : vector<512x1xf32> to vector<512x128xf32>
    %40 = arith.subf %27, %39 : vector<512x128xf32>
    %cst_15 = arith.constant 9.99999974E-6 : f32
    %41 = vector.broadcast %cst_15 : f32 to vector<512x1xf32>
    %42 = arith.addf %38, %41 : vector<512x1xf32>
    %43 = math.rsqrt %42 : vector<512x1xf32>
    %44 = vector.broadcast %43 : vector<512x1xf32> to vector<512x128xf32>
    %45 = arith.mulf %40, %44 : vector<512x128xf32>
    %c0_16 = arith.constant 0 : index
    %c0_17 = arith.constant 0 : index
    %46 = vector.load %arg5[%c0_16, %c0_17] : memref<1x128xf32, #tpu.memory_space<vmem>>, vector<1x128xf32>
    %47 = vector.broadcast %46 : vector<1x128xf32> to vector<512x128xf32>
    %48 = arith.mulf %45, %47 : vector<512x128xf32>
    %c0_18 = arith.constant 0 : index
    %c0_19 = arith.constant 0 : index
    %49 = vector.load %arg6[%c0_18, %c0_19] : memref<1x128xf32, #tpu.memory_space<vmem>>, vector<1x128xf32>
    %50 = vector.broadcast %49 : vector<1x128xf32> to vector<512x128xf32>
    %51 = arith.addf %48, %50 : vector<512x128xf32>
    %52 = arith.truncf %51 : vector<512x128xf32> to vector<512x128xbf16>
    %c0_20 = arith.constant 0 : index
    %c0_21 = arith.constant 0 : index
    %53 = vector.load %arg7[%c0_20, %c0_21] : memref<128x128xbf16, #tpu.memory_space<vmem>>, vector<128x128xbf16>
    %cst_22 = arith.constant dense<0.000000e+00> : vector<512x128xf32>
    %54 = tpu.matmul %52, %53, %cst_22 {dimension_numbers = #tpu.dot_dimension_numbers<[1], [0], [0], [1], [0, 0, 1, 1], [], []>} : vector<512x128xbf16>, vector<128x128xbf16>, vector<512x128xf32> -> vector<512x128xf32>
    %c0_23 = arith.constant 0 : index
    %c0_24 = arith.constant 0 : index
    %55 = vector.load %arg8[%c0_23, %c0_24] : memref<1x128xf32, #tpu.memory_space<vmem>>, vector<1x128xf32>
    %56 = vector.broadcast %55 : vector<1x128xf32> to vector<512x128xf32>
    %57 = arith.addf %54, %56 : vector<512x128xf32>
    %58 = math.absf %57 : vector<512x128xf32>
    %cst_25 = arith.constant 0.707106769 : f32
    %59 = vector.broadcast %cst_25 : f32 to vector<512x128xf32>
    %60 = arith.mulf %58, %59 : vector<512x128xf32>
    %cst_26 = arith.constant 0.327591091 : f32
    %61 = vector.broadcast %cst_26 : f32 to vector<512x128xf32>
    %62 = arith.mulf %61, %60 : vector<512x128xf32>
    %cst_27 = arith.constant 1.000000e+00 : f32
    %63 = vector.broadcast %cst_27 : f32 to vector<512x128xf32>
    %64 = arith.addf %63, %62 : vector<512x128xf32>
    %65 = tpu.reciprocal %64 {approx = true} : vector<512x128xf32> -> vector<512x128xf32>
    %cst_28 = arith.constant 1.06140542 : f32
    %66 = vector.broadcast %cst_28 : f32 to vector<512x128xf32>
    %67 = arith.mulf %66, %65 : vector<512x128xf32>
    %cst_29 = arith.constant -1.45315206 : f32
    %68 = vector.broadcast %cst_29 : f32 to vector<512x128xf32>
    %69 = arith.addf %67, %68 : vector<512x128xf32>
    %70 = arith.mulf %69, %65 : vector<512x128xf32>
    %cst_30 = arith.constant 1.42141378 : f32
    %71 = vector.broadcast %cst_30 : f32 to vector<512x128xf32>
    %72 = arith.addf %70, %71 : vector<512x128xf32>
    %73 = arith.mulf %72, %65 : vector<512x128xf32>
    %cst_31 = arith.constant -0.284496725 : f32
    %74 = vector.broadcast %cst_31 : f32 to vector<512x128xf32>
    %75 = arith.addf %73, %74 : vector<512x128xf32>
    %76 = arith.mulf %75, %65 : vector<512x128xf32>
    %cst_32 = arith.constant 0.254829586 : f32
    %77 = vector.broadcast %cst_32 : f32 to vector<512x128xf32>
    %78 = arith.addf %76, %77 : vector<512x128xf32>
    %79 = arith.mulf %78, %65 : vector<512x128xf32>
    %cst_33 = arith.constant 0.000000e+00 : f32
    %80 = vector.broadcast %cst_33 : f32 to vector<512x128xf32>
    %81 = arith.subf %80, %60 : vector<512x128xf32>
    %82 = arith.mulf %81, %60 : vector<512x128xf32>
    %83 = math.exp %82 : vector<512x128xf32>
    %84 = arith.mulf %79, %83 : vector<512x128xf32>
    %cst_34 = arith.constant 1.000000e+00 : f32
    %85 = vector.broadcast %cst_34 : f32 to vector<512x128xf32>
    %86 = arith.subf %85, %84 : vector<512x128xf32>
    %87 = arith.mulf %58, %86 : vector<512x128xf32>
    %88 = arith.addf %57, %87 : vector<512x128xf32>
    %cst_35 = arith.constant 5.000000e-01 : f32
    %89 = vector.broadcast %cst_35 : f32 to vector<512x128xf32>
    %90 = arith.mulf %89, %88 : vector<512x128xf32>
    %91 = arith.truncf %90 : vector<512x128xf32> to vector<512x128xbf16>
    %c0_36 = arith.constant 0 : index
    %c0_37 = arith.constant 0 : index
    %92 = vector.load %arg9[%c0_36, %c0_37] : memref<128x128xbf16, #tpu.memory_space<vmem>>, vector<128x128xbf16>
    %cst_38 = arith.constant dense<0.000000e+00> : vector<512x128xf32>
    %93 = tpu.matmul %91, %92, %cst_38 {dimension_numbers = #tpu.dot_dimension_numbers<[1], [0], [0], [1], [0, 0, 1, 1], [], []>} : vector<512x128xbf16>, vector<128x128xbf16>, vector<512x128xf32> -> vector<512x128xf32>
    %c0_39 = arith.constant 0 : index
    %c0_40 = arith.constant 0 : index
    %94 = vector.load %arg10[%c0_39, %c0_40] : memref<1x128xf32, #tpu.memory_space<vmem>>, vector<1x128xf32>
    %95 = vector.broadcast %94 : vector<1x128xf32> to vector<512x128xf32>
    %96 = arith.addf %93, %95 : vector<512x128xf32>
    %97 = arith.addf %27, %96 : vector<512x128xf32>
    %c0_41 = arith.constant 0 : index
    %c0_42 = arith.constant 0 : index
    %98 = vector.load %arg11[%c0_41, %c0_42] : memref<512x128xf32, #tpu.memory_space<vmem>>, vector<512x128xf32>
    tpu.vector_store %arg11[%c0_41, %c0_42], %97 {strides = array<i32>} : memref<512x128xf32, #tpu.memory_space<vmem>>, vector<512x128xf32>,
    return
  }
  func.func @transform_0(%arg0: i32) -> (i32, i32) {
    %c0_i32 = arith.constant 0 : i32
    %c0_i32_0 = arith.constant 0 : i32
    return %arg0, %c0_i32 : i32, i32
  }
  func.func @transform_1(%arg0: i32) -> (i32, i32) {
    %c0_i32 = arith.constant 0 : i32
    %c0_i32_0 = arith.constant 0 : i32
    return %arg0, %c0_i32 : i32, i32
  }
  func.func @transform_2(%arg0: i32) -> (i32, i32) {
    %c0_i32 = arith.constant 0 : i32
    %c0_i32_0 = arith.constant 0 : i32
    %c0_i32_1 = arith.constant 0 : i32
    return %c0_i32, %c0_i32_0 : i32, i32
  }
  func.func @transform_3(%arg0: i32) -> (i32, i32) {
    %c0_i32 = arith.constant 0 : i32
    %c0_i32_0 = arith.constant 0 : i32
    %c0_i32_1 = arith.constant 0 : i32
    return %c0_i32, %c0_i32_0 : i32, i32
  }
  func.func @transform_4(%arg0: i32) -> (i32, i32) {
    %c0_i32 = arith.constant 0 : i32
    %c0_i32_0 = arith.constant 0 : i32
    %c0_i32_1 = arith.constant 0 : i32
    return %c0_i32, %c0_i32_0 : i32, i32
  }
  func.func @transform_5(%arg0: i32) -> (i32, i32) {
    %c0_i32 = arith.constant 0 : i32
    %c0_i32_0 = arith.constant 0 : i32
    %c0_i32_1 = arith.constant 0 : i32
    return %c0_i32, %c0_i32_0 : i32, i32
  }
  func.func @transform_6(%arg0: i32) -> (i32, i32) {
    %c0_i32 = arith.constant 0 : i32
    %c0_i32_0 = arith.constant 0 : i32
    %c0_i32_1 = arith.constant 0 : i32
    return %c0_i32, %c0_i32_0 : i32, i32
  }
  func.func @transform_7(%arg0: i32) -> (i32, i32) {
    %c0_i32 = arith.constant 0 : i32
    %c0_i32_0 = arith.constant 0 : i32
    %c0_i32_1 = arith.constant 0 : i32
    return %c0_i32, %c0_i32_0 : i32, i32
  }
  func.func @transform_8(%arg0: i32) -> (i32, i32) {
    %c0_i32 = arith.constant 0 : i32
    %c0_i32_0 = arith.constant 0 : i32
    %c0_i32_1 = arith.constant 0 : i32
    return %c0_i32, %c0_i32_0 : i32, i32
  }
  func.func @transform_9(%arg0: i32) -> (i32, i32) {
    %c0_i32 = arith.constant 0 : i32
    %c0_i32_0 = arith.constant 0 : i32
    %c0_i32_1 = arith.constant 0 : i32
    return %c0_i32, %c0_i32_0 : i32, i32
  }
  func.func @transform_10(%arg0: i32) -> (i32, i32) {
    %c0_i32 = arith.constant 0 : i32
    %c0_i32_0 = arith.constant 0 : i32
    return %arg0, %c0_i32 : i32, i32
  }
}

module attributes {stable_mosaic.version = 11 : i64} {
  func.func @_block_tail_kernel(%arg0: i32, %arg1: memref<512x128xf32, #tpu.memory_space<vmem>>, %arg2: memref<512x128xf32, #tpu.memory_space<vmem>>, %arg3: memref<1x128xf32, #tpu.memory_space<vmem>>, %arg4: memref<1x128xf32, #tpu.memory_space<vmem>>, %arg5: memref<1x128xf32, #tpu.memory_space<vmem>>, %arg6: memref<1x128xf32, #tpu.memory_space<vmem>>, %arg7: memref<128x128xbf16, #tpu.memory_space<vmem>>, %arg8: memref<1x128xf32, #tpu.memory_space<vmem>>, %arg9: memref<128x128xbf16, #tpu.memory_space<vmem>>, %arg10: memref<1x128xf32, #tpu.memory_space<vmem>>, %arg11: memref<512x128xf32, #tpu.memory_space<vmem>>) attributes {dimension_semantics = [#tpu.dimension_semantics<parallel>], iteration_bounds = array<i64: 1>, scalar_prefetch = 0 : i64, scratch_operands = 0 : i64, tpu.core_type = #tpu.core_type<tc>, window_params = [{transform_indices = @transform_0, window_bounds = array<i64: 512, 128>}, {transform_indices = @transform_1, window_bounds = array<i64: 512, 128>}, {pipeline_mode = #tpu.pipeline_mode<synchronous>, transform_indices = @transform_2, window_bounds = array<i64: 1, 128>}, {pipeline_mode = #tpu.pipeline_mode<synchronous>, transform_indices = @transform_3, window_bounds = array<i64: 1, 128>}, {pipeline_mode = #tpu.pipeline_mode<synchronous>, transform_indices = @transform_4, window_bounds = array<i64: 1, 128>}, {pipeline_mode = #tpu.pipeline_mode<synchronous>, transform_indices = @transform_5, window_bounds = array<i64: 1, 128>}, {pipeline_mode = #tpu.pipeline_mode<synchronous>, transform_indices = @transform_6, window_bounds = array<i64: 128, 128>}, {pipeline_mode = #tpu.pipeline_mode<synchronous>, transform_indices = @transform_7, window_bounds = array<i64: 1, 128>}, {pipeline_mode = #tpu.pipeline_mode<synchronous>, transform_indices = @transform_8, window_bounds = array<i64: 128, 128>}, {pipeline_mode = #tpu.pipeline_mode<synchronous>, transform_indices = @transform_9, window_bounds = array<i64: 1, 128>}, {transform_indices = @transform_10, window_bounds = array<i64: 512, 128>}]} {
    %c0 = arith.constant 0 : index
    %c0_0 = arith.constant 0 : index
    %0 = vector.load %arg1[%c0, %c0_0] : memref<512x128xf32, #tpu.memory_space<vmem>>, vector<512x128xf32>
    %cst = arith.constant dense<0.000000e+00> : vector<512xf32>
    %1 = vector.multi_reduction <add>, %0, %cst [1] : vector<512x128xf32> to vector<512xf32>
    %2 = vector.shape_cast %1 : vector<512xf32> to vector<512x1xf32>
    %cst_1 = arith.constant 3.125000e-02 : f32
    %3 = vector.broadcast %cst_1 : f32 to vector<512x1xf32>
    %4 = arith.mulf %2, %3 : vector<512x1xf32>
    %5 = arith.mulf %0, %0 : vector<512x128xf32>
    %cst_2 = arith.constant dense<0.000000e+00> : vector<512xf32>
    %6 = vector.multi_reduction <add>, %5, %cst_2 [1] : vector<512x128xf32> to vector<512xf32>
    %7 = vector.shape_cast %6 : vector<512xf32> to vector<512x1xf32>
    %cst_3 = arith.constant 3.125000e-02 : f32
    %8 = vector.broadcast %cst_3 : f32 to vector<512x1xf32>
    %9 = arith.mulf %7, %8 : vector<512x1xf32>
    %10 = arith.mulf %4, %4 : vector<512x1xf32>
    %11 = arith.subf %9, %10 : vector<512x1xf32>
    %12 = vector.broadcast %4 : vector<512x1xf32> to vector<512x128xf32>
    %13 = arith.subf %0, %12 : vector<512x128xf32>
    %cst_4 = arith.constant 9.99999974E-6 : f32
    %14 = vector.broadcast %cst_4 : f32 to vector<512x1xf32>
    %15 = arith.addf %11, %14 : vector<512x1xf32>
    %16 = math.rsqrt %15 : vector<512x1xf32>
    %17 = vector.broadcast %16 : vector<512x1xf32> to vector<512x128xf32>
    %18 = arith.mulf %13, %17 : vector<512x128xf32>
    %c0_5 = arith.constant 0 : index
    %c0_6 = arith.constant 0 : index
    %19 = vector.load %arg3[%c0_5, %c0_6] : memref<1x128xf32, #tpu.memory_space<vmem>>, vector<1x128xf32>
    %20 = vector.broadcast %19 : vector<1x128xf32> to vector<512x128xf32>
    %21 = arith.mulf %18, %20 : vector<512x128xf32>
    %c0_7 = arith.constant 0 : index
    %c0_8 = arith.constant 0 : index
    %22 = vector.load %arg4[%c0_7, %c0_8] : memref<1x128xf32, #tpu.memory_space<vmem>>, vector<1x128xf32>
    %23 = vector.broadcast %22 : vector<1x128xf32> to vector<512x128xf32>
    %24 = arith.addf %21, %23 : vector<512x128xf32>
    %25 = arith.addf %0, %24 : vector<512x128xf32>
    %c0_9 = arith.constant 0 : index
    %c0_10 = arith.constant 0 : index
    %26 = vector.load %arg2[%c0_9, %c0_10] : memref<512x128xf32, #tpu.memory_space<vmem>>, vector<512x128xf32>
    %27 = arith.addf %25, %26 : vector<512x128xf32>
    %cst_11 = arith.constant dense<0.000000e+00> : vector<512xf32>
    %28 = vector.multi_reduction <add>, %27, %cst_11 [1] : vector<512x128xf32> to vector<512xf32>
    %29 = vector.shape_cast %28 : vector<512xf32> to vector<512x1xf32>
    %cst_12 = arith.constant 3.125000e-02 : f32
    %30 = vector.broadcast %cst_12 : f32 to vector<512x1xf32>
    %31 = arith.mulf %29, %30 : vector<512x1xf32>
    %32 = arith.mulf %27, %27 : vector<512x128xf32>
    %cst_13 = arith.constant dense<0.000000e+00> : vector<512xf32>
    %33 = vector.multi_reduction <add>, %32, %cst_13 [1] : vector<512x128xf32> to vector<512xf32>
    %34 = vector.shape_cast %33 : vector<512xf32> to vector<512x1xf32>
    %cst_14 = arith.constant 3.125000e-02 : f32
    %35 = vector.broadcast %cst_14 : f32 to vector<512x1xf32>
    %36 = arith.mulf %34, %35 : vector<512x1xf32>
    %37 = arith.mulf %31, %31 : vector<512x1xf32>
    %38 = arith.subf %36, %37 : vector<512x1xf32>
    %39 = vector.broadcast %31 : vector<512x1xf32> to vector<512x128xf32>
    %40 = arith.subf %27, %39 : vector<512x128xf32>
    %cst_15 = arith.constant 9.99999974E-6 : f32
    %41 = vector.broadcast %cst_15 : f32 to vector<512x1xf32>
    %42 = arith.addf %38, %41 : vector<512x1xf32>
    %43 = math.rsqrt %42 : vector<512x1xf32>
    %44 = vector.broadcast %43 : vector<512x1xf32> to vector<512x128xf32>
    %45 = arith.mulf %40, %44 : vector<512x128xf32>
    %c0_16 = arith.constant 0 : index
    %c0_17 = arith.constant 0 : index
    %46 = vector.load %arg5[%c0_16, %c0_17] : memref<1x128xf32, #tpu.memory_space<vmem>>, vector<1x128xf32>
    %47 = vector.broadcast %46 : vector<1x128xf32> to vector<512x128xf32>
    %48 = arith.mulf %45, %47 : vector<512x128xf32>
    %c0_18 = arith.constant 0 : index
    %c0_19 = arith.constant 0 : index
    %49 = vector.load %arg6[%c0_18, %c0_19] : memref<1x128xf32, #tpu.memory_space<vmem>>, vector<1x128xf32>
    %50 = vector.broadcast %49 : vector<1x128xf32> to vector<512x128xf32>
    %51 = arith.addf %48, %50 : vector<512x128xf32>
    %52 = arith.truncf %51 : vector<512x128xf32> to vector<512x128xbf16>
    %c0_20 = arith.constant 0 : index
    %c0_21 = arith.constant 0 : index
    %53 = vector.load %arg7[%c0_20, %c0_21] : memref<128x128xbf16, #tpu.memory_space<vmem>>, vector<128x128xbf16>
    %cst_22 = arith.constant dense<0.000000e+00> : vector<512x128xf32>
    %54 = tpu.matmul %52, %53, %cst_22 {dimension_numbers = #tpu.dot_dimension_numbers<[1], [0], [0], [1], [0, 0, 1, 1], [], []>} : vector<512x128xbf16>, vector<128x128xbf16>, vector<512x128xf32> -> vector<512x128xf32>
    %c0_23 = arith.constant 0 : index
    %c0_24 = arith.constant 0 : index
    %55 = vector.load %arg8[%c0_23, %c0_24] : memref<1x128xf32, #tpu.memory_space<vmem>>, vector<1x128xf32>
    %56 = vector.broadcast %55 : vector<1x128xf32> to vector<512x128xf32>
    %57 = arith.addf %54, %56 : vector<512x128xf32>
    %58 = math.absf %57 : vector<512x128xf32>
    %cst_25 = arith.constant 0.707106769 : f32
    %59 = vector.broadcast %cst_25 : f32 to vector<512x128xf32>
    %60 = arith.mulf %58, %59 : vector<512x128xf32>
    %cst_26 = arith.constant 0.327591091 : f32
    %61 = vector.broadcast %cst_26 : f32 to vector<512x128xf32>
    %62 = arith.mulf %61, %60 : vector<512x128xf32>
    %cst_27 = arith.constant 1.000000e+00 : f32
    %63 = vector.broadcast %cst_27 : f32 to vector<512x128xf32>
    %64 = arith.addf %63, %62 : vector<512x128xf32>
    %65 = tpu.reciprocal %64 {approx = true} : vector<512x128xf32> -> vector<512x128xf32>
    %cst_28 = arith.constant 1.06140542 : f32
    %66 = vector.broadcast %cst_28 : f32 to vector<512x128xf32>
    %67 = arith.mulf %66, %65 : vector<512x128xf32>
    %cst_29 = arith.constant -1.45315206 : f32
    %68 = vector.broadcast %cst_29 : f32 to vector<512x128xf32>
    %69 = arith.addf %67, %68 : vector<512x128xf32>
    %70 = arith.mulf %69, %65 : vector<512x128xf32>
    %cst_30 = arith.constant 1.42141378 : f32
    %71 = vector.broadcast %cst_30 : f32 to vector<512x128xf32>
    %72 = arith.addf %70, %71 : vector<512x128xf32>
    %73 = arith.mulf %72, %65 : vector<512x128xf32>
    %cst_31 = arith.constant -0.284496725 : f32
    %74 = vector.broadcast %cst_31 : f32 to vector<512x128xf32>
    %75 = arith.addf %73, %74 : vector<512x128xf32>
    %76 = arith.mulf %75, %65 : vector<512x128xf32>
    %cst_32 = arith.constant 0.254829586 : f32
    %77 = vector.broadcast %cst_32 : f32 to vector<512x128xf32>
    %78 = arith.addf %76, %77 : vector<512x128xf32>
    %79 = arith.mulf %78, %65 : vector<512x128xf32>
    %cst_33 = arith.constant 0.000000e+00 : f32
    %80 = vector.broadcast %cst_33 : f32 to vector<512x128xf32>
    %81 = arith.subf %80, %60 : vector<512x128xf32>
    %82 = arith.mulf %81, %60 : vector<512x128xf32>
    %83 = math.exp %82 : vector<512x128xf32>
    %84 = arith.mulf %79, %83 : vector<512x128xf32>
    %cst_34 = arith.constant 1.000000e+00 : f32
    %85 = vector.broadcast %cst_34 : f32 to vector<512x128xf32>
    %86 = arith.subf %85, %84 : vector<512x128xf32>
    %87 = arith.mulf %58, %86 : vector<512x128xf32>
    %88 = arith.addf %57, %87 : vector<512x128xf32>
    %cst_35 = arith.constant 5.000000e-01 : f32
    %89 = vector.broadcast %cst_35 : f32 to vector<512x128xf32>
    %90 = arith.mulf %89, %88 : vector<512x128xf32>
    %91 = arith.truncf %90 : vector<512x128xf32> to vector<512x128xbf16>
    %c0_36 = arith.constant 0 : index
    %c0_37 = arith.constant 0 : index
    %92 = vector.load %arg9[%c0_36, %c0_37] : memref<128x128xbf16, #tpu.memory_space<vmem>>, vector<128x128xbf16>
    %cst_38 = arith.constant dense<0.000000e+00> : vector<512x128xf32>
    %93 = tpu.matmul %91, %92, %cst_38 {dimension_numbers = #tpu.dot_dimension_numbers<[1], [0], [0], [1], [0, 0, 1, 1], [], []>} : vector<512x128xbf16>, vector<128x128xbf16>, vector<512x128xf32> -> vector<512x128xf32>
    %c0_39 = arith.constant 0 : index
    %c0_40 = arith.constant 0 : index
    %94 = vector.load %arg10[%c0_39, %c0_40] : memref<1x128xf32, #tpu.memory_space<vmem>>, vector<1x128xf32>
    %95 = vector.broadcast %94 : vector<1x128xf32> to vector<512x128xf32>
    %96 = arith.addf %93, %95 : vector<512x128xf32>
    %97 = arith.addf %27, %96 : vector<512x128xf32>
    %c0_41 = arith.constant 0 : index
    %c0_42 = arith.constant 0 : index
    %98 = vector.load %arg11[%c0_41, %c0_42] : memref<512x128xf32, #tpu.memory_space<vmem>>, vector<512x128xf32>
    tpu.vector_store %arg11[%c0_41, %c0_42], %97 {strides = array<i32>} : memref<512x128xf32, #tpu.memory_space<vmem>>, vector<512x128xf32>,
    return
  }
  func.func @transform_0(%arg0: i32) -> (i32, i32) {
    %c0_i32 = arith.constant 0 : i32
    %c0_i32_0 = arith.constant 0 : i32
    return %arg0, %c0_i32 : i32, i32
  }
  func.func @transform_1(%arg0: i32) -> (i32, i32) {
    %c0_i32 = arith.constant 0 : i32
    %c0_i32_0 = arith.constant 0 : i32
    return %arg0, %c0_i32 : i32, i32
  }
  func.func @transform_2(%arg0: i32) -> (i32, i32) {
    %c0_i32 = arith.constant 0 : i32
    %c0_i32_0 = arith.constant 0 : i32
    %c0_i32_1 = arith.constant 0 : i32
    return %c0_i32, %c0_i32_0 : i32, i32
  }
  func.func @transform_3(%arg0: i32) -> (i32, i32) {
    %c0_i32 = arith.constant 0 : i32
    %c0_i32_0 = arith.constant 0 : i32
    %c0_i32_1 = arith.constant 0 : i32
    return %c0_i32, %c0_i32_0 : i32, i32
  }
  func.func @transform_4(%arg0: i32) -> (i32, i32) {
    %c0_i32 = arith.constant 0 : i32
    %c0_i32_0 = arith.constant 0 : i32
    %c0_i32_1 = arith.constant 0 : i32
    return %c0_i32, %c0_i32_0 : i32, i32
  }
  func.func @transform_5(%arg0: i32) -> (i32, i32) {
    %c0_i32 = arith.constant 0 : i32
    %c0_i32_0 = arith.constant 0 : i32
    %c0_i32_1 = arith.constant 0 : i32
    return %c0_i32, %c0_i32_0 : i32, i32
  }
  func.func @transform_6(%arg0: i32) -> (i32, i32) {
    %c0_i32 = arith.constant 0 : i32
    %c0_i32_0 = arith.constant 0 : i32
    %c0_i32_1 = arith.constant 0 : i32
    return %c0_i32, %c0_i32_0 : i32, i32
  }
  func.func @transform_7(%arg0: i32) -> (i32, i32) {
    %c0_i32 = arith.constant 0 : i32
    %c0_i32_0 = arith.constant 0 : i32
    %c0_i32_1 = arith.constant 0 : i32
    return %c0_i32, %c0_i32_0 : i32, i32
  }
  func.func @transform_8(%arg0: i32) -> (i32, i32) {
    %c0_i32 = arith.constant 0 : i32
    %c0_i32_0 = arith.constant 0 : i32
    %c0_i32_1 = arith.constant 0 : i32
    return %c0_i32, %c0_i32_0 : i32, i32
  }
  func.func @transform_9(%arg0: i32) -> (i32, i32) {
    %c0_i32 = arith.constant 0 : i32
    %c0_i32_0 = arith.constant 0 : i32
    %c0_i32_1 = arith.constant 0 : i32
    return %c0_i32, %c0_i32_0 : i32, i32
  }
  func.func @transform_10(%arg0: i32) -> (i32, i32) {
    %c0_i32 = arith.constant 0 : i32
    %c0_i32_0 = arith.constant 0 : i32
    return %arg0, %c0_i32 : i32, i32
  }
}

</mosaic_0001>

<llo_original>
// kernel: run.4
$region0: #{run.4}
  #allocation0 [shape = 'u32[]', space=smem, size = 0x4, offset = 0x4, fixed_abs, tag = 'smem constant byte address 0x4 - core index']
  #allocation1 [shape = 'u32[144,128]{1,0:T(1,128)}', space=vmem, size = 0x12000, scoped, tag = 'internal scratch']
  %s0 = inlined_call_operand.vmem [shape: bf16[288,128], index: 0, kind: input, shape index: {}]
  %s1 = inlined_call_operand.vmem [shape: bf16[128,128], index: 1, kind: input, shape index: {}]
  %s2 = inlined_call_operand.vmem [shape: f32[1,128], index: 2, kind: input, shape index: {}]
  %s3 = inlined_call_operand.vmem [shape: bf16[128,128], index: 3, kind: input, shape index: {}]
  %s4 = inlined_call_operand.vmem [shape: f32[1,128], index: 4, kind: input, shape index: {}]
  %s5 = inlined_call_operand.vmem [shape: f32[288,128], index: 5, kind: output, shape index: {}]
  %s6 = sld [smem:[#allocation0]]
  $region30: #{run.4} parent=0
    _
  %s8 = ssub.s32 1, %s6
  %s9 = scalar_select 0, %s8, %s6
  // Predicated region
  $region2: #{run.4} parent=0 // pred_check
    _
  $region3: #{run.4} parent=0 // pred_check_branch
    %11 = sbr.rel (0) target = $region5
  $region4: #{run.4} parent=0 // pred_region
    _
  $region5: #{run.4} parent=0 // pred_fallthru
    _
  // Predicated region
  $region6: #{run.4} parent=0 // pred_check
    _
  $region7: #{run.4} parent=0 // pred_check_branch
    %13 = sbr.rel (0) target = $region9
  $region8: #{run.4} parent=0 // pred_region
    _
  $region9: #{run.4} parent=0 // pred_fallthru
    _
  // Predicated region
  $region10: #{run.4} parent=0 // pred_check
    _
  $region11: #{run.4} parent=0 // pred_check_branch
    %15 = sbr.rel (0) target = $region13
  $region12: #{run.4} parent=0 // pred_region
    _
  $region13: #{run.4} parent=0 // pred_fallthru
    _
  // Predicated region
  $region14: #{run.4} parent=0 // pred_check
    _
  $region15: #{run.4} parent=0 // pred_check_branch
    %17 = sbr.rel (0) target = $region17
  $region16: #{run.4} parent=0 // pred_region
    _
  $region17: #{run.4} parent=0 // pred_fallthru
    _
  // Predicated region
  $region18: #{run.4} parent=0 // pred_check
    _
  $region19: #{run.4} parent=0 // pred_check_branch
    %19 = sbr.rel (0) target = $region21
  $region20: #{run.4} parent=0 // pred_region
    _
  $region21: #{run.4} parent=0 // pred_fallthru
    _
  %v21 = vld [vmem:[%s0] sm:$0xf]
  %v22 = vld [vmem:[%s0 + $0x4] sm:$0xf]
  %v23 = vld [vmem:[%s0 + $0x8] sm:$0xf]
  %v24 = vld [vmem:[%s0 + $0xc] sm:$0xf]
  %v25 = vld [vmem:[%s0 + $0x10] sm:$0xf]
  %v26 = vld [vmem:[%s0 + $0x14] sm:$0xf]
  %v27 = vld [vmem:[%s0 + $0x18] sm:$0xf]
  %v28 = vld [vmem:[%s0 + $0x1c] sm:$0xf]
  %v29 = vld [vmem:[%s0 + $0x20] sm:$0xf]
  %v30 = vld [vmem:[%s0 + $0x24] sm:$0xf]
  %v31 = vld [vmem:[%s0 + $0x28] sm:$0xf]
  %v32 = vld [vmem:[%s0 + $0x2c] sm:$0xf]
  %v33 = vld [vmem:[%s0 + $0x30] sm:$0xf]
  %v34 = vld [vmem:[%s0 + $0x34] sm:$0xf]
  %v35 = vld [vmem:[%s0 + $0x38] sm:$0xf]
  %v36 = vld [vmem:[%s0 + $0x3c] sm:$0xf]
  %v37 = vld [vmem:[%s0 + $0x40] sm:$0xf]
  %v38 = vld [vmem:[%s0 + $0x44] sm:$0xf]
  %v39 = vld [vmem:[%s0 + $0x48] sm:$0xf]
  %v40 = vld [vmem:[%s0 + $0x4c] sm:$0xf]
  %v41 = vld [vmem:[%s0 + $0x50] sm:$0xf]
  %v42 = vld [vmem:[%s0 + $0x54] sm:$0xf]
  %v43 = vld [vmem:[%s0 + $0x58] sm:$0xf]
  %v44 = vld [vmem:[%s0 + $0x5c] sm:$0xf]
  %v45 = vld [vmem:[%s0 + $0x60] sm:$0xf]
  %v46 = vld [vmem:[%s0 + $0x64] sm:$0xf]
  %v47 = vld [vmem:[%s0 + $0x68] sm:$0xf]
  %v48 = vld [vmem:[%s0 + $0x6c] sm:$0xf]
  %v49 = vld [vmem:[%s0 + $0x70] sm:$0xf]
  %v50 = vld [vmem:[%s0 + $0x74] sm:$0xf]
  %v51 = vld [vmem:[%s0 + $0x78] sm:$0xf]
  %v52 = vld [vmem:[%s0 + $0x7c] sm:$0xf]
  %v53 = vld [vmem:[%s0 + $0x80] sm:$0xf]
  %v54 = vld [vmem:[%s0 + $0x84] sm:$0xf]
  %v55 = vld [vmem:[%s0 + $0x88] sm:$0xf]
  %v56 = vld [vmem:[%s0 + $0x8c] sm:$0xf]
  %v57 = vld [vmem:[%s1] sm:$0xf]
  %v58 = vld [vmem:[%s1 + $0x4] sm:$0xf]
  %v59 = vld [vmem:[%s1 + $0x8] sm:$0xf]
  %v60 = vld [vmem:[%s1 + $0xc] sm:$0xf]
  %v61 = vld [vmem:[%s1 + $0x10] sm:$0xf]
  %v62 = vld [vmem:[%s1 + $0x14] sm:$0xf]
  %v63 = vld [vmem:[%s1 + $0x18] sm:$0xf]
  %v64 = vld [vmem:[%s1 + $0x1c] sm:$0xf]
  %v65 = vld [vmem:[%s1 + $0x20] sm:$0xf]
  %v66 = vld [vmem:[%s1 + $0x24] sm:$0xf]
  %v67 = vld [vmem:[%s1 + $0x28] sm:$0xf]
  %v68 = vld [vmem:[%s1 + $0x2c] sm:$0xf]
  %v69 = vld [vmem:[%s1 + $0x30] sm:$0xf]
  %v70 = vld [vmem:[%s1 + $0x34] sm:$0xf]
  %v71 = vld [vmem:[%s1 + $0x38] sm:$0xf]
  %v72 = vld [vmem:[%s1 + $0x3c] sm:$0xf]
  %v73 = vld [vmem:[%s2] sm:$0x1]
  %v75 = vlaneseq
  %v76 = vshrl.u32 %v75, 7
  %v77 = vsub.s32 0, %v76
  %v78 = vrot.slane %v73, %v77
  %v116 = vunpack.c.l.b16 %v21
  %v117 = vunpack.c.l.b16 %v22
  %v118 = vunpack.c.l.b16 %v23
  %v119 = vunpack.c.l.b16 %v24
  %v120 = vunpack.c.l.b16 %v25
  %v121 = vunpack.c.l.b16 %v26
  %v122 = vunpack.c.l.b16 %v27
  %v123 = vunpack.c.l.b16 %v28
  %v124 = vunpack.c.l.b16 %v29
  %v125 = vunpack.c.l.b16 %v30
  %v126 = vunpack.c.l.b16 %v31
  %v127 = vunpack.c.l.b16 %v32
  %v128 = vunpack.c.l.b16 %v33
  %v129 = vunpack.c.l.b16 %v34
  %v130 = vunpack.c.l.b16 %v35
  %v131 = vunpack.c.l.b16 %v36
  %v132 = vunpack.c.l.b16 %v37
  %v133 = vunpack.c.l.b16 %v38
  %v134 = vunpack.c.l.b16 %v39
  %v135 = vunpack.c.l.b16 %v40
  %v136 = vunpack.c.l.b16 %v41
  %v137 = vunpack.c.l.b16 %v42
  %v138 = vunpack.c.l.b16 %v43
  %v139 = vunpack.c.l.b16 %v44
  %v140 = vunpack.c.l.b16 %v45
  %v141 = vunpack.c.l.b16 %v46
  %v142 = vunpack.c.l.b16 %v47
  %v143 = vunpack.c.l.b16 %v48
  %v144 = vunpack.c.l.b16 %v49
  %v145 = vunpack.c.l.b16 %v50
  %v146 = vunpack.c.l.b16 %v51
  %v147 = vunpack.c.l.b16 %v52
  %v148 = vunpack.c.l.b16 %v53
  %v149 = vunpack.c.l.b16 %v54
  %v150 = vunpack.c.l.b16 %v55
  %v151 = vunpack.c.l.b16 %v56
  %v152 = vpack.c.b16 %v117, %v116
  %v153 = vpack.c.b16 %v119, %v118
  %v154 = vpack.c.b16 %v121, %v120
  %v155 = vpack.c.b16 %v123, %v122
  %v156 = vpack.c.b16 %v125, %v124
  %v157 = vpack.c.b16 %v127, %v126
  %v158 = vpack.c.b16 %v129, %v128
  %v159 = vpack.c.b16 %v131, %v130
  %v160 = vpack.c.b16 %v133, %v132
  %v161 = vpack.c.b16 %v135, %v134
  %v162 = vpack.c.b16 %v137, %v136
  %v163 = vpack.c.b16 %v139, %v138
  %v164 = vpack.c.b16 %v141, %v140
  %v165 = vpack.c.b16 %v143, %v142
  %v166 = vpack.c.b16 %v145, %v144
  %v167 = vpack.c.b16 %v147, %v146
  %v168 = vpack.c.b16 %v149, %v148
  %v169 = vpack.c.b16 %v151, %v150
  %v204 = vunpack.c.l.b16 %v57
  %v205 = vunpack.c.l.b16 %v58
  %v206 = vunpack.c.l.b16 %v59
  %v207 = vunpack.c.l.b16 %v60
  %v208 = vunpack.c.l.b16 %v61
  %v209 = vunpack.c.l.b16 %v62
  %v210 = vunpack.c.l.b16 %v63
  %v211 = vunpack.c.l.b16 %v64
  %v212 = vunpack.c.l.b16 %v65
  %v213 = vunpack.c.l.b16 %v66
  %v214 = vunpack.c.l.b16 %v67
  %v215 = vunpack.c.l.b16 %v68
  %v216 = vunpack.c.l.b16 %v69
  %v217 = vunpack.c.l.b16 %v70
  %v218 = vunpack.c.l.b16 %v71
  %v219 = vunpack.c.l.b16 %v72
  %v220 = vpack.c.b16 %v205, %v204
  %v221 = vpack.c.b16 %v207, %v206
  %v222 = vpack.c.b16 %v209, %v208
  %v223 = vpack.c.b16 %v211, %v210
  %v224 = vpack.c.b16 %v213, %v212
  %v225 = vpack.c.b16 %v215, %v214
  %v226 = vpack.c.b16 %v217, %v216
  %v227 = vpack.c.b16 %v219, %v218
  %236 = vmatprep.subr.bf16.mxu0 0
  %237 = vmatpush1.bf16.msra.mxu0 %v227
  %238 = vmatprep.subr.bf16.mxu0 0
  %239 = vmatpush1.bf16.msra.mxu0 %v226
  %240 = vmatprep.subr.bf16.mxu0 0
  %241 = vmatpush1.bf16.msra.mxu0 %v225
  %242 = vmatprep.subr.bf16.mxu0 0
  %243 = vmatpush1.bf16.msra.mxu0 %v224
  %244 = vmatprep.subr.bf16.mxu0 0
  %245 = vmatpush1.bf16.msra.mxu0 %v223
  %246 = vmatprep.subr.bf16.mxu0 0
  %247 = vmatpush1.bf16.msra.mxu0 %v222
  %248 = vmatprep.subr.bf16.mxu0 0
  %249 = vmatpush1.bf16.msra.mxu0 %v221
  %250 = vmatprep.subr.bf16.mxu0 0
  %251 = vmatpush1.bf16.msra.mxu0 %v220
  %252 = vmatprep.subr.bf16.mxu0 0
  %253 = vmatpush2.bf16.msra.mxu0 0
  %254 = vmatprep.subr.bf16.mxu0 0
  %255 = vmatpush2.bf16.msra.mxu0 0
  %256 = vmatprep.subr.bf16.mxu0 0
  %257 = vmatpush2.bf16.msra.mxu0 0
  %258 = vmatprep.subr.bf16.mxu0 0
  %259 = vmatpush2.bf16.msra.mxu0 0
  %260 = vmatprep.subr.bf16.mxu0 0
  %261 = vmatpush2.bf16.msra.mxu0 0
  %262 = vmatprep.subr.bf16.mxu0 0
  %263 = vmatpush2.bf16.msra.mxu0 0
  %264 = vmatprep.subr.bf16.mxu0 0
  %265 = vmatpush2.bf16.msra.mxu0 0
  %266 = vmatprep.subr.bf16.mxu0 0
  %267 = vmatpush2.bf16.msra.mxu0 0
  %268 = vmatprep.mubr.bf16.mxu0 0
  %269 = vmatmul.mubr.bf16.gmra.mxu0 %v152
  %v270 = vpop.f32.mrf.mxu0
  %v271 = vadd.f32 %v78, %v270
  %v272 = vpop.f32.mrf.mxu0
  %v273 = vpop.f32.mrf.mxu0
  %v274 = vadd.f32 %v78, %v273
  %v275 = vpop.f32.mrf.mxu0
  %276 = vmatprep.mubr.bf16.mxu0 0
  %277 = vmatmul.mubr.bf16.gmra.mxu0 %v153
  %v278 = vpop.f32.mrf.mxu0
  %v279 = vadd.f32 %v78, %v278
  %v280 = vpop.f32.mrf.mxu0
  %v281 = vpop.f32.mrf.mxu0
  %v282 = vadd.f32 %v78, %v281
  %v283 = vpop.f32.mrf.mxu0
  %284 = vmatprep.mubr.bf16.mxu0 0
  %285 = vmatmul.mubr.bf16.gmra.mxu0 %v154
  %v286 = vpop.f32.mrf.mxu0
  %v287 = vadd.f32 %v78, %v286
  %v288 = vpop.f32.mrf.mxu0
  %v289 = vpop.f32.mrf.mxu0
  %v290 = vadd.f32 %v78, %v289
  %v291 = vpop.f32.mrf.mxu0
  %292 = vmatprep.mubr.bf16.mxu0 0
  %293 = vmatmul.mubr.bf16.gmra.mxu0 %v155
  %v294 = vpop.f32.mrf.mxu0
  %v295 = vadd.f32 %v78, %v294
  %v296 = vpop.f32.mrf.mxu0
  %v297 = vpop.f32.mrf.mxu0
  %v298 = vadd.f32 %v78, %v297
  %v299 = vpop.f32.mrf.mxu0
  %300 = vmatprep.mubr.bf16.mxu0 0
  %301 = vmatmul.mubr.bf16.gmra.mxu0 %v156
  %v302 = vpop.f32.mrf.mxu0
  %v303 = vadd.f32 %v78, %v302
  %v304 = vpop.f32.mrf.mxu0
  %v305 = vpop.f32.mrf.mxu0
  %v306 = vadd.f32 %v78, %v305
  %v307 = vpop.f32.mrf.mxu0
  %308 = vmatprep.mubr.bf16.mxu0 0
  %309 = vmatmul.mubr.bf16.gmra.mxu0 %v157
  %v310 = vpop.f32.mrf.mxu0
  %v311 = vadd.f32 %v78, %v310
  %v312 = vpop.f32.mrf.mxu0
  %v313 = vpop.f32.mrf.mxu0
  %v314 = vadd.f32 %v78, %v313
  %v315 = vpop.f32.mrf.mxu0
  %316 = vmatprep.mubr.bf16.mxu0 0
  %317 = vmatmul.mubr.bf16.gmra.mxu0 %v158
  %v318 = vpop.f32.mrf.mxu0
  %v319 = vadd.f32 %v78, %v318
  %v320 = vpop.f32.mrf.mxu0
  %v321 = vpop.f32.mrf.mxu0
  %v322 = vadd.f32 %v78, %v321
  %v323 = vpop.f32.mrf.mxu0
  %324 = vmatprep.mubr.bf16.mxu0 0
  %325 = vmatmul.mubr.bf16.gmra.mxu0 %v159
  %v326 = vpop.f32.mrf.mxu0
  %v327 = vadd.f32 %v78, %v326
  %v328 = vpop.f32.mrf.mxu0
  %v329 = vpop.f32.mrf.mxu0
  %v330 = vadd.f32 %v78, %v329
  %v331 = vpop.f32.mrf.mxu0
  %332 = vmatprep.mubr.bf16.mxu0 0
  %333 = vmatmul.mubr.bf16.gmra.mxu0 %v160
  %v334 = vpop.f32.mrf.mxu0
  %v335 = vadd.f32 %v78, %v334
  %v336 = vpop.f32.mrf.mxu0
  %v337 = vpop.f32.mrf.mxu0
  %v338 = vadd.f32 %v78, %v337
  %v339 = vpop.f32.mrf.mxu0
  %340 = vmatprep.mubr.bf16.mxu0 0
  %341 = vmatmul.mubr.bf16.gmra.mxu0 %v161
  %v342 = vpop.f32.mrf.mxu0
  %v343 = vadd.f32 %v78, %v342
  %v344 = vpop.f32.mrf.mxu0
  %v345 = vpop.f32.mrf.mxu0
  %v346 = vadd.f32 %v78, %v345
  %v347 = vpop.f32.mrf.mxu0
  %348 = vmatprep.mubr.bf16.mxu0 0
  %349 = vmatmul.mubr.bf16.gmra.mxu0 %v162
  %v350 = vpop.f32.mrf.mxu0
  %v351 = vadd.f32 %v78, %v350
  %v352 = vpop.f32.mrf.mxu0
  %v353 = vpop.f32.mrf.mxu0
  %v354 = vadd.f32 %v78, %v353
  %v355 = vpop.f32.mrf.mxu0
  %356 = vmatprep.mubr.bf16.mxu0 0
  %357 = vmatmul.mubr.bf16.gmra.mxu0 %v163
  %v358 = vpop.f32.mrf.mxu0
  %v359 = vadd.f32 %v78, %v358
  %v360 = vpop.f32.mrf.mxu0
  %v361 = vpop.f32.mrf.mxu0
  %v362 = vadd.f32 %v78, %v361
  %v363 = vpop.f32.mrf.mxu0
  %364 = vmatprep.mubr.bf16.mxu0 0
  %365 = vmatmul.mubr.bf16.gmra.mxu0 %v164
  %v366 = vpop.f32.mrf.mxu0
  %v367 = vadd.f32 %v78, %v366
  %v368 = vpop.f32.mrf.mxu0
  %v369 = vpop.f32.mrf.mxu0
  %v370 = vadd.f32 %v78, %v369
  %v371 = vpop.f32.mrf.mxu0
  %372 = vmatprep.mubr.bf16.mxu0 0
  %373 = vmatmul.mubr.bf16.gmra.mxu0 %v165
  %v374 = vpop.f32.mrf.mxu0
  %v375 = vadd.f32 %v78, %v374
  %v376 = vpop.f32.mrf.mxu0
  %v377 = vpop.f32.mrf.mxu0
  %v378 = vadd.f32 %v78, %v377
  %v379 = vpop.f32.mrf.mxu0
  %380 = vmatprep.mubr.bf16.mxu0 0
  %381 = vmatmul.mubr.bf16.gmra.mxu0 %v166
  %v382 = vpop.f32.mrf.mxu0
  %v383 = vadd.f32 %v78, %v382
  %v384 = vpop.f32.mrf.mxu0
  %v385 = vpop.f32.mrf.mxu0
  %v386 = vadd.f32 %v78, %v385
  %v387 = vpop.f32.mrf.mxu0
  %388 = vmatprep.mubr.bf16.mxu0 0
  %389 = vmatmul.mubr.bf16.gmra.mxu0 %v167
  %v390 = vpop.f32.mrf.mxu0
  %v391 = vadd.f32 %v78, %v390
  %v392 = vpop.f32.mrf.mxu0
  %v393 = vpop.f32.mrf.mxu0
  %v394 = vadd.f32 %v78, %v393
  %v395 = vpop.f32.mrf.mxu0
  %396 = vmatprep.mubr.bf16.mxu0 0
  %397 = vmatmul.mubr.bf16.gmra.mxu0 %v168
  %v398 = vpop.f32.mrf.mxu0
  %v399 = vadd.f32 %v78, %v398
  %v400 = vpop.f32.mrf.mxu0
  %v401 = vpop.f32.mrf.mxu0
  %v402 = vadd.f32 %v78, %v401
  %v403 = vpop.f32.mrf.mxu0
  %404 = vmatprep.mubr.bf16.mxu0 0
  %405 = vmatmul.mubr.bf16.gmra.mxu0 %v169
  %v406 = vpop.f32.mrf.mxu0
  %v407 = vadd.f32 %v78, %v406
  %v408 = vpop.f32.mrf.mxu0
  %v409 = vpop.f32.mrf.mxu0
  %v410 = vadd.f32 %v78, %v409
  %v411 = vpop.f32.mrf.mxu0
  %412 = vdwg.mxu0
  %v413 = vmax.f32 %v271, 0.0
  %v414 = vmax.f32 %v274, 0.0
  %v415 = vmax.f32 %v279, 0.0
  %v416 = vmax.f32 %v282, 0.0
  %v417 = vmax.f32 %v287, 0.0
  %v418 = vmax.f32 %v290, 0.0
  %v419 = vmax.f32 %v295, 0.0
  %v420 = vmax.f32 %v298, 0.0
  %v421 = vmax.f32 %v303, 0.0
  %v422 = vmax.f32 %v306, 0.0
  %v423 = vmax.f32 %v311, 0.0
  %v424 = vmax.f32 %v314, 0.0
  %v425 = vmax.f32 %v319, 0.0
  %v426 = vmax.f32 %v322, 0.0
  %v427 = vmax.f32 %v327, 0.0
  %v428 = vmax.f32 %v330, 0.0
  %v429 = vmax.f32 %v335, 0.0
  %v430 = vmax.f32 %v338, 0.0
  %v431 = vmax.f32 %v343, 0.0
  %v432 = vmax.f32 %v346, 0.0
  %v433 = vmax.f32 %v351, 0.0
  %v434 = vmax.f32 %v354, 0.0
  %v435 = vmax.f32 %v359, 0.0
  %v436 = vmax.f32 %v362, 0.0
  %v437 = vmax.f32 %v367, 0.0
  %v438 = vmax.f32 %v370, 0.0
  %v439 = vmax.f32 %v375, 0.0
  %v440 = vmax.f32 %v378, 0.0
  %v441 = vmax.f32 %v383, 0.0
  %v442 = vmax.f32 %v386, 0.0
  %v443 = vmax.f32 %v391, 0.0
  %v444 = vmax.f32 %v394, 0.0
  %v445 = vmax.f32 %v399, 0.0
  %v446 = vmax.f32 %v402, 0.0
  %v447 = vmax.f32 %v407, 0.0
  %v448 = vmax.f32 %v410, 0.0
  %v449 = vpack.c.bf16 %v414, %v413
  %v450 = vpack.c.bf16 %v416, %v415
  %v451 = vpack.c.bf16 %v418, %v417
  %v452 = vpack.c.bf16 %v420, %v419
  %v453 = vpack.c.bf16 %v422, %v421
  %v454 = vpack.c.bf16 %v424, %v423
  %v455 = vpack.c.bf16 %v426, %v425
  %v456 = vpack.c.bf16 %v428, %v427
  %v457 = vpack.c.bf16 %v430, %v429
  %v458 = vpack.c.bf16 %v432, %v431
  %v459 = vpack.c.bf16 %v434, %v433
  %v460 = vpack.c.bf16 %v436, %v435
  %v461 = vpack.c.bf16 %v438, %v437
  %v462 = vpack.c.bf16 %v440, %v439
  %v463 = vpack.c.bf16 %v442, %v441
  %v464 = vpack.c.bf16 %v444, %v443
  %v465 = vpack.c.bf16 %v446, %v445
  %v466 = vpack.c.bf16 %v448, %v447
  %v467 = vld [vmem:[%s3] sm:$0xf]
  %v468 = vld [vmem:[%s3 + $0x4] sm:$0xf]
  %v469 = vld [vmem:[%s3 + $0x8] sm:$0xf]
  %v470 = vld [vmem:[%s3 + $0xc] sm:$0xf]
  %v471 = vld [vmem:[%s3 + $0x10] sm:$0xf]
  %v472 = vld [vmem:[%s3 + $0x14] sm:$0xf]
  %v473 = vld [vmem:[%s3 + $0x18] sm:$0xf]
  %v474 = vld [vmem:[%s3 + $0x1c] sm:$0xf]
  %v475 = vld [vmem:[%s3 + $0x20] sm:$0xf]
  %v476 = vld [vmem:[%s3 + $0x24] sm:$0xf]
  %v477 = vld [vmem:[%s3 + $0x28] sm:$0xf]
  %v478 = vld [vmem:[%s3 + $0x2c] sm:$0xf]
  %v479 = vld [vmem:[%s3 + $0x30] sm:$0xf]
  %v480 = vld [vmem:[%s3 + $0x34] sm:$0xf]
  %v481 = vld [vmem:[%s3 + $0x38] sm:$0xf]
  %v482 = vld [vmem:[%s3 + $0x3c] sm:$0xf]
  %v483 = vld [vmem:[%s4] sm:$0x1]
  %v485 = vlaneseq
  %v486 = vshrl.u32 %v485, 7
  %v487 = vsub.s32 0, %v486
  %v488 = vrot.slane %v483, %v487
  %v506 = vunpack.c.l.b16 %v467
  %v507 = vunpack.c.l.b16 %v468
  %v508 = vunpack.c.l.b16 %v469
  %v509 = vunpack.c.l.b16 %v470
  %v510 = vunpack.c.l.b16 %v471
  %v511 = vunpack.c.l.b16 %v472
  %v512 = vunpack.c.l.b16 %v473
  %v513 = vunpack.c.l.b16 %v474
  %v514 = vunpack.c.l.b16 %v475
  %v515 = vunpack.c.l.b16 %v476
  %v516 = vunpack.c.l.b16 %v477
  %v517 = vunpack.c.l.b16 %v478
  %v518 = vunpack.c.l.b16 %v479
  %v519 = vunpack.c.l.b16 %v480
  %v520 = vunpack.c.l.b16 %v481
  %v521 = vunpack.c.l.b16 %v482
  %v522 = vpack.c.b16 %v507, %v506
  %v523 = vpack.c.b16 %v509, %v508
  %v524 = vpack.c.b16 %v511, %v510
  %v525 = vpack.c.b16 %v513, %v512
  %v526 = vpack.c.b16 %v515, %v514
  %v527 = vpack.c.b16 %v517, %v516
  %v528 = vpack.c.b16 %v519, %v518
  %v529 = vpack.c.b16 %v521, %v520
  %538 = vmatprep.subr.bf16.mxu0 0
  %539 = vmatpush1.bf16.msra.mxu0 %v529
  %540 = vmatprep.subr.bf16.mxu0 0
  %541 = vmatpush1.bf16.msra.mxu0 %v528
  %542 = vmatprep.subr.bf16.mxu0 0
  %543 = vmatpush1.bf16.msra.mxu0 %v527
  %544 = vmatprep.subr.bf16.mxu0 0
  %545 = vmatpush1.bf16.msra.mxu0 %v526
  %546 = vmatprep.subr.bf16.mxu0 0
  %547 = vmatpush1.bf16.msra.mxu0 %v525
  %548 = vmatprep.subr.bf16.mxu0 0
  %549 = vmatpush1.bf16.msra.mxu0 %v524
  %550 = vmatprep.subr.bf16.mxu0 0
  %551 = vmatpush1.bf16.msra.mxu0 %v523
  %552 = vmatprep.subr.bf16.mxu0 0
  %553 = vmatpush1.bf16.msra.mxu0 %v522
  %554 = vmatprep.subr.bf16.mxu0 0
  %555 = vmatpush2.bf16.msra.mxu0 0
  %556 = vmatprep.subr.bf16.mxu0 0
  %557 = vmatpush2.bf16.msra.mxu0 0
  %558 = vmatprep.subr.bf16.mxu0 0
  %559 = vmatpush2.bf16.msra.mxu0 0
  %560 = vmatprep.subr.bf16.mxu0 0
  %561 = vmatpush2.bf16.msra.mxu0 0
  %562 = vmatprep.subr.bf16.mxu0 0
  %563 = vmatpush2.bf16.msra.mxu0 0
  %564 = vmatprep.subr.bf16.mxu0 0
  %565 = vmatpush2.bf16.msra.mxu0 0
  %566 = vmatprep.subr.bf16.mxu0 0
  %567 = vmatpush2.bf16.msra.mxu0 0
  %568 = vmatprep.subr.bf16.mxu0 0
  %569 = vmatpush2.bf16.msra.mxu0 0
  %570 = vmatprep.mubr.bf16.mxu0 0
  %571 = vmatmul.mubr.bf16.gmra.mxu0 %v449
  %v572 = vpop.f32.mrf.mxu0
  %v573 = vadd.f32 %v488, %v572
  %v574 = vpop.f32.mrf.mxu0
  %v575 = vpop.f32.mrf.mxu0
  %v576 = vadd.f32 %v488, %v575
  %v577 = vpop.f32.mrf.mxu0
  %578 = vmatprep.mubr.bf16.mxu0 0
  %579 = vmatmul.mubr.bf16.gmra.mxu0 %v450
  %v580 = vpop.f32.mrf.mxu0
  %v581 = vadd.f32 %v488, %v580
  %v582 = vpop.f32.mrf.mxu0
  %v583 = vpop.f32.mrf.mxu0
  %v584 = vadd.f32 %v488, %v583
  %v585 = vpop.f32.mrf.mxu0
  %586 = vmatprep.mubr.bf16.mxu0 0
  %587 = vmatmul.mubr.bf16.gmra.mxu0 %v451
  %v588 = vpop.f32.mrf.mxu0
  %v589 = vadd.f32 %v488, %v588
  %v590 = vpop.f32.mrf.mxu0
  %v591 = vpop.f32.mrf.mxu0
  %v592 = vadd.f32 %v488, %v591
  %v593 = vpop.f32.mrf.mxu0
  %594 = vmatprep.mubr.bf16.mxu0 0
  %595 = vmatmul.mubr.bf16.gmra.mxu0 %v452
  %v596 = vpop.f32.mrf.mxu0
  %v597 = vadd.f32 %v488, %v596
  %v598 = vpop.f32.mrf.mxu0
  %v599 = vpop.f32.mrf.mxu0
  %v600 = vadd.f32 %v488, %v599
  %v601 = vpop.f32.mrf.mxu0
  %602 = vmatprep.mubr.bf16.mxu0 0
  %603 = vmatmul.mubr.bf16.gmra.mxu0 %v453
  %v604 = vpop.f32.mrf.mxu0
  %v605 = vadd.f32 %v488, %v604
  %v606 = vpop.f32.mrf.mxu0
  %v607 = vpop.f32.mrf.mxu0
  %v608 = vadd.f32 %v488, %v607
  %v609 = vpop.f32.mrf.mxu0
  %610 = vmatprep.mubr.bf16.mxu0 0
  %611 = vmatmul.mubr.bf16.gmra.mxu0 %v454
  %v612 = vpop.f32.mrf.mxu0
  %v613 = vadd.f32 %v488, %v612
  %v614 = vpop.f32.mrf.mxu0
  %v615 = vpop.f32.mrf.mxu0
  %v616 = vadd.f32 %v488, %v615
  %v617 = vpop.f32.mrf.mxu0
  %618 = vmatprep.mubr.bf16.mxu0 0
  %619 = vmatmul.mubr.bf16.gmra.mxu0 %v455
  %v620 = vpop.f32.mrf.mxu0
  %v621 = vadd.f32 %v488, %v620
  %v622 = vpop.f32.mrf.mxu0
  %v623 = vpop.f32.mrf.mxu0
  %v624 = vadd.f32 %v488, %v623
  %v625 = vpop.f32.mrf.mxu0
  %626 = vmatprep.mubr.bf16.mxu0 0
  %627 = vmatmul.mubr.bf16.gmra.mxu0 %v456
  %v628 = vpop.f32.mrf.mxu0
  %v629 = vadd.f32 %v488, %v628
  %v630 = vpop.f32.mrf.mxu0
  %v631 = vpop.f32.mrf.mxu0
  %v632 = vadd.f32 %v488, %v631
  %v633 = vpop.f32.mrf.mxu0
  %634 = vmatprep.mubr.bf16.mxu0 0
  %635 = vmatmul.mubr.bf16.gmra.mxu0 %v457
  %v636 = vpop.f32.mrf.mxu0
  %v637 = vadd.f32 %v488, %v636
  %v638 = vpop.f32.mrf.mxu0
  %v639 = vpop.f32.mrf.mxu0
  %v640 = vadd.f32 %v488, %v639
  %v641 = vpop.f32.mrf.mxu0
  %642 = vmatprep.mubr.bf16.mxu0 0
  %643 = vmatmul.mubr.bf16.gmra.mxu0 %v458
  %v644 = vpop.f32.mrf.mxu0
  %v645 = vadd.f32 %v488, %v644
  %v646 = vpop.f32.mrf.mxu0
  %v647 = vpop.f32.mrf.mxu0
  %v648 = vadd.f32 %v488, %v647
  %v649 = vpop.f32.mrf.mxu0
  %650 = vmatprep.mubr.bf16.mxu0 0
  %651 = vmatmul.mubr.bf16.gmra.mxu0 %v459
  %v652 = vpop.f32.mrf.mxu0
  %v653 = vadd.f32 %v488, %v652
  %v654 = vpop.f32.mrf.mxu0
  %v655 = vpop.f32.mrf.mxu0
  %v656 = vadd.f32 %v488, %v655
  %v657 = vpop.f32.mrf.mxu0
  %658 = vmatprep.mubr.bf16.mxu0 0
  %659 = vmatmul.mubr.bf16.gmra.mxu0 %v460
  %v660 = vpop.f32.mrf.mxu0
  %v661 = vadd.f32 %v488, %v660
  %v662 = vpop.f32.mrf.mxu0
  %v663 = vpop.f32.mrf.mxu0
  %v664 = vadd.f32 %v488, %v663
  %v665 = vpop.f32.mrf.mxu0
  %666 = vmatprep.mubr.bf16.mxu0 0
  %667 = vmatmul.mubr.bf16.gmra.mxu0 %v461
  %v668 = vpop.f32.mrf.mxu0
  %v669 = vadd.f32 %v488, %v668
  %v670 = vpop.f32.mrf.mxu0
  %v671 = vpop.f32.mrf.mxu0
  %v672 = vadd.f32 %v488, %v671
  %v673 = vpop.f32.mrf.mxu0
  %674 = vmatprep.mubr.bf16.mxu0 0
  %675 = vmatmul.mubr.bf16.gmra.mxu0 %v462
  %v676 = vpop.f32.mrf.mxu0
  %v677 = vadd.f32 %v488, %v676
  %v678 = vpop.f32.mrf.mxu0
  %v679 = vpop.f32.mrf.mxu0
  %v680 = vadd.f32 %v488, %v679
  %v681 = vpop.f32.mrf.mxu0
  %682 = vmatprep.mubr.bf16.mxu0 0
  %683 = vmatmul.mubr.bf16.gmra.mxu0 %v463
  %v684 = vpop.f32.mrf.mxu0
  %v685 = vadd.f32 %v488, %v684
  %v686 = vpop.f32.mrf.mxu0
  %v687 = vpop.f32.mrf.mxu0
  %v688 = vadd.f32 %v488, %v687
  %v689 = vpop.f32.mrf.mxu0
  %690 = vmatprep.mubr.bf16.mxu0 0
  %691 = vmatmul.mubr.bf16.gmra.mxu0 %v464
  %v692 = vpop.f32.mrf.mxu0
  %v693 = vadd.f32 %v488, %v692
  %v694 = vpop.f32.mrf.mxu0
  %v695 = vpop.f32.mrf.mxu0
  %v696 = vadd.f32 %v488, %v695
  %v697 = vpop.f32.mrf.mxu0
  %698 = vmatprep.mubr.bf16.mxu0 0
  %699 = vmatmul.mubr.bf16.gmra.mxu0 %v465
  %v700 = vpop.f32.mrf.mxu0
  %v701 = vadd.f32 %v488, %v700
  %v702 = vpop.f32.mrf.mxu0
  %v703 = vpop.f32.mrf.mxu0
  %v704 = vadd.f32 %v488, %v703
  %v705 = vpop.f32.mrf.mxu0
  %706 = vmatprep.mubr.bf16.mxu0 0
  %707 = vmatmul.mubr.bf16.gmra.mxu0 %v466
  %v708 = vpop.f32.mrf.mxu0
  %v709 = vadd.f32 %v488, %v708
  %v710 = vpop.f32.mrf.mxu0
  %v711 = vpop.f32.mrf.mxu0
  %v712 = vadd.f32 %v488, %v711
  %v713 = vpop.f32.mrf.mxu0
  %714 = vdwg.mxu0
  %vm715 = vcmp.gt.f32.partialorder %v573, 0.01
  %vm716 = vcmp.gt.f32.partialorder %v576, 0.01
  %vm717 = vcmp.gt.f32.partialorder %v581, 0.01
  %vm718 = vcmp.gt.f32.partialorder %v584, 0.01
  %vm719 = vcmp.gt.f32.partialorder %v589, 0.01
  %vm720 = vcmp.gt.f32.partialorder %v592, 0.01
  %vm721 = vcmp.gt.f32.partialorder %v597, 0.01
  %vm722 = vcmp.gt.f32.partialorder %v600, 0.01
  %vm723 = vcmp.gt.f32.partialorder %v605, 0.01
  %vm724 = vcmp.gt.f32.partialorder %v608, 0.01
  %vm725 = vcmp.gt.f32.partialorder %v613, 0.01
  %vm726 = vcmp.gt.f32.partialorder %v616, 0.01
  %vm727 = vcmp.gt.f32.partialorder %v621, 0.01
  %vm728 = vcmp.gt.f32.partialorder %v624, 0.01
  %vm729 = vcmp.gt.f32.partialorder %v629, 0.01
  %vm730 = vcmp.gt.f32.partialorder %v632, 0.01
  %vm731 = vcmp.gt.f32.partialorder %v637, 0.01
  %vm732 = vcmp.gt.f32.partialorder %v640, 0.01
  %vm733 = vcmp.gt.f32.partialorder %v645, 0.01
  %vm734 = vcmp.gt.f32.partialorder %v648, 0.01
  %vm735 = vcmp.gt.f32.partialorder %v653, 0.01
  %vm736 = vcmp.gt.f32.partialorder %v656, 0.01
  %vm737 = vcmp.gt.f32.partialorder %v661, 0.01
  %vm738 = vcmp.gt.f32.partialorder %v664, 0.01
  %vm739 = vcmp.gt.f32.partialorder %v669, 0.01
  %vm740 = vcmp.gt.f32.partialorder %v672, 0.01
  %vm741 = vcmp.gt.f32.partialorder %v677, 0.01
  %vm742 = vcmp.gt.f32.partialorder %v680, 0.01
  %vm743 = vcmp.gt.f32.partialorder %v685, 0.01
  %vm744 = vcmp.gt.f32.partialorder %v688, 0.01
  %vm745 = vcmp.gt.f32.partialorder %v693, 0.01
  %vm746 = vcmp.gt.f32.partialorder %v696, 0.01
  %vm747 = vcmp.gt.f32.partialorder %v701, 0.01
  %vm748 = vcmp.gt.f32.partialorder %v704, 0.01
  %vm749 = vcmp.gt.f32.partialorder %v709, 0.01
  %vm750 = vcmp.gt.f32.partialorder %v712, 0.01
  %v751 = vsub.f32 %v573, 0.01
  %v752 = vsub.f32 %v576, 0.01
  %v753 = vsub.f32 %v581, 0.01
  %v754 = vsub.f32 %v584, 0.01
  %v755 = vsub.f32 %v589, 0.01
  %v756 = vsub.f32 %v592, 0.01
  %v757 = vsub.f32 %v597, 0.01
  %v758 = vsub.f32 %v600, 0.01
  %v759 = vsub.f32 %v605, 0.01
  %v760 = vsub.f32 %v608, 0.01
  %v761 = vsub.f32 %v613, 0.01
  %v762 = vsub.f32 %v616, 0.01
  %v763 = vsub.f32 %v621, 0.01
  %v764 = vsub.f32 %v624, 0.01
  %v765 = vsub.f32 %v629, 0.01
  %v766 = vsub.f32 %v632, 0.01
  %v767 = vsub.f32 %v637, 0.01
  %v768 = vsub.f32 %v640, 0.01
  %v769 = vsub.f32 %v645, 0.01
  %v770 = vsub.f32 %v648, 0.01
  %v771 = vsub.f32 %v653, 0.01
  %v772 = vsub.f32 %v656, 0.01
  %v773 = vsub.f32 %v661, 0.01
  %v774 = vsub.f32 %v664, 0.01
  %v775 = vsub.f32 %v669, 0.01
  %v776 = vsub.f32 %v672, 0.01
  %v777 = vsub.f32 %v677, 0.01
  %v778 = vsub.f32 %v680, 0.01
  %v779 = vsub.f32 %v685, 0.01
  %v780 = vsub.f32 %v688, 0.01
  %v781 = vsub.f32 %v693, 0.01
  %v782 = vsub.f32 %v696, 0.01
  %v783 = vsub.f32 %v701, 0.01
  %v784 = vsub.f32 %v704, 0.01
  %v785 = vsub.f32 %v709, 0.01
  %v786 = vsub.f32 %v712, 0.01
  %vm787 = vcmp.lt.f32.partialorder %v573, -0.01
  %vm788 = vcmp.lt.f32.partialorder %v576, -0.01
  %vm789 = vcmp.lt.f32.partialorder %v581, -0.01
  %vm790 = vcmp.lt.f32.partialorder %v584, -0.01
  %vm791 = vcmp.lt.f32.partialorder %v589, -0.01
  %vm792 = vcmp.lt.f32.partialorder %v592, -0.01
  %vm793 = vcmp.lt.f32.partialorder %v597, -0.01
  %vm794 = vcmp.lt.f32.partialorder %v600, -0.01
  %vm795 = vcmp.lt.f32.partialorder %v605, -0.01
  %vm796 = vcmp.lt.f32.partialorder %v608, -0.01
  %vm797 = vcmp.lt.f32.partialorder %v613, -0.01
  %vm798 = vcmp.lt.f32.partialorder %v616, -0.01
  %vm799 = vcmp.lt.f32.partialorder %v621, -0.01
  %vm800 = vcmp.lt.f32.partialorder %v624, -0.01
  %vm801 = vcmp.lt.f32.partialorder %v629, -0.01
  %vm802 = vcmp.lt.f32.partialorder %v632, -0.01
  %vm803 = vcmp.lt.f32.partialorder %v637, -0.01
  %vm804 = vcmp.lt.f32.partialorder %v640, -0.01
  %vm805 = vcmp.lt.f32.partialorder %v645, -0.01
  %vm806 = vcmp.lt.f32.partialorder %v648, -0.01
  %vm807 = vcmp.lt.f32.partialorder %v653, -0.01
  %vm808 = vcmp.lt.f32.partialorder %v656, -0.01
  %vm809 = vcmp.lt.f32.partialorder %v661, -0.01
  %vm810 = vcmp.lt.f32.partialorder %v664, -0.01
  %vm811 = vcmp.lt.f32.partialorder %v669, -0.01
  %vm812 = vcmp.lt.f32.partialorder %v672, -0.01
  %vm813 = vcmp.lt.f32.partialorder %v677, -0.01
  %vm814 = vcmp.lt.f32.partialorder %v680, -0.01
  %vm815 = vcmp.lt.f32.partialorder %v685, -0.01
  %vm816 = vcmp.lt.f32.partialorder %v688, -0.01
  %vm817 = vcmp.lt.f32.partialorder %v693, -0.01
  %vm818 = vcmp.lt.f32.partialorder %v696, -0.01
  %vm819 = vcmp.lt.f32.partialorder %v701, -0.01
  %vm820 = vcmp.lt.f32.partialorder %v704, -0.01
  %vm821 = vcmp.lt.f32.partialorder %v709, -0.01
  %vm822 = vcmp.lt.f32.partialorder %v712, -0.01
  %v823 = vadd.f32 %v573, 0.01
  %v824 = vadd.f32 %v576, 0.01
  %v825 = vadd.f32 %v581, 0.01
  %v826 = vadd.f32 %v584, 0.01
  %v827 = vadd.f32 %v589, 0.01
  %v828 = vadd.f32 %v592, 0.01
  %v829 = vadd.f32 %v597, 0.01
  %v830 = vadd.f32 %v600, 0.01
  %v831 = vadd.f32 %v605, 0.01
  %v832 = vadd.f32 %v608, 0.01
  %v833 = vadd.f32 %v613, 0.01
  %v834 = vadd.f32 %v616, 0.01
  %v835 = vadd.f32 %v621, 0.01
  %v836 = vadd.f32 %v624, 0.01
  %v837 = vadd.f32 %v629, 0.01
  %v838 = vadd.f32 %v632, 0.01
  %v839 = vadd.f32 %v637, 0.01
  %v840 = vadd.f32 %v640, 0.01
  %v841 = vadd.f32 %v645, 0.01
  %v842 = vadd.f32 %v648, 0.01
  %v843 = vadd.f32 %v653, 0.01
  %v844 = vadd.f32 %v656, 0.01
  %v845 = vadd.f32 %v661, 0.01
  %v846 = vadd.f32 %v664, 0.01
  %v847 = vadd.f32 %v669, 0.01
  %v848 = vadd.f32 %v672, 0.01
  %v849 = vadd.f32 %v677, 0.01
  %v850 = vadd.f32 %v680, 0.01
  %v851 = vadd.f32 %v685, 0.01
  %v852 = vadd.f32 %v688, 0.01
  %v853 = vadd.f32 %v693, 0.01
  %v854 = vadd.f32 %v696, 0.01
  %v855 = vadd.f32 %v701, 0.01
  %v856 = vadd.f32 %v704, 0.01
  %v857 = vadd.f32 %v709, 0.01
  %v858 = vadd.f32 %v712, 0.01
  %v859 = vsel %vm787, %v823, 0.0
  %v860 = vsel %vm788, %v824, 0.0
  %v861 = vsel %vm789, %v825, 0.0
  %v862 = vsel %vm790, %v826, 0.0
  %v863 = vsel %vm791, %v827, 0.0
  %v864 = vsel %vm792, %v828, 0.0
  %v865 = vsel %vm793, %v829, 0.0
  %v866 = vsel %vm794, %v830, 0.0
  %v867 = vsel %vm795, %v831, 0.0
  %v868 = vsel %vm796, %v832, 0.0
  %v869 = vsel %vm797, %v833, 0.0
  %v870 = vsel %vm798, %v834, 0.0
  %v871 = vsel %vm799, %v835, 0.0
  %v872 = vsel %vm800, %v836, 0.0
  %v873 = vsel %vm801, %v837, 0.0
  %v874 = vsel %vm802, %v838, 0.0
  %v875 = vsel %vm803, %v839, 0.0
  %v876 = vsel %vm804, %v840, 0.0
  %v877 = vsel %vm805, %v841, 0.0
  %v878 = vsel %vm806, %v842, 0.0
  %v879 = vsel %vm807, %v843, 0.0
  %v880 = vsel %vm808, %v844, 0.0
  %v881 = vsel %vm809, %v845, 0.0
  %v882 = vsel %vm810, %v846, 0.0
  %v883 = vsel %vm811, %v847, 0.0
  %v884 = vsel %vm812, %v848, 0.0
  %v885 = vsel %vm813, %v849, 0.0
  %v886 = vsel %vm814, %v850, 0.0
  %v887 = vsel %vm815, %v851, 0.0
  %v888 = vsel %vm816, %v852, 0.0
  %v889 = vsel %vm817, %v853, 0.0
  %v890 = vsel %vm818, %v854, 0.0
  %v891 = vsel %vm819, %v855, 0.0
  %v892 = vsel %vm820, %v856, 0.0
  %v893 = vsel %vm821, %v857, 0.0
  %v894 = vsel %vm822, %v858, 0.0
  %v895 = vsel %vm715, %v751, %v859
  %v896 = vsel %vm716, %v752, %v860
  %v897 = vsel %vm717, %v753, %v861
  %v898 = vsel %vm718, %v754, %v862
  %v899 = vsel %vm719, %v755, %v863
  %v900 = vsel %vm720, %v756, %v864
  %v901 = vsel %vm721, %v757, %v865
  %v902 = vsel %vm722, %v758, %v866
  %v903 = vsel %vm723, %v759, %v867
  %v904 = vsel %vm724, %v760, %v868
  %v905 = vsel %vm725, %v761, %v869
  %v906 = vsel %vm726, %v762, %v870
  %v907 = vsel %vm727, %v763, %v871
  %v908 = vsel %vm728, %v764, %v872
  %v909 = vsel %vm729, %v765, %v873
  %v910 = vsel %vm730, %v766, %v874
  %v911 = vsel %vm731, %v767, %v875
  %v912 = vsel %vm732, %v768, %v876
  %v913 = vsel %vm733, %v769, %v877
  %v914 = vsel %vm734, %v770, %v878
  %v915 = vsel %vm735, %v771, %v879
  %v916 = vsel %vm736, %v772, %v880
  %v917 = vsel %vm737, %v773, %v881
  %v918 = vsel %vm738, %v774, %v882
  %v919 = vsel %vm739, %v775, %v883
  %v920 = vsel %vm740, %v776, %v884
  %v921 = vsel %vm741, %v777, %v885
  %v922 = vsel %vm742, %v778, %v886
  %v923 = vsel %vm743, %v779, %v887
  %v924 = vsel %vm744, %v780, %v888
  %v925 = vsel %vm745, %v781, %v889
  %v926 = vsel %vm746, %v782, %v890
  %v927 = vsel %vm747, %v783, %v891
  %v928 = vsel %vm748, %v784, %v892
  %v929 = vsel %vm749, %v785, %v893
  %v930 = vsel %vm750, %v786, %v894
  %931 = vst [vmem:[%s5] sm:$0xff] %v895
  %932 = vst [vmem:[%s5 + $0x8] sm:$0xff] %v896
  %933 = vst [vmem:[%s5 + $0x10] sm:$0xff] %v897
  %934 = vst [vmem:[%s5 + $0x18] sm:$0xff] %v898
  %935 = vst [vmem:[%s5 + $0x20] sm:$0xff] %v899
  %936 = vst [vmem:[%s5 + $0x28] sm:$0xff] %v900
  %937 = vst [vmem:[%s5 + $0x30] sm:$0xff] %v901
  %938 = vst [vmem:[%s5 + $0x38] sm:$0xff] %v902
  %939 = vst [vmem:[%s5 + $0x40] sm:$0xff] %v903
  %940 = vst [vmem:[%s5 + $0x48] sm:$0xff] %v904
  %941 = vst [vmem:[%s5 + $0x50] sm:$0xff] %v905
  %942 = vst [vmem:[%s5 + $0x58] sm:$0xff] %v906
  %943 = vst [vmem:[%s5 + $0x60] sm:$0xff] %v907
  %944 = vst [vmem:[%s5 + $0x68] sm:$0xff] %v908
  %945 = vst [vmem:[%s5 + $0x70] sm:$0xff] %v909
  %946 = vst [vmem:[%s5 + $0x78] sm:$0xff] %v910
  %947 = vst [vmem:[%s5 + $0x80] sm:$0xff] %v911
  %948 = vst [vmem:[%s5 + $0x88] sm:$0xff] %v912
  %949 = vst [vmem:[%s5 + $0x90] sm:$0xff] %v913
  %950 = vst [vmem:[%s5 + $0x98] sm:$0xff] %v914
  %951 = vst [vmem:[%s5 + $0xa0] sm:$0xff] %v915
  %952 = vst [vmem:[%s5 + $0xa8] sm:$0xff] %v916
  %953 = vst [vmem:[%s5 + $0xb0] sm:$0xff] %v917
  %954 = vst [vmem:[%s5 + $0xb8] sm:$0xff] %v918
  %955 = vst [vmem:[%s5 + $0xc0] sm:$0xff] %v919
  %956 = vst [vmem:[%s5 + $0xc8] sm:$0xff] %v920
  %957 = vst [vmem:[%s5 + $0xd0] sm:$0xff] %v921
  %958 = vst [vmem:[%s5 + $0xd8] sm:$0xff] %v922
  %959 = vst [vmem:[%s5 + $0xe0] sm:$0xff] %v923
  %960 = vst [vmem:[%s5 + $0xe8] sm:$0xff] %v924
  %961 = vst [vmem:[%s5 + $0xf0] sm:$0xff] %v925
  %962 = vst [vmem:[%s5 + $0xf8] sm:$0xff] %v926
  %963 = vst [vmem:[%s5 + $0x100] sm:$0xff] %v927
  %964 = vst [vmem:[%s5 + $0x108] sm:$0xff] %v928
  %965 = vst [vmem:[%s5 + $0x110] sm:$0xff] %v929
  %966 = vst [vmem:[%s5 + $0x118] sm:$0xff] %v930
  // Predicated region
  $region22: #{run.4} parent=0 // pred_check
    _
  $region23: #{run.4} parent=0 // pred_check_branch
    %968 = sbr.rel (0) target = $region25
  $region24: #{run.4} parent=0 // pred_region
    _
  $region25: #{run.4} parent=0 // pred_fallthru
    _
  // Predicated region
  $region26: #{run.4} parent=0 // pred_check
    _
  $region27: #{run.4} parent=0 // pred_check_branch
    %970 = sbr.rel (0) target = $region29
  $region28: #{run.4} parent=0 // pred_region
    _
  $region29: #{run.4} parent=0 // pred_fallthru
    _

// kernel: reverse.4
$region0: #{reverse.4}
  #allocation0 [shape = 's32[1]{0}', space=sflag, size = 0x4, scoped, tag = 'scoped memory for reverse.4']
  %s0 = inlined_call_operand.vmem [shape: f32[2,32,16,7], index: 0, kind: input, shape index: {}]
  %s1 = inlined_call_operand.vmem [shape: f32[2,32,16,7], index: 1, kind: output, shape index: {}]
  %s2 = scalar_lea.vmem %s0, 96
  %v3 = vld [vmem:[%s2] sm:$0xff]
  %4 = vst [vmem:[%s1] sm:$0xff] %v3
  %s5 = scalar_lea.vmem %s0, 208
  %v6 = vld [vmem:[%s5] sm:$0xff]
  %s7 = scalar_lea.vmem %s1, 112
  %8 = vst [vmem:[%s7] sm:$0xff] %v6
  %s9 = scalar_lea.vmem %s0, 80
  %v10 = vld [vmem:[%s9] sm:$0xff]
  %s11 = scalar_lea.vmem %s1, 16
  %12 = vst [vmem:[%s11] sm:$0xff] %v10
  %s13 = scalar_lea.vmem %s0, 192
  %v14 = vld [vmem:[%s13] sm:$0xff]
  %s15 = scalar_lea.vmem %s1, 128
  %16 = vst [vmem:[%s15] sm:$0xff] %v14
  %s17 = scalar_lea.vmem %s0, 64
  %v18 = vld [vmem:[%s17] sm:$0xff]
  %s19 = scalar_lea.vmem %s1, 32
  %20 = vst [vmem:[%s19] sm:$0xff] %v18
  %s21 = scalar_lea.vmem %s0, 176
  %v22 = vld [vmem:[%s21] sm:$0xff]
  %s23 = scalar_lea.vmem %s1, 144
  %24 = vst [vmem:[%s23] sm:$0xff] %v22
  %s25 = scalar_lea.vmem %s0, 48
  %v26 = vld [vmem:[%s25] sm:$0xff]
  %s27 = scalar_lea.vmem %s1, 48
  %28 = vst [vmem:[%s27] sm:$0xff] %v26
  %s29 = scalar_lea.vmem %s0, 160
  %v30 = vld [vmem:[%s29] sm:$0xff]
  %s31 = scalar_lea.vmem %s1, 160
  %32 = vst [vmem:[%s31] sm:$0xff] %v30
  %s33 = scalar_lea.vmem %s0, 32
  %v34 = vld [vmem:[%s33] sm:$0xff]
  %s35 = scalar_lea.vmem %s1, 64
  %36 = vst [vmem:[%s35] sm:$0xff] %v34
  %s37 = scalar_lea.vmem %s0, 144
  %v38 = vld [vmem:[%s37] sm:$0xff]
  %s39 = scalar_lea.vmem %s1, 176
  %40 = vst [vmem:[%s39] sm:$0xff] %v38
  %s41 = scalar_lea.vmem %s0, 16
  %v42 = vld [vmem:[%s41] sm:$0xff]
  %s43 = scalar_lea.vmem %s1, 80
  %44 = vst [vmem:[%s43] sm:$0xff] %v42
  %s45 = scalar_lea.vmem %s0, 128
  %v46 = vld [vmem:[%s45] sm:$0xff]
  %s47 = scalar_lea.vmem %s1, 192
  %48 = vst [vmem:[%s47] sm:$0xff] %v46
  %v49 = vld [vmem:[%s0] sm:$0xff]
  %s50 = scalar_lea.vmem %s1, 96
  %51 = vst [vmem:[%s50] sm:$0xff] %v49
  %s52 = scalar_lea.vmem %s0, 112
  %v53 = vld [vmem:[%s52] sm:$0xff]
  %s54 = scalar_lea.vmem %s1, 208
  %55 = vst [vmem:[%s54] sm:$0xff] %v53
  %s56 = scalar_lea.vmem %s0, 104
  %v57 = vld [vmem:[%s56] sm:$0xff]
  %s58 = scalar_lea.vmem %s1, 8
  %59 = vst [vmem:[%s58] sm:$0xff] %v57
  %s60 = scalar_lea.vmem %s0, 216
  %v61 = vld [vmem:[%s60] sm:$0xff]
  %s62 = scalar_lea.vmem %s1, 120
  %63 = vst [vmem:[%s62] sm:$0xff] %v61
  %s64 = scalar_lea.vmem %s0, 88
  %v65 = vld [vmem:[%s64] sm:$0xff]
  %s66 = scalar_lea.vmem %s1, 24
  %67 = vst [vmem:[%s66] sm:$0xff] %v65
  %s68 = scalar_lea.vmem %s0, 200
  %v69 = vld [vmem:[%s68] sm:$0xff]
  %s70 = scalar_lea.vmem %s1, 136
  %71 = vst [vmem:[%s70] sm:$0xff] %v69
  %s72 = scalar_lea.vmem %s0, 72
  %v73 = vld [vmem:[%s72] sm:$0xff]
  %s74 = scalar_lea.vmem %s1, 40
  %75 = vst [vmem:[%s74] sm:$0xff] %v73
  %s76 = scalar_lea.vmem %s0, 184
  %v77 = vld [vmem:[%s76] sm:$0xff]
  %s78 = scalar_lea.vmem %s1, 152
  %79 = vst [vmem:[%s78] sm:$0xff] %v77
  %s80 = scalar_lea.vmem %s0, 56
  %v81 = vld [vmem:[%s80] sm:$0xff]
  %s82 = scalar_lea.vmem %s1, 56
  %83 = vst [vmem:[%s82] sm:$0xff] %v81
  %s84 = scalar_lea.vmem %s0, 168
  %v85 = vld [vmem:[%s84] sm:$0xff]
  %s86 = scalar_lea.vmem %s1, 168
  %87 = vst [vmem:[%s86] sm:$0xff] %v85
  %s88 = scalar_lea.vmem %s0, 40
  %v89 = vld [vmem:[%s88] sm:$0xff]
  %s90 = scalar_lea.vmem %s1, 72
  %91 = vst [vmem:[%s90] sm:$0xff] %v89
  %s92 = scalar_lea.vmem %s0, 152
  %v93 = vld [vmem:[%s92] sm:$0xff]
  %s94 = scalar_lea.vmem %s1, 184
  %95 = vst [vmem:[%s94] sm:$0xff] %v93
  %s96 = scalar_lea.vmem %s0, 24
  %v97 = vld [vmem:[%s96] sm:$0xff]
  %s98 = scalar_lea.vmem %s1, 88
  %99 = vst [vmem:[%s98] sm:$0xff] %v97
  %s100 = scalar_lea.vmem %s0, 136
  %v101 = vld [vmem:[%s100] sm:$0xff]
  %s102 = scalar_lea.vmem %s1, 200
  %103 = vst [vmem:[%s102] sm:$0xff] %v101
  %s104 = scalar_lea.vmem %s0, 8
  %v105 = vld [vmem:[%s104] sm:$0xff]
  %s106 = scalar_lea.vmem %s1, 104
  %107 = vst [vmem:[%s106] sm:$0xff] %v105
  %s108 = scalar_lea.vmem %s0, 120
  %v109 = vld [vmem:[%s108] sm:$0xff]
  %s110 = scalar_lea.vmem %s1, 216
  %111 = vst [vmem:[%s110] sm:$0xff] %v109

// kernel: run.5
$region0: #{run.5}
  #allocation0 [shape = 'u32[]', space=smem, size = 0x4, offset = 0x4, fixed_abs, tag = 'smem constant byte address 0x4 - core index']
  #allocation1 [shape = 'u32[144,128]{1,0:T(1,128)}', space=vmem, size = 0x12000, scoped, tag = 'internal scratch']
  %s0 = inlined_call_operand.vmem [shape: f32[512,128], index: 0, kind: input, shape index: {}]
  %s1 = inlined_call_operand.vmem [shape: f32[512,128], index: 1, kind: input, shape index: {}]
  %s2 = inlined_call_operand.vmem [shape: f32[1,128], index: 2, kind: input, shape index: {}]
  %s3 = inlined_call_operand.vmem [shape: f32[1,128], index: 3, kind: input, shape index: {}]
  %s4 = inlined_call_operand.vmem [shape: f32[1,128], index: 4, kind: input, shape index: {}]
  %s5 = inlined_call_operand.vmem [shape: f32[1,128], index: 5, kind: input, shape index: {}]
  %s6 = inlined_call_operand.vmem [shape: bf16[128,128], index: 6, kind: input, shape index: {}]
  %s7 = inlined_call_operand.vmem [shape: f32[1,128], index: 7, kind: input, shape index: {}]
  %s8 = inlined_call_operand.vmem [shape: bf16[128,128], index: 8, kind: input, shape index: {}]
  %s9 = inlined_call_operand.vmem [shape: f32[1,128], index: 9, kind: input, shape index: {}]
  %s10 = inlined_call_operand.vmem [shape: f32[512,128], index: 10, kind: output, shape index: {}]
  %s11 = sld [smem:[#allocation0]]
  $region50: #{run.5} parent=0
    _
  %s13 = ssub.s32 1, %s11
  %s14 = scalar_select 0, %s13, %s11
  // Predicated region
  $region2: #{run.5} parent=0 // pred_check
    _
  $region3: #{run.5} parent=0 // pred_check_branch
    %16 = sbr.rel (0) target = $region5
  $region4: #{run.5} parent=0 // pred_region
    _
  $region5: #{run.5} parent=0 // pred_fallthru
    _
  // Predicated region
  $region6: #{run.5} parent=0 // pred_check
    _
  $region7: #{run.5} parent=0 // pred_check_branch
    %18 = sbr.rel (0) target = $region9
  $region8: #{run.5} parent=0 // pred_region
    _
  $region9: #{run.5} parent=0 // pred_fallthru
    _
  // Predicated region
  $region10: #{run.5} parent=0 // pred_check
    _
  $region11: #{run.5} parent=0 // pred_check_branch
    %20 = sbr.rel (0) target = $region13
  $region12: #{run.5} parent=0 // pred_region
    _
  $region13: #{run.5} parent=0 // pred_fallthru
    _
  // Predicated region
  $region14: #{run.5} parent=0 // pred_check
    _
  $region15: #{run.5} parent=0 // pred_check_branch
    %22 = sbr.rel (0) target = $region17
  $region16: #{run.5} parent=0 // pred_region
    _
  $region17: #{run.5} parent=0 // pred_fallthru
    _
  // Predicated region
  $region18: #{run.5} parent=0 // pred_check
    _
  $region19: #{run.5} parent=0 // pred_check_branch
    %24 = sbr.rel (0) target = $region21
  $region20: #{run.5} parent=0 // pred_region
    _
  $region21: #{run.5} parent=0 // pred_fallthru
    _
  // Predicated region
  $region22: #{run.5} parent=0 // pred_check
    _
  $region23: #{run.5} parent=0 // pred_check_branch
    %26 = sbr.rel (0) target = $region25
  $region24: #{run.5} parent=0 // pred_region
    _
  $region25: #{run.5} parent=0 // pred_fallthru
    _
  // Predicated region
  $region26: #{run.5} parent=0 // pred_check
    _
  $region27: #{run.5} parent=0 // pred_check_branch
    %28 = sbr.rel (0) target = $region29
  $region28: #{run.5} parent=0 // pred_region
    _
  $region29: #{run.5} parent=0 // pred_fallthru
    _
  // Predicated region
  $region30: #{run.5} parent=0 // pred_check
    _
  $region31: #{run.5} parent=0 // pred_check_branch
    %30 = sbr.rel (0) target = $region33
  $region32: #{run.5} parent=0 // pred_region
    _
  $region33: #{run.5} parent=0 // pred_fallthru
    _
  // Predicated region
  $region34: #{run.5} parent=0 // pred_check
    _
  $region35: #{run.5} parent=0 // pred_check_branch
    %32 = sbr.rel (0) target = $region37
  $region36: #{run.5} parent=0 // pred_region
    _
  $region37: #{run.5} parent=0 // pred_fallthru
    _
  // Predicated region
  $region38: #{run.5} parent=0 // pred_check
    _
  $region39: #{run.5} parent=0 // pred_check_branch
    %34 = sbr.rel (0) target = $region41
  $region40: #{run.5} parent=0 // pred_region
    _
  $region41: #{run.5} parent=0 // pred_fallthru
    _
  %v36 = vld [vmem:[%s0] sm:$0xff]
  %v37 = vld [vmem:[%s0 + $0x8] sm:$0xff]
  %v38 = vld [vmem:[%s0 + $0x10] sm:$0xff]
  %v39 = vld [vmem:[%s0 + $0x18] sm:$0xff]
  %v40 = vld [vmem:[%s0 + $0x20] sm:$0xff]
  %v41 = vld [vmem:[%s0 + $0x28] sm:$0xff]
  %v42 = vld [vmem:[%s0 + $0x30] sm:$0xff]
  %v43 = vld [vmem:[%s0 + $0x38] sm:$0xff]
  %v44 = vld [vmem:[%s0 + $0x40] sm:$0xff]
  %v45 = vld [vmem:[%s0 + $0x48] sm:$0xff]
  %v46 = vld [vmem:[%s0 + $0x50] sm:$0xff]
  %v47 = vld [vmem:[%s0 + $0x58] sm:$0xff]
  %v48 = vld [vmem:[%s0 + $0x60] sm:$0xff]
  %v49 = vld [vmem:[%s0 + $0x68] sm:$0xff]
  %v50 = vld [vmem:[%s0 + $0x70] sm:$0xff]
  %v51 = vld [vmem:[%s0 + $0x78] sm:$0xff]
  %v52 = vld [vmem:[%s0 + $0x80] sm:$0xff]
  %v53 = vld [vmem:[%s0 + $0x88] sm:$0xff]
  %v54 = vld [vmem:[%s0 + $0x90] sm:$0xff]
  %v55 = vld [vmem:[%s0 + $0x98] sm:$0xff]
  %v56 = vld [vmem:[%s0 + $0xa0] sm:$0xff]
  %v57 = vld [vmem:[%s0 + $0xa8] sm:$0xff]
  %v58 = vld [vmem:[%s0 + $0xb0] sm:$0xff]
  %v59 = vld [vmem:[%s0 + $0xb8] sm:$0xff]
  %v60 = vld [vmem:[%s0 + $0xc0] sm:$0xff]
  %v61 = vld [vmem:[%s0 + $0xc8] sm:$0xff]
  %v62 = vld [vmem:[%s0 + $0xd0] sm:$0xff]
  %v63 = vld [vmem:[%s0 + $0xd8] sm:$0xff]
  %v64 = vld [vmem:[%s0 + $0xe0] sm:$0xff]
  %v65 = vld [vmem:[%s0 + $0xe8] sm:$0xff]
  %v66 = vld [vmem:[%s0 + $0xf0] sm:$0xff]
  %v67 = vld [vmem:[%s0 + $0xf8] sm:$0xff]
  %v68 = vld [vmem:[%s0 + $0x100] sm:$0xff]
  %v69 = vld [vmem:[%s0 + $0x108] sm:$0xff]
  %v70 = vld [vmem:[%s0 + $0x110] sm:$0xff]
  %v71 = vld [vmem:[%s0 + $0x118] sm:$0xff]
  %v72 = vld [vmem:[%s0 + $0x120] sm:$0xff]
  %v73 = vld [vmem:[%s0 + $0x128] sm:$0xff]
  %v74 = vld [vmem:[%s0 + $0x130] sm:$0xff]
  %v75 = vld [vmem:[%s0 + $0x138] sm:$0xff]
  %v76 = vld [vmem:[%s0 + $0x140] sm:$0xff]
  %v77 = vld [vmem:[%s0 + $0x148] sm:$0xff]
  %v78 = vld [vmem:[%s0 + $0x150] sm:$0xff]
  %v79 = vld [vmem:[%s0 + $0x158] sm:$0xff]
  %v80 = vld [vmem:[%s0 + $0x160] sm:$0xff]
  %v81 = vld [vmem:[%s0 + $0x168] sm:$0xff]
  %v82 = vld [vmem:[%s0 + $0x170] sm:$0xff]
  %v83 = vld [vmem:[%s0 + $0x178] sm:$0xff]
  %v84 = vld [vmem:[%s0 + $0x180] sm:$0xff]
  %v85 = vld [vmem:[%s0 + $0x188] sm:$0xff]
  %v86 = vld [vmem:[%s0 + $0x190] sm:$0xff]
  %v87 = vld [vmem:[%s0 + $0x198] sm:$0xff]
  %v88 = vld [vmem:[%s0 + $0x1a0] sm:$0xff]
  %v89 = vld [vmem:[%s0 + $0x1a8] sm:$0xff]
  %v90 = vld [vmem:[%s0 + $0x1b0] sm:$0xff]
  %v91 = vld [vmem:[%s0 + $0x1b8] sm:$0xff]
  %v92 = vld [vmem:[%s0 + $0x1c0] sm:$0xff]
  %v93 = vld [vmem:[%s0 + $0x1c8] sm:$0xff]
  %v94 = vld [vmem:[%s0 + $0x1d0] sm:$0xff]
  %v95 = vld [vmem:[%s0 + $0x1d8] sm:$0xff]
  %v96 = vld [vmem:[%s0 + $0x1e0] sm:$0xff]
  %v97 = vld [vmem:[%s0 + $0x1e8] sm:$0xff]
  %v98 = vld [vmem:[%s0 + $0x1f0] sm:$0xff]
  %v99 = vld [vmem:[%s0 + $0x1f8] sm:$0xff]
  %100 = vadd.xlane.f32.xlu0 %v36
  %v101 = vpop.xlane.xlu0 %100
  %102 = vadd.xlane.f32.xlu0 %v37
  %v103 = vpop.xlane.xlu0 %102
  %104 = vadd.xlane.f32.xlu0 %v38
  %v105 = vpop.xlane.xlu0 %104
  %106 = vadd.xlane.f32.xlu0 %v39
  %v107 = vpop.xlane.xlu0 %106
  %108 = vadd.xlane.f32.xlu0 %v40
  %v109 = vpop.xlane.xlu0 %108
  %110 = vadd.xlane.f32.xlu0 %v41
  %v111 = vpop.xlane.xlu0 %110
  %112 = vadd.xlane.f32.xlu0 %v42
  %v113 = vpop.xlane.xlu0 %112
  %114 = vadd.xlane.f32.xlu0 %v43
  %v115 = vpop.xlane.xlu0 %114
  %116 = vadd.xlane.f32.xlu0 %v44
  %v117 = vpop.xlane.xlu0 %116
  %118 = vadd.xlane.f32.xlu0 %v45
  %v119 = vpop.xlane.xlu0 %118
  %120 = vadd.xlane.f32.xlu0 %v46
  %v121 = vpop.xlane.xlu0 %120
  %122 = vadd.xlane.f32.xlu0 %v47
  %v123 = vpop.xlane.xlu0 %122
  %124 = vadd.xlane.f32.xlu0 %v48
  %v125 = vpop.xlane.xlu0 %124
  %126 = vadd.xlane.f32.xlu0 %v49
  %v127 = vpop.xlane.xlu0 %126
  %128 = vadd.xlane.f32.xlu0 %v50
  %v129 = vpop.xlane.xlu0 %128
  %130 = vadd.xlane.f32.xlu0 %v51
  %v131 = vpop.xlane.xlu0 %130
  %132 = vadd.xlane.f32.xlu0 %v52
  %v133 = vpop.xlane.xlu0 %132
  %134 = vadd.xlane.f32.xlu0 %v53
  %v135 = vpop.xlane.xlu0 %134
  %136 = vadd.xlane.f32.xlu0 %v54
  %v137 = vpop.xlane.xlu0 %136
  %138 = vadd.xlane.f32.xlu0 %v55
  %v139 = vpop.xlane.xlu0 %138
  %140 = vadd.xlane.f32.xlu0 %v56
  %v141 = vpop.xlane.xlu0 %140
  %142 = vadd.xlane.f32.xlu0 %v57
  %v143 = vpop.xlane.xlu0 %142
  %144 = vadd.xlane.f32.xlu0 %v58
  %v145 = vpop.xlane.xlu0 %144
  %146 = vadd.xlane.f32.xlu0 %v59
  %v147 = vpop.xlane.xlu0 %146
  %148 = vadd.xlane.f32.xlu0 %v60
  %v149 = vpop.xlane.xlu0 %148
  %150 = vadd.xlane.f32.xlu0 %v61
  %v151 = vpop.xlane.xlu0 %150
  %152 = vadd.xlane.f32.xlu0 %v62
  %v153 = vpop.xlane.xlu0 %152
  %154 = vadd.xlane.f32.xlu0 %v63
  %v155 = vpop.xlane.xlu0 %154
  %156 = vadd.xlane.f32.xlu0 %v64
  %v157 = vpop.xlane.xlu0 %156
  %158 = vadd.xlane.f32.xlu0 %v65
  %v159 = vpop.xlane.xlu0 %158
  %160 = vadd.xlane.f32.xlu0 %v66
  %v161 = vpop.xlane.xlu0 %160
  %162 = vadd.xlane.f32.xlu0 %v67
  %v163 = vpop.xlane.xlu0 %162
  %164 = vadd.xlane.f32.xlu0 %v68
  %v165 = vpop.xlane.xlu0 %164
  %166 = vadd.xlane.f32.xlu0 %v69
  %v167 = vpop.xlane.xlu0 %166
  %168 = vadd.xlane.f32.xlu0 %v70
  %v169 = vpop.xlane.xlu0 %168
  %170 = vadd.xlane.f32.xlu0 %v71
  %v171 = vpop.xlane.xlu0 %170
  %172 = vadd.xlane.f32.xlu0 %v72
  %v173 = vpop.xlane.xlu0 %172
  %174 = vadd.xlane.f32.xlu0 %v73
  %v175 = vpop.xlane.xlu0 %174
  %176 = vadd.xlane.f32.xlu0 %v74
  %v177 = vpop.xlane.xlu0 %176
  %178 = vadd.xlane.f32.xlu0 %v75
  %v179 = vpop.xlane.xlu0 %178
  %180 = vadd.xlane.f32.xlu0 %v76
  %v181 = vpop.xlane.xlu0 %180
  %182 = vadd.xlane.f32.xlu0 %v77
  %v183 = vpop.xlane.xlu0 %182
  %184 = vadd.xlane.f32.xlu0 %v78
  %v185 = vpop.xlane.xlu0 %184
  %186 = vadd.xlane.f32.xlu0 %v79
  %v187 = vpop.xlane.xlu0 %186
  %188 = vadd.xlane.f32.xlu0 %v80
  %v189 = vpop.xlane.xlu0 %188
  %190 = vadd.xlane.f32.xlu0 %v81
  %v191 = vpop.xlane.xlu0 %190
  %192 = vadd.xlane.f32.xlu0 %v82
  %v193 = vpop.xlane.xlu0 %192
  %194 = vadd.xlane.f32.xlu0 %v83
  %v195 = vpop.xlane.xlu0 %194
  %196 = vadd.xlane.f32.xlu0 %v84
  %v197 = vpop.xlane.xlu0 %196
  %198 = vadd.xlane.f32.xlu0 %v85
  %v199 = vpop.xlane.xlu0 %198
  %200 = vadd.xlane.f32.xlu0 %v86
  %v201 = vpop.xlane.xlu0 %200
  %202 = vadd.xlane.f32.xlu0 %v87
  %v203 = vpop.xlane.xlu0 %202
  %204 = vadd.xlane.f32.xlu0 %v88
  %v205 = vpop.xlane.xlu0 %204
  %206 = vadd.xlane.f32.xlu0 %v89
  %v207 = vpop.xlane.xlu0 %206
  %208 = vadd.xlane.f32.xlu0 %v90
  %v209 = vpop.xlane.xlu0 %208
  %210 = vadd.xlane.f32.xlu0 %v91
  %v211 = vpop.xlane.xlu0 %210
  %212 = vadd.xlane.f32.xlu0 %v92
  %v213 = vpop.xlane.xlu0 %212
  %214 = vadd.xlane.f32.xlu0 %v93
  %v215 = vpop.xlane.xlu0 %214
  %216 = vadd.xlane.f32.xlu0 %v94
  %v217 = vpop.xlane.xlu0 %216
  %218 = vadd.xlane.f32.xlu0 %v95
  %v219 = vpop.xlane.xlu0 %218
  %220 = vadd.xlane.f32.xlu0 %v96
  %v221 = vpop.xlane.xlu0 %220
  %222 = vadd.xlane.f32.xlu0 %v97
  %v223 = vpop.xlane.xlu0 %222
  %224 = vadd.xlane.f32.xlu0 %v98
  %v225 = vpop.xlane.xlu0 %224
  %226 = vadd.xlane.f32.xlu0 %v99
  %v227 = vpop.xlane.xlu0 %226
  %v228 = vmul.f32 %v101, 0.03125
  %v229 = vmul.f32 %v103, 0.03125
  %v230 = vmul.f32 %v105, 0.03125
  %v231 = vmul.f32 %v107, 0.03125
  %v232 = vmul.f32 %v109, 0.03125
  %v233 = vmul.f32 %v111, 0.03125
  %v234 = vmul.f32 %v113, 0.03125
  %v235 = vmul.f32 %v115, 0.03125
  %v236 = vmul.f32 %v117, 0.03125
  %v237 = vmul.f32 %v119, 0.03125
  %v238 = vmul.f32 %v121, 0.03125
  %v239 = vmul.f32 %v123, 0.03125
  %v240 = vmul.f32 %v125, 0.03125
  %v241 = vmul.f32 %v127, 0.03125
  %v242 = vmul.f32 %v129, 0.03125
  %v243 = vmul.f32 %v131, 0.03125
  %v244 = vmul.f32 %v133, 0.03125
  %v245 = vmul.f32 %v135, 0.03125
  %v246 = vmul.f32 %v137, 0.03125
  %v247 = vmul.f32 %v139, 0.03125
  %v248 = vmul.f32 %v141, 0.03125
  %v249 = vmul.f32 %v143, 0.03125
  %v250 = vmul.f32 %v145, 0.03125
  %v251 = vmul.f32 %v147, 0.03125
  %v252 = vmul.f32 %v149, 0.03125
  %v253 = vmul.f32 %v151, 0.03125
  %v254 = vmul.f32 %v153, 0.03125
  %v255 = vmul.f32 %v155, 0.03125
  %v256 = vmul.f32 %v157, 0.03125
  %v257 = vmul.f32 %v159, 0.03125
  %v258 = vmul.f32 %v161, 0.03125
  %v259 = vmul.f32 %v163, 0.03125
  %v260 = vmul.f32 %v165, 0.03125
  %v261 = vmul.f32 %v167, 0.03125
  %v262 = vmul.f32 %v169, 0.03125
  %v263 = vmul.f32 %v171, 0.03125
  %v264 = vmul.f32 %v173, 0.03125
  %v265 = vmul.f32 %v175, 0.03125
  %v266 = vmul.f32 %v177, 0.03125
  %v267 = vmul.f32 %v179, 0.03125
  %v268 = vmul.f32 %v181, 0.03125
  %v269 = vmul.f32 %v183, 0.03125
  %v270 = vmul.f32 %v185, 0.03125
  %v271 = vmul.f32 %v187, 0.03125
  %v272 = vmul.f32 %v189, 0.03125
  %v273 = vmul.f32 %v191, 0.03125
  %v274 = vmul.f32 %v193, 0.03125
  %v275 = vmul.f32 %v195, 0.03125
  %v276 = vmul.f32 %v197, 0.03125
  %v277 = vmul.f32 %v199, 0.03125
  %v278 = vmul.f32 %v201, 0.03125
  %v279 = vmul.f32 %v203, 0.03125
  %v280 = vmul.f32 %v205, 0.03125
  %v281 = vmul.f32 %v207, 0.03125
  %v282 = vmul.f32 %v209, 0.03125
  %v283 = vmul.f32 %v211, 0.03125
  %v284 = vmul.f32 %v213, 0.03125
  %v285 = vmul.f32 %v215, 0.03125
  %v286 = vmul.f32 %v217, 0.03125
  %v287 = vmul.f32 %v219, 0.03125
  %v288 = vmul.f32 %v221, 0.03125
  %v289 = vmul.f32 %v223, 0.03125
  %v290 = vmul.f32 %v225, 0.03125
  %v291 = vmul.f32 %v227, 0.03125
  %v292 = vmul.f32 %v36, %v36
  %v293 = vmul.f32 %v37, %v37
  %v294 = vmul.f32 %v38, %v38
  %v295 = vmul.f32 %v39, %v39
  %v296 = vmul.f32 %v40, %v40
  %v297 = vmul.f32 %v41, %v41
  %v298 = vmul.f32 %v42, %v42
  %v299 = vmul.f32 %v43, %v43
  %v300 = vmul.f32 %v44, %v44
  %v301 = vmul.f32 %v45, %v45
  %v302 = vmul.f32 %v46, %v46
  %v303 = vmul.f32 %v47, %v47
  %v304 = vmul.f32 %v48, %v48
  %v305 = vmul.f32 %v49, %v49
  %v306 = vmul.f32 %v50, %v50
  %v307 = vmul.f32 %v51, %v51
  %v308 = vmul.f32 %v52, %v52
  %v309 = vmul.f32 %v53, %v53
  %v310 = vmul.f32 %v54, %v54
  %v311 = vmul.f32 %v55, %v55
  %v312 = vmul.f32 %v56, %v56
  %v313 = vmul.f32 %v57, %v57
  %v314 = vmul.f32 %v58, %v58
  %v315 = vmul.f32 %v59, %v59
  %v316 = vmul.f32 %v60, %v60
  %v317 = vmul.f32 %v61, %v61
  %v318 = vmul.f32 %v62, %v62
  %v319 = vmul.f32 %v63, %v63
  %v320 = vmul.f32 %v64, %v64
  %v321 = vmul.f32 %v65, %v65
  %v322 = vmul.f32 %v66, %v66
  %v323 = vmul.f32 %v67, %v67
  %v324 = vmul.f32 %v68, %v68
  %v325 = vmul.f32 %v69, %v69
  %v326 = vmul.f32 %v70, %v70
  %v327 = vmul.f32 %v71, %v71
  %v328 = vmul.f32 %v72, %v72
  %v329 = vmul.f32 %v73, %v73
  %v330 = vmul.f32 %v74, %v74
  %v331 = vmul.f32 %v75, %v75
  %v332 = vmul.f32 %v76, %v76
  %v333 = vmul.f32 %v77, %v77
  %v334 = vmul.f32 %v78, %v78
  %v335 = vmul.f32 %v79, %v79
  %v336 = vmul.f32 %v80, %v80
  %v337 = vmul.f32 %v81, %v81
  %v338 = vmul.f32 %v82, %v82
  %v339 = vmul.f32 %v83, %v83
  %v340 = vmul.f32 %v84, %v84
  %v341 = vmul.f32 %v85, %v85
  %v342 = vmul.f32 %v86, %v86
  %v343 = vmul.f32 %v87, %v87
  %v344 = vmul.f32 %v88, %v88
  %v345 = vmul.f32 %v89, %v89
  %v346 = vmul.f32 %v90, %v90
  %v347 = vmul.f32 %v91, %v91
  %v348 = vmul.f32 %v92, %v92
  %v349 = vmul.f32 %v93, %v93
  %v350 = vmul.f32 %v94, %v94
  %v351 = vmul.f32 %v95, %v95
  %v352 = vmul.f32 %v96, %v96
  %v353 = vmul.f32 %v97, %v97
  %v354 = vmul.f32 %v98, %v98
  %v355 = vmul.f32 %v99, %v99
  %356 = vadd.xlane.f32.xlu0 %v292
  %v357 = vpop.xlane.xlu0 %356
  %358 = vadd.xlane.f32.xlu0 %v293
  %v359 = vpop.xlane.xlu0 %358
  %360 = vadd.xlane.f32.xlu0 %v294
  %v361 = vpop.xlane.xlu0 %360
  %362 = vadd.xlane.f32.xlu0 %v295
  %v363 = vpop.xlane.xlu0 %362
  %364 = vadd.xlane.f32.xlu0 %v296
  %v365 = vpop.xlane.xlu0 %364
  %366 = vadd.xlane.f32.xlu0 %v297
  %v367 = vpop.xlane.xlu0 %366
  %368 = vadd.xlane.f32.xlu0 %v298
  %v369 = vpop.xlane.xlu0 %368
  %370 = vadd.xlane.f32.xlu0 %v299
  %v371 = vpop.xlane.xlu0 %370
  %372 = vadd.xlane.f32.xlu0 %v300
  %v373 = vpop.xlane.xlu0 %372
  %374 = vadd.xlane.f32.xlu0 %v301
  %v375 = vpop.xlane.xlu0 %374
  %376 = vadd.xlane.f32.xlu0 %v302
  %v377 = vpop.xlane.xlu0 %376
  %378 = vadd.xlane.f32.xlu0 %v303
  %v379 = vpop.xlane.xlu0 %378
  %380 = vadd.xlane.f32.xlu0 %v304
  %v381 = vpop.xlane.xlu0 %380
  %382 = vadd.xlane.f32.xlu0 %v305
  %v383 = vpop.xlane.xlu0 %382
  %384 = vadd.xlane.f32.xlu0 %v306
  %v385 = vpop.xlane.xlu0 %384
  %386 = vadd.xlane.f32.xlu0 %v307
  %v387 = vpop.xlane.xlu0 %386
  %388 = vadd.xlane.f32.xlu0 %v308
  %v389 = vpop.xlane.xlu0 %388
  %390 = vadd.xlane.f32.xlu0 %v309
  %v391 = vpop.xlane.xlu0 %390
  %392 = vadd.xlane.f32.xlu0 %v310
  %v393 = vpop.xlane.xlu0 %392
  %394 = vadd.xlane.f32.xlu0 %v311
  %v395 = vpop.xlane.xlu0 %394
  %396 = vadd.xlane.f32.xlu0 %v312
  %v397 = vpop.xlane.xlu0 %396
  %398 = vadd.xlane.f32.xlu0 %v313
  %v399 = vpop.xlane.xlu0 %398
  %400 = vadd.xlane.f32.xlu0 %v314
  %v401 = vpop.xlane.xlu0 %400
  %402 = vadd.xlane.f32.xlu0 %v315
  %v403 = vpop.xlane.xlu0 %402
  %404 = vadd.xlane.f32.xlu0 %v316
  %v405 = vpop.xlane.xlu0 %404
  %406 = vadd.xlane.f32.xlu0 %v317
  %v407 = vpop.xlane.xlu0 %406
  %408 = vadd.xlane.f32.xlu0 %v318
  %v409 = vpop.xlane.xlu0 %408
  %410 = vadd.xlane.f32.xlu0 %v319
  %v411 = vpop.xlane.xlu0 %410
  %412 = vadd.xlane.f32.xlu0 %v320
  %v413 = vpop.xlane.xlu0 %412
  %414 = vadd.xlane.f32.xlu0 %v321
  %v415 = vpop.xlane.xlu0 %414
  %416 = vadd.xlane.f32.xlu0 %v322
  %v417 = vpop.xlane.xlu0 %416
  %418 = vadd.xlane.f32.xlu0 %v323
  %v419 = vpop.xlane.xlu0 %418
  %420 = vadd.xlane.f32.xlu0 %v324
  %v421 = vpop.xlane.xlu0 %420
  %422 = vadd.xlane.f32.xlu0 %v325
  %v423 = vpop.xlane.xlu0 %422
  %424 = vadd.xlane.f32.xlu0 %v326
  %v425 = vpop.xlane.xlu0 %424
  %426 = vadd.xlane.f32.xlu0 %v327
  %v427 = vpop.xlane.xlu0 %426
  %428 = vadd.xlane.f32.xlu0 %v328
  %v429 = vpop.xlane.xlu0 %428
  %430 = vadd.xlane.f32.xlu0 %v329
  %v431 = vpop.xlane.xlu0 %430
  %432 = vadd.xlane.f32.xlu0 %v330
  %v433 = vpop.xlane.xlu0 %432
  %434 = vadd.xlane.f32.xlu0 %v331
  %v435 = vpop.xlane.xlu0 %434
  %436 = vadd.xlane.f32.xlu0 %v332
  %v437 = vpop.xlane.xlu0 %436
  %438 = vadd.xlane.f32.xlu0 %v333
  %v439 = vpop.xlane.xlu0 %438
  %440 = vadd.xlane.f32.xlu0 %v334
  %v441 = vpop.xlane.xlu0 %440
  %442 = vadd.xlane.f32.xlu0 %v335
  %v443 = vpop.xlane.xlu0 %442
  %444 = vadd.xlane.f32.xlu0 %v336
  %v445 = vpop.xlane.xlu0 %444
  %446 = vadd.xlane.f32.xlu0 %v337
  %v447 = vpop.xlane.xlu0 %446
  %448 = vadd.xlane.f32.xlu0 %v338
  %v449 = vpop.xlane.xlu0 %448
  %450 = vadd.xlane.f32.xlu0 %v339
  %v451 = vpop.xlane.xlu0 %450
  %452 = vadd.xlane.f32.xlu0 %v340
  %v453 = vpop.xlane.xlu0 %452
  %454 = vadd.xlane.f32.xlu0 %v341
  %v455 = vpop.xlane.xlu0 %454
  %456 = vadd.xlane.f32.xlu0 %v342
  %v457 = vpop.xlane.xlu0 %456
  %458 = vadd.xlane.f32.xlu0 %v343
  %v459 = vpop.xlane.xlu0 %458
  %460 = vadd.xlane.f32.xlu0 %v344
  %v461 = vpop.xlane.xlu0 %460
  %462 = vadd.xlane.f32.xlu0 %v345
  %v463 = vpop.xlane.xlu0 %462
  %464 = vadd.xlane.f32.xlu0 %v346
  %v465 = vpop.xlane.xlu0 %464
  %466 = vadd.xlane.f32.xlu0 %v347
  %v467 = vpop.xlane.xlu0 %466
  %468 = vadd.xlane.f32.xlu0 %v348
  %v469 = vpop.xlane.xlu0 %468
  %470 = vadd.xlane.f32.xlu0 %v349
  %v471 = vpop.xlane.xlu0 %470
  %472 = vadd.xlane.f32.xlu0 %v350
  %v473 = vpop.xlane.xlu0 %472
  %474 = vadd.xlane.f32.xlu0 %v351
  %v475 = vpop.xlane.xlu0 %474
  %476 = vadd.xlane.f32.xlu0 %v352
  %v477 = vpop.xlane.xlu0 %476
  %478 = vadd.xlane.f32.xlu0 %v353
  %v479 = vpop.xlane.xlu0 %478
  %480 = vadd.xlane.f32.xlu0 %v354
  %v481 = vpop.xlane.xlu0 %480
  %482 = vadd.xlane.f32.xlu0 %v355
  %v483 = vpop.xlane.xlu0 %482
  %v484 = vmul.f32 %v357, 0.03125
  %v485 = vmul.f32 %v359, 0.03125
  %v486 = vmul.f32 %v361, 0.03125
  %v487 = vmul.f32 %v363, 0.03125
  %v488 = vmul.f32 %v365, 0.03125
  %v489 = vmul.f32 %v367, 0.03125
  %v490 = vmul.f32 %v369, 0.03125
  %v491 = vmul.f32 %v371, 0.03125
  %v492 = vmul.f32 %v373, 0.03125
  %v493 = vmul.f32 %v375, 0.03125
  %v494 = vmul.f32 %v377, 0.03125
  %v495 = vmul.f32 %v379, 0.03125
  %v496 = vmul.f32 %v381, 0.03125
  %v497 = vmul.f32 %v383, 0.03125
  %v498 = vmul.f32 %v385, 0.03125
  %v499 = vmul.f32 %v387, 0.03125
  %v500 = vmul.f32 %v389, 0.03125
  %v501 = vmul.f32 %v391, 0.03125
  %v502 = vmul.f32 %v393, 0.03125
  %v503 = vmul.f32 %v395, 0.03125
  %v504 = vmul.f32 %v397, 0.03125
  %v505 = vmul.f32 %v399, 0.03125
  %v506 = vmul.f32 %v401, 0.03125
  %v507 = vmul.f32 %v403, 0.03125
  %v508 = vmul.f32 %v405, 0.03125
  %v509 = vmul.f32 %v407, 0.03125
  %v510 = vmul.f32 %v409, 0.03125
  %v511 = vmul.f32 %v411, 0.03125
  %v512 = vmul.f32 %v413, 0.03125
  %v513 = vmul.f32 %v415, 0.03125
  %v514 = vmul.f32 %v417, 0.03125
  %v515 = vmul.f32 %v419, 0.03125
  %v516 = vmul.f32 %v421, 0.03125
  %v517 = vmul.f32 %v423, 0.03125
  %v518 = vmul.f32 %v425, 0.03125
  %v519 = vmul.f32 %v427, 0.03125
  %v520 = vmul.f32 %v429, 0.03125
  %v521 = vmul.f32 %v431, 0.03125
  %v522 = vmul.f32 %v433, 0.03125
  %v523 = vmul.f32 %v435, 0.03125
  %v524 = vmul.f32 %v437, 0.03125
  %v525 = vmul.f32 %v439, 0.03125
  %v526 = vmul.f32 %v441, 0.03125
  %v527 = vmul.f32 %v443, 0.03125
  %v528 = vmul.f32 %v445, 0.03125
  %v529 = vmul.f32 %v447, 0.03125
  %v530 = vmul.f32 %v449, 0.03125
  %v531 = vmul.f32 %v451, 0.03125
  %v532 = vmul.f32 %v453, 0.03125
  %v533 = vmul.f32 %v455, 0.03125
  %v534 = vmul.f32 %v457, 0.03125
  %v535 = vmul.f32 %v459, 0.03125
  %v536 = vmul.f32 %v461, 0.03125
  %v537 = vmul.f32 %v463, 0.03125
  %v538 = vmul.f32 %v465, 0.03125
  %v539 = vmul.f32 %v467, 0.03125
  %v540 = vmul.f32 %v469, 0.03125
  %v541 = vmul.f32 %v471, 0.03125
  %v542 = vmul.f32 %v473, 0.03125
  %v543 = vmul.f32 %v475, 0.03125
  %v544 = vmul.f32 %v477, 0.03125
  %v545 = vmul.f32 %v479, 0.03125
  %v546 = vmul.f32 %v481, 0.03125
  %v547 = vmul.f32 %v483, 0.03125
  %v548 = vmul.f32 %v228, %v228
  %v549 = vmul.f32 %v229, %v229
  %v550 = vmul.f32 %v230, %v230
  %v551 = vmul.f32 %v231, %v231
  %v552 = vmul.f32 %v232, %v232
  %v553 = vmul.f32 %v233, %v233
  %v554 = vmul.f32 %v234, %v234
  %v555 = vmul.f32 %v235, %v235
  %v556 = vmul.f32 %v236, %v236
  %v557 = vmul.f32 %v237, %v237
  %v558 = vmul.f32 %v238, %v238
  %v559 = vmul.f32 %v239, %v239
  %v560 = vmul.f32 %v240, %v240
  %v561 = vmul.f32 %v241, %v241
  %v562 = vmul.f32 %v242, %v242
  %v563 = vmul.f32 %v243, %v243
  %v564 = vmul.f32 %v244, %v244
  %v565 = vmul.f32 %v245, %v245
  %v566 = vmul.f32 %v246, %v246
  %v567 = vmul.f32 %v247, %v247
  %v568 = vmul.f32 %v248, %v248
  %v569 = vmul.f32 %v249, %v249
  %v570 = vmul.f32 %v250, %v250
  %v571 = vmul.f32 %v251, %v251
  %v572 = vmul.f32 %v252, %v252
  %v573 = vmul.f32 %v253, %v253
  %v574 = vmul.f32 %v254, %v254
  %v575 = vmul.f32 %v255, %v255
  %v576 = vmul.f32 %v256, %v256
  %v577 = vmul.f32 %v257, %v257
  %v578 = vmul.f32 %v258, %v258
  %v579 = vmul.f32 %v259, %v259
  %v580 = vmul.f32 %v260, %v260
  %v581 = vmul.f32 %v261, %v261
  %v582 = vmul.f32 %v262, %v262
  %v583 = vmul.f32 %v263, %v263
  %v584 = vmul.f32 %v264, %v264
  %v585 = vmul.f32 %v265, %v265
  %v586 = vmul.f32 %v266, %v266
  %v587 = vmul.f32 %v267, %v267
  %v588 = vmul.f32 %v268, %v268
  %v589 = vmul.f32 %v269, %v269
  %v590 = vmul.f32 %v270, %v270
  %v591 = vmul.f32 %v271, %v271
  %v592 = vmul.f32 %v272, %v272
  %v593 = vmul.f32 %v273, %v273
  %v594 = vmul.f32 %v274, %v274
  %v595 = vmul.f32 %v275, %v275
  %v596 = vmul.f32 %v276, %v276
  %v597 = vmul.f32 %v277, %v277
  %v598 = vmul.f32 %v278, %v278
  %v599 = vmul.f32 %v279, %v279
  %v600 = vmul.f32 %v280, %v280
  %v601 = vmul.f32 %v281, %v281
  %v602 = vmul.f32 %v282, %v282
  %v603 = vmul.f32 %v283, %v283
  %v604 = vmul.f32 %v284, %v284
  %v605 = vmul.f32 %v285, %v285
  %v606 = vmul.f32 %v286, %v286
  %v607 = vmul.f32 %v287, %v287
  %v608 = vmul.f32 %v288, %v288
  %v609 = vmul.f32 %v289, %v289
  %v610 = vmul.f32 %v290, %v290
  %v611 = vmul.f32 %v291, %v291
  %v612 = vsub.f32 %v484, %v548
  %v613 = vsub.f32 %v485, %v549
  %v614 = vsub.f32 %v486, %v550
  %v615 = vsub.f32 %v487, %v551
  %v616 = vsub.f32 %v488, %v552
  %v617 = vsub.f32 %v489, %v553
  %v618 = vsub.f32 %v490, %v554
  %v619 = vsub.f32 %v491, %v555
  %v620 = vsub.f32 %v492, %v556
  %v621 = vsub.f32 %v493, %v557
  %v622 = vsub.f32 %v494, %v558
  %v623 = vsub.f32 %v495, %v559
  %v624 = vsub.f32 %v496, %v560
  %v625 = vsub.f32 %v497, %v561
  %v626 = vsub.f32 %v498, %v562
  %v627 = vsub.f32 %v499, %v563
  %v628 = vsub.f32 %v500, %v564
  %v629 = vsub.f32 %v501, %v565
  %v630 = vsub.f32 %v502, %v566
  %v631 = vsub.f32 %v503, %v567
  %v632 = vsub.f32 %v504, %v568
  %v633 = vsub.f32 %v505, %v569
  %v634 = vsub.f32 %v506, %v570
  %v635 = vsub.f32 %v507, %v571
  %v636 = vsub.f32 %v508, %v572
  %v637 = vsub.f32 %v509, %v573
  %v638 = vsub.f32 %v510, %v574
  %v639 = vsub.f32 %v511, %v575
  %v640 = vsub.f32 %v512, %v576
  %v641 = vsub.f32 %v513, %v577
  %v642 = vsub.f32 %v514, %v578
  %v643 = vsub.f32 %v515, %v579
  %v644 = vsub.f32 %v516, %v580
  %v645 = vsub.f32 %v517, %v581
  %v646 = vsub.f32 %v518, %v582
  %v647 = vsub.f32 %v519, %v583
  %v648 = vsub.f32 %v520, %v584
  %v649 = vsub.f32 %v521, %v585
  %v650 = vsub.f32 %v522, %v586
  %v651 = vsub.f32 %v523, %v587
  %v652 = vsub.f32 %v524, %v588
  %v653 = vsub.f32 %v525, %v589
  %v654 = vsub.f32 %v526, %v590
  %v655 = vsub.f32 %v527, %v591
  %v656 = vsub.f32 %v528, %v592
  %v657 = vsub.f32 %v529, %v593
  %v658 = vsub.f32 %v530, %v594
  %v659 = vsub.f32 %v531, %v595
  %v660 = vsub.f32 %v532, %v596
  %v661 = vsub.f32 %v533, %v597
  %v662 = vsub.f32 %v534, %v598
  %v663 = vsub.f32 %v535, %v599
  %v664 = vsub.f32 %v536, %v600
  %v665 = vsub.f32 %v537, %v601
  %v666 = vsub.f32 %v538, %v602
  %v667 = vsub.f32 %v539, %v603
  %v668 = vsub.f32 %v540, %v604
  %v669 = vsub.f32 %v541, %v605
  %v670 = vsub.f32 %v542, %v606
  %v671 = vsub.f32 %v543, %v607
  %v672 = vsub.f32 %v544, %v608
  %v673 = vsub.f32 %v545, %v609
  %v674 = vsub.f32 %v546, %v610
  %v675 = vsub.f32 %v547, %v611
  %v676 = vsub.f32 %v36, %v228
  %v677 = vsub.f32 %v37, %v229
  %v678 = vsub.f32 %v38, %v230
  %v679 = vsub.f32 %v39, %v231
  %v680 = vsub.f32 %v40, %v232
  %v681 = vsub.f32 %v41, %v233
  %v682 = vsub.f32 %v42, %v234
  %v683 = vsub.f32 %v43, %v235
  %v684 = vsub.f32 %v44, %v236
  %v685 = vsub.f32 %v45, %v237
  %v686 = vsub.f32 %v46, %v238
  %v687 = vsub.f32 %v47, %v239
  %v688 = vsub.f32 %v48, %v240
  %v689 = vsub.f32 %v49, %v241
  %v690 = vsub.f32 %v50, %v242
  %v691 = vsub.f32 %v51, %v243
  %v692 = vsub.f32 %v52, %v244
  %v693 = vsub.f32 %v53, %v245
  %v694 = vsub.f32 %v54, %v246
  %v695 = vsub.f32 %v55, %v247
  %v696 = vsub.f32 %v56, %v248
  %v697 = vsub.f32 %v57, %v249
  %v698 = vsub.f32 %v58, %v250
  %v699 = vsub.f32 %v59, %v251
  %v700 = vsub.f32 %v60, %v252
  %v701 = vsub.f32 %v61, %v253
  %v702 = vsub.f32 %v62, %v254
  %v703 = vsub.f32 %v63, %v255
  %v704 = vsub.f32 %v64, %v256
  %v705 = vsub.f32 %v65, %v257
  %v706 = vsub.f32 %v66, %v258
  %v707 = vsub.f32 %v67, %v259
  %v708 = vsub.f32 %v68, %v260
  %v709 = vsub.f32 %v69, %v261
  %v710 = vsub.f32 %v70, %v262
  %v711 = vsub.f32 %v71, %v263
  %v712 = vsub.f32 %v72, %v264
  %v713 = vsub.f32 %v73, %v265
  %v714 = vsub.f32 %v74, %v266
  %v715 = vsub.f32 %v75, %v267
  %v716 = vsub.f32 %v76, %v268
  %v717 = vsub.f32 %v77, %v269
  %v718 = vsub.f32 %v78, %v270
  %v719 = vsub.f32 %v79, %v271
  %v720 = vsub.f32 %v80, %v272
  %v721 = vsub.f32 %v81, %v273
  %v722 = vsub.f32 %v82, %v274
  %v723 = vsub.f32 %v83, %v275
  %v724 = vsub.f32 %v84, %v276
  %v725 = vsub.f32 %v85, %v277
  %v726 = vsub.f32 %v86, %v278
  %v727 = vsub.f32 %v87, %v279
  %v728 = vsub.f32 %v88, %v280
  %v729 = vsub.f32 %v89, %v281
  %v730 = vsub.f32 %v90, %v282
  %v731 = vsub.f32 %v91, %v283
  %v732 = vsub.f32 %v92, %v284
  %v733 = vsub.f32 %v93, %v285
  %v734 = vsub.f32 %v94, %v286
  %v735 = vsub.f32 %v95, %v287
  %v736 = vsub.f32 %v96, %v288
  %v737 = vsub.f32 %v97, %v289
  %v738 = vsub.f32 %v98, %v290
  %v739 = vsub.f32 %v99, %v291
  %v740 = vadd.f32 %v612, 1e-05
  %v741 = vadd.f32 %v613, 1e-05
  %v742 = vadd.f32 %v614, 1e-05
  %v743 = vadd.f32 %v615, 1e-05
  %v744 = vadd.f32 %v616, 1e-05
  %v745 = vadd.f32 %v617, 1e-05
  %v746 = vadd.f32 %v618, 1e-05
  %v747 = vadd.f32 %v619, 1e-05
  %v748 = vadd.f32 %v620, 1e-05
  %v749 = vadd.f32 %v621, 1e-05
  %v750 = vadd.f32 %v622, 1e-05
  %v751 = vadd.f32 %v623, 1e-05
  %v752 = vadd.f32 %v624, 1e-05
  %v753 = vadd.f32 %v625, 1e-05
  %v754 = vadd.f32 %v626, 1e-05
  %v755 = vadd.f32 %v627, 1e-05
  %v756 = vadd.f32 %v628, 1e-05
  %v757 = vadd.f32 %v629, 1e-05
  %v758 = vadd.f32 %v630, 1e-05
  %v759 = vadd.f32 %v631, 1e-05
  %v760 = vadd.f32 %v632, 1e-05
  %v761 = vadd.f32 %v633, 1e-05
  %v762 = vadd.f32 %v634, 1e-05
  %v763 = vadd.f32 %v635, 1e-05
  %v764 = vadd.f32 %v636, 1e-05
  %v765 = vadd.f32 %v637, 1e-05
  %v766 = vadd.f32 %v638, 1e-05
  %v767 = vadd.f32 %v639, 1e-05
  %v768 = vadd.f32 %v640, 1e-05
  %v769 = vadd.f32 %v641, 1e-05
  %v770 = vadd.f32 %v642, 1e-05
  %v771 = vadd.f32 %v643, 1e-05
  %v772 = vadd.f32 %v644, 1e-05
  %v773 = vadd.f32 %v645, 1e-05
  %v774 = vadd.f32 %v646, 1e-05
  %v775 = vadd.f32 %v647, 1e-05
  %v776 = vadd.f32 %v648, 1e-05
  %v777 = vadd.f32 %v649, 1e-05
  %v778 = vadd.f32 %v650, 1e-05
  %v779 = vadd.f32 %v651, 1e-05
  %v780 = vadd.f32 %v652, 1e-05
  %v781 = vadd.f32 %v653, 1e-05
  %v782 = vadd.f32 %v654, 1e-05
  %v783 = vadd.f32 %v655, 1e-05
  %v784 = vadd.f32 %v656, 1e-05
  %v785 = vadd.f32 %v657, 1e-05
  %v786 = vadd.f32 %v658, 1e-05
  %v787 = vadd.f32 %v659, 1e-05
  %v788 = vadd.f32 %v660, 1e-05
  %v789 = vadd.f32 %v661, 1e-05
  %v790 = vadd.f32 %v662, 1e-05
  %v791 = vadd.f32 %v663, 1e-05
  %v792 = vadd.f32 %v664, 1e-05
  %v793 = vadd.f32 %v665, 1e-05
  %v794 = vadd.f32 %v666, 1e-05
  %v795 = vadd.f32 %v667, 1e-05
  %v796 = vadd.f32 %v668, 1e-05
  %v797 = vadd.f32 %v669, 1e-05
  %v798 = vadd.f32 %v670, 1e-05
  %v799 = vadd.f32 %v671, 1e-05
  %v800 = vadd.f32 %v672, 1e-05
  %v801 = vadd.f32 %v673, 1e-05
  %v802 = vadd.f32 %v674, 1e-05
  %v803 = vadd.f32 %v675, 1e-05
  %v804 = vrsqrt.pop %v740
  %v805 = vrsqrt.pop %v741
  %v806 = vrsqrt.pop %v742
  %v807 = vrsqrt.pop %v743
  %v808 = vrsqrt.pop %v744
  %v809 = vrsqrt.pop %v745
  %v810 = vrsqrt.pop %v746
  %v811 = vrsqrt.pop %v747
  %v812 = vrsqrt.pop %v748
  %v813 = vrsqrt.pop %v749
  %v814 = vrsqrt.pop %v750
  %v815 = vrsqrt.pop %v751
  %v816 = vrsqrt.pop %v752
  %v817 = vrsqrt.pop %v753
  %v818 = vrsqrt.pop %v754
  %v819 = vrsqrt.pop %v755
  %v820 = vrsqrt.pop %v756
  %v821 = vrsqrt.pop %v757
  %v822 = vrsqrt.pop %v758
  %v823 = vrsqrt.pop %v759
  %v824 = vrsqrt.pop %v760
  %v825 = vrsqrt.pop %v761
  %v826 = vrsqrt.pop %v762
  %v827 = vrsqrt.pop %v763
  %v828 = vrsqrt.pop %v764
  %v829 = vrsqrt.pop %v765
  %v830 = vrsqrt.pop %v766
  %v831 = vrsqrt.pop %v767
  %v832 = vrsqrt.pop %v768
  %v833 = vrsqrt.pop %v769
  %v834 = vrsqrt.pop %v770
  %v835 = vrsqrt.pop %v771
  %v836 = vrsqrt.pop %v772
  %v837 = vrsqrt.pop %v773
  %v838 = vrsqrt.pop %v774
  %v839 = vrsqrt.pop %v775
  %v840 = vrsqrt.pop %v776
  %v841 = vrsqrt.pop %v777
  %v842 = vrsqrt.pop %v778
  %v843 = vrsqrt.pop %v779
  %v844 = vrsqrt.pop %v780
  %v845 = vrsqrt.pop %v781
  %v846 = vrsqrt.pop %v782
  %v847 = vrsqrt.pop %v783
  %v848 = vrsqrt.pop %v784
  %v849 = vrsqrt.pop %v785
  %v850 = vrsqrt.pop %v786
  %v851 = vrsqrt.pop %v787
  %v852 = vrsqrt.pop %v788
  %v853 = vrsqrt.pop %v789
  %v854 = vrsqrt.pop %v790
  %v855 = vrsqrt.pop %v791
  %v856 = vrsqrt.pop %v792
  %v857 = vrsqrt.pop %v793
  %v858 = vrsqrt.pop %v794
  %v859 = vrsqrt.pop %v795
  %v860 = vrsqrt.pop %v796
  %v861 = vrsqrt.pop %v797
  %v862 = vrsqrt.pop %v798
  %v863 = vrsqrt.pop %v799
  %v864 = vrsqrt.pop %v800
  %v865 = vrsqrt.pop %v801
  %v866 = vrsqrt.pop %v802
  %v867 = vrsqrt.pop %v803
  %v868 = vmul.f32 %v676, %v804
  %v869 = vmul.f32 %v677, %v805
  %v870 = vmul.f32 %v678, %v806
  %v871 = vmul.f32 %v679, %v807
  %v872 = vmul.f32 %v680, %v808
  %v873 = vmul.f32 %v681, %v809
  %v874 = vmul.f32 %v682, %v810
  %v875 = vmul.f32 %v683, %v811
  %v876 = vmul.f32 %v684, %v812
  %v877 = vmul.f32 %v685, %v813
  %v878 = vmul.f32 %v686, %v814
  %v879 = vmul.f32 %v687, %v815
  %v880 = vmul.f32 %v688, %v816
  %v881 = vmul.f32 %v689, %v817
  %v882 = vmul.f32 %v690, %v818
  %v883 = vmul.f32 %v691, %v819
  %v884 = vmul.f32 %v692, %v820
  %v885 = vmul.f32 %v693, %v821
  %v886 = vmul.f32 %v694, %v822
  %v887 = vmul.f32 %v695, %v823
  %v888 = vmul.f32 %v696, %v824
  %v889 = vmul.f32 %v697, %v825
  %v890 = vmul.f32 %v698, %v826
  %v891 = vmul.f32 %v699, %v827
  %v892 = vmul.f32 %v700, %v828
  %v893 = vmul.f32 %v701, %v829
  %v894 = vmul.f32 %v702, %v830
  %v895 = vmul.f32 %v703, %v831
  %v896 = vmul.f32 %v704, %v832
  %v897 = vmul.f32 %v705, %v833
  %v898 = vmul.f32 %v706, %v834
  %v899 = vmul.f32 %v707, %v835
  %v900 = vmul.f32 %v708, %v836
  %v901 = vmul.f32 %v709, %v837
  %v902 = vmul.f32 %v710, %v838
  %v903 = vmul.f32 %v711, %v839
  %v904 = vmul.f32 %v712, %v840
  %v905 = vmul.f32 %v713, %v841
  %v906 = vmul.f32 %v714, %v842
  %v907 = vmul.f32 %v715, %v843
  %v908 = vmul.f32 %v716, %v844
  %v909 = vmul.f32 %v717, %v845
  %v910 = vmul.f32 %v718, %v846
  %v911 = vmul.f32 %v719, %v847
  %v912 = vmul.f32 %v720, %v848
  %v913 = vmul.f32 %v721, %v849
  %v914 = vmul.f32 %v722, %v850
  %v915 = vmul.f32 %v723, %v851
  %v916 = vmul.f32 %v724, %v852
  %v917 = vmul.f32 %v725, %v853
  %v918 = vmul.f32 %v726, %v854
  %v919 = vmul.f32 %v727, %v855
  %v920 = vmul.f32 %v728, %v856
  %v921 = vmul.f32 %v729, %v857
  %v922 = vmul.f32 %v730, %v858
  %v923 = vmul.f32 %v731, %v859
  %v924 = vmul.f32 %v732, %v860
  %v925 = vmul.f32 %v733, %v861
  %v926 = vmul.f32 %v734, %v862
  %v927 = vmul.f32 %v735, %v863
  %v928 = vmul.f32 %v736, %v864
  %v929 = vmul.f32 %v737, %v865
  %v930 = vmul.f32 %v738, %v866
  %v931 = vmul.f32 %v739, %v867
  %v932 = vld [vmem:[%s2] sm:$0x1]
  %v934 = vlaneseq
  %v935 = vshrl.u32 %v934, 7
  %v936 = vsub.s32 0, %v935
  %v937 = vrot.slane %v932, %v936
  %v939 = vmul.f32 %v868, %v937
  %v940 = vmul.f32 %v869, %v937
  %v941 = vmul.f32 %v870, %v937
  %v942 = vmul.f32 %v871, %v937
  %v943 = vmul.f32 %v872, %v937
  %v944 = vmul.f32 %v873, %v937
  %v945 = vmul.f32 %v874, %v937
  %v946 = vmul.f32 %v875, %v937
  %v947 = vmul.f32 %v876, %v937
  %v948 = vmul.f32 %v877, %v937
  %v949 = vmul.f32 %v878, %v937
  %v950 = vmul.f32 %v879, %v937
  %v951 = vmul.f32 %v880, %v937
  %v952 = vmul.f32 %v881, %v937
  %v953 = vmul.f32 %v882, %v937
  %v954 = vmul.f32 %v883, %v937
  %v955 = vmul.f32 %v884, %v937
  %v956 = vmul.f32 %v885, %v937
  %v957 = vmul.f32 %v886, %v937
  %v958 = vmul.f32 %v887, %v937
  %v959 = vmul.f32 %v888, %v937
  %v960 = vmul.f32 %v889, %v937
  %v961 = vmul.f32 %v890, %v937
  %v962 = vmul.f32 %v891, %v937
  %v963 = vmul.f32 %v892, %v937
  %v964 = vmul.f32 %v893, %v937
  %v965 = vmul.f32 %v894, %v937
  %v966 = vmul.f32 %v895, %v937
  %v967 = vmul.f32 %v896, %v937
  %v968 = vmul.f32 %v897, %v937
  %v969 = vmul.f32 %v898, %v937
  %v970 = vmul.f32 %v899, %v937
  %v971 = vmul.f32 %v900, %v937
  %v972 = vmul.f32 %v901, %v937
  %v973 = vmul.f32 %v902, %v937
  %v974 = vmul.f32 %v903, %v937
  %v975 = vmul.f32 %v904, %v937
  %v976 = vmul.f32 %v905, %v937
  %v977 = vmul.f32 %v906, %v937
  %v978 = vmul.f32 %v907, %v937
  %v979 = vmul.f32 %v908, %v937
  %v980 = vmul.f32 %v909, %v937
  %v981 = vmul.f32 %v910, %v937
  %v982 = vmul.f32 %v911, %v937
  %v983 = vmul.f32 %v912, %v937
  %v984 = vmul.f32 %v913, %v937
  %v985 = vmul.f32 %v914, %v937
  %v986 = vmul.f32 %v915, %v937
  %v987 = vmul.f32 %v916, %v937
  %v988 = vmul.f32 %v917, %v937
  %v989 = vmul.f32 %v918, %v937
  %v990 = vmul.f32 %v919, %v937
  %v991 = vmul.f32 %v920, %v937
  %v992 = vmul.f32 %v921, %v937
  %v993 = vmul.f32 %v922, %v937
  %v994 = vmul.f32 %v923, %v937
  %v995 = vmul.f32 %v924, %v937
  %v996 = vmul.f32 %v925, %v937
  %v997 = vmul.f32 %v926, %v937
  %v998 = vmul.f32 %v927, %v937
  %v999 = vmul.f32 %v928, %v937
  %v1000 = vmul.f32 %v929, %v937
  %v1001 = vmul.f32 %v930, %v937
  %v1002 = vmul.f32 %v931, %v937
  %v1003 = vld [vmem:[%s3] sm:$0x1]
  %v1005 = vlaneseq
  %v1006 = vshrl.u32 %v1005, 7
  %v1007 = vsub.s32 0, %v1006
  %v1008 = vrot.slane %v1003, %v1007
  %v1010 = vadd.f32 %v939, %v1008
  %v1011 = vadd.f32 %v940, %v1008
  %v1012 = vadd.f32 %v941, %v1008
  %v1013 = vadd.f32 %v942, %v1008
  %v1014 = vadd.f32 %v943, %v1008
  %v1015 = vadd.f32 %v944, %v1008
  %v1016 = vadd.f32 %v945, %v1008
  %v1017 = vadd.f32 %v946, %v1008
  %v1018 = vadd.f32 %v947, %v1008
  %v1019 = vadd.f32 %v948, %v1008
  %v1020 = vadd.f32 %v949, %v1008
  %v1021 = vadd.f32 %v950, %v1008
  %v1022 = vadd.f32 %v951, %v1008
  %v1023 = vadd.f32 %v952, %v1008
  %v1024 = vadd.f32 %v953, %v1008
  %v1025 = vadd.f32 %v954, %v1008
  %v1026 = vadd.f32 %v955, %v1008
  %v1027 = vadd.f32 %v956, %v1008
  %v1028 = vadd.f32 %v957, %v1008
  %v1029 = vadd.f32 %v958, %v1008
  %v1030 = vadd.f32 %v959, %v1008
  %v1031 = vadd.f32 %v960, %v1008
  %v1032 = vadd.f32 %v961, %v1008
  %v1033 = vadd.f32 %v962, %v1008
  %v1034 = vadd.f32 %v963, %v1008
  %v1035 = vadd.f32 %v964, %v1008
  %v1036 = vadd.f32 %v965, %v1008
  %v1037 = vadd.f32 %v966, %v1008
  %v1038 = vadd.f32 %v967, %v1008
  %v1039 = vadd.f32 %v968, %v1008
  %v1040 = vadd.f32 %v969, %v1008
  %v1041 = vadd.f32 %v970, %v1008
  %v1042 = vadd.f32 %v971, %v1008
  %v1043 = vadd.f32 %v972, %v1008
  %v1044 = vadd.f32 %v973, %v1008
  %v1045 = vadd.f32 %v974, %v1008
  %v1046 = vadd.f32 %v975, %v1008
  %v1047 = vadd.f32 %v976, %v1008
  %v1048 = vadd.f32 %v977, %v1008
  %v1049 = vadd.f32 %v978, %v1008
  %v1050 = vadd.f32 %v979, %v1008
  %v1051 = vadd.f32 %v980, %v1008
  %v1052 = vadd.f32 %v981, %v1008
  %v1053 = vadd.f32 %v982, %v1008
  %v1054 = vadd.f32 %v983, %v1008
  %v1055 = vadd.f32 %v984, %v1008
  %v1056 = vadd.f32 %v985, %v1008
  %v1057 = vadd.f32 %v986, %v1008
  %v1058 = vadd.f32 %v987, %v1008
  %v1059 = vadd.f32 %v988, %v1008
  %v1060 = vadd.f32 %v989, %v1008
  %v1061 = vadd.f32 %v990, %v1008
  %v1062 = vadd.f32 %v991, %v1008
  %v1063 = vadd.f32 %v992, %v1008
  %v1064 = vadd.f32 %v993, %v1008
  %v1065 = vadd.f32 %v994, %v1008
  %v1066 = vadd.f32 %v995, %v1008
  %v1067 = vadd.f32 %v996, %v1008
  %v1068 = vadd.f32 %v997, %v1008
  %v1069 = vadd.f32 %v998, %v1008
  %v1070 = vadd.f32 %v999, %v1008
  %v1071 = vadd.f32 %v1000, %v1008
  %v1072 = vadd.f32 %v1001, %v1008
  %v1073 = vadd.f32 %v1002, %v1008
  %v1074 = vadd.f32 %v36, %v1010
  %v1075 = vadd.f32 %v37, %v1011
  %v1076 = vadd.f32 %v38, %v1012
  %v1077 = vadd.f32 %v39, %v1013
  %v1078 = vadd.f32 %v40, %v1014
  %v1079 = vadd.f32 %v41, %v1015
  %v1080 = vadd.f32 %v42, %v1016
  %v1081 = vadd.f32 %v43, %v1017
  %v1082 = vadd.f32 %v44, %v1018
  %v1083 = vadd.f32 %v45, %v1019
  %v1084 = vadd.f32 %v46, %v1020
  %v1085 = vadd.f32 %v47, %v1021
  %v1086 = vadd.f32 %v48, %v1022
  %v1087 = vadd.f32 %v49, %v1023
  %v1088 = vadd.f32 %v50, %v1024
  %v1089 = vadd.f32 %v51, %v1025
  %v1090 = vadd.f32 %v52, %v1026
  %v1091 = vadd.f32 %v53, %v1027
  %v1092 = vadd.f32 %v54, %v1028
  %v1093 = vadd.f32 %v55, %v1029
  %v1094 = vadd.f32 %v56, %v1030
  %v1095 = vadd.f32 %v57, %v1031
  %v1096 = vadd.f32 %v58, %v1032
  %v1097 = vadd.f32 %v59, %v1033
  %v1098 = vadd.f32 %v60, %v1034
  %v1099 = vadd.f32 %v61, %v1035
  %v1100 = vadd.f32 %v62, %v1036
  %v1101 = vadd.f32 %v63, %v1037
  %v1102 = vadd.f32 %v64, %v1038
  %v1103 = vadd.f32 %v65, %v1039
  %v1104 = vadd.f32 %v66, %v1040
  %v1105 = vadd.f32 %v67, %v1041
  %v1106 = vadd.f32 %v68, %v1042
  %v1107 = vadd.f32 %v69, %v1043
  %v1108 = vadd.f32 %v70, %v1044
  %v1109 = vadd.f32 %v71, %v1045
  %v1110 = vadd.f32 %v72, %v1046
  %v1111 = vadd.f32 %v73, %v1047
  %v1112 = vadd.f32 %v74, %v1048
  %v1113 = vadd.f32 %v75, %v1049
  %v1114 = vadd.f32 %v76, %v1050
  %v1115 = vadd.f32 %v77, %v1051
  %v1116 = vadd.f32 %v78, %v1052
  %v1117 = vadd.f32 %v79, %v1053
  %v1118 = vadd.f32 %v80, %v1054
  %v1119 = vadd.f32 %v81, %v1055
  %v1120 = vadd.f32 %v82, %v1056
  %v1121 = vadd.f32 %v83, %v1057
  %v1122 = vadd.f32 %v84, %v1058
  %v1123 = vadd.f32 %v85, %v1059
  %v1124 = vadd.f32 %v86, %v1060
  %v1125 = vadd.f32 %v87, %v1061
  %v1126 = vadd.f32 %v88, %v1062
  %v1127 = vadd.f32 %v89, %v1063
  %v1128 = vadd.f32 %v90, %v1064
  %v1129 = vadd.f32 %v91, %v1065
  %v1130 = vadd.f32 %v92, %v1066
  %v1131 = vadd.f32 %v93, %v1067
  %v1132 = vadd.f32 %v94, %v1068
  %v1133 = vadd.f32 %v95, %v1069
  %v1134 = vadd.f32 %v96, %v1070
  %v1135 = vadd.f32 %v97, %v1071
  %v1136 = vadd.f32 %v98, %v1072
  %v1137 = vadd.f32 %v99, %v1073
  %v1138 = vld [vmem:[%s1] sm:$0xff]
  %v1139 = vld [vmem:[%s1 + $0x8] sm:$0xff]
  %v1140 = vld [vmem:[%s1 + $0x10] sm:$0xff]
  %v1141 = vld [vmem:[%s1 + $0x18] sm:$0xff]
  %v1142 = vld [vmem:[%s1 + $0x20] sm:$0xff]
  %v1143 = vld [vmem:[%s1 + $0x28] sm:$0xff]
  %v1144 = vld [vmem:[%s1 + $0x30] sm:$0xff]
  %v1145 = vld [vmem:[%s1 + $0x38] sm:$0xff]
  %v1146 = vld [vmem:[%s1 + $0x40] sm:$0xff]
  %v1147 = vld [vmem:[%s1 + $0x48] sm:$0xff]
  %v1148 = vld [vmem:[%s1 + $0x50] sm:$0xff]
  %v1149 = vld [vmem:[%s1 + $0x58] sm:$0xff]
  %v1150 = vld [vmem:[%s1 + $0x60] sm:$0xff]
  %v1151 = vld [vmem:[%s1 + $0x68] sm:$0xff]
  %v1152 = vld [vmem:[%s1 + $0x70] sm:$0xff]
  %v1153 = vld [vmem:[%s1 + $0x78] sm:$0xff]
  %v1154 = vld [vmem:[%s1 + $0x80] sm:$0xff]
  %v1155 = vld [vmem:[%s1 + $0x88] sm:$0xff]
  %v1156 = vld [vmem:[%s1 + $0x90] sm:$0xff]
  %v1157 = vld [vmem:[%s1 + $0x98] sm:$0xff]
  %v1158 = vld [vmem:[%s1 + $0xa0] sm:$0xff]
  %v1159 = vld [vmem:[%s1 + $0xa8] sm:$0xff]
  %v1160 = vld [vmem:[%s1 + $0xb0] sm:$0xff]
  %v1161 = vld [vmem:[%s1 + $0xb8] sm:$0xff]
  %v1162 = vld [vmem:[%s1 + $0xc0] sm:$0xff]
  %v1163 = vld [vmem:[%s1 + $0xc8] sm:$0xff]
  %v1164 = vld [vmem:[%s1 + $0xd0] sm:$0xff]
  %v1165 = vld [vmem:[%s1 + $0xd8] sm:$0xff]
  %v1166 = vld [vmem:[%s1 + $0xe0] sm:$0xff]
  %v1167 = vld [vmem:[%s1 + $0xe8] sm:$0xff]
  %v1168 = vld [vmem:[%s1 + $0xf0] sm:$0xff]
  %v1169 = vld [vmem:[%s1 + $0xf8] sm:$0xff]
  %v1170 = vld [vmem:[%s1 + $0x100] sm:$0xff]
  %v1171 = vld [vmem:[%s1 + $0x108] sm:$0xff]
  %v1172 = vld [vmem:[%s1 + $0x110] sm:$0xff]
  %v1173 = vld [vmem:[%s1 + $0x118] sm:$0xff]
  %v1174 = vld [vmem:[%s1 + $0x120] sm:$0xff]
  %v1175 = vld [vmem:[%s1 + $0x128] sm:$0xff]
  %v1176 = vld [vmem:[%s1 + $0x130] sm:$0xff]
  %v1177 = vld [vmem:[%s1 + $0x138] sm:$0xff]
  %v1178 = vld [vmem:[%s1 + $0x140] sm:$0xff]
  %v1179 = vld [vmem:[%s1 + $0x148] sm:$0xff]
  %v1180 = vld [vmem:[%s1 + $0x150] sm:$0xff]
  %v1181 = vld [vmem:[%s1 + $0x158] sm:$0xff]
  %v1182 = vld [vmem:[%s1 + $0x160] sm:$0xff]
  %v1183 = vld [vmem:[%s1 + $0x168] sm:$0xff]
  %v1184 = vld [vmem:[%s1 + $0x170] sm:$0xff]
  %v1185 = vld [vmem:[%s1 + $0x178] sm:$0xff]
  %v1186 = vld [vmem:[%s1 + $0x180] sm:$0xff]
  %v1187 = vld [vmem:[%s1 + $0x188] sm:$0xff]
  %v1188 = vld [vmem:[%s1 + $0x190] sm:$0xff]
  %v1189 = vld [vmem:[%s1 + $0x198] sm:$0xff]
  %v1190 = vld [vmem:[%s1 + $0x1a0] sm:$0xff]
  %v1191 = vld [vmem:[%s1 + $0x1a8] sm:$0xff]
  %v1192 = vld [vmem:[%s1 + $0x1b0] sm:$0xff]
  %v1193 = vld [vmem:[%s1 + $0x1b8] sm:$0xff]
  %v1194 = vld [vmem:[%s1 + $0x1c0] sm:$0xff]
  %v1195 = vld [vmem:[%s1 + $0x1c8] sm:$0xff]
  %v1196 = vld [vmem:[%s1 + $0x1d0] sm:$0xff]
  %v1197 = vld [vmem:[%s1 + $0x1d8] sm:$0xff]
  %v1198 = vld [vmem:[%s1 + $0x1e0] sm:$0xff]
  %v1199 = vld [vmem:[%s1 + $0x1e8] sm:$0xff]
  %v1200 = vld [vmem:[%s1 + $0x1f0] sm:$0xff]
  %v1201 = vld [vmem:[%s1 + $0x1f8] sm:$0xff]
  %v1202 = vadd.f32 %v1074, %v1138
  %v1203 = vadd.f32 %v1075, %v1139
  %v1204 = vadd.f32 %v1076, %v1140
  %v1205 = vadd.f32 %v1077, %v1141
  %v1206 = vadd.f32 %v1078, %v1142
  %v1207 = vadd.f32 %v1079, %v1143
  %v1208 = vadd.f32 %v1080, %v1144
  %v1209 = vadd.f32 %v1081, %v1145
  %v1210 = vadd.f32 %v1082, %v1146
  %v1211 = vadd.f32 %v1083, %v1147
  %v1212 = vadd.f32 %v1084, %v1148
  %v1213 = vadd.f32 %v1085, %v1149
  %v1214 = vadd.f32 %v1086, %v1150
  %v1215 = vadd.f32 %v1087, %v1151
  %v1216 = vadd.f32 %v1088, %v1152
  %v1217 = vadd.f32 %v1089, %v1153
  %v1218 = vadd.f32 %v1090, %v1154
  %v1219 = vadd.f32 %v1091, %v1155
  %v1220 = vadd.f32 %v1092, %v1156
  %v1221 = vadd.f32 %v1093, %v1157
  %v1222 = vadd.f32 %v1094, %v1158
  %v1223 = vadd.f32 %v1095, %v1159
  %v1224 = vadd.f32 %v1096, %v1160
  %v1225 = vadd.f32 %v1097, %v1161
  %v1226 = vadd.f32 %v1098, %v1162
  %v1227 = vadd.f32 %v1099, %v1163
  %v1228 = vadd.f32 %v1100, %v1164
  %v1229 = vadd.f32 %v1101, %v1165
  %v1230 = vadd.f32 %v1102, %v1166
  %v1231 = vadd.f32 %v1103, %v1167
  %v1232 = vadd.f32 %v1104, %v1168
  %v1233 = vadd.f32 %v1105, %v1169
  %v1234 = vadd.f32 %v1106, %v1170
  %v1235 = vadd.f32 %v1107, %v1171
  %v1236 = vadd.f32 %v1108, %v1172
  %v1237 = vadd.f32 %v1109, %v1173
  %v1238 = vadd.f32 %v1110, %v1174
  %v1239 = vadd.f32 %v1111, %v1175
  %v1240 = vadd.f32 %v1112, %v1176
  %v1241 = vadd.f32 %v1113, %v1177
  %v1242 = vadd.f32 %v1114, %v1178
  %v1243 = vadd.f32 %v1115, %v1179
  %v1244 = vadd.f32 %v1116, %v1180
  %v1245 = vadd.f32 %v1117, %v1181
  %v1246 = vadd.f32 %v1118, %v1182
  %v1247 = vadd.f32 %v1119, %v1183
  %v1248 = vadd.f32 %v1120, %v1184
  %v1249 = vadd.f32 %v1121, %v1185
  %v1250 = vadd.f32 %v1122, %v1186
  %v1251 = vadd.f32 %v1123, %v1187
  %v1252 = vadd.f32 %v1124, %v1188
  %v1253 = vadd.f32 %v1125, %v1189
  %v1254 = vadd.f32 %v1126, %v1190
  %v1255 = vadd.f32 %v1127, %v1191
  %v1256 = vadd.f32 %v1128, %v1192
  %v1257 = vadd.f32 %v1129, %v1193
  %v1258 = vadd.f32 %v1130, %v1194
  %v1259 = vadd.f32 %v1131, %v1195
  %v1260 = vadd.f32 %v1132, %v1196
  %v1261 = vadd.f32 %v1133, %v1197
  %v1262 = vadd.f32 %v1134, %v1198
  %v1263 = vadd.f32 %v1135, %v1199
  %v1264 = vadd.f32 %v1136, %v1200
  %v1265 = vadd.f32 %v1137, %v1201
  %1266 = vadd.xlane.f32.xlu0 %v1202
  %v1267 = vpop.xlane.xlu0 %1266
  %1268 = vadd.xlane.f32.xlu0 %v1203
  %v1269 = vpop.xlane.xlu0 %1268
  %1270 = vadd.xlane.f32.xlu0 %v1204
  %v1271 = vpop.xlane.xlu0 %1270
  %1272 = vadd.xlane.f32.xlu0 %v1205
  %v1273 = vpop.xlane.xlu0 %1272
  %1274 = vadd.xlane.f32.xlu0 %v1206
  %v1275 = vpop.xlane.xlu0 %1274
  %1276 = vadd.xlane.f32.xlu0 %v1207
  %v1277 = vpop.xlane.xlu0 %1276
  %1278 = vadd.xlane.f32.xlu0 %v1208
  %v1279 = vpop.xlane.xlu0 %1278
  %1280 = vadd.xlane.f32.xlu0 %v1209
  %v1281 = vpop.xlane.xlu0 %1280
  %1282 = vadd.xlane.f32.xlu0 %v1210
  %v1283 = vpop.xlane.xlu0 %1282
  %1284 = vadd.xlane.f32.xlu0 %v1211
  %v1285 = vpop.xlane.xlu0 %1284
  %1286 = vadd.xlane.f32.xlu0 %v1212
  %v1287 = vpop.xlane.xlu0 %1286
  %1288 = vadd.xlane.f32.xlu0 %v1213
  %v1289 = vpop.xlane.xlu0 %1288
  %1290 = vadd.xlane.f32.xlu0 %v1214
  %v1291 = vpop.xlane.xlu0 %1290
  %1292 = vadd.xlane.f32.xlu0 %v1215
  %v1293 = vpop.xlane.xlu0 %1292
  %1294 = vadd.xlane.f32.xlu0 %v1216
  %v1295 = vpop.xlane.xlu0 %1294
  %1296 = vadd.xlane.f32.xlu0 %v1217
  %v1297 = vpop.xlane.xlu0 %1296
  %1298 = vadd.xlane.f32.xlu0 %v1218
  %v1299 = vpop.xlane.xlu0 %1298
  %1300 = vadd.xlane.f32.xlu0 %v1219
  %v1301 = vpop.xlane.xlu0 %1300
  %1302 = vadd.xlane.f32.xlu0 %v1220
  %v1303 = vpop.xlane.xlu0 %1302
  %1304 = vadd.xlane.f32.xlu0 %v1221
  %v1305 = vpop.xlane.xlu0 %1304
  %1306 = vadd.xlane.f32.xlu0 %v1222
  %v1307 = vpop.xlane.xlu0 %1306
  %1308 = vadd.xlane.f32.xlu0 %v1223
  %v1309 = vpop.xlane.xlu0 %1308
  %1310 = vadd.xlane.f32.xlu0 %v1224
  %v1311 = vpop.xlane.xlu0 %1310
  %1312 = vadd.xlane.f32.xlu0 %v1225
  %v1313 = vpop.xlane.xlu0 %1312
  %1314 = vadd.xlane.f32.xlu0 %v1226
  %v1315 = vpop.xlane.xlu0 %1314
  %1316 = vadd.xlane.f32.xlu0 %v1227
  %v1317 = vpop.xlane.xlu0 %1316
  %1318 = vadd.xlane.f32.xlu0 %v1228
  %v1319 = vpop.xlane.xlu0 %1318
  %1320 = vadd.xlane.f32.xlu0 %v1229
  %v1321 = vpop.xlane.xlu0 %1320
  %1322 = vadd.xlane.f32.xlu0 %v1230
  %v1323 = vpop.xlane.xlu0 %1322
  %1324 = vadd.xlane.f32.xlu0 %v1231
  %v1325 = vpop.xlane.xlu0 %1324
  %1326 = vadd.xlane.f32.xlu0 %v1232
  %v1327 = vpop.xlane.xlu0 %1326
  %1328 = vadd.xlane.f32.xlu0 %v1233
  %v1329 = vpop.xlane.xlu0 %1328
  %1330 = vadd.xlane.f32.xlu0 %v1234
  %v1331 = vpop.xlane.xlu0 %1330
  %1332 = vadd.xlane.f32.xlu0 %v1235
  %v1333 = vpop.xlane.xlu0 %1332
  %1334 = vadd.xlane.f32.xlu0 %v1236
  %v1335 = vpop.xlane.xlu0 %1334
  %1336 = vadd.xlane.f32.xlu0 %v1237
  %v1337 = vpop.xlane.xlu0 %1336
  %1338 = vadd.xlane.f32.xlu0 %v1238
  %v1339 = vpop.xlane.xlu0 %1338
  %1340 = vadd.xlane.f32.xlu0 %v1239
  %v1341 = vpop.xlane.xlu0 %1340
  %1342 = vadd.xlane.f32.xlu0 %v1240
  %v1343 = vpop.xlane.xlu0 %1342
  %1344 = vadd.xlane.f32.xlu0 %v1241
  %v1345 = vpop.xlane.xlu0 %1344
  %1346 = vadd.xlane.f32.xlu0 %v1242
  %v1347 = vpop.xlane.xlu0 %1346
  %1348 = vadd.xlane.f32.xlu0 %v1243
  %v1349 = vpop.xlane.xlu0 %1348
  %1350 = vadd.xlane.f32.xlu0 %v1244
  %v1351 = vpop.xlane.xlu0 %1350
  %1352 = vadd.xlane.f32.xlu0 %v1245
  %v1353 = vpop.xlane.xlu0 %1352
  %1354 = vadd.xlane.f32.xlu0 %v1246
  %v1355 = vpop.xlane.xlu0 %1354
  %1356 = vadd.xlane.f32.xlu0 %v1247
  %v1357 = vpop.xlane.xlu0 %1356
  %1358 = vadd.xlane.f32.xlu0 %v1248
  %v1359 = vpop.xlane.xlu0 %1358
  %1360 = vadd.xlane.f32.xlu0 %v1249
  %v1361 = vpop.xlane.xlu0 %1360
  %1362 = vadd.xlane.f32.xlu0 %v1250
  %v1363 = vpop.xlane.xlu0 %1362
  %1364 = vadd.xlane.f32.xlu0 %v1251
  %v1365 = vpop.xlane.xlu0 %1364
  %1366 = vadd.xlane.f32.xlu0 %v1252
  %v1367 = vpop.xlane.xlu0 %1366
  %1368 = vadd.xlane.f32.xlu0 %v1253
  %v1369 = vpop.xlane.xlu0 %1368
  %1370 = vadd.xlane.f32.xlu0 %v1254
  %v1371 = vpop.xlane.xlu0 %1370
  %1372 = vadd.xlane.f32.xlu0 %v1255
  %v1373 = vpop.xlane.xlu0 %1372
  %1374 = vadd.xlane.f32.xlu0 %v1256
  %v1375 = vpop.xlane.xlu0 %1374
  %1376 = vadd.xlane.f32.xlu0 %v1257
  %v1377 = vpop.xlane.xlu0 %1376
  %1378 = vadd.xlane.f32.xlu0 %v1258
  %v1379 = vpop.xlane.xlu0 %1378
  %1380 = vadd.xlane.f32.xlu0 %v1259
  %v1381 = vpop.xlane.xlu0 %1380
  %1382 = vadd.xlane.f32.xlu0 %v1260
  %v1383 = vpop.xlane.xlu0 %1382
  %1384 = vadd.xlane.f32.xlu0 %v1261
  %v1385 = vpop.xlane.xlu0 %1384
  %1386 = vadd.xlane.f32.xlu0 %v1262
  %v1387 = vpop.xlane.xlu0 %1386
  %1388 = vadd.xlane.f32.xlu0 %v1263
  %v1389 = vpop.xlane.xlu0 %1388
  %1390 = vadd.xlane.f32.xlu0 %v1264
  %v1391 = vpop.xlane.xlu0 %1390
  %1392 = vadd.xlane.f32.xlu0 %v1265
  %v1393 = vpop.xlane.xlu0 %1392
  %v1394 = vmul.f32 %v1267, 0.03125
  %v1395 = vmul.f32 %v1269, 0.03125
  %v1396 = vmul.f32 %v1271, 0.03125
  %v1397 = vmul.f32 %v1273, 0.03125
  %v1398 = vmul.f32 %v1275, 0.03125
  %v1399 = vmul.f32 %v1277, 0.03125
  %v1400 = vmul.f32 %v1279, 0.03125
  %v1401 = vmul.f32 %v1281, 0.03125
  %v1402 = vmul.f32 %v1283, 0.03125
  %v1403 = vmul.f32 %v1285, 0.03125
  %v1404 = vmul.f32 %v1287, 0.03125
  %v1405 = vmul.f32 %v1289, 0.03125
  %v1406 = vmul.f32 %v1291, 0.03125
  %v1407 = vmul.f32 %v1293, 0.03125
  %v1408 = vmul.f32 %v1295, 0.03125
  %v1409 = vmul.f32 %v1297, 0.03125
  %v1410 = vmul.f32 %v1299, 0.03125
  %v1411 = vmul.f32 %v1301, 0.03125
  %v1412 = vmul.f32 %v1303, 0.03125
  %v1413 = vmul.f32 %v1305, 0.03125
  %v1414 = vmul.f32 %v1307, 0.03125
  %v1415 = vmul.f32 %v1309, 0.03125
  %v1416 = vmul.f32 %v1311, 0.03125
  %v1417 = vmul.f32 %v1313, 0.03125
  %v1418 = vmul.f32 %v1315, 0.03125
  %v1419 = vmul.f32 %v1317, 0.03125
  %v1420 = vmul.f32 %v1319, 0.03125
  %v1421 = vmul.f32 %v1321, 0.03125
  %v1422 = vmul.f32 %v1323, 0.03125
  %v1423 = vmul.f32 %v1325, 0.03125
  %v1424 = vmul.f32 %v1327, 0.03125
  %v1425 = vmul.f32 %v1329, 0.03125
  %v1426 = vmul.f32 %v1331, 0.03125
  %v1427 = vmul.f32 %v1333, 0.03125
  %v1428 = vmul.f32 %v1335, 0.03125
  %v1429 = vmul.f32 %v1337, 0.03125
  %v1430 = vmul.f32 %v1339, 0.03125
  %v1431 = vmul.f32 %v1341, 0.03125
  %v1432 = vmul.f32 %v1343, 0.03125
  %v1433 = vmul.f32 %v1345, 0.03125
  %v1434 = vmul.f32 %v1347, 0.03125
  %v1435 = vmul.f32 %v1349, 0.03125
  %v1436 = vmul.f32 %v1351, 0.03125
  %v1437 = vmul.f32 %v1353, 0.03125
  %v1438 = vmul.f32 %v1355, 0.03125
  %v1439 = vmul.f32 %v1357, 0.03125
  %v1440 = vmul.f32 %v1359, 0.03125
  %v1441 = vmul.f32 %v1361, 0.03125
  %v1442 = vmul.f32 %v1363, 0.03125
  %v1443 = vmul.f32 %v1365, 0.03125
  %v1444 = vmul.f32 %v1367, 0.03125
  %v1445 = vmul.f32 %v1369, 0.03125
  %v1446 = vmul.f32 %v1371, 0.03125
  %v1447 = vmul.f32 %v1373, 0.03125
  %v1448 = vmul.f32 %v1375, 0.03125
  %v1449 = vmul.f32 %v1377, 0.03125
  %v1450 = vmul.f32 %v1379, 0.03125
  %v1451 = vmul.f32 %v1381, 0.03125
  %v1452 = vmul.f32 %v1383, 0.03125
  %v1453 = vmul.f32 %v1385, 0.03125
  %v1454 = vmul.f32 %v1387, 0.03125
  %v1455 = vmul.f32 %v1389, 0.03125
  %v1456 = vmul.f32 %v1391, 0.03125
  %v1457 = vmul.f32 %v1393, 0.03125
  %v1458 = vmul.f32 %v1202, %v1202
  %v1459 = vmul.f32 %v1203, %v1203
  %v1460 = vmul.f32 %v1204, %v1204
  %v1461 = vmul.f32 %v1205, %v1205
  %v1462 = vmul.f32 %v1206, %v1206
  %v1463 = vmul.f32 %v1207, %v1207
  %v1464 = vmul.f32 %v1208, %v1208
  %v1465 = vmul.f32 %v1209, %v1209
  %v1466 = vmul.f32 %v1210, %v1210
  %v1467 = vmul.f32 %v1211, %v1211
  %v1468 = vmul.f32 %v1212, %v1212
  %v1469 = vmul.f32 %v1213, %v1213
  %v1470 = vmul.f32 %v1214, %v1214
  %v1471 = vmul.f32 %v1215, %v1215
  %v1472 = vmul.f32 %v1216, %v1216
  %v1473 = vmul.f32 %v1217, %v1217
  %v1474 = vmul.f32 %v1218, %v1218
  %v1475 = vmul.f32 %v1219, %v1219
  %v1476 = vmul.f32 %v1220, %v1220
  %v1477 = vmul.f32 %v1221, %v1221
  %v1478 = vmul.f32 %v1222, %v1222
  %v1479 = vmul.f32 %v1223, %v1223
  %v1480 = vmul.f32 %v1224, %v1224
  %v1481 = vmul.f32 %v1225, %v1225
  %v1482 = vmul.f32 %v1226, %v1226
  %v1483 = vmul.f32 %v1227, %v1227
  %v1484 = vmul.f32 %v1228, %v1228
  %v1485 = vmul.f32 %v1229, %v1229
  %v1486 = vmul.f32 %v1230, %v1230
  %v1487 = vmul.f32 %v1231, %v1231
  %v1488 = vmul.f32 %v1232, %v1232
  %v1489 = vmul.f32 %v1233, %v1233
  %v1490 = vmul.f32 %v1234, %v1234
  %v1491 = vmul.f32 %v1235, %v1235
  %v1492 = vmul.f32 %v1236, %v1236
  %v1493 = vmul.f32 %v1237, %v1237
  %v1494 = vmul.f32 %v1238, %v1238
  %v1495 = vmul.f32 %v1239, %v1239
  %v1496 = vmul.f32 %v1240, %v1240
  %v1497 = vmul.f32 %v1241, %v1241
  %v1498 = vmul.f32 %v1242, %v1242
  %v1499 = vmul.f32 %v1243, %v1243
  %v1500 = vmul.f32 %v1244, %v1244
  %v1501 = vmul.f32 %v1245, %v1245
  %v1502 = vmul.f32 %v1246, %v1246
  %v1503 = vmul.f32 %v1247, %v1247
  %v1504 = vmul.f32 %v1248, %v1248
  %v1505 = vmul.f32 %v1249, %v1249
  %v1506 = vmul.f32 %v1250, %v1250
  %v1507 = vmul.f32 %v1251, %v1251
  %v1508 = vmul.f32 %v1252, %v1252
  %v1509 = vmul.f32 %v1253, %v1253
  %v1510 = vmul.f32 %v1254, %v1254
  %v1511 = vmul.f32 %v1255, %v1255
  %v1512 = vmul.f32 %v1256, %v1256
  %v1513 = vmul.f32 %v1257, %v1257
  %v1514 = vmul.f32 %v1258, %v1258
  %v1515 = vmul.f32 %v1259, %v1259
  %v1516 = vmul.f32 %v1260, %v1260
  %v1517 = vmul.f32 %v1261, %v1261
  %v1518 = vmul.f32 %v1262, %v1262
  %v1519 = vmul.f32 %v1263, %v1263
  %v1520 = vmul.f32 %v1264, %v1264
  %v1521 = vmul.f32 %v1265, %v1265
  %1522 = vadd.xlane.f32.xlu0 %v1458
  %v1523 = vpop.xlane.xlu0 %1522
  %1524 = vadd.xlane.f32.xlu0 %v1459
  %v1525 = vpop.xlane.xlu0 %1524
  %1526 = vadd.xlane.f32.xlu0 %v1460
  %v1527 = vpop.xlane.xlu0 %1526
  %1528 = vadd.xlane.f32.xlu0 %v1461
  %v1529 = vpop.xlane.xlu0 %1528
  %1530 = vadd.xlane.f32.xlu0 %v1462
  %v1531 = vpop.xlane.xlu0 %1530
  %1532 = vadd.xlane.f32.xlu0 %v1463
  %v1533 = vpop.xlane.xlu0 %1532
  %1534 = vadd.xlane.f32.xlu0 %v1464
  %v1535 = vpop.xlane.xlu0 %1534
  %1536 = vadd.xlane.f32.xlu0 %v1465
  %v1537 = vpop.xlane.xlu0 %1536
  %1538 = vadd.xlane.f32.xlu0 %v1466
  %v1539 = vpop.xlane.xlu0 %1538
  %1540 = vadd.xlane.f32.xlu0 %v1467
  %v1541 = vpop.xlane.xlu0 %1540
  %1542 = vadd.xlane.f32.xlu0 %v1468
  %v1543 = vpop.xlane.xlu0 %1542
  %1544 = vadd.xlane.f32.xlu0 %v1469
  %v1545 = vpop.xlane.xlu0 %1544
  %1546 = vadd.xlane.f32.xlu0 %v1470
  %v1547 = vpop.xlane.xlu0 %1546
  %1548 = vadd.xlane.f32.xlu0 %v1471
  %v1549 = vpop.xlane.xlu0 %1548
  %1550 = vadd.xlane.f32.xlu0 %v1472
  %v1551 = vpop.xlane.xlu0 %1550
  %1552 = vadd.xlane.f32.xlu0 %v1473
  %v1553 = vpop.xlane.xlu0 %1552
  %1554 = vadd.xlane.f32.xlu0 %v1474
  %v1555 = vpop.xlane.xlu0 %1554
  %1556 = vadd.xlane.f32.xlu0 %v1475
  %v1557 = vpop.xlane.xlu0 %1556
  %1558 = vadd.xlane.f32.xlu0 %v1476
  %v1559 = vpop.xlane.xlu0 %1558
  %1560 = vadd.xlane.f32.xlu0 %v1477
  %v1561 = vpop.xlane.xlu0 %1560
  %1562 = vadd.xlane.f32.xlu0 %v1478
  %v1563 = vpop.xlane.xlu0 %1562
  %1564 = vadd.xlane.f32.xlu0 %v1479
  %v1565 = vpop.xlane.xlu0 %1564
  %1566 = vadd.xlane.f32.xlu0 %v1480
  %v1567 = vpop.xlane.xlu0 %1566
  %1568 = vadd.xlane.f32.xlu0 %v1481
  %v1569 = vpop.xlane.xlu0 %1568
  %1570 = vadd.xlane.f32.xlu0 %v1482
  %v1571 = vpop.xlane.xlu0 %1570
  %1572 = vadd.xlane.f32.xlu0 %v1483
  %v1573 = vpop.xlane.xlu0 %1572
  %1574 = vadd.xlane.f32.xlu0 %v1484
  %v1575 = vpop.xlane.xlu0 %1574
  %1576 = vadd.xlane.f32.xlu0 %v1485
  %v1577 = vpop.xlane.xlu0 %1576
  %1578 = vadd.xlane.f32.xlu0 %v1486
  %v1579 = vpop.xlane.xlu0 %1578
  %1580 = vadd.xlane.f32.xlu0 %v1487
  %v1581 = vpop.xlane.xlu0 %1580
  %1582 = vadd.xlane.f32.xlu0 %v1488
  %v1583 = vpop.xlane.xlu0 %1582
  %1584 = vadd.xlane.f32.xlu0 %v1489
  %v1585 = vpop.xlane.xlu0 %1584
  %1586 = vadd.xlane.f32.xlu0 %v1490
  %v1587 = vpop.xlane.xlu0 %1586
  %1588 = vadd.xlane.f32.xlu0 %v1491
  %v1589 = vpop.xlane.xlu0 %1588
  %1590 = vadd.xlane.f32.xlu0 %v1492
  %v1591 = vpop.xlane.xlu0 %1590
  %1592 = vadd.xlane.f32.xlu0 %v1493
  %v1593 = vpop.xlane.xlu0 %1592
  %1594 = vadd.xlane.f32.xlu0 %v1494
  %v1595 = vpop.xlane.xlu0 %1594
  %1596 = vadd.xlane.f32.xlu0 %v1495
  %v1597 = vpop.xlane.xlu0 %1596
  %1598 = vadd.xlane.f32.xlu0 %v1496
  %v1599 = vpop.xlane.xlu0 %1598
  %1600 = vadd.xlane.f32.xlu0 %v1497
  %v1601 = vpop.xlane.xlu0 %1600
  %1602 = vadd.xlane.f32.xlu0 %v1498
  %v1603 = vpop.xlane.xlu0 %1602
  %1604 = vadd.xlane.f32.xlu0 %v1499
  %v1605 = vpop.xlane.xlu0 %1604
  %1606 = vadd.xlane.f32.xlu0 %v1500
  %v1607 = vpop.xlane.xlu0 %1606
  %1608 = vadd.xlane.f32.xlu0 %v1501
  %v1609 = vpop.xlane.xlu0 %1608
  %1610 = vadd.xlane.f32.xlu0 %v1502
  %v1611 = vpop.xlane.xlu0 %1610
  %1612 = vadd.xlane.f32.xlu0 %v1503
  %v1613 = vpop.xlane.xlu0 %1612
  %1614 = vadd.xlane.f32.xlu0 %v1504
  %v1615 = vpop.xlane.xlu0 %1614
  %1616 = vadd.xlane.f32.xlu0 %v1505
  %v1617 = vpop.xlane.xlu0 %1616
  %1618 = vadd.xlane.f32.xlu0 %v1506
  %v1619 = vpop.xlane.xlu0 %1618
  %1620 = vadd.xlane.f32.xlu0 %v1507
  %v1621 = vpop.xlane.xlu0 %1620
  %1622 = vadd.xlane.f32.xlu0 %v1508
  %v1623 = vpop.xlane.xlu0 %1622
  %1624 = vadd.xlane.f32.xlu0 %v1509
  %v1625 = vpop.xlane.xlu0 %1624
  %1626 = vadd.xlane.f32.xlu0 %v1510
  %v1627 = vpop.xlane.xlu0 %1626
  %1628 = vadd.xlane.f32.xlu0 %v1511
  %v1629 = vpop.xlane.xlu0 %1628
  %1630 = vadd.xlane.f32.xlu0 %v1512
  %v1631 = vpop.xlane.xlu0 %1630
  %1632 = vadd.xlane.f32.xlu0 %v1513
  %v1633 = vpop.xlane.xlu0 %1632
  %1634 = vadd.xlane.f32.xlu0 %v1514
  %v1635 = vpop.xlane.xlu0 %1634
  %1636 = vadd.xlane.f32.xlu0 %v1515
  %v1637 = vpop.xlane.xlu0 %1636
  %1638 = vadd.xlane.f32.xlu0 %v1516
  %v1639 = vpop.xlane.xlu0 %1638
  %1640 = vadd.xlane.f32.xlu0 %v1517
  %v1641 = vpop.xlane.xlu0 %1640
  %1642 = vadd.xlane.f32.xlu0 %v1518
  %v1643 = vpop.xlane.xlu0 %1642
  %1644 = vadd.xlane.f32.xlu0 %v1519
  %v1645 = vpop.xlane.xlu0 %1644
  %1646 = vadd.xlane.f32.xlu0 %v1520
  %v1647 = vpop.xlane.xlu0 %1646
  %1648 = vadd.xlane.f32.xlu0 %v1521
  %v1649 = vpop.xlane.xlu0 %1648
  %v1650 = vmul.f32 %v1523, 0.03125
  %v1651 = vmul.f32 %v1525, 0.03125
  %v1652 = vmul.f32 %v1527, 0.03125
  %v1653 = vmul.f32 %v1529, 0.03125
  %v1654 = vmul.f32 %v1531, 0.03125
  %v1655 = vmul.f32 %v1533, 0.03125
  %v1656 = vmul.f32 %v1535, 0.03125
  %v1657 = vmul.f32 %v1537, 0.03125
  %v1658 = vmul.f32 %v1539, 0.03125
  %v1659 = vmul.f32 %v1541, 0.03125
  %v1660 = vmul.f32 %v1543, 0.03125
  %v1661 = vmul.f32 %v1545, 0.03125
  %v1662 = vmul.f32 %v1547, 0.03125
  %v1663 = vmul.f32 %v1549, 0.03125
  %v1664 = vmul.f32 %v1551, 0.03125
  %v1665 = vmul.f32 %v1553, 0.03125
  %v1666 = vmul.f32 %v1555, 0.03125
  %v1667 = vmul.f32 %v1557, 0.03125
  %v1668 = vmul.f32 %v1559, 0.03125
  %v1669 = vmul.f32 %v1561, 0.03125
  %v1670 = vmul.f32 %v1563, 0.03125
  %v1671 = vmul.f32 %v1565, 0.03125
  %v1672 = vmul.f32 %v1567, 0.03125
  %v1673 = vmul.f32 %v1569, 0.03125
  %v1674 = vmul.f32 %v1571, 0.03125
  %v1675 = vmul.f32 %v1573, 0.03125
  %v1676 = vmul.f32 %v1575, 0.03125
  %v1677 = vmul.f32 %v1577, 0.03125
  %v1678 = vmul.f32 %v1579, 0.03125
  %v1679 = vmul.f32 %v1581, 0.03125
  %v1680 = vmul.f32 %v1583, 0.03125
  %v1681 = vmul.f32 %v1585, 0.03125
  %v1682 = vmul.f32 %v1587, 0.03125
  %v1683 = vmul.f32 %v1589, 0.03125
  %v1684 = vmul.f32 %v1591, 0.03125
  %v1685 = vmul.f32 %v1593, 0.03125
  %v1686 = vmul.f32 %v1595, 0.03125
  %v1687 = vmul.f32 %v1597, 0.03125
  %v1688 = vmul.f32 %v1599, 0.03125
  %v1689 = vmul.f32 %v1601, 0.03125
  %v1690 = vmul.f32 %v1603, 0.03125
  %v1691 = vmul.f32 %v1605, 0.03125
  %v1692 = vmul.f32 %v1607, 0.03125
  %v1693 = vmul.f32 %v1609, 0.03125
  %v1694 = vmul.f32 %v1611, 0.03125
  %v1695 = vmul.f32 %v1613, 0.03125
  %v1696 = vmul.f32 %v1615, 0.03125
  %v1697 = vmul.f32 %v1617, 0.03125
  %v1698 = vmul.f32 %v1619, 0.03125
  %v1699 = vmul.f32 %v1621, 0.03125
  %v1700 = vmul.f32 %v1623, 0.03125
  %v1701 = vmul.f32 %v1625, 0.03125
  %v1702 = vmul.f32 %v1627, 0.03125
  %v1703 = vmul.f32 %v1629, 0.03125
  %v1704 = vmul.f32 %v1631, 0.03125
  %v1705 = vmul.f32 %v1633, 0.03125
  %v1706 = vmul.f32 %v1635, 0.03125
  %v1707 = vmul.f32 %v1637, 0.03125
  %v1708 = vmul.f32 %v1639, 0.03125
  %v1709 = vmul.f32 %v1641, 0.03125
  %v1710 = vmul.f32 %v1643, 0.03125
  %v1711 = vmul.f32 %v1645, 0.03125
  %v1712 = vmul.f32 %v1647, 0.03125
  %v1713 = vmul.f32 %v1649, 0.03125
  %v1714 = vmul.f32 %v1394, %v1394
  %v1715 = vmul.f32 %v1395, %v1395
  %v1716 = vmul.f32 %v1396, %v1396
  %v1717 = vmul.f32 %v1397, %v1397
  %v1718 = vmul.f32 %v1398, %v1398
  %v1719 = vmul.f32 %v1399, %v1399
  %v1720 = vmul.f32 %v1400, %v1400
  %v1721 = vmul.f32 %v1401, %v1401
  %v1722 = vmul.f32 %v1402, %v1402
  %v1723 = vmul.f32 %v1403, %v1403
  %v1724 = vmul.f32 %v1404, %v1404
  %v1725 = vmul.f32 %v1405, %v1405
  %v1726 = vmul.f32 %v1406, %v1406
  %v1727 = vmul.f32 %v1407, %v1407
  %v1728 = vmul.f32 %v1408, %v1408
  %v1729 = vmul.f32 %v1409, %v1409
  %v1730 = vmul.f32 %v1410, %v1410
  %v1731 = vmul.f32 %v1411, %v1411
  %v1732 = vmul.f32 %v1412, %v1412
  %v1733 = vmul.f32 %v1413, %v1413
  %v1734 = vmul.f32 %v1414, %v1414
  %v1735 = vmul.f32 %v1415, %v1415
  %v1736 = vmul.f32 %v1416, %v1416
  %v1737 = vmul.f32 %v1417, %v1417
  %v1738 = vmul.f32 %v1418, %v1418
  %v1739 = vmul.f32 %v1419, %v1419
  %v1740 = vmul.f32 %v1420, %v1420
  %v1741 = vmul.f32 %v1421, %v1421
  %v1742 = vmul.f32 %v1422, %v1422
  %v1743 = vmul.f32 %v1423, %v1423
  %v1744 = vmul.f32 %v1424, %v1424
  %v1745 = vmul.f32 %v1425, %v1425
  %v1746 = vmul.f32 %v1426, %v1426
  %v1747 = vmul.f32 %v1427, %v1427
  %v1748 = vmul.f32 %v1428, %v1428
  %v1749 = vmul.f32 %v1429, %v1429
  %v1750 = vmul.f32 %v1430, %v1430
  %v1751 = vmul.f32 %v1431, %v1431
  %v1752 = vmul.f32 %v1432, %v1432
  %v1753 = vmul.f32 %v1433, %v1433
  %v1754 = vmul.f32 %v1434, %v1434
  %v1755 = vmul.f32 %v1435, %v1435
  %v1756 = vmul.f32 %v1436, %v1436
  %v1757 = vmul.f32 %v1437, %v1437
  %v1758 = vmul.f32 %v1438, %v1438
  %v1759 = vmul.f32 %v1439, %v1439
  %v1760 = vmul.f32 %v1440, %v1440
  %v1761 = vmul.f32 %v1441, %v1441
  %v1762 = vmul.f32 %v1442, %v1442
  %v1763 = vmul.f32 %v1443, %v1443
  %v1764 = vmul.f32 %v1444, %v1444
  %v1765 = vmul.f32 %v1445, %v1445
  %v1766 = vmul.f32 %v1446, %v1446
  %v1767 = vmul.f32 %v1447, %v1447
  %v1768 = vmul.f32 %v1448, %v1448
  %v1769 = vmul.f32 %v1449, %v1449
  %v1770 = vmul.f32 %v1450, %v1450
  %v1771 = vmul.f32 %v1451, %v1451
  %v1772 = vmul.f32 %v1452, %v1452
  %v1773 = vmul.f32 %v1453, %v1453
  %v1774 = vmul.f32 %v1454, %v1454
  %v1775 = vmul.f32 %v1455, %v1455
  %v1776 = vmul.f32 %v1456, %v1456
  %v1777 = vmul.f32 %v1457, %v1457
  %v1778 = vsub.f32 %v1650, %v1714
  %v1779 = vsub.f32 %v1651, %v1715
  %v1780 = vsub.f32 %v1652, %v1716
  %v1781 = vsub.f32 %v1653, %v1717
  %v1782 = vsub.f32 %v1654, %v1718
  %v1783 = vsub.f32 %v1655, %v1719
  %v1784 = vsub.f32 %v1656, %v1720
  %v1785 = vsub.f32 %v1657, %v1721
  %v1786 = vsub.f32 %v1658, %v1722
  %v1787 = vsub.f32 %v1659, %v1723
  %v1788 = vsub.f32 %v1660, %v1724
  %v1789 = vsub.f32 %v1661, %v1725
  %v1790 = vsub.f32 %v1662, %v1726
  %v1791 = vsub.f32 %v1663, %v1727
  %v1792 = vsub.f32 %v1664, %v1728
  %v1793 = vsub.f32 %v1665, %v1729
  %v1794 = vsub.f32 %v1666, %v1730
  %v1795 = vsub.f32 %v1667, %v1731
  %v1796 = vsub.f32 %v1668, %v1732
  %v1797 = vsub.f32 %v1669, %v1733
  %v1798 = vsub.f32 %v1670, %v1734
  %v1799 = vsub.f32 %v1671, %v1735
  %v1800 = vsub.f32 %v1672, %v1736
  %v1801 = vsub.f32 %v1673, %v1737
  %v1802 = vsub.f32 %v1674, %v1738
  %v1803 = vsub.f32 %v1675, %v1739
  %v1804 = vsub.f32 %v1676, %v1740
  %v1805 = vsub.f32 %v1677, %v1741
  %v1806 = vsub.f32 %v1678, %v1742
  %v1807 = vsub.f32 %v1679, %v1743
  %v1808 = vsub.f32 %v1680, %v1744
  %v1809 = vsub.f32 %v1681, %v1745
  %v1810 = vsub.f32 %v1682, %v1746
  %v1811 = vsub.f32 %v1683, %v1747
  %v1812 = vsub.f32 %v1684, %v1748
  %v1813 = vsub.f32 %v1685, %v1749
  %v1814 = vsub.f32 %v1686, %v1750
  %v1815 = vsub.f32 %v1687, %v1751
  %v1816 = vsub.f32 %v1688, %v1752
  %v1817 = vsub.f32 %v1689, %v1753
  %v1818 = vsub.f32 %v1690, %v1754
  %v1819 = vsub.f32 %v1691, %v1755
  %v1820 = vsub.f32 %v1692, %v1756
  %v1821 = vsub.f32 %v1693, %v1757
  %v1822 = vsub.f32 %v1694, %v1758
  %v1823 = vsub.f32 %v1695, %v1759
  %v1824 = vsub.f32 %v1696, %v1760
  %v1825 = vsub.f32 %v1697, %v1761
  %v1826 = vsub.f32 %v1698, %v1762
  %v1827 = vsub.f32 %v1699, %v1763
  %v1828 = vsub.f32 %v1700, %v1764
  %v1829 = vsub.f32 %v1701, %v1765
  %v1830 = vsub.f32 %v1702, %v1766
  %v1831 = vsub.f32 %v1703, %v1767
  %v1832 = vsub.f32 %v1704, %v1768
  %v1833 = vsub.f32 %v1705, %v1769
  %v1834 = vsub.f32 %v1706, %v1770
  %v1835 = vsub.f32 %v1707, %v1771
  %v1836 = vsub.f32 %v1708, %v1772
  %v1837 = vsub.f32 %v1709, %v1773
  %v1838 = vsub.f32 %v1710, %v1774
  %v1839 = vsub.f32 %v1711, %v1775
  %v1840 = vsub.f32 %v1712, %v1776
  %v1841 = vsub.f32 %v1713, %v1777
  %v1842 = vsub.f32 %v1202, %v1394
  %v1843 = vsub.f32 %v1203, %v1395
  %v1844 = vsub.f32 %v1204, %v1396
  %v1845 = vsub.f32 %v1205, %v1397
  %v1846 = vsub.f32 %v1206, %v1398
  %v1847 = vsub.f32 %v1207, %v1399
  %v1848 = vsub.f32 %v1208, %v1400
  %v1849 = vsub.f32 %v1209, %v1401
  %v1850 = vsub.f32 %v1210, %v1402
  %v1851 = vsub.f32 %v1211, %v1403
  %v1852 = vsub.f32 %v1212, %v1404
  %v1853 = vsub.f32 %v1213, %v1405
  %v1854 = vsub.f32 %v1214, %v1406
  %v1855 = vsub.f32 %v1215, %v1407
  %v1856 = vsub.f32 %v1216, %v1408
  %v1857 = vsub.f32 %v1217, %v1409
  %v1858 = vsub.f32 %v1218, %v1410
  %v1859 = vsub.f32 %v1219, %v1411
  %v1860 = vsub.f32 %v1220, %v1412
  %v1861 = vsub.f32 %v1221, %v1413
  %v1862 = vsub.f32 %v1222, %v1414
  %v1863 = vsub.f32 %v1223, %v1415
  %v1864 = vsub.f32 %v1224, %v1416
  %v1865 = vsub.f32 %v1225, %v1417
  %v1866 = vsub.f32 %v1226, %v1418
  %v1867 = vsub.f32 %v1227, %v1419
  %v1868 = vsub.f32 %v1228, %v1420
  %v1869 = vsub.f32 %v1229, %v1421
  %v1870 = vsub.f32 %v1230, %v1422
  %v1871 = vsub.f32 %v1231, %v1423
  %v1872 = vsub.f32 %v1232, %v1424
  %v1873 = vsub.f32 %v1233, %v1425
  %v1874 = vsub.f32 %v1234, %v1426
  %v1875 = vsub.f32 %v1235, %v1427
  %v1876 = vsub.f32 %v1236, %v1428
  %v1877 = vsub.f32 %v1237, %v1429
  %v1878 = vsub.f32 %v1238, %v1430
  %v1879 = vsub.f32 %v1239, %v1431
  %v1880 = vsub.f32 %v1240, %v1432
  %v1881 = vsub.f32 %v1241, %v1433
  %v1882 = vsub.f32 %v1242, %v1434
  %v1883 = vsub.f32 %v1243, %v1435
  %v1884 = vsub.f32 %v1244, %v1436
  %v1885 = vsub.f32 %v1245, %v1437
  %v1886 = vsub.f32 %v1246, %v1438
  %v1887 = vsub.f32 %v1247, %v1439
  %v1888 = vsub.f32 %v1248, %v1440
  %v1889 = vsub.f32 %v1249, %v1441
  %v1890 = vsub.f32 %v1250, %v1442
  %v1891 = vsub.f32 %v1251, %v1443
  %v1892 = vsub.f32 %v1252, %v1444
  %v1893 = vsub.f32 %v1253, %v1445
  %v1894 = vsub.f32 %v1254, %v1446
  %v1895 = vsub.f32 %v1255, %v1447
  %v1896 = vsub.f32 %v1256, %v1448
  %v1897 = vsub.f32 %v1257, %v1449
  %v1898 = vsub.f32 %v1258, %v1450
  %v1899 = vsub.f32 %v1259, %v1451
  %v1900 = vsub.f32 %v1260, %v1452
  %v1901 = vsub.f32 %v1261, %v1453
  %v1902 = vsub.f32 %v1262, %v1454
  %v1903 = vsub.f32 %v1263, %v1455
  %v1904 = vsub.f32 %v1264, %v1456
  %v1905 = vsub.f32 %v1265, %v1457
  %v1906 = vadd.f32 %v1778, 1e-05
  %v1907 = vadd.f32 %v1779, 1e-05
  %v1908 = vadd.f32 %v1780, 1e-05
  %v1909 = vadd.f32 %v1781, 1e-05
  %v1910 = vadd.f32 %v1782, 1e-05
  %v1911 = vadd.f32 %v1783, 1e-05
  %v1912 = vadd.f32 %v1784, 1e-05
  %v1913 = vadd.f32 %v1785, 1e-05
  %v1914 = vadd.f32 %v1786, 1e-05
  %v1915 = vadd.f32 %v1787, 1e-05
  %v1916 = vadd.f32 %v1788, 1e-05
  %v1917 = vadd.f32 %v1789, 1e-05
  %v1918 = vadd.f32 %v1790, 1e-05
  %v1919 = vadd.f32 %v1791, 1e-05
  %v1920 = vadd.f32 %v1792, 1e-05
  %v1921 = vadd.f32 %v1793, 1e-05
  %v1922 = vadd.f32 %v1794, 1e-05
  %v1923 = vadd.f32 %v1795, 1e-05
  %v1924 = vadd.f32 %v1796, 1e-05
  %v1925 = vadd.f32 %v1797, 1e-05
  %v1926 = vadd.f32 %v1798, 1e-05
  %v1927 = vadd.f32 %v1799, 1e-05
  %v1928 = vadd.f32 %v1800, 1e-05
  %v1929 = vadd.f32 %v1801, 1e-05
  %v1930 = vadd.f32 %v1802, 1e-05
  %v1931 = vadd.f32 %v1803, 1e-05
  %v1932 = vadd.f32 %v1804, 1e-05
  %v1933 = vadd.f32 %v1805, 1e-05
  %v1934 = vadd.f32 %v1806, 1e-05
  %v1935 = vadd.f32 %v1807, 1e-05
  %v1936 = vadd.f32 %v1808, 1e-05
  %v1937 = vadd.f32 %v1809, 1e-05
  %v1938 = vadd.f32 %v1810, 1e-05
  %v1939 = vadd.f32 %v1811, 1e-05
  %v1940 = vadd.f32 %v1812, 1e-05
  %v1941 = vadd.f32 %v1813, 1e-05
  %v1942 = vadd.f32 %v1814, 1e-05
  %v1943 = vadd.f32 %v1815, 1e-05
  %v1944 = vadd.f32 %v1816, 1e-05
  %v1945 = vadd.f32 %v1817, 1e-05
  %v1946 = vadd.f32 %v1818, 1e-05
  %v1947 = vadd.f32 %v1819, 1e-05
  %v1948 = vadd.f32 %v1820, 1e-05
  %v1949 = vadd.f32 %v1821, 1e-05
  %v1950 = vadd.f32 %v1822, 1e-05
  %v1951 = vadd.f32 %v1823, 1e-05
  %v1952 = vadd.f32 %v1824, 1e-05
  %v1953 = vadd.f32 %v1825, 1e-05
  %v1954 = vadd.f32 %v1826, 1e-05
  %v1955 = vadd.f32 %v1827, 1e-05
  %v1956 = vadd.f32 %v1828, 1e-05
  %v1957 = vadd.f32 %v1829, 1e-05
  %v1958 = vadd.f32 %v1830, 1e-05
  %v1959 = vadd.f32 %v1831, 1e-05
  %v1960 = vadd.f32 %v1832, 1e-05
  %v1961 = vadd.f32 %v1833, 1e-05
  %v1962 = vadd.f32 %v1834, 1e-05
  %v1963 = vadd.f32 %v1835, 1e-05
  %v1964 = vadd.f32 %v1836, 1e-05
  %v1965 = vadd.f32 %v1837, 1e-05
  %v1966 = vadd.f32 %v1838, 1e-05
  %v1967 = vadd.f32 %v1839, 1e-05
  %v1968 = vadd.f32 %v1840, 1e-05
  %v1969 = vadd.f32 %v1841, 1e-05
  %v1970 = vrsqrt.pop %v1906
  %v1971 = vrsqrt.pop %v1907
  %v1972 = vrsqrt.pop %v1908
  %v1973 = vrsqrt.pop %v1909
  %v1974 = vrsqrt.pop %v1910
  %v1975 = vrsqrt.pop %v1911
  %v1976 = vrsqrt.pop %v1912
  %v1977 = vrsqrt.pop %v1913
  %v1978 = vrsqrt.pop %v1914
  %v1979 = vrsqrt.pop %v1915
  %v1980 = vrsqrt.pop %v1916
  %v1981 = vrsqrt.pop %v1917
  %v1982 = vrsqrt.pop %v1918
  %v1983 = vrsqrt.pop %v1919
  %v1984 = vrsqrt.pop %v1920
  %v1985 = vrsqrt.pop %v1921
  %v1986 = vrsqrt.pop %v1922
  %v1987 = vrsqrt.pop %v1923
  %v1988 = vrsqrt.pop %v1924
  %v1989 = vrsqrt.pop %v1925
  %v1990 = vrsqrt.pop %v1926
  %v1991 = vrsqrt.pop %v1927
  %v1992 = vrsqrt.pop %v1928
  %v1993 = vrsqrt.pop %v1929
  %v1994 = vrsqrt.pop %v1930
  %v1995 = vrsqrt.pop %v1931
  %v1996 = vrsqrt.pop %v1932
  %v1997 = vrsqrt.pop %v1933
  %v1998 = vrsqrt.pop %v1934
  %v1999 = vrsqrt.pop %v1935
  %v2000 = vrsqrt.pop %v1936
  %v2001 = vrsqrt.pop %v1937
  %v2002 = vrsqrt.pop %v1938
  %v2003 = vrsqrt.pop %v1939
  %v2004 = vrsqrt.pop %v1940
  %v2005 = vrsqrt.pop %v1941
  %v2006 = vrsqrt.pop %v1942
  %v2007 = vrsqrt.pop %v1943
  %v2008 = vrsqrt.pop %v1944
  %v2009 = vrsqrt.pop %v1945
  %v2010 = vrsqrt.pop %v1946
  %v2011 = vrsqrt.pop %v1947
  %v2012 = vrsqrt.pop %v1948
  %v2013 = vrsqrt.pop %v1949
  %v2014 = vrsqrt.pop %v1950
  %v2015 = vrsqrt.pop %v1951
  %v2016 = vrsqrt.pop %v1952
  %v2017 = vrsqrt.pop %v1953
  %v2018 = vrsqrt.pop %v1954
  %v2019 = vrsqrt.pop %v1955
  %v2020 = vrsqrt.pop %v1956
  %v2021 = vrsqrt.pop %v1957
  %v2022 = vrsqrt.pop %v1958
  %v2023 = vrsqrt.pop %v1959
  %v2024 = vrsqrt.pop %v1960
  %v2025 = vrsqrt.pop %v1961
  %v2026 = vrsqrt.pop %v1962
  %v2027 = vrsqrt.pop %v1963
  %v2028 = vrsqrt.pop %v1964
  %v2029 = vrsqrt.pop %v1965
  %v2030 = vrsqrt.pop %v1966
  %v2031 = vrsqrt.pop %v1967
  %v2032 = vrsqrt.pop %v1968
  %v2033 = vrsqrt.pop %v1969
  %v2034 = vmul.f32 %v1842, %v1970
  %v2035 = vmul.f32 %v1843, %v1971
  %v2036 = vmul.f32 %v1844, %v1972
  %v2037 = vmul.f32 %v1845, %v1973
  %v2038 = vmul.f32 %v1846, %v1974
  %v2039 = vmul.f32 %v1847, %v1975
  %v2040 = vmul.f32 %v1848, %v1976
  %v2041 = vmul.f32 %v1849, %v1977
  %v2042 = vmul.f32 %v1850, %v1978
  %v2043 = vmul.f32 %v1851, %v1979
  %v2044 = vmul.f32 %v1852, %v1980
  %v2045 = vmul.f32 %v1853, %v1981
  %v2046 = vmul.f32 %v1854, %v1982
  %v2047 = vmul.f32 %v1855, %v1983
  %v2048 = vmul.f32 %v1856, %v1984
  %v2049 = vmul.f32 %v1857, %v1985
  %v2050 = vmul.f32 %v1858, %v1986
  %v2051 = vmul.f32 %v1859, %v1987
  %v2052 = vmul.f32 %v1860, %v1988
  %v2053 = vmul.f32 %v1861, %v1989
  %v2054 = vmul.f32 %v1862, %v1990
  %v2055 = vmul.f32 %v1863, %v1991
  %v2056 = vmul.f32 %v1864, %v1992
  %v2057 = vmul.f32 %v1865, %v1993
  %v2058 = vmul.f32 %v1866, %v1994
  %v2059 = vmul.f32 %v1867, %v1995
  %v2060 = vmul.f32 %v1868, %v1996
  %v2061 = vmul.f32 %v1869, %v1997
  %v2062 = vmul.f32 %v1870, %v1998
  %v2063 = vmul.f32 %v1871, %v1999
  %v2064 = vmul.f32 %v1872, %v2000
  %v2065 = vmul.f32 %v1873, %v2001
  %v2066 = vmul.f32 %v1874, %v2002
  %v2067 = vmul.f32 %v1875, %v2003
  %v2068 = vmul.f32 %v1876, %v2004
  %v2069 = vmul.f32 %v1877, %v2005
  %v2070 = vmul.f32 %v1878, %v2006
  %v2071 = vmul.f32 %v1879, %v2007
  %v2072 = vmul.f32 %v1880, %v2008
  %v2073 = vmul.f32 %v1881, %v2009
  %v2074 = vmul.f32 %v1882, %v2010
  %v2075 = vmul.f32 %v1883, %v2011
  %v2076 = vmul.f32 %v1884, %v2012
  %v2077 = vmul.f32 %v1885, %v2013
  %v2078 = vmul.f32 %v1886, %v2014
  %v2079 = vmul.f32 %v1887, %v2015
  %v2080 = vmul.f32 %v1888, %v2016
  %v2081 = vmul.f32 %v1889, %v2017
  %v2082 = vmul.f32 %v1890, %v2018
  %v2083 = vmul.f32 %v1891, %v2019
  %v2084 = vmul.f32 %v1892, %v2020
  %v2085 = vmul.f32 %v1893, %v2021
  %v2086 = vmul.f32 %v1894, %v2022
  %v2087 = vmul.f32 %v1895, %v2023
  %v2088 = vmul.f32 %v1896, %v2024
  %v2089 = vmul.f32 %v1897, %v2025
  %v2090 = vmul.f32 %v1898, %v2026
  %v2091 = vmul.f32 %v1899, %v2027
  %v2092 = vmul.f32 %v1900, %v2028
  %v2093 = vmul.f32 %v1901, %v2029
  %v2094 = vmul.f32 %v1902, %v2030
  %v2095 = vmul.f32 %v1903, %v2031
  %v2096 = vmul.f32 %v1904, %v2032
  %v2097 = vmul.f32 %v1905, %v2033
  %v2098 = vld [vmem:[%s4] sm:$0x1]
  %v2100 = vlaneseq
  %v2101 = vshrl.u32 %v2100, 7
  %v2102 = vsub.s32 0, %v2101
  %v2103 = vrot.slane %v2098, %v2102
  %v2105 = vmul.f32 %v2034, %v2103
  %v2106 = vmul.f32 %v2035, %v2103
  %v2107 = vmul.f32 %v2036, %v2103
  %v2108 = vmul.f32 %v2037, %v2103
  %v2109 = vmul.f32 %v2038, %v2103
  %v2110 = vmul.f32 %v2039, %v2103
  %v2111 = vmul.f32 %v2040, %v2103
  %v2112 = vmul.f32 %v2041, %v2103
  %v2113 = vmul.f32 %v2042, %v2103
  %v2114 = vmul.f32 %v2043, %v2103
  %v2115 = vmul.f32 %v2044, %v2103
  %v2116 = vmul.f32 %v2045, %v2103
  %v2117 = vmul.f32 %v2046, %v2103
  %v2118 = vmul.f32 %v2047, %v2103
  %v2119 = vmul.f32 %v2048, %v2103
  %v2120 = vmul.f32 %v2049, %v2103
  %v2121 = vmul.f32 %v2050, %v2103
  %v2122 = vmul.f32 %v2051, %v2103
  %v2123 = vmul.f32 %v2052, %v2103
  %v2124 = vmul.f32 %v2053, %v2103
  %v2125 = vmul.f32 %v2054, %v2103
  %v2126 = vmul.f32 %v2055, %v2103
  %v2127 = vmul.f32 %v2056, %v2103
  %v2128 = vmul.f32 %v2057, %v2103
  %v2129 = vmul.f32 %v2058, %v2103
  %v2130 = vmul.f32 %v2059, %v2103
  %v2131 = vmul.f32 %v2060, %v2103
  %v2132 = vmul.f32 %v2061, %v2103
  %v2133 = vmul.f32 %v2062, %v2103
  %v2134 = vmul.f32 %v2063, %v2103
  %v2135 = vmul.f32 %v2064, %v2103
  %v2136 = vmul.f32 %v2065, %v2103
  %v2137 = vmul.f32 %v2066, %v2103
  %v2138 = vmul.f32 %v2067, %v2103
  %v2139 = vmul.f32 %v2068, %v2103
  %v2140 = vmul.f32 %v2069, %v2103
  %v2141 = vmul.f32 %v2070, %v2103
  %v2142 = vmul.f32 %v2071, %v2103
  %v2143 = vmul.f32 %v2072, %v2103
  %v2144 = vmul.f32 %v2073, %v2103
  %v2145 = vmul.f32 %v2074, %v2103
  %v2146 = vmul.f32 %v2075, %v2103
  %v2147 = vmul.f32 %v2076, %v2103
  %v2148 = vmul.f32 %v2077, %v2103
  %v2149 = vmul.f32 %v2078, %v2103
  %v2150 = vmul.f32 %v2079, %v2103
  %v2151 = vmul.f32 %v2080, %v2103
  %v2152 = vmul.f32 %v2081, %v2103
  %v2153 = vmul.f32 %v2082, %v2103
  %v2154 = vmul.f32 %v2083, %v2103
  %v2155 = vmul.f32 %v2084, %v2103
  %v2156 = vmul.f32 %v2085, %v2103
  %v2157 = vmul.f32 %v2086, %v2103
  %v2158 = vmul.f32 %v2087, %v2103
  %v2159 = vmul.f32 %v2088, %v2103
  %v2160 = vmul.f32 %v2089, %v2103
  %v2161 = vmul.f32 %v2090, %v2103
  %v2162 = vmul.f32 %v2091, %v2103
  %v2163 = vmul.f32 %v2092, %v2103
  %v2164 = vmul.f32 %v2093, %v2103
  %v2165 = vmul.f32 %v2094, %v2103
  %v2166 = vmul.f32 %v2095, %v2103
  %v2167 = vmul.f32 %v2096, %v2103
  %v2168 = vmul.f32 %v2097, %v2103
  %v2169 = vld [vmem:[%s5] sm:$0x1]
  %v2171 = vlaneseq
  %v2172 = vshrl.u32 %v2171, 7
  %v2173 = vsub.s32 0, %v2172
  %v2174 = vrot.slane %v2169, %v2173
  %v2176 = vadd.f32 %v2105, %v2174
  %v2177 = vadd.f32 %v2106, %v2174
  %v2178 = vadd.f32 %v2107, %v2174
  %v2179 = vadd.f32 %v2108, %v2174
  %v2180 = vadd.f32 %v2109, %v2174
  %v2181 = vadd.f32 %v2110, %v2174
  %v2182 = vadd.f32 %v2111, %v2174
  %v2183 = vadd.f32 %v2112, %v2174
  %v2184 = vadd.f32 %v2113, %v2174
  %v2185 = vadd.f32 %v2114, %v2174
  %v2186 = vadd.f32 %v2115, %v2174
  %v2187 = vadd.f32 %v2116, %v2174
  %v2188 = vadd.f32 %v2117, %v2174
  %v2189 = vadd.f32 %v2118, %v2174
  %v2190 = vadd.f32 %v2119, %v2174
  %v2191 = vadd.f32 %v2120, %v2174
  %v2192 = vadd.f32 %v2121, %v2174
  %v2193 = vadd.f32 %v2122, %v2174
  %v2194 = vadd.f32 %v2123, %v2174
  %v2195 = vadd.f32 %v2124, %v2174
  %v2196 = vadd.f32 %v2125, %v2174
  %v2197 = vadd.f32 %v2126, %v2174
  %v2198 = vadd.f32 %v2127, %v2174
  %v2199 = vadd.f32 %v2128, %v2174
  %v2200 = vadd.f32 %v2129, %v2174
  %v2201 = vadd.f32 %v2130, %v2174
  %v2202 = vadd.f32 %v2131, %v2174
  %v2203 = vadd.f32 %v2132, %v2174
  %v2204 = vadd.f32 %v2133, %v2174
  %v2205 = vadd.f32 %v2134, %v2174
  %v2206 = vadd.f32 %v2135, %v2174
  %v2207 = vadd.f32 %v2136, %v2174
  %v2208 = vadd.f32 %v2137, %v2174
  %v2209 = vadd.f32 %v2138, %v2174
  %v2210 = vadd.f32 %v2139, %v2174
  %v2211 = vadd.f32 %v2140, %v2174
  %v2212 = vadd.f32 %v2141, %v2174
  %v2213 = vadd.f32 %v2142, %v2174
  %v2214 = vadd.f32 %v2143, %v2174
  %v2215 = vadd.f32 %v2144, %v2174
  %v2216 = vadd.f32 %v2145, %v2174
  %v2217 = vadd.f32 %v2146, %v2174
  %v2218 = vadd.f32 %v2147, %v2174
  %v2219 = vadd.f32 %v2148, %v2174
  %v2220 = vadd.f32 %v2149, %v2174
  %v2221 = vadd.f32 %v2150, %v2174
  %v2222 = vadd.f32 %v2151, %v2174
  %v2223 = vadd.f32 %v2152, %v2174
  %v2224 = vadd.f32 %v2153, %v2174
  %v2225 = vadd.f32 %v2154, %v2174
  %v2226 = vadd.f32 %v2155, %v2174
  %v2227 = vadd.f32 %v2156, %v2174
  %v2228 = vadd.f32 %v2157, %v2174
  %v2229 = vadd.f32 %v2158, %v2174
  %v2230 = vadd.f32 %v2159, %v2174
  %v2231 = vadd.f32 %v2160, %v2174
  %v2232 = vadd.f32 %v2161, %v2174
  %v2233 = vadd.f32 %v2162, %v2174
  %v2234 = vadd.f32 %v2163, %v2174
  %v2235 = vadd.f32 %v2164, %v2174
  %v2236 = vadd.f32 %v2165, %v2174
  %v2237 = vadd.f32 %v2166, %v2174
  %v2238 = vadd.f32 %v2167, %v2174
  %v2239 = vadd.f32 %v2168, %v2174
  %v2240 = vpack.c.bf16 %v2177, %v2176
  %v2241 = vpack.c.bf16 %v2179, %v2178
  %v2242 = vpack.c.bf16 %v2181, %v2180
  %v2243 = vpack.c.bf16 %v2183, %v2182
  %v2244 = vpack.c.bf16 %v2185, %v2184
  %v2245 = vpack.c.bf16 %v2187, %v2186
  %v2246 = vpack.c.bf16 %v2189, %v2188
  %v2247 = vpack.c.bf16 %v2191, %v2190
  %v2248 = vpack.c.bf16 %v2193, %v2192
  %v2249 = vpack.c.bf16 %v2195, %v2194
  %v2250 = vpack.c.bf16 %v2197, %v2196
  %v2251 = vpack.c.bf16 %v2199, %v2198
  %v2252 = vpack.c.bf16 %v2201, %v2200
  %v2253 = vpack.c.bf16 %v2203, %v2202
  %v2254 = vpack.c.bf16 %v2205, %v2204
  %v2255 = vpack.c.bf16 %v2207, %v2206
  %v2256 = vpack.c.bf16 %v2209, %v2208
  %v2257 = vpack.c.bf16 %v2211, %v2210
  %v2258 = vpack.c.bf16 %v2213, %v2212
  %v2259 = vpack.c.bf16 %v2215, %v2214
  %v2260 = vpack.c.bf16 %v2217, %v2216
  %v2261 = vpack.c.bf16 %v2219, %v2218
  %v2262 = vpack.c.bf16 %v2221, %v2220
  %v2263 = vpack.c.bf16 %v2223, %v2222
  %v2264 = vpack.c.bf16 %v2225, %v2224
  %v2265 = vpack.c.bf16 %v2227, %v2226
  %v2266 = vpack.c.bf16 %v2229, %v2228
  %v2267 = vpack.c.bf16 %v2231, %v2230
  %v2268 = vpack.c.bf16 %v2233, %v2232
  %v2269 = vpack.c.bf16 %v2235, %v2234
  %v2270 = vpack.c.bf16 %v2237, %v2236
  %v2271 = vpack.c.bf16 %v2239, %v2238
  %v2272 = vld [vmem:[%s6] sm:$0xf]
  %v2273 = vld [vmem:[%s6 + $0x4] sm:$0xf]
  %v2274 = vld [vmem:[%s6 + $0x8] sm:$0xf]
  %v2275 = vld [vmem:[%s6 + $0xc] sm:$0xf]
  %v2276 = vld [vmem:[%s6 + $0x10] sm:$0xf]
  %v2277 = vld [vmem:[%s6 + $0x14] sm:$0xf]
  %v2278 = vld [vmem:[%s6 + $0x18] sm:$0xf]
  %v2279 = vld [vmem:[%s6 + $0x1c] sm:$0xf]
  %v2280 = vld [vmem:[%s6 + $0x20] sm:$0xf]
  %v2281 = vld [vmem:[%s6 + $0x24] sm:$0xf]
  %v2282 = vld [vmem:[%s6 + $0x28] sm:$0xf]
  %v2283 = vld [vmem:[%s6 + $0x2c] sm:$0xf]
  %v2284 = vld [vmem:[%s6 + $0x30] sm:$0xf]
  %v2285 = vld [vmem:[%s6 + $0x34] sm:$0xf]
  %v2286 = vld [vmem:[%s6 + $0x38] sm:$0xf]
  %v2287 = vld [vmem:[%s6 + $0x3c] sm:$0xf]
  %v2288 = vld [vmem:[%s7] sm:$0x1]
  %v2290 = vlaneseq
  %v2291 = vshrl.u32 %v2290, 7
  %v2292 = vsub.s32 0, %v2291
  %v2293 = vrot.slane %v2288, %v2292
  %v2311 = vunpack.c.l.b16 %v2272
  %v2312 = vunpack.c.l.b16 %v2273
  %v2313 = vunpack.c.l.b16 %v2274
  %v2314 = vunpack.c.l.b16 %v2275
  %v2315 = vunpack.c.l.b16 %v2276
  %v2316 = vunpack.c.l.b16 %v2277
  %v2317 = vunpack.c.l.b16 %v2278
  %v2318 = vunpack.c.l.b16 %v2279
  %v2319 = vunpack.c.l.b16 %v2280
  %v2320 = vunpack.c.l.b16 %v2281
  %v2321 = vunpack.c.l.b16 %v2282
  %v2322 = vunpack.c.l.b16 %v2283
  %v2323 = vunpack.c.l.b16 %v2284
  %v2324 = vunpack.c.l.b16 %v2285
  %v2325 = vunpack.c.l.b16 %v2286
  %v2326 = vunpack.c.l.b16 %v2287
  %v2327 = vpack.c.b16 %v2312, %v2311
  %v2328 = vpack.c.b16 %v2314, %v2313
  %v2329 = vpack.c.b16 %v2316, %v2315
  %v2330 = vpack.c.b16 %v2318, %v2317
  %v2331 = vpack.c.b16 %v2320, %v2319
  %v2332 = vpack.c.b16 %v2322, %v2321
  %v2333 = vpack.c.b16 %v2324, %v2323
  %v2334 = vpack.c.b16 %v2326, %v2325
  %2343 = vmatprep.subr.bf16.mxu0 0
  %2344 = vmatpush1.bf16.msra.mxu0 %v2334
  %2345 = vmatprep.subr.bf16.mxu0 0
  %2346 = vmatpush1.bf16.msra.mxu0 %v2333
  %2347 = vmatprep.subr.bf16.mxu0 0
  %2348 = vmatpush1.bf16.msra.mxu0 %v2332
  %2349 = vmatprep.subr.bf16.mxu0 0
  %2350 = vmatpush1.bf16.msra.mxu0 %v2331
  %2351 = vmatprep.subr.bf16.mxu0 0
  %2352 = vmatpush1.bf16.msra.mxu0 %v2330
  %2353 = vmatprep.subr.bf16.mxu0 0
  %2354 = vmatpush1.bf16.msra.mxu0 %v2329
  %2355 = vmatprep.subr.bf16.mxu0 0
  %2356 = vmatpush1.bf16.msra.mxu0 %v2328
  %2357 = vmatprep.subr.bf16.mxu0 0
  %2358 = vmatpush1.bf16.msra.mxu0 %v2327
  %2359 = vmatprep.subr.bf16.mxu0 0
  %2360 = vmatpush2.bf16.msra.mxu0 0
  %2361 = vmatprep.subr.bf16.mxu0 0
  %2362 = vmatpush2.bf16.msra.mxu0 0
  %2363 = vmatprep.subr.bf16.mxu0 0
  %2364 = vmatpush2.bf16.msra.mxu0 0
  %2365 = vmatprep.subr.bf16.mxu0 0
  %2366 = vmatpush2.bf16.msra.mxu0 0
  %2367 = vmatprep.subr.bf16.mxu0 0
  %2368 = vmatpush2.bf16.msra.mxu0 0
  %2369 = vmatprep.subr.bf16.mxu0 0
  %2370 = vmatpush2.bf16.msra.mxu0 0
  %2371 = vmatprep.subr.bf16.mxu0 0
  %2372 = vmatpush2.bf16.msra.mxu0 0
  %2373 = vmatprep.subr.bf16.mxu0 0
  %2374 = vmatpush2.bf16.msra.mxu0 0
  %2375 = vmatprep.mubr.bf16.mxu0 0
  %2376 = vmatmul.mubr.bf16.gmra.mxu0 %v2240
  %v2377 = vpop.f32.mrf.mxu0
  %v2378 = vadd.f32 %v2293, %v2377
  %v2379 = vpop.f32.mrf.mxu0
  %v2380 = vpop.f32.mrf.mxu0
  %v2381 = vadd.f32 %v2293, %v2380
  %v2382 = vpop.f32.mrf.mxu0
  %2383 = vmatprep.mubr.bf16.mxu0 0
  %2384 = vmatmul.mubr.bf16.gmra.mxu0 %v2241
  %v2385 = vpop.f32.mrf.mxu0
  %v2386 = vadd.f32 %v2293, %v2385
  %v2387 = vpop.f32.mrf.mxu0
  %v2388 = vpop.f32.mrf.mxu0
  %v2389 = vadd.f32 %v2293, %v2388
  %v2390 = vpop.f32.mrf.mxu0
  %2391 = vmatprep.mubr.bf16.mxu0 0
  %2392 = vmatmul.mubr.bf16.gmra.mxu0 %v2242
  %v2393 = vpop.f32.mrf.mxu0
  %v2394 = vadd.f32 %v2293, %v2393
  %v2395 = vpop.f32.mrf.mxu0
  %v2396 = vpop.f32.mrf.mxu0
  %v2397 = vadd.f32 %v2293, %v2396
  %v2398 = vpop.f32.mrf.mxu0
  %2399 = vmatprep.mubr.bf16.mxu0 0
  %2400 = vmatmul.mubr.bf16.gmra.mxu0 %v2243
  %v2401 = vpop.f32.mrf.mxu0
  %v2402 = vadd.f32 %v2293, %v2401
  %v2403 = vpop.f32.mrf.mxu0
  %v2404 = vpop.f32.mrf.mxu0
  %v2405 = vadd.f32 %v2293, %v2404
  %v2406 = vpop.f32.mrf.mxu0
  %2407 = vmatprep.mubr.bf16.mxu0 0
  %2408 = vmatmul.mubr.bf16.gmra.mxu0 %v2244
  %v2409 = vpop.f32.mrf.mxu0
  %v2410 = vadd.f32 %v2293, %v2409
  %v2411 = vpop.f32.mrf.mxu0
  %v2412 = vpop.f32.mrf.mxu0
  %v2413 = vadd.f32 %v2293, %v2412
  %v2414 = vpop.f32.mrf.mxu0
  %2415 = vmatprep.mubr.bf16.mxu0 0
  %2416 = vmatmul.mubr.bf16.gmra.mxu0 %v2245
  %v2417 = vpop.f32.mrf.mxu0
  %v2418 = vadd.f32 %v2293, %v2417
  %v2419 = vpop.f32.mrf.mxu0
  %v2420 = vpop.f32.mrf.mxu0
  %v2421 = vadd.f32 %v2293, %v2420
  %v2422 = vpop.f32.mrf.mxu0
  %2423 = vmatprep.mubr.bf16.mxu0 0
  %2424 = vmatmul.mubr.bf16.gmra.mxu0 %v2246
  %v2425 = vpop.f32.mrf.mxu0
  %v2426 = vadd.f32 %v2293, %v2425
  %v2427 = vpop.f32.mrf.mxu0
  %v2428 = vpop.f32.mrf.mxu0
  %v2429 = vadd.f32 %v2293, %v2428
  %v2430 = vpop.f32.mrf.mxu0
  %2431 = vmatprep.mubr.bf16.mxu0 0
  %2432 = vmatmul.mubr.bf16.gmra.mxu0 %v2247
  %v2433 = vpop.f32.mrf.mxu0
  %v2434 = vadd.f32 %v2293, %v2433
  %v2435 = vpop.f32.mrf.mxu0
  %v2436 = vpop.f32.mrf.mxu0
  %v2437 = vadd.f32 %v2293, %v2436
  %v2438 = vpop.f32.mrf.mxu0
  %2439 = vmatprep.mubr.bf16.mxu0 0
  %2440 = vmatmul.mubr.bf16.gmra.mxu0 %v2248
  %v2441 = vpop.f32.mrf.mxu0
  %v2442 = vadd.f32 %v2293, %v2441
  %v2443 = vpop.f32.mrf.mxu0
  %v2444 = vpop.f32.mrf.mxu0
  %v2445 = vadd.f32 %v2293, %v2444
  %v2446 = vpop.f32.mrf.mxu0
  %2447 = vmatprep.mubr.bf16.mxu0 0
  %2448 = vmatmul.mubr.bf16.gmra.mxu0 %v2249
  %v2449 = vpop.f32.mrf.mxu0
  %v2450 = vadd.f32 %v2293, %v2449
  %v2451 = vpop.f32.mrf.mxu0
  %v2452 = vpop.f32.mrf.mxu0
  %v2453 = vadd.f32 %v2293, %v2452
  %v2454 = vpop.f32.mrf.mxu0
  %2455 = vmatprep.mubr.bf16.mxu0 0
  %2456 = vmatmul.mubr.bf16.gmra.mxu0 %v2250
  %v2457 = vpop.f32.mrf.mxu0
  %v2458 = vadd.f32 %v2293, %v2457
  %v2459 = vpop.f32.mrf.mxu0
  %v2460 = vpop.f32.mrf.mxu0
  %v2461 = vadd.f32 %v2293, %v2460
  %v2462 = vpop.f32.mrf.mxu0
  %2463 = vmatprep.mubr.bf16.mxu0 0
  %2464 = vmatmul.mubr.bf16.gmra.mxu0 %v2251
  %v2465 = vpop.f32.mrf.mxu0
  %v2466 = vadd.f32 %v2293, %v2465
  %v2467 = vpop.f32.mrf.mxu0
  %v2468 = vpop.f32.mrf.mxu0
  %v2469 = vadd.f32 %v2293, %v2468
  %v2470 = vpop.f32.mrf.mxu0
  %2471 = vmatprep.mubr.bf16.mxu0 0
  %2472 = vmatmul.mubr.bf16.gmra.mxu0 %v2252
  %v2473 = vpop.f32.mrf.mxu0
  %v2474 = vadd.f32 %v2293, %v2473
  %v2475 = vpop.f32.mrf.mxu0
  %v2476 = vpop.f32.mrf.mxu0
  %v2477 = vadd.f32 %v2293, %v2476
  %v2478 = vpop.f32.mrf.mxu0
  %2479 = vmatprep.mubr.bf16.mxu0 0
  %2480 = vmatmul.mubr.bf16.gmra.mxu0 %v2253
  %v2481 = vpop.f32.mrf.mxu0
  %v2482 = vadd.f32 %v2293, %v2481
  %v2483 = vpop.f32.mrf.mxu0
  %v2484 = vpop.f32.mrf.mxu0
  %v2485 = vadd.f32 %v2293, %v2484
  %v2486 = vpop.f32.mrf.mxu0
  %2487 = vmatprep.mubr.bf16.mxu0 0
  %2488 = vmatmul.mubr.bf16.gmra.mxu0 %v2254
  %v2489 = vpop.f32.mrf.mxu0
  %v2490 = vadd.f32 %v2293, %v2489
  %v2491 = vpop.f32.mrf.mxu0
  %v2492 = vpop.f32.mrf.mxu0
  %v2493 = vadd.f32 %v2293, %v2492
  %v2494 = vpop.f32.mrf.mxu0
  %2495 = vmatprep.mubr.bf16.mxu0 0
  %2496 = vmatmul.mubr.bf16.gmra.mxu0 %v2255
  %v2497 = vpop.f32.mrf.mxu0
  %v2498 = vadd.f32 %v2293, %v2497
  %v2499 = vpop.f32.mrf.mxu0
  %v2500 = vpop.f32.mrf.mxu0
  %v2501 = vadd.f32 %v2293, %v2500
  %v2502 = vpop.f32.mrf.mxu0
  %2503 = vmatprep.mubr.bf16.mxu0 0
  %2504 = vmatmul.mubr.bf16.gmra.mxu0 %v2256
  %v2505 = vpop.f32.mrf.mxu0
  %v2506 = vadd.f32 %v2293, %v2505
  %v2507 = vpop.f32.mrf.mxu0
  %v2508 = vpop.f32.mrf.mxu0
  %v2509 = vadd.f32 %v2293, %v2508
  %v2510 = vpop.f32.mrf.mxu0
  %2511 = vmatprep.mubr.bf16.mxu0 0
  %2512 = vmatmul.mubr.bf16.gmra.mxu0 %v2257
  %v2513 = vpop.f32.mrf.mxu0
  %v2514 = vadd.f32 %v2293, %v2513
  %v2515 = vpop.f32.mrf.mxu0
  %v2516 = vpop.f32.mrf.mxu0
  %v2517 = vadd.f32 %v2293, %v2516
  %v2518 = vpop.f32.mrf.mxu0
  %2519 = vmatprep.mubr.bf16.mxu0 0
  %2520 = vmatmul.mubr.bf16.gmra.mxu0 %v2258
  %v2521 = vpop.f32.mrf.mxu0
  %v2522 = vadd.f32 %v2293, %v2521
  %v2523 = vpop.f32.mrf.mxu0
  %v2524 = vpop.f32.mrf.mxu0
  %v2525 = vadd.f32 %v2293, %v2524
  %v2526 = vpop.f32.mrf.mxu0
  %2527 = vmatprep.mubr.bf16.mxu0 0
  %2528 = vmatmul.mubr.bf16.gmra.mxu0 %v2259
  %v2529 = vpop.f32.mrf.mxu0
  %v2530 = vadd.f32 %v2293, %v2529
  %v2531 = vpop.f32.mrf.mxu0
  %v2532 = vpop.f32.mrf.mxu0
  %v2533 = vadd.f32 %v2293, %v2532
  %v2534 = vpop.f32.mrf.mxu0
  %2535 = vmatprep.mubr.bf16.mxu0 0
  %2536 = vmatmul.mubr.bf16.gmra.mxu0 %v2260
  %v2537 = vpop.f32.mrf.mxu0
  %v2538 = vadd.f32 %v2293, %v2537
  %v2539 = vpop.f32.mrf.mxu0
  %v2540 = vpop.f32.mrf.mxu0
  %v2541 = vadd.f32 %v2293, %v2540
  %v2542 = vpop.f32.mrf.mxu0
  %2543 = vmatprep.mubr.bf16.mxu0 0
  %2544 = vmatmul.mubr.bf16.gmra.mxu0 %v2261
  %v2545 = vpop.f32.mrf.mxu0
  %v2546 = vadd.f32 %v2293, %v2545
  %v2547 = vpop.f32.mrf.mxu0
  %v2548 = vpop.f32.mrf.mxu0
  %v2549 = vadd.f32 %v2293, %v2548
  %v2550 = vpop.f32.mrf.mxu0
  %2551 = vmatprep.mubr.bf16.mxu0 0
  %2552 = vmatmul.mubr.bf16.gmra.mxu0 %v2262
  %v2553 = vpop.f32.mrf.mxu0
  %v2554 = vadd.f32 %v2293, %v2553
  %v2555 = vpop.f32.mrf.mxu0
  %v2556 = vpop.f32.mrf.mxu0
  %v2557 = vadd.f32 %v2293, %v2556
  %v2558 = vpop.f32.mrf.mxu0
  %2559 = vmatprep.mubr.bf16.mxu0 0
  %2560 = vmatmul.mubr.bf16.gmra.mxu0 %v2263
  %v2561 = vpop.f32.mrf.mxu0
  %v2562 = vadd.f32 %v2293, %v2561
  %v2563 = vpop.f32.mrf.mxu0
  %v2564 = vpop.f32.mrf.mxu0
  %v2565 = vadd.f32 %v2293, %v2564
  %v2566 = vpop.f32.mrf.mxu0
  %2567 = vmatprep.mubr.bf16.mxu0 0
  %2568 = vmatmul.mubr.bf16.gmra.mxu0 %v2264
  %v2569 = vpop.f32.mrf.mxu0
  %v2570 = vadd.f32 %v2293, %v2569
  %v2571 = vpop.f32.mrf.mxu0
  %v2572 = vpop.f32.mrf.mxu0
  %v2573 = vadd.f32 %v2293, %v2572
  %v2574 = vpop.f32.mrf.mxu0
  %2575 = vmatprep.mubr.bf16.mxu0 0
  %2576 = vmatmul.mubr.bf16.gmra.mxu0 %v2265
  %v2577 = vpop.f32.mrf.mxu0
  %v2578 = vadd.f32 %v2293, %v2577
  %v2579 = vpop.f32.mrf.mxu0
  %v2580 = vpop.f32.mrf.mxu0
  %v2581 = vadd.f32 %v2293, %v2580
  %v2582 = vpop.f32.mrf.mxu0
  %2583 = vmatprep.mubr.bf16.mxu0 0
  %2584 = vmatmul.mubr.bf16.gmra.mxu0 %v2266
  %v2585 = vpop.f32.mrf.mxu0
  %v2586 = vadd.f32 %v2293, %v2585
  %v2587 = vpop.f32.mrf.mxu0
  %v2588 = vpop.f32.mrf.mxu0
  %v2589 = vadd.f32 %v2293, %v2588
  %v2590 = vpop.f32.mrf.mxu0
  %2591 = vmatprep.mubr.bf16.mxu0 0
  %2592 = vmatmul.mubr.bf16.gmra.mxu0 %v2267
  %v2593 = vpop.f32.mrf.mxu0
  %v2594 = vadd.f32 %v2293, %v2593
  %v2595 = vpop.f32.mrf.mxu0
  %v2596 = vpop.f32.mrf.mxu0
  %v2597 = vadd.f32 %v2293, %v2596
  %v2598 = vpop.f32.mrf.mxu0
  %2599 = vmatprep.mubr.bf16.mxu0 0
  %2600 = vmatmul.mubr.bf16.gmra.mxu0 %v2268
  %v2601 = vpop.f32.mrf.mxu0
  %v2602 = vadd.f32 %v2293, %v2601
  %v2603 = vpop.f32.mrf.mxu0
  %v2604 = vpop.f32.mrf.mxu0
  %v2605 = vadd.f32 %v2293, %v2604
  %v2606 = vpop.f32.mrf.mxu0
  %2607 = vmatprep.mubr.bf16.mxu0 0
  %2608 = vmatmul.mubr.bf16.gmra.mxu0 %v2269
  %v2609 = vpop.f32.mrf.mxu0
  %v2610 = vadd.f32 %v2293, %v2609
  %v2611 = vpop.f32.mrf.mxu0
  %v2612 = vpop.f32.mrf.mxu0
  %v2613 = vadd.f32 %v2293, %v2612
  %v2614 = vpop.f32.mrf.mxu0
  %2615 = vmatprep.mubr.bf16.mxu0 0
  %2616 = vmatmul.mubr.bf16.gmra.mxu0 %v2270
  %v2617 = vpop.f32.mrf.mxu0
  %v2618 = vadd.f32 %v2293, %v2617
  %v2619 = vpop.f32.mrf.mxu0
  %v2620 = vpop.f32.mrf.mxu0
  %v2621 = vadd.f32 %v2293, %v2620
  %v2622 = vpop.f32.mrf.mxu0
  %2623 = vmatprep.mubr.bf16.mxu0 0
  %2624 = vmatmul.mubr.bf16.gmra.mxu0 %v2271
  %v2625 = vpop.f32.mrf.mxu0
  %v2626 = vadd.f32 %v2293, %v2625
  %v2627 = vpop.f32.mrf.mxu0
  %v2628 = vpop.f32.mrf.mxu0
  %v2629 = vadd.f32 %v2293, %v2628
  %v2630 = vpop.f32.mrf.mxu0
  %2631 = vdwg.mxu0
  %v2632 = vand.u32 2147483647, %v2378
  %v2633 = vand.u32 2147483647, %v2381
  %v2634 = vand.u32 2147483647, %v2386
  %v2635 = vand.u32 2147483647, %v2389
  %v2636 = vand.u32 2147483647, %v2394
  %v2637 = vand.u32 2147483647, %v2397
  %v2638 = vand.u32 2147483647, %v2402
  %v2639 = vand.u32 2147483647, %v2405
  %v2640 = vand.u32 2147483647, %v2410
  %v2641 = vand.u32 2147483647, %v2413
  %v2642 = vand.u32 2147483647, %v2418
  %v2643 = vand.u32 2147483647, %v2421
  %v2644 = vand.u32 2147483647, %v2426
  %v2645 = vand.u32 2147483647, %v2429
  %v2646 = vand.u32 2147483647, %v2434
  %v2647 = vand.u32 2147483647, %v2437
  %v2648 = vand.u32 2147483647, %v2442
  %v2649 = vand.u32 2147483647, %v2445
  %v2650 = vand.u32 2147483647, %v2450
  %v2651 = vand.u32 2147483647, %v2453
  %v2652 = vand.u32 2147483647, %v2458
  %v2653 = vand.u32 2147483647, %v2461
  %v2654 = vand.u32 2147483647, %v2466
  %v2655 = vand.u32 2147483647, %v2469
  %v2656 = vand.u32 2147483647, %v2474
  %v2657 = vand.u32 2147483647, %v2477
  %v2658 = vand.u32 2147483647, %v2482
  %v2659 = vand.u32 2147483647, %v2485
  %v2660 = vand.u32 2147483647, %v2490
  %v2661 = vand.u32 2147483647, %v2493
  %v2662 = vand.u32 2147483647, %v2498
  %v2663 = vand.u32 2147483647, %v2501
  %v2664 = vand.u32 2147483647, %v2506
  %v2665 = vand.u32 2147483647, %v2509
  %v2666 = vand.u32 2147483647, %v2514
  %v2667 = vand.u32 2147483647, %v2517
  %v2668 = vand.u32 2147483647, %v2522
  %v2669 = vand.u32 2147483647, %v2525
  %v2670 = vand.u32 2147483647, %v2530
  %v2671 = vand.u32 2147483647, %v2533
  %v2672 = vand.u32 2147483647, %v2538
  %v2673 = vand.u32 2147483647, %v2541
  %v2674 = vand.u32 2147483647, %v2546
  %v2675 = vand.u32 2147483647, %v2549
  %v2676 = vand.u32 2147483647, %v2554
  %v2677 = vand.u32 2147483647, %v2557
  %v2678 = vand.u32 2147483647, %v2562
  %v2679 = vand.u32 2147483647, %v2565
  %v2680 = vand.u32 2147483647, %v2570
  %v2681 = vand.u32 2147483647, %v2573
  %v2682 = vand.u32 2147483647, %v2578
  %v2683 = vand.u32 2147483647, %v2581
  %v2684 = vand.u32 2147483647, %v2586
  %v2685 = vand.u32 2147483647, %v2589
  %v2686 = vand.u32 2147483647, %v2594
  %v2687 = vand.u32 2147483647, %v2597
  %v2688 = vand.u32 2147483647, %v2602
  %v2689 = vand.u32 2147483647, %v2605
  %v2690 = vand.u32 2147483647, %v2610
  %v2691 = vand.u32 2147483647, %v2613
  %v2692 = vand.u32 2147483647, %v2618
  %v2693 = vand.u32 2147483647, %v2621
  %v2694 = vand.u32 2147483647, %v2626
  %v2695 = vand.u32 2147483647, %v2629
  %v2696 = vmul.f32 %v2632, 0.70710677
  %v2697 = vmul.f32 %v2633, 0.70710677
  %v2698 = vmul.f32 %v2634, 0.70710677
  %v2699 = vmul.f32 %v2635, 0.70710677
  %v2700 = vmul.f32 %v2636, 0.70710677
  %v2701 = vmul.f32 %v2637, 0.70710677
  %v2702 = vmul.f32 %v2638, 0.70710677
  %v2703 = vmul.f32 %v2639, 0.70710677
  %v2704 = vmul.f32 %v2640, 0.70710677
  %v2705 = vmul.f32 %v2641, 0.70710677
  %v2706 = vmul.f32 %v2642, 0.70710677
  %v2707 = vmul.f32 %v2643, 0.70710677
  %v2708 = vmul.f32 %v2644, 0.70710677
  %v2709 = vmul.f32 %v2645, 0.70710677
  %v2710 = vmul.f32 %v2646, 0.70710677
  %v2711 = vmul.f32 %v2647, 0.70710677
  %v2712 = vmul.f32 %v2648, 0.70710677
  %v2713 = vmul.f32 %v2649, 0.70710677
  %v2714 = vmul.f32 %v2650, 0.70710677
  %v2715 = vmul.f32 %v2651, 0.70710677
  %v2716 = vmul.f32 %v2652, 0.70710677
  %v2717 = vmul.f32 %v2653, 0.70710677
  %v2718 = vmul.f32 %v2654, 0.70710677
  %v2719 = vmul.f32 %v2655, 0.70710677
  %v2720 = vmul.f32 %v2656, 0.70710677
  %v2721 = vmul.f32 %v2657, 0.70710677
  %v2722 = vmul.f32 %v2658, 0.70710677
  %v2723 = vmul.f32 %v2659, 0.70710677
  %v2724 = vmul.f32 %v2660, 0.70710677
  %v2725 = vmul.f32 %v2661, 0.70710677
  %v2726 = vmul.f32 %v2662, 0.70710677
  %v2727 = vmul.f32 %v2663, 0.70710677
  %v2728 = vmul.f32 %v2664, 0.70710677
  %v2729 = vmul.f32 %v2665, 0.70710677
  %v2730 = vmul.f32 %v2666, 0.70710677
  %v2731 = vmul.f32 %v2667, 0.70710677
  %v2732 = vmul.f32 %v2668, 0.70710677
  %v2733 = vmul.f32 %v2669, 0.70710677
  %v2734 = vmul.f32 %v2670, 0.70710677
  %v2735 = vmul.f32 %v2671, 0.70710677
  %v2736 = vmul.f32 %v2672, 0.70710677
  %v2737 = vmul.f32 %v2673, 0.70710677
  %v2738 = vmul.f32 %v2674, 0.70710677
  %v2739 = vmul.f32 %v2675, 0.70710677
  %v2740 = vmul.f32 %v2676, 0.70710677
  %v2741 = vmul.f32 %v2677, 0.70710677
  %v2742 = vmul.f32 %v2678, 0.70710677
  %v2743 = vmul.f32 %v2679, 0.70710677
  %v2744 = vmul.f32 %v2680, 0.70710677
  %v2745 = vmul.f32 %v2681, 0.70710677
  %v2746 = vmul.f32 %v2682, 0.70710677
  %v2747 = vmul.f32 %v2683, 0.70710677
  %v2748 = vmul.f32 %v2684, 0.70710677
  %v2749 = vmul.f32 %v2685, 0.70710677
  %v2750 = vmul.f32 %v2686, 0.70710677
  %v2751 = vmul.f32 %v2687, 0.70710677
  %v2752 = vmul.f32 %v2688, 0.70710677
  %v2753 = vmul.f32 %v2689, 0.70710677
  %v2754 = vmul.f32 %v2690, 0.70710677
  %v2755 = vmul.f32 %v2691, 0.70710677
  %v2756 = vmul.f32 %v2692, 0.70710677
  %v2757 = vmul.f32 %v2693, 0.70710677
  %v2758 = vmul.f32 %v2694, 0.70710677
  %v2759 = vmul.f32 %v2695, 0.70710677
  %v2760 = vmul.f32 %v2696, 0.3275911
  %v2761 = vmul.f32 %v2697, 0.3275911
  %v2762 = vmul.f32 %v2698, 0.3275911
  %v2763 = vmul.f32 %v2699, 0.3275911
  %v2764 = vmul.f32 %v2700, 0.3275911
  %v2765 = vmul.f32 %v2701, 0.3275911
  %v2766 = vmul.f32 %v2702, 0.3275911
  %v2767 = vmul.f32 %v2703, 0.3275911
  %v2768 = vmul.f32 %v2704, 0.3275911
  %v2769 = vmul.f32 %v2705, 0.3275911
  %v2770 = vmul.f32 %v2706, 0.3275911
  %v2771 = vmul.f32 %v2707, 0.3275911
  %v2772 = vmul.f32 %v2708, 0.3275911
  %v2773 = vmul.f32 %v2709, 0.3275911
  %v2774 = vmul.f32 %v2710, 0.3275911
  %v2775 = vmul.f32 %v2711, 0.3275911
  %v2776 = vmul.f32 %v2712, 0.3275911
  %v2777 = vmul.f32 %v2713, 0.3275911
  %v2778 = vmul.f32 %v2714, 0.3275911
  %v2779 = vmul.f32 %v2715, 0.3275911
  %v2780 = vmul.f32 %v2716, 0.3275911
  %v2781 = vmul.f32 %v2717, 0.3275911
  %v2782 = vmul.f32 %v2718, 0.3275911
  %v2783 = vmul.f32 %v2719, 0.3275911
  %v2784 = vmul.f32 %v2720, 0.3275911
  %v2785 = vmul.f32 %v2721, 0.3275911
  %v2786 = vmul.f32 %v2722, 0.3275911
  %v2787 = vmul.f32 %v2723, 0.3275911
  %v2788 = vmul.f32 %v2724, 0.3275911
  %v2789 = vmul.f32 %v2725, 0.3275911
  %v2790 = vmul.f32 %v2726, 0.3275911
  %v2791 = vmul.f32 %v2727, 0.3275911
  %v2792 = vmul.f32 %v2728, 0.3275911
  %v2793 = vmul.f32 %v2729, 0.3275911
  %v2794 = vmul.f32 %v2730, 0.3275911
  %v2795 = vmul.f32 %v2731, 0.3275911
  %v2796 = vmul.f32 %v2732, 0.3275911
  %v2797 = vmul.f32 %v2733, 0.3275911
  %v2798 = vmul.f32 %v2734, 0.3275911
  %v2799 = vmul.f32 %v2735, 0.3275911
  %v2800 = vmul.f32 %v2736, 0.3275911
  %v2801 = vmul.f32 %v2737, 0.3275911
  %v2802 = vmul.f32 %v2738, 0.3275911
  %v2803 = vmul.f32 %v2739, 0.3275911
  %v2804 = vmul.f32 %v2740, 0.3275911
  %v2805 = vmul.f32 %v2741, 0.3275911
  %v2806 = vmul.f32 %v2742, 0.3275911
  %v2807 = vmul.f32 %v2743, 0.3275911
  %v2808 = vmul.f32 %v2744, 0.3275911
  %v2809 = vmul.f32 %v2745, 0.3275911
  %v2810 = vmul.f32 %v2746, 0.3275911
  %v2811 = vmul.f32 %v2747, 0.3275911
  %v2812 = vmul.f32 %v2748, 0.3275911
  %v2813 = vmul.f32 %v2749, 0.3275911
  %v2814 = vmul.f32 %v2750, 0.3275911
  %v2815 = vmul.f32 %v2751, 0.3275911
  %v2816 = vmul.f32 %v2752, 0.3275911
  %v2817 = vmul.f32 %v2753, 0.3275911
  %v2818 = vmul.f32 %v2754, 0.3275911
  %v2819 = vmul.f32 %v2755, 0.3275911
  %v2820 = vmul.f32 %v2756, 0.3275911
  %v2821 = vmul.f32 %v2757, 0.3275911
  %v2822 = vmul.f32 %v2758, 0.3275911
  %v2823 = vmul.f32 %v2759, 0.3275911
  %v2824 = vadd.f32 %v2760, 1.0
  %v2825 = vadd.f32 %v2761, 1.0
  %v2826 = vadd.f32 %v2762, 1.0
  %v2827 = vadd.f32 %v2763, 1.0
  %v2828 = vadd.f32 %v2764, 1.0
  %v2829 = vadd.f32 %v2765, 1.0
  %v2830 = vadd.f32 %v2766, 1.0
  %v2831 = vadd.f32 %v2767, 1.0
  %v2832 = vadd.f32 %v2768, 1.0
  %v2833 = vadd.f32 %v2769, 1.0
  %v2834 = vadd.f32 %v2770, 1.0
  %v2835 = vadd.f32 %v2771, 1.0
  %v2836 = vadd.f32 %v2772, 1.0
  %v2837 = vadd.f32 %v2773, 1.0
  %v2838 = vadd.f32 %v2774, 1.0
  %v2839 = vadd.f32 %v2775, 1.0
  %v2840 = vadd.f32 %v2776, 1.0
  %v2841 = vadd.f32 %v2777, 1.0
  %v2842 = vadd.f32 %v2778, 1.0
  %v2843 = vadd.f32 %v2779, 1.0
  %v2844 = vadd.f32 %v2780, 1.0
  %v2845 = vadd.f32 %v2781, 1.0
  %v2846 = vadd.f32 %v2782, 1.0
  %v2847 = vadd.f32 %v2783, 1.0
  %v2848 = vadd.f32 %v2784, 1.0
  %v2849 = vadd.f32 %v2785, 1.0
  %v2850 = vadd.f32 %v2786, 1.0
  %v2851 = vadd.f32 %v2787, 1.0
  %v2852 = vadd.f32 %v2788, 1.0
  %v2853 = vadd.f32 %v2789, 1.0
  %v2854 = vadd.f32 %v2790, 1.0
  %v2855 = vadd.f32 %v2791, 1.0
  %v2856 = vadd.f32 %v2792, 1.0
  %v2857 = vadd.f32 %v2793, 1.0
  %v2858 = vadd.f32 %v2794, 1.0
  %v2859 = vadd.f32 %v2795, 1.0
  %v2860 = vadd.f32 %v2796, 1.0
  %v2861 = vadd.f32 %v2797, 1.0
  %v2862 = vadd.f32 %v2798, 1.0
  %v2863 = vadd.f32 %v2799, 1.0
  %v2864 = vadd.f32 %v2800, 1.0
  %v2865 = vadd.f32 %v2801, 1.0
  %v2866 = vadd.f32 %v2802, 1.0
  %v2867 = vadd.f32 %v2803, 1.0
  %v2868 = vadd.f32 %v2804, 1.0
  %v2869 = vadd.f32 %v2805, 1.0
  %v2870 = vadd.f32 %v2806, 1.0
  %v2871 = vadd.f32 %v2807, 1.0
  %v2872 = vadd.f32 %v2808, 1.0
  %v2873 = vadd.f32 %v2809, 1.0
  %v2874 = vadd.f32 %v2810, 1.0
  %v2875 = vadd.f32 %v2811, 1.0
  %v2876 = vadd.f32 %v2812, 1.0
  %v2877 = vadd.f32 %v2813, 1.0
  %v2878 = vadd.f32 %v2814, 1.0
  %v2879 = vadd.f32 %v2815, 1.0
  %v2880 = vadd.f32 %v2816, 1.0
  %v2881 = vadd.f32 %v2817, 1.0
  %v2882 = vadd.f32 %v2818, 1.0
  %v2883 = vadd.f32 %v2819, 1.0
  %v2884 = vadd.f32 %v2820, 1.0
  %v2885 = vadd.f32 %v2821, 1.0
  %v2886 = vadd.f32 %v2822, 1.0
  %v2887 = vadd.f32 %v2823, 1.0
  %v2888 = vrcp.pop %v2824
  %v2889 = vrcp.pop %v2825
  %v2890 = vrcp.pop %v2826
  %v2891 = vrcp.pop %v2827
  %v2892 = vrcp.pop %v2828
  %v2893 = vrcp.pop %v2829
  %v2894 = vrcp.pop %v2830
  %v2895 = vrcp.pop %v2831
  %v2896 = vrcp.pop %v2832
  %v2897 = vrcp.pop %v2833
  %v2898 = vrcp.pop %v2834
  %v2899 = vrcp.pop %v2835
  %v2900 = vrcp.pop %v2836
  %v2901 = vrcp.pop %v2837
  %v2902 = vrcp.pop %v2838
  %v2903 = vrcp.pop %v2839
  %v2904 = vrcp.pop %v2840
  %v2905 = vrcp.pop %v2841
  %v2906 = vrcp.pop %v2842
  %v2907 = vrcp.pop %v2843
  %v2908 = vrcp.pop %v2844
  %v2909 = vrcp.pop %v2845
  %v2910 = vrcp.pop %v2846
  %v2911 = vrcp.pop %v2847
  %v2912 = vrcp.pop %v2848
  %v2913 = vrcp.pop %v2849
  %v2914 = vrcp.pop %v2850
  %v2915 = vrcp.pop %v2851
  %v2916 = vrcp.pop %v2852
  %v2917 = vrcp.pop %v2853
  %v2918 = vrcp.pop %v2854
  %v2919 = vrcp.pop %v2855
  %v2920 = vrcp.pop %v2856
  %v2921 = vrcp.pop %v2857
  %v2922 = vrcp.pop %v2858
  %v2923 = vrcp.pop %v2859
  %v2924 = vrcp.pop %v2860
  %v2925 = vrcp.pop %v2861
  %v2926 = vrcp.pop %v2862
  %v2927 = vrcp.pop %v2863
  %v2928 = vrcp.pop %v2864
  %v2929 = vrcp.pop %v2865
  %v2930 = vrcp.pop %v2866
  %v2931 = vrcp.pop %v2867
  %v2932 = vrcp.pop %v2868
  %v2933 = vrcp.pop %v2869
  %v2934 = vrcp.pop %v2870
  %v2935 = vrcp.pop %v2871
  %v2936 = vrcp.pop %v2872
  %v2937 = vrcp.pop %v2873
  %v2938 = vrcp.pop %v2874
  %v2939 = vrcp.pop %v2875
  %v2940 = vrcp.pop %v2876
  %v2941 = vrcp.pop %v2877
  %v2942 = vrcp.pop %v2878
  %v2943 = vrcp.pop %v2879
  %v2944 = vrcp.pop %v2880
  %v2945 = vrcp.pop %v2881
  %v2946 = vrcp.pop %v2882
  %v2947 = vrcp.pop %v2883
  %v2948 = vrcp.pop %v2884
  %v2949 = vrcp.pop %v2885
  %v2950 = vrcp.pop %v2886
  %v2951 = vrcp.pop %v2887
  %v2952 = vmul.f32 %v2888, 1.0614054
  %v2953 = vmul.f32 %v2889, 1.0614054
  %v2954 = vmul.f32 %v2890, 1.0614054
  %v2955 = vmul.f32 %v2891, 1.0614054
  %v2956 = vmul.f32 %v2892, 1.0614054
  %v2957 = vmul.f32 %v2893, 1.0614054
  %v2958 = vmul.f32 %v2894, 1.0614054
  %v2959 = vmul.f32 %v2895, 1.0614054
  %v2960 = vmul.f32 %v2896, 1.0614054
  %v2961 = vmul.f32 %v2897, 1.0614054
  %v2962 = vmul.f32 %v2898, 1.0614054
  %v2963 = vmul.f32 %v2899, 1.0614054
  %v2964 = vmul.f32 %v2900, 1.0614054
  %v2965 = vmul.f32 %v2901, 1.0614054
  %v2966 = vmul.f32 %v2902, 1.0614054
  %v2967 = vmul.f32 %v2903, 1.0614054
  %v2968 = vmul.f32 %v2904, 1.0614054
  %v2969 = vmul.f32 %v2905, 1.0614054
  %v2970 = vmul.f32 %v2906, 1.0614054
  %v2971 = vmul.f32 %v2907, 1.0614054
  %v2972 = vmul.f32 %v2908, 1.0614054
  %v2973 = vmul.f32 %v2909, 1.0614054
  %v2974 = vmul.f32 %v2910, 1.0614054
  %v2975 = vmul.f32 %v2911, 1.0614054
  %v2976 = vmul.f32 %v2912, 1.0614054
  %v2977 = vmul.f32 %v2913, 1.0614054
  %v2978 = vmul.f32 %v2914, 1.0614054
  %v2979 = vmul.f32 %v2915, 1.0614054
  %v2980 = vmul.f32 %v2916, 1.0614054
  %v2981 = vmul.f32 %v2917, 1.0614054
  %v2982 = vmul.f32 %v2918, 1.0614054
  %v2983 = vmul.f32 %v2919, 1.0614054
  %v2984 = vmul.f32 %v2920, 1.0614054
  %v2985 = vmul.f32 %v2921, 1.0614054
  %v2986 = vmul.f32 %v2922, 1.0614054
  %v2987 = vmul.f32 %v2923, 1.0614054
  %v2988 = vmul.f32 %v2924, 1.0614054
  %v2989 = vmul.f32 %v2925, 1.0614054
  %v2990 = vmul.f32 %v2926, 1.0614054
  %v2991 = vmul.f32 %v2927, 1.0614054
  %v2992 = vmul.f32 %v2928, 1.0614054
  %v2993 = vmul.f32 %v2929, 1.0614054
  %v2994 = vmul.f32 %v2930, 1.0614054
  %v2995 = vmul.f32 %v2931, 1.0614054
  %v2996 = vmul.f32 %v2932, 1.0614054
  %v2997 = vmul.f32 %v2933, 1.0614054
  %v2998 = vmul.f32 %v2934, 1.0614054
  %v2999 = vmul.f32 %v2935, 1.0614054
  %v3000 = vmul.f32 %v2936, 1.0614054
  %v3001 = vmul.f32 %v2937, 1.0614054
  %v3002 = vmul.f32 %v2938, 1.0614054
  %v3003 = vmul.f32 %v2939, 1.0614054
  %v3004 = vmul.f32 %v2940, 1.0614054
  %v3005 = vmul.f32 %v2941, 1.0614054
  %v3006 = vmul.f32 %v2942, 1.0614054
  %v3007 = vmul.f32 %v2943, 1.0614054
  %v3008 = vmul.f32 %v2944, 1.0614054
  %v3009 = vmul.f32 %v2945, 1.0614054
  %v3010 = vmul.f32 %v2946, 1.0614054
  %v3011 = vmul.f32 %v2947, 1.0614054
  %v3012 = vmul.f32 %v2948, 1.0614054
  %v3013 = vmul.f32 %v2949, 1.0614054
  %v3014 = vmul.f32 %v2950, 1.0614054
  %v3015 = vmul.f32 %v2951, 1.0614054
  %v3016 = vadd.f32 %v2952, -1.4531521
  %v3017 = vadd.f32 %v2953, -1.4531521
  %v3018 = vadd.f32 %v2954, -1.4531521
  %v3019 = vadd.f32 %v2955, -1.4531521
  %v3020 = vadd.f32 %v2956, -1.4531521
  %v3021 = vadd.f32 %v2957, -1.4531521
  %v3022 = vadd.f32 %v2958, -1.4531521
  %v3023 = vadd.f32 %v2959, -1.4531521
  %v3024 = vadd.f32 %v2960, -1.4531521
  %v3025 = vadd.f32 %v2961, -1.4531521
  %v3026 = vadd.f32 %v2962, -1.4531521
  %v3027 = vadd.f32 %v2963, -1.4531521
  %v3028 = vadd.f32 %v2964, -1.4531521
  %v3029 = vadd.f32 %v2965, -1.4531521
  %v3030 = vadd.f32 %v2966, -1.4531521
  %v3031 = vadd.f32 %v2967, -1.4531521
  %v3032 = vadd.f32 %v2968, -1.4531521
  %v3033 = vadd.f32 %v2969, -1.4531521
  %v3034 = vadd.f32 %v2970, -1.4531521
  %v3035 = vadd.f32 %v2971, -1.4531521
  %v3036 = vadd.f32 %v2972, -1.4531521
  %v3037 = vadd.f32 %v2973, -1.4531521
  %v3038 = vadd.f32 %v2974, -1.4531521
  %v3039 = vadd.f32 %v2975, -1.4531521
  %v3040 = vadd.f32 %v2976, -1.4531521
  %v3041 = vadd.f32 %v2977, -1.4531521
  %v3042 = vadd.f32 %v2978, -1.4531521
  %v3043 = vadd.f32 %v2979, -1.4531521
  %v3044 = vadd.f32 %v2980, -1.4531521
  %v3045 = vadd.f32 %v2981, -1.4531521
  %v3046 = vadd.f32 %v2982, -1.4531521
  %v3047 = vadd.f32 %v2983, -1.4531521
  %v3048 = vadd.f32 %v2984, -1.4531521
  %v3049 = vadd.f32 %v2985, -1.4531521
  %v3050 = vadd.f32 %v2986, -1.4531521
  %v3051 = vadd.f32 %v2987, -1.4531521
  %v3052 = vadd.f32 %v2988, -1.4531521
  %v3053 = vadd.f32 %v2989, -1.4531521
  %v3054 = vadd.f32 %v2990, -1.4531521
  %v3055 = vadd.f32 %v2991, -1.4531521
  %v3056 = vadd.f32 %v2992, -1.4531521
  %v3057 = vadd.f32 %v2993, -1.4531521
  %v3058 = vadd.f32 %v2994, -1.4531521
  %v3059 = vadd.f32 %v2995, -1.4531521
  %v3060 = vadd.f32 %v2996, -1.4531521
  %v3061 = vadd.f32 %v2997, -1.4531521
  %v3062 = vadd.f32 %v2998, -1.4531521
  %v3063 = vadd.f32 %v2999, -1.4531521
  %v3064 = vadd.f32 %v3000, -1.4531521
  %v3065 = vadd.f32 %v3001, -1.4531521
  %v3066 = vadd.f32 %v3002, -1.4531521
  %v3067 = vadd.f32 %v3003, -1.4531521
  %v3068 = vadd.f32 %v3004, -1.4531521
  %v3069 = vadd.f32 %v3005, -1.4531521
  %v3070 = vadd.f32 %v3006, -1.4531521
  %v3071 = vadd.f32 %v3007, -1.4531521
  %v3072 = vadd.f32 %v3008, -1.4531521
  %v3073 = vadd.f32 %v3009, -1.4531521
  %v3074 = vadd.f32 %v3010, -1.4531521
  %v3075 = vadd.f32 %v3011, -1.4531521
  %v3076 = vadd.f32 %v3012, -1.4531521
  %v3077 = vadd.f32 %v3013, -1.4531521
  %v3078 = vadd.f32 %v3014, -1.4531521
  %v3079 = vadd.f32 %v3015, -1.4531521
  %v3080 = vmul.f32 %v3016, %v2888
  %v3081 = vmul.f32 %v3017, %v2889
  %v3082 = vmul.f32 %v3018, %v2890
  %v3083 = vmul.f32 %v3019, %v2891
  %v3084 = vmul.f32 %v3020, %v2892
  %v3085 = vmul.f32 %v3021, %v2893
  %v3086 = vmul.f32 %v3022, %v2894
  %v3087 = vmul.f32 %v3023, %v2895
  %v3088 = vmul.f32 %v3024, %v2896
  %v3089 = vmul.f32 %v3025, %v2897
  %v3090 = vmul.f32 %v3026, %v2898
  %v3091 = vmul.f32 %v3027, %v2899
  %v3092 = vmul.f32 %v3028, %v2900
  %v3093 = vmul.f32 %v3029, %v2901
  %v3094 = vmul.f32 %v3030, %v2902
  %v3095 = vmul.f32 %v3031, %v2903
  %v3096 = vmul.f32 %v3032, %v2904
  %v3097 = vmul.f32 %v3033, %v2905
  %v3098 = vmul.f32 %v3034, %v2906
  %v3099 = vmul.f32 %v3035, %v2907
  %v3100 = vmul.f32 %v3036, %v2908
  %v3101 = vmul.f32 %v3037, %v2909
  %v3102 = vmul.f32 %v3038, %v2910
  %v3103 = vmul.f32 %v3039, %v2911
  %v3104 = vmul.f32 %v3040, %v2912
  %v3105 = vmul.f32 %v3041, %v2913
  %v3106 = vmul.f32 %v3042, %v2914
  %v3107 = vmul.f32 %v3043, %v2915
  %v3108 = vmul.f32 %v3044, %v2916
  %v3109 = vmul.f32 %v3045, %v2917
  %v3110 = vmul.f32 %v3046, %v2918
  %v3111 = vmul.f32 %v3047, %v2919
  %v3112 = vmul.f32 %v3048, %v2920
  %v3113 = vmul.f32 %v3049, %v2921
  %v3114 = vmul.f32 %v3050, %v2922
  %v3115 = vmul.f32 %v3051, %v2923
  %v3116 = vmul.f32 %v3052, %v2924
  %v3117 = vmul.f32 %v3053, %v2925
  %v3118 = vmul.f32 %v3054, %v2926
  %v3119 = vmul.f32 %v3055, %v2927
  %v3120 = vmul.f32 %v3056, %v2928
  %v3121 = vmul.f32 %v3057, %v2929
  %v3122 = vmul.f32 %v3058, %v2930
  %v3123 = vmul.f32 %v3059, %v2931
  %v3124 = vmul.f32 %v3060, %v2932
  %v3125 = vmul.f32 %v3061, %v2933
  %v3126 = vmul.f32 %v3062, %v2934
  %v3127 = vmul.f32 %v3063, %v2935
  %v3128 = vmul.f32 %v3064, %v2936
  %v3129 = vmul.f32 %v3065, %v2937
  %v3130 = vmul.f32 %v3066, %v2938
  %v3131 = vmul.f32 %v3067, %v2939
  %v3132 = vmul.f32 %v3068, %v2940
  %v3133 = vmul.f32 %v3069, %v2941
  %v3134 = vmul.f32 %v3070, %v2942
  %v3135 = vmul.f32 %v3071, %v2943
  %v3136 = vmul.f32 %v3072, %v2944
  %v3137 = vmul.f32 %v3073, %v2945
  %v3138 = vmul.f32 %v3074, %v2946
  %v3139 = vmul.f32 %v3075, %v2947
  %v3140 = vmul.f32 %v3076, %v2948
  %v3141 = vmul.f32 %v3077, %v2949
  %v3142 = vmul.f32 %v3078, %v2950
  %v3143 = vmul.f32 %v3079, %v2951
  %v3144 = vadd.f32 %v3080, 1.4214138
  %v3145 = vadd.f32 %v3081, 1.4214138
  %v3146 = vadd.f32 %v3082, 1.4214138
  %v3147 = vadd.f32 %v3083, 1.4214138
  %v3148 = vadd.f32 %v3084, 1.4214138
  %v3149 = vadd.f32 %v3085, 1.4214138
  %v3150 = vadd.f32 %v3086, 1.4214138
  %v3151 = vadd.f32 %v3087, 1.4214138
  %v3152 = vadd.f32 %v3088, 1.4214138
  %v3153 = vadd.f32 %v3089, 1.4214138
  %v3154 = vadd.f32 %v3090, 1.4214138
  %v3155 = vadd.f32 %v3091, 1.4214138
  %v3156 = vadd.f32 %v3092, 1.4214138
  %v3157 = vadd.f32 %v3093, 1.4214138
  %v3158 = vadd.f32 %v3094, 1.4214138
  %v3159 = vadd.f32 %v3095, 1.4214138
  %v3160 = vadd.f32 %v3096, 1.4214138
  %v3161 = vadd.f32 %v3097, 1.4214138
  %v3162 = vadd.f32 %v3098, 1.4214138
  %v3163 = vadd.f32 %v3099, 1.4214138
  %v3164 = vadd.f32 %v3100, 1.4214138
  %v3165 = vadd.f32 %v3101, 1.4214138
  %v3166 = vadd.f32 %v3102, 1.4214138
  %v3167 = vadd.f32 %v3103, 1.4214138
  %v3168 = vadd.f32 %v3104, 1.4214138
  %v3169 = vadd.f32 %v3105, 1.4214138
  %v3170 = vadd.f32 %v3106, 1.4214138
  %v3171 = vadd.f32 %v3107, 1.4214138
  %v3172 = vadd.f32 %v3108, 1.4214138
  %v3173 = vadd.f32 %v3109, 1.4214138
  %v3174 = vadd.f32 %v3110, 1.4214138
  %v3175 = vadd.f32 %v3111, 1.4214138
  %v3176 = vadd.f32 %v3112, 1.4214138
  %v3177 = vadd.f32 %v3113, 1.4214138
  %v3178 = vadd.f32 %v3114, 1.4214138
  %v3179 = vadd.f32 %v3115, 1.4214138
  %v3180 = vadd.f32 %v3116, 1.4214138
  %v3181 = vadd.f32 %v3117, 1.4214138
  %v3182 = vadd.f32 %v3118, 1.4214138
  %v3183 = vadd.f32 %v3119, 1.4214138
  %v3184 = vadd.f32 %v3120, 1.4214138
  %v3185 = vadd.f32 %v3121, 1.4214138
  %v3186 = vadd.f32 %v3122, 1.4214138
  %v3187 = vadd.f32 %v3123, 1.4214138
  %v3188 = vadd.f32 %v3124, 1.4214138
  %v3189 = vadd.f32 %v3125, 1.4214138
  %v3190 = vadd.f32 %v3126, 1.4214138
  %v3191 = vadd.f32 %v3127, 1.4214138
  %v3192 = vadd.f32 %v3128, 1.4214138
  %v3193 = vadd.f32 %v3129, 1.4214138
  %v3194 = vadd.f32 %v3130, 1.4214138
  %v3195 = vadd.f32 %v3131, 1.4214138
  %v3196 = vadd.f32 %v3132, 1.4214138
  %v3197 = vadd.f32 %v3133, 1.4214138
  %v3198 = vadd.f32 %v3134, 1.4214138
  %v3199 = vadd.f32 %v3135, 1.4214138
  %v3200 = vadd.f32 %v3136, 1.4214138
  %v3201 = vadd.f32 %v3137, 1.4214138
  %v3202 = vadd.f32 %v3138, 1.4214138
  %v3203 = vadd.f32 %v3139, 1.4214138
  %v3204 = vadd.f32 %v3140, 1.4214138
  %v3205 = vadd.f32 %v3141, 1.4214138
  %v3206 = vadd.f32 %v3142, 1.4214138
  %v3207 = vadd.f32 %v3143, 1.4214138
  %v3208 = vmul.f32 %v3144, %v2888
  %v3209 = vmul.f32 %v3145, %v2889
  %v3210 = vmul.f32 %v3146, %v2890
  %v3211 = vmul.f32 %v3147, %v2891
  %v3212 = vmul.f32 %v3148, %v2892
  %v3213 = vmul.f32 %v3149, %v2893
  %v3214 = vmul.f32 %v3150, %v2894
  %v3215 = vmul.f32 %v3151, %v2895
  %v3216 = vmul.f32 %v3152, %v2896
  %v3217 = vmul.f32 %v3153, %v2897
  %v3218 = vmul.f32 %v3154, %v2898
  %v3219 = vmul.f32 %v3155, %v2899
  %v3220 = vmul.f32 %v3156, %v2900
  %v3221 = vmul.f32 %v3157, %v2901
  %v3222 = vmul.f32 %v3158, %v2902
  %v3223 = vmul.f32 %v3159, %v2903
  %v3224 = vmul.f32 %v3160, %v2904
  %v3225 = vmul.f32 %v3161, %v2905
  %v3226 = vmul.f32 %v3162, %v2906
  %v3227 = vmul.f32 %v3163, %v2907
  %v3228 = vmul.f32 %v3164, %v2908
  %v3229 = vmul.f32 %v3165, %v2909
  %v3230 = vmul.f32 %v3166, %v2910
  %v3231 = vmul.f32 %v3167, %v2911
  %v3232 = vmul.f32 %v3168, %v2912
  %v3233 = vmul.f32 %v3169, %v2913
  %v3234 = vmul.f32 %v3170, %v2914
  %v3235 = vmul.f32 %v3171, %v2915
  %v3236 = vmul.f32 %v3172, %v2916
  %v3237 = vmul.f32 %v3173, %v2917
  %v3238 = vmul.f32 %v3174, %v2918
  %v3239 = vmul.f32 %v3175, %v2919
  %v3240 = vmul.f32 %v3176, %v2920
  %v3241 = vmul.f32 %v3177, %v2921
  %v3242 = vmul.f32 %v3178, %v2922
  %v3243 = vmul.f32 %v3179, %v2923
  %v3244 = vmul.f32 %v3180, %v2924
  %v3245 = vmul.f32 %v3181, %v2925
  %v3246 = vmul.f32 %v3182, %v2926
  %v3247 = vmul.f32 %v3183, %v2927
  %v3248 = vmul.f32 %v3184, %v2928
  %v3249 = vmul.f32 %v3185, %v2929
  %v3250 = vmul.f32 %v3186, %v2930
  %v3251 = vmul.f32 %v3187, %v2931
  %v3252 = vmul.f32 %v3188, %v2932
  %v3253 = vmul.f32 %v3189, %v2933
  %v3254 = vmul.f32 %v3190, %v2934
  %v3255 = vmul.f32 %v3191, %v2935
  %v3256 = vmul.f32 %v3192, %v2936
  %v3257 = vmul.f32 %v3193, %v2937
  %v3258 = vmul.f32 %v3194, %v2938
  %v3259 = vmul.f32 %v3195, %v2939
  %v3260 = vmul.f32 %v3196, %v2940
  %v3261 = vmul.f32 %v3197, %v2941
  %v3262 = vmul.f32 %v3198, %v2942
  %v3263 = vmul.f32 %v3199, %v2943
  %v3264 = vmul.f32 %v3200, %v2944
  %v3265 = vmul.f32 %v3201, %v2945
  %v3266 = vmul.f32 %v3202, %v2946
  %v3267 = vmul.f32 %v3203, %v2947
  %v3268 = vmul.f32 %v3204, %v2948
  %v3269 = vmul.f32 %v3205, %v2949
  %v3270 = vmul.f32 %v3206, %v2950
  %v3271 = vmul.f32 %v3207, %v2951
  %v3272 = vadd.f32 %v3208, -0.28449672
  %v3273 = vadd.f32 %v3209, -0.28449672
  %v3274 = vadd.f32 %v3210, -0.28449672
  %v3275 = vadd.f32 %v3211, -0.28449672
  %v3276 = vadd.f32 %v3212, -0.28449672
  %v3277 = vadd.f32 %v3213, -0.28449672
  %v3278 = vadd.f32 %v3214, -0.28449672
  %v3279 = vadd.f32 %v3215, -0.28449672
  %v3280 = vadd.f32 %v3216, -0.28449672
  %v3281 = vadd.f32 %v3217, -0.28449672
  %v3282 = vadd.f32 %v3218, -0.28449672
  %v3283 = vadd.f32 %v3219, -0.28449672
  %v3284 = vadd.f32 %v3220, -0.28449672
  %v3285 = vadd.f32 %v3221, -0.28449672
  %v3286 = vadd.f32 %v3222, -0.28449672
  %v3287 = vadd.f32 %v3223, -0.28449672
  %v3288 = vadd.f32 %v3224, -0.28449672
  %v3289 = vadd.f32 %v3225, -0.28449672
  %v3290 = vadd.f32 %v3226, -0.28449672
  %v3291 = vadd.f32 %v3227, -0.28449672
  %v3292 = vadd.f32 %v3228, -0.28449672
  %v3293 = vadd.f32 %v3229, -0.28449672
  %v3294 = vadd.f32 %v3230, -0.28449672
  %v3295 = vadd.f32 %v3231, -0.28449672
  %v3296 = vadd.f32 %v3232, -0.28449672
  %v3297 = vadd.f32 %v3233, -0.28449672
  %v3298 = vadd.f32 %v3234, -0.28449672
  %v3299 = vadd.f32 %v3235, -0.28449672
  %v3300 = vadd.f32 %v3236, -0.28449672
  %v3301 = vadd.f32 %v3237, -0.28449672
  %v3302 = vadd.f32 %v3238, -0.28449672
  %v3303 = vadd.f32 %v3239, -0.28449672
  %v3304 = vadd.f32 %v3240, -0.28449672
  %v3305 = vadd.f32 %v3241, -0.28449672
  %v3306 = vadd.f32 %v3242, -0.28449672
  %v3307 = vadd.f32 %v3243, -0.28449672
  %v3308 = vadd.f32 %v3244, -0.28449672
  %v3309 = vadd.f32 %v3245, -0.28449672
  %v3310 = vadd.f32 %v3246, -0.28449672
  %v3311 = vadd.f32 %v3247, -0.28449672
  %v3312 = vadd.f32 %v3248, -0.28449672
  %v3313 = vadd.f32 %v3249, -0.28449672
  %v3314 = vadd.f32 %v3250, -0.28449672
  %v3315 = vadd.f32 %v3251, -0.28449672
  %v3316 = vadd.f32 %v3252, -0.28449672
  %v3317 = vadd.f32 %v3253, -0.28449672
  %v3318 = vadd.f32 %v3254, -0.28449672
  %v3319 = vadd.f32 %v3255, -0.28449672
  %v3320 = vadd.f32 %v3256, -0.28449672
  %v3321 = vadd.f32 %v3257, -0.28449672
  %v3322 = vadd.f32 %v3258, -0.28449672
  %v3323 = vadd.f32 %v3259, -0.28449672
  %v3324 = vadd.f32 %v3260, -0.28449672
  %v3325 = vadd.f32 %v3261, -0.28449672
  %v3326 = vadd.f32 %v3262, -0.28449672
  %v3327 = vadd.f32 %v3263, -0.28449672
  %v3328 = vadd.f32 %v3264, -0.28449672
  %v3329 = vadd.f32 %v3265, -0.28449672
  %v3330 = vadd.f32 %v3266, -0.28449672
  %v3331 = vadd.f32 %v3267, -0.28449672
  %v3332 = vadd.f32 %v3268, -0.28449672
  %v3333 = vadd.f32 %v3269, -0.28449672
  %v3334 = vadd.f32 %v3270, -0.28449672
  %v3335 = vadd.f32 %v3271, -0.28449672
  %v3336 = vmul.f32 %v3272, %v2888
  %v3337 = vmul.f32 %v3273, %v2889
  %v3338 = vmul.f32 %v3274, %v2890
  %v3339 = vmul.f32 %v3275, %v2891
  %v3340 = vmul.f32 %v3276, %v2892
  %v3341 = vmul.f32 %v3277, %v2893
  %v3342 = vmul.f32 %v3278, %v2894
  %v3343 = vmul.f32 %v3279, %v2895
  %v3344 = vmul.f32 %v3280, %v2896
  %v3345 = vmul.f32 %v3281, %v2897
  %v3346 = vmul.f32 %v3282, %v2898
  %v3347 = vmul.f32 %v3283, %v2899
  %v3348 = vmul.f32 %v3284, %v2900
  %v3349 = vmul.f32 %v3285, %v2901
  %v3350 = vmul.f32 %v3286, %v2902
  %v3351 = vmul.f32 %v3287, %v2903
  %v3352 = vmul.f32 %v3288, %v2904
  %v3353 = vmul.f32 %v3289, %v2905
  %v3354 = vmul.f32 %v3290, %v2906
  %v3355 = vmul.f32 %v3291, %v2907
  %v3356 = vmul.f32 %v3292, %v2908
  %v3357 = vmul.f32 %v3293, %v2909
  %v3358 = vmul.f32 %v3294, %v2910
  %v3359 = vmul.f32 %v3295, %v2911
  %v3360 = vmul.f32 %v3296, %v2912
  %v3361 = vmul.f32 %v3297, %v2913
  %v3362 = vmul.f32 %v3298, %v2914
  %v3363 = vmul.f32 %v3299, %v2915
  %v3364 = vmul.f32 %v3300, %v2916
  %v3365 = vmul.f32 %v3301, %v2917
  %v3366 = vmul.f32 %v3302, %v2918
  %v3367 = vmul.f32 %v3303, %v2919
  %v3368 = vmul.f32 %v3304, %v2920
  %v3369 = vmul.f32 %v3305, %v2921
  %v3370 = vmul.f32 %v3306, %v2922
  %v3371 = vmul.f32 %v3307, %v2923
  %v3372 = vmul.f32 %v3308, %v2924
  %v3373 = vmul.f32 %v3309, %v2925
  %v3374 = vmul.f32 %v3310, %v2926
  %v3375 = vmul.f32 %v3311, %v2927
  %v3376 = vmul.f32 %v3312, %v2928
  %v3377 = vmul.f32 %v3313, %v2929
  %v3378 = vmul.f32 %v3314, %v2930
  %v3379 = vmul.f32 %v3315, %v2931
  %v3380 = vmul.f32 %v3316, %v2932
  %v3381 = vmul.f32 %v3317, %v2933
  %v3382 = vmul.f32 %v3318, %v2934
  %v3383 = vmul.f32 %v3319, %v2935
  %v3384 = vmul.f32 %v3320, %v2936
  %v3385 = vmul.f32 %v3321, %v2937
  %v3386 = vmul.f32 %v3322, %v2938
  %v3387 = vmul.f32 %v3323, %v2939
  %v3388 = vmul.f32 %v3324, %v2940
  %v3389 = vmul.f32 %v3325, %v2941
  %v3390 = vmul.f32 %v3326, %v2942
  %v3391 = vmul.f32 %v3327, %v2943
  %v3392 = vmul.f32 %v3328, %v2944
  %v3393 = vmul.f32 %v3329, %v2945
  %v3394 = vmul.f32 %v3330, %v2946
  %v3395 = vmul.f32 %v3331, %v2947
  %v3396 = vmul.f32 %v3332, %v2948
  %v3397 = vmul.f32 %v3333, %v2949
  %v3398 = vmul.f32 %v3334, %v2950
  %v3399 = vmul.f32 %v3335, %v2951
  %v3400 = vadd.f32 %v3336, 0.2548296
  %v3401 = vadd.f32 %v3337, 0.2548296
  %v3402 = vadd.f32 %v3338, 0.2548296
  %v3403 = vadd.f32 %v3339, 0.2548296
  %v3404 = vadd.f32 %v3340, 0.2548296
  %v3405 = vadd.f32 %v3341, 0.2548296
  %v3406 = vadd.f32 %v3342, 0.2548296
  %v3407 = vadd.f32 %v3343, 0.2548296
  %v3408 = vadd.f32 %v3344, 0.2548296
  %v3409 = vadd.f32 %v3345, 0.2548296
  %v3410 = vadd.f32 %v3346, 0.2548296
  %v3411 = vadd.f32 %v3347, 0.2548296
  %v3412 = vadd.f32 %v3348, 0.2548296
  %v3413 = vadd.f32 %v3349, 0.2548296
  %v3414 = vadd.f32 %v3350, 0.2548296
  %v3415 = vadd.f32 %v3351, 0.2548296
  %v3416 = vadd.f32 %v3352, 0.2548296
  %v3417 = vadd.f32 %v3353, 0.2548296
  %v3418 = vadd.f32 %v3354, 0.2548296
  %v3419 = vadd.f32 %v3355, 0.2548296
  %v3420 = vadd.f32 %v3356, 0.2548296
  %v3421 = vadd.f32 %v3357, 0.2548296
  %v3422 = vadd.f32 %v3358, 0.2548296
  %v3423 = vadd.f32 %v3359, 0.2548296
  %v3424 = vadd.f32 %v3360, 0.2548296
  %v3425 = vadd.f32 %v3361, 0.2548296
  %v3426 = vadd.f32 %v3362, 0.2548296
  %v3427 = vadd.f32 %v3363, 0.2548296
  %v3428 = vadd.f32 %v3364, 0.2548296
  %v3429 = vadd.f32 %v3365, 0.2548296
  %v3430 = vadd.f32 %v3366, 0.2548296
  %v3431 = vadd.f32 %v3367, 0.2548296
  %v3432 = vadd.f32 %v3368, 0.2548296
  %v3433 = vadd.f32 %v3369, 0.2548296
  %v3434 = vadd.f32 %v3370, 0.2548296
  %v3435 = vadd.f32 %v3371, 0.2548296
  %v3436 = vadd.f32 %v3372, 0.2548296
  %v3437 = vadd.f32 %v3373, 0.2548296
  %v3438 = vadd.f32 %v3374, 0.2548296
  %v3439 = vadd.f32 %v3375, 0.2548296
  %v3440 = vadd.f32 %v3376, 0.2548296
  %v3441 = vadd.f32 %v3377, 0.2548296
  %v3442 = vadd.f32 %v3378, 0.2548296
  %v3443 = vadd.f32 %v3379, 0.2548296
  %v3444 = vadd.f32 %v3380, 0.2548296
  %v3445 = vadd.f32 %v3381, 0.2548296
  %v3446 = vadd.f32 %v3382, 0.2548296
  %v3447 = vadd.f32 %v3383, 0.2548296
  %v3448 = vadd.f32 %v3384, 0.2548296
  %v3449 = vadd.f32 %v3385, 0.2548296
  %v3450 = vadd.f32 %v3386, 0.2548296
  %v3451 = vadd.f32 %v3387, 0.2548296
  %v3452 = vadd.f32 %v3388, 0.2548296
  %v3453 = vadd.f32 %v3389, 0.2548296
  %v3454 = vadd.f32 %v3390, 0.2548296
  %v3455 = vadd.f32 %v3391, 0.2548296
  %v3456 = vadd.f32 %v3392, 0.2548296
  %v3457 = vadd.f32 %v3393, 0.2548296
  %v3458 = vadd.f32 %v3394, 0.2548296
  %v3459 = vadd.f32 %v3395, 0.2548296
  %v3460 = vadd.f32 %v3396, 0.2548296
  %v3461 = vadd.f32 %v3397, 0.2548296
  %v3462 = vadd.f32 %v3398, 0.2548296
  %v3463 = vadd.f32 %v3399, 0.2548296
  %v3464 = vmul.f32 %v3400, %v2888
  %v3465 = vmul.f32 %v3401, %v2889
  %v3466 = vmul.f32 %v3402, %v2890
  %v3467 = vmul.f32 %v3403, %v2891
  %v3468 = vmul.f32 %v3404, %v2892
  %v3469 = vmul.f32 %v3405, %v2893
  %v3470 = vmul.f32 %v3406, %v2894
  %v3471 = vmul.f32 %v3407, %v2895
  %v3472 = vmul.f32 %v3408, %v2896
  %v3473 = vmul.f32 %v3409, %v2897
  %v3474 = vmul.f32 %v3410, %v2898
  %v3475 = vmul.f32 %v3411, %v2899
  %v3476 = vmul.f32 %v3412, %v2900
  %v3477 = vmul.f32 %v3413, %v2901
  %v3478 = vmul.f32 %v3414, %v2902
  %v3479 = vmul.f32 %v3415, %v2903
  %v3480 = vmul.f32 %v3416, %v2904
  %v3481 = vmul.f32 %v3417, %v2905
  %v3482 = vmul.f32 %v3418, %v2906
  %v3483 = vmul.f32 %v3419, %v2907
  %v3484 = vmul.f32 %v3420, %v2908
  %v3485 = vmul.f32 %v3421, %v2909
  %v3486 = vmul.f32 %v3422, %v2910
  %v3487 = vmul.f32 %v3423, %v2911
  %v3488 = vmul.f32 %v3424, %v2912
  %v3489 = vmul.f32 %v3425, %v2913
  %v3490 = vmul.f32 %v3426, %v2914
  %v3491 = vmul.f32 %v3427, %v2915
  %v3492 = vmul.f32 %v3428, %v2916
  %v3493 = vmul.f32 %v3429, %v2917
  %v3494 = vmul.f32 %v3430, %v2918
  %v3495 = vmul.f32 %v3431, %v2919
  %v3496 = vmul.f32 %v3432, %v2920
  %v3497 = vmul.f32 %v3433, %v2921
  %v3498 = vmul.f32 %v3434, %v2922
  %v3499 = vmul.f32 %v3435, %v2923
  %v3500 = vmul.f32 %v3436, %v2924
  %v3501 = vmul.f32 %v3437, %v2925
  %v3502 = vmul.f32 %v3438, %v2926
  %v3503 = vmul.f32 %v3439, %v2927
  %v3504 = vmul.f32 %v3440, %v2928
  %v3505 = vmul.f32 %v3441, %v2929
  %v3506 = vmul.f32 %v3442, %v2930
  %v3507 = vmul.f32 %v3443, %v2931
  %v3508 = vmul.f32 %v3444, %v2932
  %v3509 = vmul.f32 %v3445, %v2933
  %v3510 = vmul.f32 %v3446, %v2934
  %v3511 = vmul.f32 %v3447, %v2935
  %v3512 = vmul.f32 %v3448, %v2936
  %v3513 = vmul.f32 %v3449, %v2937
  %v3514 = vmul.f32 %v3450, %v2938
  %v3515 = vmul.f32 %v3451, %v2939
  %v3516 = vmul.f32 %v3452, %v2940
  %v3517 = vmul.f32 %v3453, %v2941
  %v3518 = vmul.f32 %v3454, %v2942
  %v3519 = vmul.f32 %v3455, %v2943
  %v3520 = vmul.f32 %v3456, %v2944
  %v3521 = vmul.f32 %v3457, %v2945
  %v3522 = vmul.f32 %v3458, %v2946
  %v3523 = vmul.f32 %v3459, %v2947
  %v3524 = vmul.f32 %v3460, %v2948
  %v3525 = vmul.f32 %v3461, %v2949
  %v3526 = vmul.f32 %v3462, %v2950
  %v3527 = vmul.f32 %v3463, %v2951
  %v3528 = vsub.f32 0.0, %v2696
  %v3529 = vsub.f32 0.0, %v2697
  %v3530 = vsub.f32 0.0, %v2698
  %v3531 = vsub.f32 0.0, %v2699
  %v3532 = vsub.f32 0.0, %v2700
  %v3533 = vsub.f32 0.0, %v2701
  %v3534 = vsub.f32 0.0, %v2702
  %v3535 = vsub.f32 0.0, %v2703
  %v3536 = vsub.f32 0.0, %v2704
  %v3537 = vsub.f32 0.0, %v2705
  %v3538 = vsub.f32 0.0, %v2706
  %v3539 = vsub.f32 0.0, %v2707
  %v3540 = vsub.f32 0.0, %v2708
  %v3541 = vsub.f32 0.0, %v2709
  %v3542 = vsub.f32 0.0, %v2710
  %v3543 = vsub.f32 0.0, %v2711
  %v3544 = vsub.f32 0.0, %v2712
  %v3545 = vsub.f32 0.0, %v2713
  %v3546 = vsub.f32 0.0, %v2714
  %v3547 = vsub.f32 0.0, %v2715
  %v3548 = vsub.f32 0.0, %v2716
  %v3549 = vsub.f32 0.0, %v2717
  %v3550 = vsub.f32 0.0, %v2718
  %v3551 = vsub.f32 0.0, %v2719
  %v3552 = vsub.f32 0.0, %v2720
  %v3553 = vsub.f32 0.0, %v2721
  %v3554 = vsub.f32 0.0, %v2722
  %v3555 = vsub.f32 0.0, %v2723
  %v3556 = vsub.f32 0.0, %v2724
  %v3557 = vsub.f32 0.0, %v2725
  %v3558 = vsub.f32 0.0, %v2726
  %v3559 = vsub.f32 0.0, %v2727
  %v3560 = vsub.f32 0.0, %v2728
  %v3561 = vsub.f32 0.0, %v2729
  %v3562 = vsub.f32 0.0, %v2730
  %v3563 = vsub.f32 0.0, %v2731
  %v3564 = vsub.f32 0.0, %v2732
  %v3565 = vsub.f32 0.0, %v2733
  %v3566 = vsub.f32 0.0, %v2734
  %v3567 = vsub.f32 0.0, %v2735
  %v3568 = vsub.f32 0.0, %v2736
  %v3569 = vsub.f32 0.0, %v2737
  %v3570 = vsub.f32 0.0, %v2738
  %v3571 = vsub.f32 0.0, %v2739
  %v3572 = vsub.f32 0.0, %v2740
  %v3573 = vsub.f32 0.0, %v2741
  %v3574 = vsub.f32 0.0, %v2742
  %v3575 = vsub.f32 0.0, %v2743
  %v3576 = vsub.f32 0.0, %v2744
  %v3577 = vsub.f32 0.0, %v2745
  %v3578 = vsub.f32 0.0, %v2746
  %v3579 = vsub.f32 0.0, %v2747
  %v3580 = vsub.f32 0.0, %v2748
  %v3581 = vsub.f32 0.0, %v2749
  %v3582 = vsub.f32 0.0, %v2750
  %v3583 = vsub.f32 0.0, %v2751
  %v3584 = vsub.f32 0.0, %v2752
  %v3585 = vsub.f32 0.0, %v2753
  %v3586 = vsub.f32 0.0, %v2754
  %v3587 = vsub.f32 0.0, %v2755
  %v3588 = vsub.f32 0.0, %v2756
  %v3589 = vsub.f32 0.0, %v2757
  %v3590 = vsub.f32 0.0, %v2758
  %v3591 = vsub.f32 0.0, %v2759
  %v3592 = vmul.f32 %v3528, %v2696
  %v3593 = vmul.f32 %v3529, %v2697
  %v3594 = vmul.f32 %v3530, %v2698
  %v3595 = vmul.f32 %v3531, %v2699
  %v3596 = vmul.f32 %v3532, %v2700
  %v3597 = vmul.f32 %v3533, %v2701
  %v3598 = vmul.f32 %v3534, %v2702
  %v3599 = vmul.f32 %v3535, %v2703
  %v3600 = vmul.f32 %v3536, %v2704
  %v3601 = vmul.f32 %v3537, %v2705
  %v3602 = vmul.f32 %v3538, %v2706
  %v3603 = vmul.f32 %v3539, %v2707
  %v3604 = vmul.f32 %v3540, %v2708
  %v3605 = vmul.f32 %v3541, %v2709
  %v3606 = vmul.f32 %v3542, %v2710
  %v3607 = vmul.f32 %v3543, %v2711
  %v3608 = vmul.f32 %v3544, %v2712
  %v3609 = vmul.f32 %v3545, %v2713
  %v3610 = vmul.f32 %v3546, %v2714
  %v3611 = vmul.f32 %v3547, %v2715
  %v3612 = vmul.f32 %v3548, %v2716
  %v3613 = vmul.f32 %v3549, %v2717
  %v3614 = vmul.f32 %v3550, %v2718
  %v3615 = vmul.f32 %v3551, %v2719
  %v3616 = vmul.f32 %v3552, %v2720
  %v3617 = vmul.f32 %v3553, %v2721
  %v3618 = vmul.f32 %v3554, %v2722
  %v3619 = vmul.f32 %v3555, %v2723
  %v3620 = vmul.f32 %v3556, %v2724
  %v3621 = vmul.f32 %v3557, %v2725
  %v3622 = vmul.f32 %v3558, %v2726
  %v3623 = vmul.f32 %v3559, %v2727
  %v3624 = vmul.f32 %v3560, %v2728
  %v3625 = vmul.f32 %v3561, %v2729
  %v3626 = vmul.f32 %v3562, %v2730
  %v3627 = vmul.f32 %v3563, %v2731
  %v3628 = vmul.f32 %v3564, %v2732
  %v3629 = vmul.f32 %v3565, %v2733
  %v3630 = vmul.f32 %v3566, %v2734
  %v3631 = vmul.f32 %v3567, %v2735
  %v3632 = vmul.f32 %v3568, %v2736
  %v3633 = vmul.f32 %v3569, %v2737
  %v3634 = vmul.f32 %v3570, %v2738
  %v3635 = vmul.f32 %v3571, %v2739
  %v3636 = vmul.f32 %v3572, %v2740
  %v3637 = vmul.f32 %v3573, %v2741
  %v3638 = vmul.f32 %v3574, %v2742
  %v3639 = vmul.f32 %v3575, %v2743
  %v3640 = vmul.f32 %v3576, %v2744
  %v3641 = vmul.f32 %v3577, %v2745
  %v3642 = vmul.f32 %v3578, %v2746
  %v3643 = vmul.f32 %v3579, %v2747
  %v3644 = vmul.f32 %v3580, %v2748
  %v3645 = vmul.f32 %v3581, %v2749
  %v3646 = vmul.f32 %v3582, %v2750
  %v3647 = vmul.f32 %v3583, %v2751
  %v3648 = vmul.f32 %v3584, %v2752
  %v3649 = vmul.f32 %v3585, %v2753
  %v3650 = vmul.f32 %v3586, %v2754
  %v3651 = vmul.f32 %v3587, %v2755
  %v3652 = vmul.f32 %v3588, %v2756
  %v3653 = vmul.f32 %v3589, %v2757
  %v3654 = vmul.f32 %v3590, %v2758
  %v3655 = vmul.f32 %v3591, %v2759
  %v3656 = vmul.f32 %v3592, 1.442695
  %v3657 = vpow.pop %v3656
  %v3658 = vmul.f32 %v3593, 1.442695
  %v3659 = vpow.pop %v3658
  %v3660 = vmul.f32 %v3594, 1.442695
  %v3661 = vpow.pop %v3660
  %v3662 = vmul.f32 %v3595, 1.442695
  %v3663 = vpow.pop %v3662
  %v3664 = vmul.f32 %v3596, 1.442695
  %v3665 = vpow.pop %v3664
  %v3666 = vmul.f32 %v3597, 1.442695
  %v3667 = vpow.pop %v3666
  %v3668 = vmul.f32 %v3598, 1.442695
  %v3669 = vpow.pop %v3668
  %v3670 = vmul.f32 %v3599, 1.442695
  %v3671 = vpow.pop %v3670
  %v3672 = vmul.f32 %v3600, 1.442695
  %v3673 = vpow.pop %v3672
  %v3674 = vmul.f32 %v3601, 1.442695
  %v3675 = vpow.pop %v3674
  %v3676 = vmul.f32 %v3602, 1.442695
  %v3677 = vpow.pop %v3676
  %v3678 = vmul.f32 %v3603, 1.442695
  %v3679 = vpow.pop %v3678
  %v3680 = vmul.f32 %v3604, 1.442695
  %v3681 = vpow.pop %v3680
  %v3682 = vmul.f32 %v3605, 1.442695
  %v3683 = vpow.pop %v3682
  %v3684 = vmul.f32 %v3606, 1.442695
  %v3685 = vpow.pop %v3684
  %v3686 = vmul.f32 %v3607, 1.442695
  %v3687 = vpow.pop %v3686
  %v3688 = vmul.f32 %v3608, 1.442695
  %v3689 = vpow.pop %v3688
  %v3690 = vmul.f32 %v3609, 1.442695
  %v3691 = vpow.pop %v3690
  %v3692 = vmul.f32 %v3610, 1.442695
  %v3693 = vpow.pop %v3692
  %v3694 = vmul.f32 %v3611, 1.442695
  %v3695 = vpow.pop %v3694
  %v3696 = vmul.f32 %v3612, 1.442695
  %v3697 = vpow.pop %v3696
  %v3698 = vmul.f32 %v3613, 1.442695
  %v3699 = vpow.pop %v3698
  %v3700 = vmul.f32 %v3614, 1.442695
  %v3701 = vpow.pop %v3700
  %v3702 = vmul.f32 %v3615, 1.442695
  %v3703 = vpow.pop %v3702
  %v3704 = vmul.f32 %v3616, 1.442695
  %v3705 = vpow.pop %v3704
  %v3706 = vmul.f32 %v3617, 1.442695
  %v3707 = vpow.pop %v3706
  %v3708 = vmul.f32 %v3618, 1.442695
  %v3709 = vpow.pop %v3708
  %v3710 = vmul.f32 %v3619, 1.442695
  %v3711 = vpow.pop %v3710
  %v3712 = vmul.f32 %v3620, 1.442695
  %v3713 = vpow.pop %v3712
  %v3714 = vmul.f32 %v3621, 1.442695
  %v3715 = vpow.pop %v3714
  %v3716 = vmul.f32 %v3622, 1.442695
  %v3717 = vpow.pop %v3716
  %v3718 = vmul.f32 %v3623, 1.442695
  %v3719 = vpow.pop %v3718
  %v3720 = vmul.f32 %v3624, 1.442695
  %v3721 = vpow.pop %v3720
  %v3722 = vmul.f32 %v3625, 1.442695
  %v3723 = vpow.pop %v3722
  %v3724 = vmul.f32 %v3626, 1.442695
  %v3725 = vpow.pop %v3724
  %v3726 = vmul.f32 %v3627, 1.442695
  %v3727 = vpow.pop %v3726
  %v3728 = vmul.f32 %v3628, 1.442695
  %v3729 = vpow.pop %v3728
  %v3730 = vmul.f32 %v3629, 1.442695
  %v3731 = vpow.pop %v3730
  %v3732 = vmul.f32 %v3630, 1.442695
  %v3733 = vpow.pop %v3732
  %v3734 = vmul.f32 %v3631, 1.442695
  %v3735 = vpow.pop %v3734
  %v3736 = vmul.f32 %v3632, 1.442695
  %v3737 = vpow.pop %v3736
  %v3738 = vmul.f32 %v3633, 1.442695
  %v3739 = vpow.pop %v3738
  %v3740 = vmul.f32 %v3634, 1.442695
  %v3741 = vpow.pop %v3740
  %v3742 = vmul.f32 %v3635, 1.442695
  %v3743 = vpow.pop %v3742
  %v3744 = vmul.f32 %v3636, 1.442695
  %v3745 = vpow.pop %v3744
  %v3746 = vmul.f32 %v3637, 1.442695
  %v3747 = vpow.pop %v3746
  %v3748 = vmul.f32 %v3638, 1.442695
  %v3749 = vpow.pop %v3748
  %v3750 = vmul.f32 %v3639, 1.442695
  %v3751 = vpow.pop %v3750
  %v3752 = vmul.f32 %v3640, 1.442695
  %v3753 = vpow.pop %v3752
  %v3754 = vmul.f32 %v3641, 1.442695
  %v3755 = vpow.pop %v3754
  %v3756 = vmul.f32 %v3642, 1.442695
  %v3757 = vpow.pop %v3756
  %v3758 = vmul.f32 %v3643, 1.442695
  %v3759 = vpow.pop %v3758
  %v3760 = vmul.f32 %v3644, 1.442695
  %v3761 = vpow.pop %v3760
  %v3762 = vmul.f32 %v3645, 1.442695
  %v3763 = vpow.pop %v3762
  %v3764 = vmul.f32 %v3646, 1.442695
  %v3765 = vpow.pop %v3764
  %v3766 = vmul.f32 %v3647, 1.442695
  %v3767 = vpow.pop %v3766
  %v3768 = vmul.f32 %v3648, 1.442695
  %v3769 = vpow.pop %v3768
  %v3770 = vmul.f32 %v3649, 1.442695
  %v3771 = vpow.pop %v3770
  %v3772 = vmul.f32 %v3650, 1.442695
  %v3773 = vpow.pop %v3772
  %v3774 = vmul.f32 %v3651, 1.442695
  %v3775 = vpow.pop %v3774
  %v3776 = vmul.f32 %v3652, 1.442695
  %v3777 = vpow.pop %v3776
  %v3778 = vmul.f32 %v3653, 1.442695
  %v3779 = vpow.pop %v3778
  %v3780 = vmul.f32 %v3654, 1.442695
  %v3781 = vpow.pop %v3780
  %v3782 = vmul.f32 %v3655, 1.442695
  %v3783 = vpow.pop %v3782
  %v3784 = vmul.f32 %v3464, %v3657
  %v3785 = vmul.f32 %v3465, %v3659
  %v3786 = vmul.f32 %v3466, %v3661
  %v3787 = vmul.f32 %v3467, %v3663
  %v3788 = vmul.f32 %v3468, %v3665
  %v3789 = vmul.f32 %v3469, %v3667
  %v3790 = vmul.f32 %v3470, %v3669
  %v3791 = vmul.f32 %v3471, %v3671
  %v3792 = vmul.f32 %v3472, %v3673
  %v3793 = vmul.f32 %v3473, %v3675
  %v3794 = vmul.f32 %v3474, %v3677
  %v3795 = vmul.f32 %v3475, %v3679
  %v3796 = vmul.f32 %v3476, %v3681
  %v3797 = vmul.f32 %v3477, %v3683
  %v3798 = vmul.f32 %v3478, %v3685
  %v3799 = vmul.f32 %v3479, %v3687
  %v3800 = vmul.f32 %v3480, %v3689
  %v3801 = vmul.f32 %v3481, %v3691
  %v3802 = vmul.f32 %v3482, %v3693
  %v3803 = vmul.f32 %v3483, %v3695
  %v3804 = vmul.f32 %v3484, %v3697
  %v3805 = vmul.f32 %v3485, %v3699
  %v3806 = vmul.f32 %v3486, %v3701
  %v3807 = vmul.f32 %v3487, %v3703
  %v3808 = vmul.f32 %v3488, %v3705
  %v3809 = vmul.f32 %v3489, %v3707
  %v3810 = vmul.f32 %v3490, %v3709
  %v3811 = vmul.f32 %v3491, %v3711
  %v3812 = vmul.f32 %v3492, %v3713
  %v3813 = vmul.f32 %v3493, %v3715
  %v3814 = vmul.f32 %v3494, %v3717
  %v3815 = vmul.f32 %v3495, %v3719
  %v3816 = vmul.f32 %v3496, %v3721
  %v3817 = vmul.f32 %v3497, %v3723
  %v3818 = vmul.f32 %v3498, %v3725
  %v3819 = vmul.f32 %v3499, %v3727
  %v3820 = vmul.f32 %v3500, %v3729
  %v3821 = vmul.f32 %v3501, %v3731
  %v3822 = vmul.f32 %v3502, %v3733
  %v3823 = vmul.f32 %v3503, %v3735
  %v3824 = vmul.f32 %v3504, %v3737
  %v3825 = vmul.f32 %v3505, %v3739
  %v3826 = vmul.f32 %v3506, %v3741
  %v3827 = vmul.f32 %v3507, %v3743
  %v3828 = vmul.f32 %v3508, %v3745
  %v3829 = vmul.f32 %v3509, %v3747
  %v3830 = vmul.f32 %v3510, %v3749
  %v3831 = vmul.f32 %v3511, %v3751
  %v3832 = vmul.f32 %v3512, %v3753
  %v3833 = vmul.f32 %v3513, %v3755
  %v3834 = vmul.f32 %v3514, %v3757
  %v3835 = vmul.f32 %v3515, %v3759
  %v3836 = vmul.f32 %v3516, %v3761
  %v3837 = vmul.f32 %v3517, %v3763
  %v3838 = vmul.f32 %v3518, %v3765
  %v3839 = vmul.f32 %v3519, %v3767
  %v3840 = vmul.f32 %v3520, %v3769
  %v3841 = vmul.f32 %v3521, %v3771
  %v3842 = vmul.f32 %v3522, %v3773
  %v3843 = vmul.f32 %v3523, %v3775
  %v3844 = vmul.f32 %v3524, %v3777
  %v3845 = vmul.f32 %v3525, %v3779
  %v3846 = vmul.f32 %v3526, %v3781
  %v3847 = vmul.f32 %v3527, %v3783
  %v3848 = vsub.f32 1.0, %v3784
  %v3849 = vsub.f32 1.0, %v3785
  %v3850 = vsub.f32 1.0, %v3786
  %v3851 = vsub.f32 1.0, %v3787
  %v3852 = vsub.f32 1.0, %v3788
  %v3853 = vsub.f32 1.0, %v3789
  %v3854 = vsub.f32 1.0, %v3790
  %v3855 = vsub.f32 1.0, %v3791
  %v3856 = vsub.f32 1.0, %v3792
  %v3857 = vsub.f32 1.0, %v3793
  %v3858 = vsub.f32 1.0, %v3794
  %v3859 = vsub.f32 1.0, %v3795
  %v3860 = vsub.f32 1.0, %v3796
  %v3861 = vsub.f32 1.0, %v3797
  %v3862 = vsub.f32 1.0, %v3798
  %v3863 = vsub.f32 1.0, %v3799
  %v3864 = vsub.f32 1.0, %v3800
  %v3865 = vsub.f32 1.0, %v3801
  %v3866 = vsub.f32 1.0, %v3802
  %v3867 = vsub.f32 1.0, %v3803
  %v3868 = vsub.f32 1.0, %v3804
  %v3869 = vsub.f32 1.0, %v3805
  %v3870 = vsub.f32 1.0, %v3806
  %v3871 = vsub.f32 1.0, %v3807
  %v3872 = vsub.f32 1.0, %v3808
  %v3873 = vsub.f32 1.0, %v3809
  %v3874 = vsub.f32 1.0, %v3810
  %v3875 = vsub.f32 1.0, %v3811
  %v3876 = vsub.f32 1.0, %v3812
  %v3877 = vsub.f32 1.0, %v3813
  %v3878 = vsub.f32 1.0, %v3814
  %v3879 = vsub.f32 1.0, %v3815
  %v3880 = vsub.f32 1.0, %v3816
  %v3881 = vsub.f32 1.0, %v3817
  %v3882 = vsub.f32 1.0, %v3818
  %v3883 = vsub.f32 1.0, %v3819
  %v3884 = vsub.f32 1.0, %v3820
  %v3885 = vsub.f32 1.0, %v3821
  %v3886 = vsub.f32 1.0, %v3822
  %v3887 = vsub.f32 1.0, %v3823
  %v3888 = vsub.f32 1.0, %v3824
  %v3889 = vsub.f32 1.0, %v3825
  %v3890 = vsub.f32 1.0, %v3826
  %v3891 = vsub.f32 1.0, %v3827
  %v3892 = vsub.f32 1.0, %v3828
  %v3893 = vsub.f32 1.0, %v3829
  %v3894 = vsub.f32 1.0, %v3830
  %v3895 = vsub.f32 1.0, %v3831
  %v3896 = vsub.f32 1.0, %v3832
  %v3897 = vsub.f32 1.0, %v3833
  %v3898 = vsub.f32 1.0, %v3834
  %v3899 = vsub.f32 1.0, %v3835
  %v3900 = vsub.f32 1.0, %v3836
  %v3901 = vsub.f32 1.0, %v3837
  %v3902 = vsub.f32 1.0, %v3838
  %v3903 = vsub.f32 1.0, %v3839
  %v3904 = vsub.f32 1.0, %v3840
  %v3905 = vsub.f32 1.0, %v3841
  %v3906 = vsub.f32 1.0, %v3842
  %v3907 = vsub.f32 1.0, %v3843
  %v3908 = vsub.f32 1.0, %v3844
  %v3909 = vsub.f32 1.0, %v3845
  %v3910 = vsub.f32 1.0, %v3846
  %v3911 = vsub.f32 1.0, %v3847
  %v3912 = vmul.f32 %v2632, %v3848
  %v3913 = vmul.f32 %v2633, %v3849
  %v3914 = vmul.f32 %v2634, %v3850
  %v3915 = vmul.f32 %v2635, %v3851
  %v3916 = vmul.f32 %v2636, %v3852
  %v3917 = vmul.f32 %v2637, %v3853
  %v3918 = vmul.f32 %v2638, %v3854
  %v3919 = vmul.f32 %v2639, %v3855
  %v3920 = vmul.f32 %v2640, %v3856
  %v3921 = vmul.f32 %v2641, %v3857
  %v3922 = vmul.f32 %v2642, %v3858
  %v3923 = vmul.f32 %v2643, %v3859
  %v3924 = vmul.f32 %v2644, %v3860
  %v3925 = vmul.f32 %v2645, %v3861
  %v3926 = vmul.f32 %v2646, %v3862
  %v3927 = vmul.f32 %v2647, %v3863
  %v3928 = vmul.f32 %v2648, %v3864
  %v3929 = vmul.f32 %v2649, %v3865
  %v3930 = vmul.f32 %v2650, %v3866
  %v3931 = vmul.f32 %v2651, %v3867
  %v3932 = vmul.f32 %v2652, %v3868
  %v3933 = vmul.f32 %v2653, %v3869
  %v3934 = vmul.f32 %v2654, %v3870
  %v3935 = vmul.f32 %v2655, %v3871
  %v3936 = vmul.f32 %v2656, %v3872
  %v3937 = vmul.f32 %v2657, %v3873
  %v3938 = vmul.f32 %v2658, %v3874
  %v3939 = vmul.f32 %v2659, %v3875
  %v3940 = vmul.f32 %v2660, %v3876
  %v3941 = vmul.f32 %v2661, %v3877
  %v3942 = vmul.f32 %v2662, %v3878
  %v3943 = vmul.f32 %v2663, %v3879
  %v3944 = vmul.f32 %v2664, %v3880
  %v3945 = vmul.f32 %v2665, %v3881
  %v3946 = vmul.f32 %v2666, %v3882
  %v3947 = vmul.f32 %v2667, %v3883
  %v3948 = vmul.f32 %v2668, %v3884
  %v3949 = vmul.f32 %v2669, %v3885
  %v3950 = vmul.f32 %v2670, %v3886
  %v3951 = vmul.f32 %v2671, %v3887
  %v3952 = vmul.f32 %v2672, %v3888
  %v3953 = vmul.f32 %v2673, %v3889
  %v3954 = vmul.f32 %v2674, %v3890
  %v3955 = vmul.f32 %v2675, %v3891
  %v3956 = vmul.f32 %v2676, %v3892
  %v3957 = vmul.f32 %v2677, %v3893
  %v3958 = vmul.f32 %v2678, %v3894
  %v3959 = vmul.f32 %v2679, %v3895
  %v3960 = vmul.f32 %v2680, %v3896
  %v3961 = vmul.f32 %v2681, %v3897
  %v3962 = vmul.f32 %v2682, %v3898
  %v3963 = vmul.f32 %v2683, %v3899
  %v3964 = vmul.f32 %v2684, %v3900
  %v3965 = vmul.f32 %v2685, %v3901
  %v3966 = vmul.f32 %v2686, %v3902
  %v3967 = vmul.f32 %v2687, %v3903
  %v3968 = vmul.f32 %v2688, %v3904
  %v3969 = vmul.f32 %v2689, %v3905
  %v3970 = vmul.f32 %v2690, %v3906
  %v3971 = vmul.f32 %v2691, %v3907
  %v3972 = vmul.f32 %v2692, %v3908
  %v3973 = vmul.f32 %v2693, %v3909
  %v3974 = vmul.f32 %v2694, %v3910
  %v3975 = vmul.f32 %v2695, %v3911
  %v3976 = vadd.f32 %v2378, %v3912
  %v3977 = vadd.f32 %v2381, %v3913
  %v3978 = vadd.f32 %v2386, %v3914
  %v3979 = vadd.f32 %v2389, %v3915
  %v3980 = vadd.f32 %v2394, %v3916
  %v3981 = vadd.f32 %v2397, %v3917
  %v3982 = vadd.f32 %v2402, %v3918
  %v3983 = vadd.f32 %v2405, %v3919
  %v3984 = vadd.f32 %v2410, %v3920
  %v3985 = vadd.f32 %v2413, %v3921
  %v3986 = vadd.f32 %v2418, %v3922
  %v3987 = vadd.f32 %v2421, %v3923
  %v3988 = vadd.f32 %v2426, %v3924
  %v3989 = vadd.f32 %v2429, %v3925
  %v3990 = vadd.f32 %v2434, %v3926
  %v3991 = vadd.f32 %v2437, %v3927
  %v3992 = vadd.f32 %v2442, %v3928
  %v3993 = vadd.f32 %v2445, %v3929
  %v3994 = vadd.f32 %v2450, %v3930
  %v3995 = vadd.f32 %v2453, %v3931
  %v3996 = vadd.f32 %v2458, %v3932
  %v3997 = vadd.f32 %v2461, %v3933
  %v3998 = vadd.f32 %v2466, %v3934
  %v3999 = vadd.f32 %v2469, %v3935
  %v4000 = vadd.f32 %v2474, %v3936
  %v4001 = vadd.f32 %v2477, %v3937
  %v4002 = vadd.f32 %v2482, %v3938
  %v4003 = vadd.f32 %v2485, %v3939
  %v4004 = vadd.f32 %v2490, %v3940
  %v4005 = vadd.f32 %v2493, %v3941
  %v4006 = vadd.f32 %v2498, %v3942
  %v4007 = vadd.f32 %v2501, %v3943
  %v4008 = vadd.f32 %v2506, %v3944
  %v4009 = vadd.f32 %v2509, %v3945
  %v4010 = vadd.f32 %v2514, %v3946
  %v4011 = vadd.f32 %v2517, %v3947
  %v4012 = vadd.f32 %v2522, %v3948
  %v4013 = vadd.f32 %v2525, %v3949
  %v4014 = vadd.f32 %v2530, %v3950
  %v4015 = vadd.f32 %v2533, %v3951
  %v4016 = vadd.f32 %v2538, %v3952
  %v4017 = vadd.f32 %v2541, %v3953
  %v4018 = vadd.f32 %v2546, %v3954
  %v4019 = vadd.f32 %v2549, %v3955
  %v4020 = vadd.f32 %v2554, %v3956
  %v4021 = vadd.f32 %v2557, %v3957
  %v4022 = vadd.f32 %v2562, %v3958
  %v4023 = vadd.f32 %v2565, %v3959
  %v4024 = vadd.f32 %v2570, %v3960
  %v4025 = vadd.f32 %v2573, %v3961
  %v4026 = vadd.f32 %v2578, %v3962
  %v4027 = vadd.f32 %v2581, %v3963
  %v4028 = vadd.f32 %v2586, %v3964
  %v4029 = vadd.f32 %v2589, %v3965
  %v4030 = vadd.f32 %v2594, %v3966
  %v4031 = vadd.f32 %v2597, %v3967
  %v4032 = vadd.f32 %v2602, %v3968
  %v4033 = vadd.f32 %v2605, %v3969
  %v4034 = vadd.f32 %v2610, %v3970
  %v4035 = vadd.f32 %v2613, %v3971
  %v4036 = vadd.f32 %v2618, %v3972
  %v4037 = vadd.f32 %v2621, %v3973
  %v4038 = vadd.f32 %v2626, %v3974
  %v4039 = vadd.f32 %v2629, %v3975
  %v4040 = vmul.f32 %v3976, 0.5
  %v4041 = vmul.f32 %v3977, 0.5
  %v4042 = vmul.f32 %v3978, 0.5
  %v4043 = vmul.f32 %v3979, 0.5
  %v4044 = vmul.f32 %v3980, 0.5
  %v4045 = vmul.f32 %v3981, 0.5
  %v4046 = vmul.f32 %v3982, 0.5
  %v4047 = vmul.f32 %v3983, 0.5
  %v4048 = vmul.f32 %v3984, 0.5
  %v4049 = vmul.f32 %v3985, 0.5
  %v4050 = vmul.f32 %v3986, 0.5
  %v4051 = vmul.f32 %v3987, 0.5
  %v4052 = vmul.f32 %v3988, 0.5
  %v4053 = vmul.f32 %v3989, 0.5
  %v4054 = vmul.f32 %v3990, 0.5
  %v4055 = vmul.f32 %v3991, 0.5
  %v4056 = vmul.f32 %v3992, 0.5
  %v4057 = vmul.f32 %v3993, 0.5
  %v4058 = vmul.f32 %v3994, 0.5
  %v4059 = vmul.f32 %v3995, 0.5
  %v4060 = vmul.f32 %v3996, 0.5
  %v4061 = vmul.f32 %v3997, 0.5
  %v4062 = vmul.f32 %v3998, 0.5
  %v4063 = vmul.f32 %v3999, 0.5
  %v4064 = vmul.f32 %v4000, 0.5
  %v4065 = vmul.f32 %v4001, 0.5
  %v4066 = vmul.f32 %v4002, 0.5
  %v4067 = vmul.f32 %v4003, 0.5
  %v4068 = vmul.f32 %v4004, 0.5
  %v4069 = vmul.f32 %v4005, 0.5
  %v4070 = vmul.f32 %v4006, 0.5
  %v4071 = vmul.f32 %v4007, 0.5
  %v4072 = vmul.f32 %v4008, 0.5
  %v4073 = vmul.f32 %v4009, 0.5
  %v4074 = vmul.f32 %v4010, 0.5
  %v4075 = vmul.f32 %v4011, 0.5
  %v4076 = vmul.f32 %v4012, 0.5
  %v4077 = vmul.f32 %v4013, 0.5
  %v4078 = vmul.f32 %v4014, 0.5
  %v4079 = vmul.f32 %v4015, 0.5
  %v4080 = vmul.f32 %v4016, 0.5
  %v4081 = vmul.f32 %v4017, 0.5
  %v4082 = vmul.f32 %v4018, 0.5
  %v4083 = vmul.f32 %v4019, 0.5
  %v4084 = vmul.f32 %v4020, 0.5
  %v4085 = vmul.f32 %v4021, 0.5
  %v4086 = vmul.f32 %v4022, 0.5
  %v4087 = vmul.f32 %v4023, 0.5
  %v4088 = vmul.f32 %v4024, 0.5
  %v4089 = vmul.f32 %v4025, 0.5
  %v4090 = vmul.f32 %v4026, 0.5
  %v4091 = vmul.f32 %v4027, 0.5
  %v4092 = vmul.f32 %v4028, 0.5
  %v4093 = vmul.f32 %v4029, 0.5
  %v4094 = vmul.f32 %v4030, 0.5
  %v4095 = vmul.f32 %v4031, 0.5
  %v4096 = vmul.f32 %v4032, 0.5
  %v4097 = vmul.f32 %v4033, 0.5
  %v4098 = vmul.f32 %v4034, 0.5
  %v4099 = vmul.f32 %v4035, 0.5
  %v4100 = vmul.f32 %v4036, 0.5
  %v4101 = vmul.f32 %v4037, 0.5
  %v4102 = vmul.f32 %v4038, 0.5
  %v4103 = vmul.f32 %v4039, 0.5
  %v4104 = vpack.c.bf16 %v4041, %v4040
  %v4105 = vpack.c.bf16 %v4043, %v4042
  %v4106 = vpack.c.bf16 %v4045, %v4044
  %v4107 = vpack.c.bf16 %v4047, %v4046
  %v4108 = vpack.c.bf16 %v4049, %v4048
  %v4109 = vpack.c.bf16 %v4051, %v4050
  %v4110 = vpack.c.bf16 %v4053, %v4052
  %v4111 = vpack.c.bf16 %v4055, %v4054
  %v4112 = vpack.c.bf16 %v4057, %v4056
  %v4113 = vpack.c.bf16 %v4059, %v4058
  %v4114 = vpack.c.bf16 %v4061, %v4060
  %v4115 = vpack.c.bf16 %v4063, %v4062
  %v4116 = vpack.c.bf16 %v4065, %v4064
  %v4117 = vpack.c.bf16 %v4067, %v4066
  %v4118 = vpack.c.bf16 %v4069, %v4068
  %v4119 = vpack.c.bf16 %v4071, %v4070
  %v4120 = vpack.c.bf16 %v4073, %v4072
  %v4121 = vpack.c.bf16 %v4075, %v4074
  %v4122 = vpack.c.bf16 %v4077, %v4076
  %v4123 = vpack.c.bf16 %v4079, %v4078
  %v4124 = vpack.c.bf16 %v4081, %v4080
  %v4125 = vpack.c.bf16 %v4083, %v4082
  %v4126 = vpack.c.bf16 %v4085, %v4084
  %v4127 = vpack.c.bf16 %v4087, %v4086
  %v4128 = vpack.c.bf16 %v4089, %v4088
  %v4129 = vpack.c.bf16 %v4091, %v4090
  %v4130 = vpack.c.bf16 %v4093, %v4092
  %v4131 = vpack.c.bf16 %v4095, %v4094
  %v4132 = vpack.c.bf16 %v4097, %v4096
  %v4133 = vpack.c.bf16 %v4099, %v4098
  %v4134 = vpack.c.bf16 %v4101, %v4100
  %v4135 = vpack.c.bf16 %v4103, %v4102
  %v4136 = vld [vmem:[%s8] sm:$0xf]
  %v4137 = vld [vmem:[%s8 + $0x4] sm:$0xf]
  %v4138 = vld [vmem:[%s8 + $0x8] sm:$0xf]
  %v4139 = vld [vmem:[%s8 + $0xc] sm:$0xf]
  %v4140 = vld [vmem:[%s8 + $0x10] sm:$0xf]
  %v4141 = vld [vmem:[%s8 + $0x14] sm:$0xf]
  %v4142 = vld [vmem:[%s8 + $0x18] sm:$0xf]
  %v4143 = vld [vmem:[%s8 + $0x1c] sm:$0xf]
  %v4144 = vld [vmem:[%s8 + $0x20] sm:$0xf]
  %v4145 = vld [vmem:[%s8 + $0x24] sm:$0xf]
  %v4146 = vld [vmem:[%s8 + $0x28] sm:$0xf]
  %v4147 = vld [vmem:[%s8 + $0x2c] sm:$0xf]
  %v4148 = vld [vmem:[%s8 + $0x30] sm:$0xf]
  %v4149 = vld [vmem:[%s8 + $0x34] sm:$0xf]
  %v4150 = vld [vmem:[%s8 + $0x38] sm:$0xf]
  %v4151 = vld [vmem:[%s8 + $0x3c] sm:$0xf]
  %v4152 = vld [vmem:[%s9] sm:$0x1]
  %v4154 = vlaneseq
  %v4155 = vshrl.u32 %v4154, 7
  %v4156 = vsub.s32 0, %v4155
  %v4157 = vrot.slane %v4152, %v4156
  %v4175 = vunpack.c.l.b16 %v4136
  %v4176 = vunpack.c.l.b16 %v4137
  %v4177 = vunpack.c.l.b16 %v4138
  %v4178 = vunpack.c.l.b16 %v4139
  %v4179 = vunpack.c.l.b16 %v4140
  %v4180 = vunpack.c.l.b16 %v4141
  %v4181 = vunpack.c.l.b16 %v4142
  %v4182 = vunpack.c.l.b16 %v4143
  %v4183 = vunpack.c.l.b16 %v4144
  %v4184 = vunpack.c.l.b16 %v4145
  %v4185 = vunpack.c.l.b16 %v4146
  %v4186 = vunpack.c.l.b16 %v4147
  %v4187 = vunpack.c.l.b16 %v4148
  %v4188 = vunpack.c.l.b16 %v4149
  %v4189 = vunpack.c.l.b16 %v4150
  %v4190 = vunpack.c.l.b16 %v4151
  %v4191 = vpack.c.b16 %v4176, %v4175
  %v4192 = vpack.c.b16 %v4178, %v4177
  %v4193 = vpack.c.b16 %v4180, %v4179
  %v4194 = vpack.c.b16 %v4182, %v4181
  %v4195 = vpack.c.b16 %v4184, %v4183
  %v4196 = vpack.c.b16 %v4186, %v4185
  %v4197 = vpack.c.b16 %v4188, %v4187
  %v4198 = vpack.c.b16 %v4190, %v4189
  %4207 = vmatprep.subr.bf16.mxu0 0
  %4208 = vmatpush1.bf16.msra.mxu0 %v4198
  %4209 = vmatprep.subr.bf16.mxu0 0
  %4210 = vmatpush1.bf16.msra.mxu0 %v4197
  %4211 = vmatprep.subr.bf16.mxu0 0
  %4212 = vmatpush1.bf16.msra.mxu0 %v4196
  %4213 = vmatprep.subr.bf16.mxu0 0
  %4214 = vmatpush1.bf16.msra.mxu0 %v4195
  %4215 = vmatprep.subr.bf16.mxu0 0
  %4216 = vmatpush1.bf16.msra.mxu0 %v4194
  %4217 = vmatprep.subr.bf16.mxu0 0
  %4218 = vmatpush1.bf16.msra.mxu0 %v4193
  %4219 = vmatprep.subr.bf16.mxu0 0
  %4220 = vmatpush1.bf16.msra.mxu0 %v4192
  %4221 = vmatprep.subr.bf16.mxu0 0
  %4222 = vmatpush1.bf16.msra.mxu0 %v4191
  %4223 = vmatprep.subr.bf16.mxu0 0
  %4224 = vmatpush2.bf16.msra.mxu0 0
  %4225 = vmatprep.subr.bf16.mxu0 0
  %4226 = vmatpush2.bf16.msra.mxu0 0
  %4227 = vmatprep.subr.bf16.mxu0 0
  %4228 = vmatpush2.bf16.msra.mxu0 0
  %4229 = vmatprep.subr.bf16.mxu0 0
  %4230 = vmatpush2.bf16.msra.mxu0 0
  %4231 = vmatprep.subr.bf16.mxu0 0
  %4232 = vmatpush2.bf16.msra.mxu0 0
  %4233 = vmatprep.subr.bf16.mxu0 0
  %4234 = vmatpush2.bf16.msra.mxu0 0
  %4235 = vmatprep.subr.bf16.mxu0 0
  %4236 = vmatpush2.bf16.msra.mxu0 0
  %4237 = vmatprep.subr.bf16.mxu0 0
  %4238 = vmatpush2.bf16.msra.mxu0 0
  %4239 = vmatprep.mubr.bf16.mxu0 0
  %4240 = vmatmul.mubr.bf16.gmra.mxu0 %v4104
  %v4241 = vpop.f32.mrf.mxu0
  %v4242 = vadd.f32 %v4157, %v4241
  %v4243 = vpop.f32.mrf.mxu0
  %v4244 = vpop.f32.mrf.mxu0
  %v4245 = vadd.f32 %v4157, %v4244
  %v4246 = vpop.f32.mrf.mxu0
  %4247 = vmatprep.mubr.bf16.mxu0 0
  %4248 = vmatmul.mubr.bf16.gmra.mxu0 %v4105
  %v4249 = vpop.f32.mrf.mxu0
  %v4250 = vadd.f32 %v4157, %v4249
  %v4251 = vpop.f32.mrf.mxu0
  %v4252 = vpop.f32.mrf.mxu0
  %v4253 = vadd.f32 %v4157, %v4252
  %v4254 = vpop.f32.mrf.mxu0
  %4255 = vmatprep.mubr.bf16.mxu0 0
  %4256 = vmatmul.mubr.bf16.gmra.mxu0 %v4106
  %v4257 = vpop.f32.mrf.mxu0
  %v4258 = vadd.f32 %v4157, %v4257
  %v4259 = vpop.f32.mrf.mxu0
  %v4260 = vpop.f32.mrf.mxu0
  %v4261 = vadd.f32 %v4157, %v4260
  %v4262 = vpop.f32.mrf.mxu0
  %4263 = vmatprep.mubr.bf16.mxu0 0
  %4264 = vmatmul.mubr.bf16.gmra.mxu0 %v4107
  %v4265 = vpop.f32.mrf.mxu0
  %v4266 = vadd.f32 %v4157, %v4265
  %v4267 = vpop.f32.mrf.mxu0
  %v4268 = vpop.f32.mrf.mxu0
  %v4269 = vadd.f32 %v4157, %v4268
  %v4270 = vpop.f32.mrf.mxu0
  %4271 = vmatprep.mubr.bf16.mxu0 0
  %4272 = vmatmul.mubr.bf16.gmra.mxu0 %v4108
  %v4273 = vpop.f32.mrf.mxu0
  %v4274 = vadd.f32 %v4157, %v4273
  %v4275 = vpop.f32.mrf.mxu0
  %v4276 = vpop.f32.mrf.mxu0
  %v4277 = vadd.f32 %v4157, %v4276
  %v4278 = vpop.f32.mrf.mxu0
  %4279 = vmatprep.mubr.bf16.mxu0 0
  %4280 = vmatmul.mubr.bf16.gmra.mxu0 %v4109
  %v4281 = vpop.f32.mrf.mxu0
  %v4282 = vadd.f32 %v4157, %v4281
  %v4283 = vpop.f32.mrf.mxu0
  %v4284 = vpop.f32.mrf.mxu0
  %v4285 = vadd.f32 %v4157, %v4284
  %v4286 = vpop.f32.mrf.mxu0
  %4287 = vmatprep.mubr.bf16.mxu0 0
  %4288 = vmatmul.mubr.bf16.gmra.mxu0 %v4110
  %v4289 = vpop.f32.mrf.mxu0
  %v4290 = vadd.f32 %v4157, %v4289
  %v4291 = vpop.f32.mrf.mxu0
  %v4292 = vpop.f32.mrf.mxu0
  %v4293 = vadd.f32 %v4157, %v4292
  %v4294 = vpop.f32.mrf.mxu0
  %4295 = vmatprep.mubr.bf16.mxu0 0
  %4296 = vmatmul.mubr.bf16.gmra.mxu0 %v4111
  %v4297 = vpop.f32.mrf.mxu0
  %v4298 = vadd.f32 %v4157, %v4297
  %v4299 = vpop.f32.mrf.mxu0
  %v4300 = vpop.f32.mrf.mxu0
  %v4301 = vadd.f32 %v4157, %v4300
  %v4302 = vpop.f32.mrf.mxu0
  %4303 = vmatprep.mubr.bf16.mxu0 0
  %4304 = vmatmul.mubr.bf16.gmra.mxu0 %v4112
  %v4305 = vpop.f32.mrf.mxu0
  %v4306 = vadd.f32 %v4157, %v4305
  %v4307 = vpop.f32.mrf.mxu0
  %v4308 = vpop.f32.mrf.mxu0
  %v4309 = vadd.f32 %v4157, %v4308
  %v4310 = vpop.f32.mrf.mxu0
  %4311 = vmatprep.mubr.bf16.mxu0 0
  %4312 = vmatmul.mubr.bf16.gmra.mxu0 %v4113
  %v4313 = vpop.f32.mrf.mxu0
  %v4314 = vadd.f32 %v4157, %v4313
  %v4315 = vpop.f32.mrf.mxu0
  %v4316 = vpop.f32.mrf.mxu0
  %v4317 = vadd.f32 %v4157, %v4316
  %v4318 = vpop.f32.mrf.mxu0
  %4319 = vmatprep.mubr.bf16.mxu0 0
  %4320 = vmatmul.mubr.bf16.gmra.mxu0 %v4114
  %v4321 = vpop.f32.mrf.mxu0
  %v4322 = vadd.f32 %v4157, %v4321
  %v4323 = vpop.f32.mrf.mxu0
  %v4324 = vpop.f32.mrf.mxu0
  %v4325 = vadd.f32 %v4157, %v4324
  %v4326 = vpop.f32.mrf.mxu0
  %4327 = vmatprep.mubr.bf16.mxu0 0
  %4328 = vmatmul.mubr.bf16.gmra.mxu0 %v4115
  %v4329 = vpop.f32.mrf.mxu0
  %v4330 = vadd.f32 %v4157, %v4329
  %v4331 = vpop.f32.mrf.mxu0
  %v4332 = vpop.f32.mrf.mxu0
  %v4333 = vadd.f32 %v4157, %v4332
  %v4334 = vpop.f32.mrf.mxu0
  %4335 = vmatprep.mubr.bf16.mxu0 0
  %4336 = vmatmul.mubr.bf16.gmra.mxu0 %v4116
  %v4337 = vpop.f32.mrf.mxu0
  %v4338 = vadd.f32 %v4157, %v4337
  %v4339 = vpop.f32.mrf.mxu0
  %v4340 = vpop.f32.mrf.mxu0
  %v4341 = vadd.f32 %v4157, %v4340
  %v4342 = vpop.f32.mrf.mxu0
  %4343 = vmatprep.mubr.bf16.mxu0 0
  %4344 = vmatmul.mubr.bf16.gmra.mxu0 %v4117
  %v4345 = vpop.f32.mrf.mxu0
  %v4346 = vadd.f32 %v4157, %v4345
  %v4347 = vpop.f32.mrf.mxu0
  %v4348 = vpop.f32.mrf.mxu0
  %v4349 = vadd.f32 %v4157, %v4348
  %v4350 = vpop.f32.mrf.mxu0
  %4351 = vmatprep.mubr.bf16.mxu0 0
  %4352 = vmatmul.mubr.bf16.gmra.mxu0 %v4118
  %v4353 = vpop.f32.mrf.mxu0
  %v4354 = vadd.f32 %v4157, %v4353
  %v4355 = vpop.f32.mrf.mxu0
  %v4356 = vpop.f32.mrf.mxu0
  %v4357 = vadd.f32 %v4157, %v4356
  %v4358 = vpop.f32.mrf.mxu0
  %4359 = vmatprep.mubr.bf16.mxu0 0
  %4360 = vmatmul.mubr.bf16.gmra.mxu0 %v4119
  %v4361 = vpop.f32.mrf.mxu0
  %v4362 = vadd.f32 %v4157, %v4361
  %v4363 = vpop.f32.mrf.mxu0
  %v4364 = vpop.f32.mrf.mxu0
  %v4365 = vadd.f32 %v4157, %v4364
  %v4366 = vpop.f32.mrf.mxu0
  %4367 = vmatprep.mubr.bf16.mxu0 0
  %4368 = vmatmul.mubr.bf16.gmra.mxu0 %v4120
  %v4369 = vpop.f32.mrf.mxu0
  %v4370 = vadd.f32 %v4157, %v4369
  %v4371 = vpop.f32.mrf.mxu0
  %v4372 = vpop.f32.mrf.mxu0
  %v4373 = vadd.f32 %v4157, %v4372
  %v4374 = vpop.f32.mrf.mxu0
  %4375 = vmatprep.mubr.bf16.mxu0 0
  %4376 = vmatmul.mubr.bf16.gmra.mxu0 %v4121
  %v4377 = vpop.f32.mrf.mxu0
  %v4378 = vadd.f32 %v4157, %v4377
  %v4379 = vpop.f32.mrf.mxu0
  %v4380 = vpop.f32.mrf.mxu0
  %v4381 = vadd.f32 %v4157, %v4380
  %v4382 = vpop.f32.mrf.mxu0
  %4383 = vmatprep.mubr.bf16.mxu0 0
  %4384 = vmatmul.mubr.bf16.gmra.mxu0 %v4122
  %v4385 = vpop.f32.mrf.mxu0
  %v4386 = vadd.f32 %v4157, %v4385
  %v4387 = vpop.f32.mrf.mxu0
  %v4388 = vpop.f32.mrf.mxu0
  %v4389 = vadd.f32 %v4157, %v4388
  %v4390 = vpop.f32.mrf.mxu0
  %4391 = vmatprep.mubr.bf16.mxu0 0
  %4392 = vmatmul.mubr.bf16.gmra.mxu0 %v4123
  %v4393 = vpop.f32.mrf.mxu0
  %v4394 = vadd.f32 %v4157, %v4393
  %v4395 = vpop.f32.mrf.mxu0
  %v4396 = vpop.f32.mrf.mxu0
  %v4397 = vadd.f32 %v4157, %v4396
  %v4398 = vpop.f32.mrf.mxu0
  %4399 = vmatprep.mubr.bf16.mxu0 0
  %4400 = vmatmul.mubr.bf16.gmra.mxu0 %v4124
  %v4401 = vpop.f32.mrf.mxu0
  %v4402 = vadd.f32 %v4157, %v4401
  %v4403 = vpop.f32.mrf.mxu0
  %v4404 = vpop.f32.mrf.mxu0
  %v4405 = vadd.f32 %v4157, %v4404
  %v4406 = vpop.f32.mrf.mxu0
  %4407 = vmatprep.mubr.bf16.mxu0 0
  %4408 = vmatmul.mubr.bf16.gmra.mxu0 %v4125
  %v4409 = vpop.f32.mrf.mxu0
  %v4410 = vadd.f32 %v4157, %v4409
  %v4411 = vpop.f32.mrf.mxu0
  %v4412 = vpop.f32.mrf.mxu0
  %v4413 = vadd.f32 %v4157, %v4412
  %v4414 = vpop.f32.mrf.mxu0
  %4415 = vmatprep.mubr.bf16.mxu0 0
  %4416 = vmatmul.mubr.bf16.gmra.mxu0 %v4126
  %v4417 = vpop.f32.mrf.mxu0
  %v4418 = vadd.f32 %v4157, %v4417
  %v4419 = vpop.f32.mrf.mxu0
  %v4420 = vpop.f32.mrf.mxu0
  %v4421 = vadd.f32 %v4157, %v4420
  %v4422 = vpop.f32.mrf.mxu0
  %4423 = vmatprep.mubr.bf16.mxu0 0
  %4424 = vmatmul.mubr.bf16.gmra.mxu0 %v4127
  %v4425 = vpop.f32.mrf.mxu0
  %v4426 = vadd.f32 %v4157, %v4425
  %v4427 = vpop.f32.mrf.mxu0
  %v4428 = vpop.f32.mrf.mxu0
  %v4429 = vadd.f32 %v4157, %v4428
  %v4430 = vpop.f32.mrf.mxu0
  %4431 = vmatprep.mubr.bf16.mxu0 0
  %4432 = vmatmul.mubr.bf16.gmra.mxu0 %v4128
  %v4433 = vpop.f32.mrf.mxu0
  %v4434 = vadd.f32 %v4157, %v4433
  %v4435 = vpop.f32.mrf.mxu0
  %v4436 = vpop.f32.mrf.mxu0
  %v4437 = vadd.f32 %v4157, %v4436
  %v4438 = vpop.f32.mrf.mxu0
  %4439 = vmatprep.mubr.bf16.mxu0 0
  %4440 = vmatmul.mubr.bf16.gmra.mxu0 %v4129
  %v4441 = vpop.f32.mrf.mxu0
  %v4442 = vadd.f32 %v4157, %v4441
  %v4443 = vpop.f32.mrf.mxu0
  %v4444 = vpop.f32.mrf.mxu0
  %v4445 = vadd.f32 %v4157, %v4444
  %v4446 = vpop.f32.mrf.mxu0
  %4447 = vmatprep.mubr.bf16.mxu0 0
  %4448 = vmatmul.mubr.bf16.gmra.mxu0 %v4130
  %v4449 = vpop.f32.mrf.mxu0
  %v4450 = vadd.f32 %v4157, %v4449
  %v4451 = vpop.f32.mrf.mxu0
  %v4452 = vpop.f32.mrf.mxu0
  %v4453 = vadd.f32 %v4157, %v4452
  %v4454 = vpop.f32.mrf.mxu0
  %4455 = vmatprep.mubr.bf16.mxu0 0
  %4456 = vmatmul.mubr.bf16.gmra.mxu0 %v4131
  %v4457 = vpop.f32.mrf.mxu0
  %v4458 = vadd.f32 %v4157, %v4457
  %v4459 = vpop.f32.mrf.mxu0
  %v4460 = vpop.f32.mrf.mxu0
  %v4461 = vadd.f32 %v4157, %v4460
  %v4462 = vpop.f32.mrf.mxu0
  %4463 = vmatprep.mubr.bf16.mxu0 0
  %4464 = vmatmul.mubr.bf16.gmra.mxu0 %v4132
  %v4465 = vpop.f32.mrf.mxu0
  %v4466 = vadd.f32 %v4157, %v4465
  %v4467 = vpop.f32.mrf.mxu0
  %v4468 = vpop.f32.mrf.mxu0
  %v4469 = vadd.f32 %v4157, %v4468
  %v4470 = vpop.f32.mrf.mxu0
  %4471 = vmatprep.mubr.bf16.mxu0 0
  %4472 = vmatmul.mubr.bf16.gmra.mxu0 %v4133
  %v4473 = vpop.f32.mrf.mxu0
  %v4474 = vadd.f32 %v4157, %v4473
  %v4475 = vpop.f32.mrf.mxu0
  %v4476 = vpop.f32.mrf.mxu0
  %v4477 = vadd.f32 %v4157, %v4476
  %v4478 = vpop.f32.mrf.mxu0
  %4479 = vmatprep.mubr.bf16.mxu0 0
  %4480 = vmatmul.mubr.bf16.gmra.mxu0 %v4134
  %v4481 = vpop.f32.mrf.mxu0
  %v4482 = vadd.f32 %v4157, %v4481
  %v4483 = vpop.f32.mrf.mxu0
  %v4484 = vpop.f32.mrf.mxu0
  %v4485 = vadd.f32 %v4157, %v4484
  %v4486 = vpop.f32.mrf.mxu0
  %4487 = vmatprep.mubr.bf16.mxu0 0
  %4488 = vmatmul.mubr.bf16.gmra.mxu0 %v4135
  %v4489 = vpop.f32.mrf.mxu0
  %v4490 = vadd.f32 %v4157, %v4489
  %v4491 = vpop.f32.mrf.mxu0
  %v4492 = vpop.f32.mrf.mxu0
  %v4493 = vadd.f32 %v4157, %v4492
  %v4494 = vpop.f32.mrf.mxu0
  %4495 = vdwg.mxu0
  %v4496 = vadd.f32 %v1202, %v4242
  %v4497 = vadd.f32 %v1203, %v4245
  %v4498 = vadd.f32 %v1204, %v4250
  %v4499 = vadd.f32 %v1205, %v4253
  %v4500 = vadd.f32 %v1206, %v4258
  %v4501 = vadd.f32 %v1207, %v4261
  %v4502 = vadd.f32 %v1208, %v4266
  %v4503 = vadd.f32 %v1209, %v4269
  %v4504 = vadd.f32 %v1210, %v4274
  %v4505 = vadd.f32 %v1211, %v4277
  %v4506 = vadd.f32 %v1212, %v4282
  %v4507 = vadd.f32 %v1213, %v4285
  %v4508 = vadd.f32 %v1214, %v4290
  %v4509 = vadd.f32 %v1215, %v4293
  %v4510 = vadd.f32 %v1216, %v4298
  %v4511 = vadd.f32 %v1217, %v4301
  %v4512 = vadd.f32 %v1218, %v4306
  %v4513 = vadd.f32 %v1219, %v4309
  %v4514 = vadd.f32 %v1220, %v4314
  %v4515 = vadd.f32 %v1221, %v4317
  %v4516 = vadd.f32 %v1222, %v4322
  %v4517 = vadd.f32 %v1223, %v4325
  %v4518 = vadd.f32 %v1224, %v4330
  %v4519 = vadd.f32 %v1225, %v4333
  %v4520 = vadd.f32 %v1226, %v4338
  %v4521 = vadd.f32 %v1227, %v4341
  %v4522 = vadd.f32 %v1228, %v4346
  %v4523 = vadd.f32 %v1229, %v4349
  %v4524 = vadd.f32 %v1230, %v4354
  %v4525 = vadd.f32 %v1231, %v4357
  %v4526 = vadd.f32 %v1232, %v4362
  %v4527 = vadd.f32 %v1233, %v4365
  %v4528 = vadd.f32 %v1234, %v4370
  %v4529 = vadd.f32 %v1235, %v4373
  %v4530 = vadd.f32 %v1236, %v4378
  %v4531 = vadd.f32 %v1237, %v4381
  %v4532 = vadd.f32 %v1238, %v4386
  %v4533 = vadd.f32 %v1239, %v4389
  %v4534 = vadd.f32 %v1240, %v4394
  %v4535 = vadd.f32 %v1241, %v4397
  %v4536 = vadd.f32 %v1242, %v4402
  %v4537 = vadd.f32 %v1243, %v4405
  %v4538 = vadd.f32 %v1244, %v4410
  %v4539 = vadd.f32 %v1245, %v4413
  %v4540 = vadd.f32 %v1246, %v4418
  %v4541 = vadd.f32 %v1247, %v4421
  %v4542 = vadd.f32 %v1248, %v4426
  %v4543 = vadd.f32 %v1249, %v4429
  %v4544 = vadd.f32 %v1250, %v4434
  %v4545 = vadd.f32 %v1251, %v4437
  %v4546 = vadd.f32 %v1252, %v4442
  %v4547 = vadd.f32 %v1253, %v4445
  %v4548 = vadd.f32 %v1254, %v4450
  %v4549 = vadd.f32 %v1255, %v4453
  %v4550 = vadd.f32 %v1256, %v4458
  %v4551 = vadd.f32 %v1257, %v4461
  %v4552 = vadd.f32 %v1258, %v4466
  %v4553 = vadd.f32 %v1259, %v4469
  %v4554 = vadd.f32 %v1260, %v4474
  %v4555 = vadd.f32 %v1261, %v4477
  %v4556 = vadd.f32 %v1262, %v4482
  %v4557 = vadd.f32 %v1263, %v4485
  %v4558 = vadd.f32 %v1264, %v4490
  %v4559 = vadd.f32 %v1265, %v4493
  %4560 = vst [vmem:[%s10] sm:$0xff] %v4496
  %4561 = vst [vmem:[%s10 + $0x8] sm:$0xff] %v4497
  %4562 = vst [vmem:[%s10 + $0x10] sm:$0xff] %v4498
  %4563 = vst [vmem:[%s10 + $0x18] sm:$0xff] %v4499
  %4564 = vst [vmem:[%s10 + $0x20] sm:$0xff] %v4500
  %4565 = vst [vmem:[%s10 + $0x28] sm:$0xff] %v4501
  %4566 = vst [vmem:[%s10 + $0x30] sm:$0xff] %v4502
  %4567 = vst [vmem:[%s10 + $0x38] sm:$0xff] %v4503
  %4568 = vst [vmem:[%s10 + $0x40] sm:$0xff] %v4504
  %4569 = vst [vmem:[%s10 + $0x48] sm:$0xff] %v4505
  %4570 = vst [vmem:[%s10 + $0x50] sm:$0xff] %v4506
  %4571 = vst [vmem:[%s10 + $0x58] sm:$0xff] %v4507
  %4572 = vst [vmem:[%s10 + $0x60] sm:$0xff] %v4508
  %4573 = vst [vmem:[%s10 + $0x68] sm:$0xff] %v4509
  %4574 = vst [vmem:[%s10 + $0x70] sm:$0xff] %v4510
  %4575 = vst [vmem:[%s10 + $0x78] sm:$0xff] %v4511
  %4576 = vst [vmem:[%s10 + $0x80] sm:$0xff] %v4512
  %4577 = vst [vmem:[%s10 + $0x88] sm:$0xff] %v4513
  %4578 = vst [vmem:[%s10 + $0x90] sm:$0xff] %v4514
  %4579 = vst [vmem:[%s10 + $0x98] sm:$0xff] %v4515
  %4580 = vst [vmem:[%s10 + $0xa0] sm:$0xff] %v4516
  %4581 = vst [vmem:[%s10 + $0xa8] sm:$0xff] %v4517
  %4582 = vst [vmem:[%s10 + $0xb0] sm:$0xff] %v4518
  %4583 = vst [vmem:[%s10 + $0xb8] sm:$0xff] %v4519
  %4584 = vst [vmem:[%s10 + $0xc0] sm:$0xff] %v4520
  %4585 = vst [vmem:[%s10 + $0xc8] sm:$0xff] %v4521
  %4586 = vst [vmem:[%s10 + $0xd0] sm:$0xff] %v4522
  %4587 = vst [vmem:[%s10 + $0xd8] sm:$0xff] %v4523
  %4588 = vst [vmem:[%s10 + $0xe0] sm:$0xff] %v4524
  %4589 = vst [vmem:[%s10 + $0xe8] sm:$0xff] %v4525
  %4590 = vst [vmem:[%s10 + $0xf0] sm:$0xff] %v4526
  %4591 = vst [vmem:[%s10 + $0xf8] sm:$0xff] %v4527
  %4592 = vst [vmem:[%s10 + $0x100] sm:$0xff] %v4528
  %4593 = vst [vmem:[%s10 + $0x108] sm:$0xff] %v4529
  %4594 = vst [vmem:[%s10 + $0x110] sm:$0xff] %v4530
  %4595 = vst [vmem:[%s10 + $0x118] sm:$0xff] %v4531
  %4596 = vst [vmem:[%s10 + $0x120] sm:$0xff] %v4532
  %4597 = vst [vmem:[%s10 + $0x128] sm:$0xff] %v4533
  %4598 = vst [vmem:[%s10 + $0x130] sm:$0xff] %v4534
  %4599 = vst [vmem:[%s10 + $0x138] sm:$0xff] %v4535
  %4600 = vst [vmem:[%s10 + $0x140] sm:$0xff] %v4536
  %4601 = vst [vmem:[%s10 + $0x148] sm:$0xff] %v4537
  %4602 = vst [vmem:[%s10 + $0x150] sm:$0xff] %v4538
  %4603 = vst [vmem:[%s10 + $0x158] sm:$0xff] %v4539
  %4604 = vst [vmem:[%s10 + $0x160] sm:$0xff] %v4540
  %4605 = vst [vmem:[%s10 + $0x168] sm:$0xff] %v4541
  %4606 = vst [vmem:[%s10 + $0x170] sm:$0xff] %v4542
  %4607 = vst [vmem:[%s10 + $0x178] sm:$0xff] %v4543
  %4608 = vst [vmem:[%s10 + $0x180] sm:$0xff] %v4544
  %4609 = vst [vmem:[%s10 + $0x188] sm:$0xff] %v4545
  %4610 = vst [vmem:[%s10 + $0x190] sm:$0xff] %v4546
  %4611 = vst [vmem:[%s10 + $0x198] sm:$0xff] %v4547
  %4612 = vst [vmem:[%s10 + $0x1a0] sm:$0xff] %v4548
  %4613 = vst [vmem:[%s10 + $0x1a8] sm:$0xff] %v4549
  %4614 = vst [vmem:[%s10 + $0x1b0] sm:$0xff] %v4550
  %4615 = vst [vmem:[%s10 + $0x1b8] sm:$0xff] %v4551
  %4616 = vst [vmem:[%s10 + $0x1c0] sm:$0xff] %v4552
  %4617 = vst [vmem:[%s10 + $0x1c8] sm:$0xff] %v4553
  %4618 = vst [vmem:[%s10 + $0x1d0] sm:$0xff] %v4554
  %4619 = vst [vmem:[%s10 + $0x1d8] sm:$0xff] %v4555
  %4620 = vst [vmem:[%s10 + $0x1e0] sm:$0xff] %v4556
  %4621 = vst [vmem:[%s10 + $0x1e8] sm:$0xff] %v4557
  %4622 = vst [vmem:[%s10 + $0x1f0] sm:$0xff] %v4558
  %4623 = vst [vmem:[%s10 + $0x1f8] sm:$0xff] %v4559
  // Predicated region
  $region42: #{run.5} parent=0 // pred_check
    _
  $region43: #{run.5} parent=0 // pred_check_branch
    %4625 = sbr.rel (0) target = $region45
  $region44: #{run.5} parent=0 // pred_region
    _
  $region45: #{run.5} parent=0 // pred_fallthru
    _
  // Predicated region
  $region46: #{run.5} parent=0 // pred_check
    _
  $region47: #{run.5} parent=0 // pred_check_branch
    %4627 = sbr.rel (0) target = $region49
  $region48: #{run.5} parent=0 // pred_region
    _
  $region49: #{run.5} parent=0 // pred_fallthru
    _

// kernel: run.7
$region0: #{run.7}
  #allocation0 [shape = 'u32[]', space=smem, size = 0x4, offset = 0x4, fixed_abs, tag = 'smem constant byte address 0x4 - core index']
  #allocation1 [shape = 'u32[144,128]{1,0:T(1,128)}', space=vmem, size = 0x12000, scoped, tag = 'internal scratch']
  %s0 = inlined_call_operand.vmem [shape: f32[512,128], index: 0, kind: input, shape index: {}]
  %s1 = inlined_call_operand.vmem [shape: f32[512,128], index: 1, kind: input, shape index: {}]
  %s2 = inlined_call_operand.vmem [shape: f32[1,128], index: 2, kind: input, shape index: {}]
  %s3 = inlined_call_operand.vmem [shape: f32[1,128], index: 3, kind: input, shape index: {}]
  %s4 = inlined_call_operand.vmem [shape: f32[1,128], index: 4, kind: input, shape index: {}]
  %s5 = inlined_call_operand.vmem [shape: f32[1,128], index: 5, kind: input, shape index: {}]
  %s6 = inlined_call_operand.vmem [shape: bf16[128,128], index: 6, kind: input, shape index: {}]
  %s7 = inlined_call_operand.vmem [shape: f32[1,128], index: 7, kind: input, shape index: {}]
  %s8 = inlined_call_operand.vmem [shape: bf16[128,128], index: 8, kind: input, shape index: {}]
  %s9 = inlined_call_operand.vmem [shape: f32[1,128], index: 9, kind: input, shape index: {}]
  %s10 = inlined_call_operand.hbm [shape: f32[512,128], index: 10, kind: output, shape index: {}]
  %s11 = sld [smem:[#allocation0]]
  $region50: #{run.7} parent=0
    _
  %s13 = ssub.s32 1, %s11
  %s14 = scalar_select 0, %s13, %s11
  $region1: #{run.7} parent=0
    #allocation2 [shape = 'u8[262144]{0}', space=vmem, size = 0x40000, scoped, tag = 'output window, operand 0, single buffered']
    #allocation3 [shape = 's32[1]{0}', space=sflag, size = 0x4, scoped, tag = 'scoped memory for run.7']
    %15 = vsyncpa [#allocation3], 0
    // Predicated region
    $region2: #{run.7} parent=1 // pred_check
      _
    $region3: #{run.7} parent=1 // pred_check_branch
      %17 = sbr.rel (0) target = $region5
    $region4: #{run.7} parent=1 // pred_region
      _
    $region5: #{run.7} parent=1 // pred_fallthru
      _
    // Predicated region
    $region6: #{run.7} parent=1 // pred_check
      _
    $region7: #{run.7} parent=1 // pred_check_branch
      %19 = sbr.rel (0) target = $region9
    $region8: #{run.7} parent=1 // pred_region
      _
    $region9: #{run.7} parent=1 // pred_fallthru
      _
    // Predicated region
    $region10: #{run.7} parent=1 // pred_check
      _
    $region11: #{run.7} parent=1 // pred_check_branch
      %21 = sbr.rel (0) target = $region13
    $region12: #{run.7} parent=1 // pred_region
      _
    $region13: #{run.7} parent=1 // pred_fallthru
      _
    // Predicated region
    $region14: #{run.7} parent=1 // pred_check
      _
    $region15: #{run.7} parent=1 // pred_check_branch
      %23 = sbr.rel (0) target = $region17
    $region16: #{run.7} parent=1 // pred_region
      _
    $region17: #{run.7} parent=1 // pred_fallthru
      _
    // Predicated region
    $region18: #{run.7} parent=1 // pred_check
      _
    $region19: #{run.7} parent=1 // pred_check_branch
      %25 = sbr.rel (0) target = $region21
    $region20: #{run.7} parent=1 // pred_region
      _
    $region21: #{run.7} parent=1 // pred_fallthru
      _
    // Predicated region
    $region22: #{run.7} parent=1 // pred_check
      _
    $region23: #{run.7} parent=1 // pred_check_branch
      %27 = sbr.rel (0) target = $region25
    $region24: #{run.7} parent=1 // pred_region
      _
    $region25: #{run.7} parent=1 // pred_fallthru
      _
    // Predicated region
    $region26: #{run.7} parent=1 // pred_check
      _
    $region27: #{run.7} parent=1 // pred_check_branch
      %29 = sbr.rel (0) target = $region29
    $region28: #{run.7} parent=1 // pred_region
      _
    $region29: #{run.7} parent=1 // pred_fallthru
      _
    // Predicated region
    $region30: #{run.7} parent=1 // pred_check
      _
    $region31: #{run.7} parent=1 // pred_check_branch
      %31 = sbr.rel (0) target = $region33
    $region32: #{run.7} parent=1 // pred_region
      _
    $region33: #{run.7} parent=1 // pred_fallthru
      _
    // Predicated region
    $region34: #{run.7} parent=1 // pred_check
      _
    $region35: #{run.7} parent=1 // pred_check_branch
      %33 = sbr.rel (0) target = $region37
    $region36: #{run.7} parent=1 // pred_region
      _
    $region37: #{run.7} parent=1 // pred_fallthru
      _
    // Predicated region
    $region38: #{run.7} parent=1 // pred_check
      _
    $region39: #{run.7} parent=1 // pred_check_branch
      %35 = sbr.rel (0) target = $region41
    $region40: #{run.7} parent=1 // pred_region
      _
    $region41: #{run.7} parent=1 // pred_fallthru
      _
    %v37 = vld [vmem:[%s0] sm:$0xff]
    %v38 = vld [vmem:[%s0 + $0x8] sm:$0xff]
    %v39 = vld [vmem:[%s0 + $0x10] sm:$0xff]
    %v40 = vld [vmem:[%s0 + $0x18] sm:$0xff]
    %v41 = vld [vmem:[%s0 + $0x20] sm:$0xff]
    %v42 = vld [vmem:[%s0 + $0x28] sm:$0xff]
    %v43 = vld [vmem:[%s0 + $0x30] sm:$0xff]
    %v44 = vld [vmem:[%s0 + $0x38] sm:$0xff]
    %v45 = vld [vmem:[%s0 + $0x40] sm:$0xff]
    %v46 = vld [vmem:[%s0 + $0x48] sm:$0xff]
    %v47 = vld [vmem:[%s0 + $0x50] sm:$0xff]
    %v48 = vld [vmem:[%s0 + $0x58] sm:$0xff]
    %v49 = vld [vmem:[%s0 + $0x60] sm:$0xff]
    %v50 = vld [vmem:[%s0 + $0x68] sm:$0xff]
    %v51 = vld [vmem:[%s0 + $0x70] sm:$0xff]
    %v52 = vld [vmem:[%s0 + $0x78] sm:$0xff]
    %v53 = vld [vmem:[%s0 + $0x80] sm:$0xff]
    %v54 = vld [vmem:[%s0 + $0x88] sm:$0xff]
    %v55 = vld [vmem:[%s0 + $0x90] sm:$0xff]
    %v56 = vld [vmem:[%s0 + $0x98] sm:$0xff]
    %v57 = vld [vmem:[%s0 + $0xa0] sm:$0xff]
    %v58 = vld [vmem:[%s0 + $0xa8] sm:$0xff]
    %v59 = vld [vmem:[%s0 + $0xb0] sm:$0xff]
    %v60 = vld [vmem:[%s0 + $0xb8] sm:$0xff]
    %v61 = vld [vmem:[%s0 + $0xc0] sm:$0xff]
    %v62 = vld [vmem:[%s0 + $0xc8] sm:$0xff]
    %v63 = vld [vmem:[%s0 + $0xd0] sm:$0xff]
    %v64 = vld [vmem:[%s0 + $0xd8] sm:$0xff]
    %v65 = vld [vmem:[%s0 + $0xe0] sm:$0xff]
    %v66 = vld [vmem:[%s0 + $0xe8] sm:$0xff]
    %v67 = vld [vmem:[%s0 + $0xf0] sm:$0xff]
    %v68 = vld [vmem:[%s0 + $0xf8] sm:$0xff]
    %v69 = vld [vmem:[%s0 + $0x100] sm:$0xff]
    %v70 = vld [vmem:[%s0 + $0x108] sm:$0xff]
    %v71 = vld [vmem:[%s0 + $0x110] sm:$0xff]
    %v72 = vld [vmem:[%s0 + $0x118] sm:$0xff]
    %v73 = vld [vmem:[%s0 + $0x120] sm:$0xff]
    %v74 = vld [vmem:[%s0 + $0x128] sm:$0xff]
    %v75 = vld [vmem:[%s0 + $0x130] sm:$0xff]
    %v76 = vld [vmem:[%s0 + $0x138] sm:$0xff]
    %v77 = vld [vmem:[%s0 + $0x140] sm:$0xff]
    %v78 = vld [vmem:[%s0 + $0x148] sm:$0xff]
    %v79 = vld [vmem:[%s0 + $0x150] sm:$0xff]
    %v80 = vld [vmem:[%s0 + $0x158] sm:$0xff]
    %v81 = vld [vmem:[%s0 + $0x160] sm:$0xff]
    %v82 = vld [vmem:[%s0 + $0x168] sm:$0xff]
    %v83 = vld [vmem:[%s0 + $0x170] sm:$0xff]
    %v84 = vld [vmem:[%s0 + $0x178] sm:$0xff]
    %v85 = vld [vmem:[%s0 + $0x180] sm:$0xff]
    %v86 = vld [vmem:[%s0 + $0x188] sm:$0xff]
    %v87 = vld [vmem:[%s0 + $0x190] sm:$0xff]
    %v88 = vld [vmem:[%s0 + $0x198] sm:$0xff]
    %v89 = vld [vmem:[%s0 + $0x1a0] sm:$0xff]
    %v90 = vld [vmem:[%s0 + $0x1a8] sm:$0xff]
    %v91 = vld [vmem:[%s0 + $0x1b0] sm:$0xff]
    %v92 = vld [vmem:[%s0 + $0x1b8] sm:$0xff]
    %v93 = vld [vmem:[%s0 + $0x1c0] sm:$0xff]
    %v94 = vld [vmem:[%s0 + $0x1c8] sm:$0xff]
    %v95 = vld [vmem:[%s0 + $0x1d0] sm:$0xff]
    %v96 = vld [vmem:[%s0 + $0x1d8] sm:$0xff]
    %v97 = vld [vmem:[%s0 + $0x1e0] sm:$0xff]
    %v98 = vld [vmem:[%s0 + $0x1e8] sm:$0xff]
    %v99 = vld [vmem:[%s0 + $0x1f0] sm:$0xff]
    %v100 = vld [vmem:[%s0 + $0x1f8] sm:$0xff]
    %101 = vadd.xlane.f32.xlu0 %v37
    %v102 = vpop.xlane.xlu0 %101
    %103 = vadd.xlane.f32.xlu0 %v38
    %v104 = vpop.xlane.xlu0 %103
    %105 = vadd.xlane.f32.xlu0 %v39
    %v106 = vpop.xlane.xlu0 %105
    %107 = vadd.xlane.f32.xlu0 %v40
    %v108 = vpop.xlane.xlu0 %107
    %109 = vadd.xlane.f32.xlu0 %v41
    %v110 = vpop.xlane.xlu0 %109
    %111 = vadd.xlane.f32.xlu0 %v42
    %v112 = vpop.xlane.xlu0 %111
    %113 = vadd.xlane.f32.xlu0 %v43
    %v114 = vpop.xlane.xlu0 %113
    %115 = vadd.xlane.f32.xlu0 %v44
    %v116 = vpop.xlane.xlu0 %115
    %117 = vadd.xlane.f32.xlu0 %v45
    %v118 = vpop.xlane.xlu0 %117
    %119 = vadd.xlane.f32.xlu0 %v46
    %v120 = vpop.xlane.xlu0 %119
    %121 = vadd.xlane.f32.xlu0 %v47
    %v122 = vpop.xlane.xlu0 %121
    %123 = vadd.xlane.f32.xlu0 %v48
    %v124 = vpop.xlane.xlu0 %123
    %125 = vadd.xlane.f32.xlu0 %v49
    %v126 = vpop.xlane.xlu0 %125
    %127 = vadd.xlane.f32.xlu0 %v50
    %v128 = vpop.xlane.xlu0 %127
    %129 = vadd.xlane.f32.xlu0 %v51
    %v130 = vpop.xlane.xlu0 %129
    %131 = vadd.xlane.f32.xlu0 %v52
    %v132 = vpop.xlane.xlu0 %131
    %133 = vadd.xlane.f32.xlu0 %v53
    %v134 = vpop.xlane.xlu0 %133
    %135 = vadd.xlane.f32.xlu0 %v54
    %v136 = vpop.xlane.xlu0 %135
    %137 = vadd.xlane.f32.xlu0 %v55
    %v138 = vpop.xlane.xlu0 %137
    %139 = vadd.xlane.f32.xlu0 %v56
    %v140 = vpop.xlane.xlu0 %139
    %141 = vadd.xlane.f32.xlu0 %v57
    %v142 = vpop.xlane.xlu0 %141
    %143 = vadd.xlane.f32.xlu0 %v58
    %v144 = vpop.xlane.xlu0 %143
    %145 = vadd.xlane.f32.xlu0 %v59
    %v146 = vpop.xlane.xlu0 %145
    %147 = vadd.xlane.f32.xlu0 %v60
    %v148 = vpop.xlane.xlu0 %147
    %149 = vadd.xlane.f32.xlu0 %v61
    %v150 = vpop.xlane.xlu0 %149
    %151 = vadd.xlane.f32.xlu0 %v62
    %v152 = vpop.xlane.xlu0 %151
    %153 = vadd.xlane.f32.xlu0 %v63
    %v154 = vpop.xlane.xlu0 %153
    %155 = vadd.xlane.f32.xlu0 %v64
    %v156 = vpop.xlane.xlu0 %155
    %157 = vadd.xlane.f32.xlu0 %v65
    %v158 = vpop.xlane.xlu0 %157
    %159 = vadd.xlane.f32.xlu0 %v66
    %v160 = vpop.xlane.xlu0 %159
    %161 = vadd.xlane.f32.xlu0 %v67
    %v162 = vpop.xlane.xlu0 %161
    %163 = vadd.xlane.f32.xlu0 %v68
    %v164 = vpop.xlane.xlu0 %163
    %165 = vadd.xlane.f32.xlu0 %v69
    %v166 = vpop.xlane.xlu0 %165
    %167 = vadd.xlane.f32.xlu0 %v70
    %v168 = vpop.xlane.xlu0 %167
    %169 = vadd.xlane.f32.xlu0 %v71
    %v170 = vpop.xlane.xlu0 %169
    %171 = vadd.xlane.f32.xlu0 %v72
    %v172 = vpop.xlane.xlu0 %171
    %173 = vadd.xlane.f32.xlu0 %v73
    %v174 = vpop.xlane.xlu0 %173
    %175 = vadd.xlane.f32.xlu0 %v74
    %v176 = vpop.xlane.xlu0 %175
    %177 = vadd.xlane.f32.xlu0 %v75
    %v178 = vpop.xlane.xlu0 %177
    %179 = vadd.xlane.f32.xlu0 %v76
    %v180 = vpop.xlane.xlu0 %179
    %181 = vadd.xlane.f32.xlu0 %v77
    %v182 = vpop.xlane.xlu0 %181
    %183 = vadd.xlane.f32.xlu0 %v78
    %v184 = vpop.xlane.xlu0 %183
    %185 = vadd.xlane.f32.xlu0 %v79
    %v186 = vpop.xlane.xlu0 %185
    %187 = vadd.xlane.f32.xlu0 %v80
    %v188 = vpop.xlane.xlu0 %187
    %189 = vadd.xlane.f32.xlu0 %v81
    %v190 = vpop.xlane.xlu0 %189
    %191 = vadd.xlane.f32.xlu0 %v82
    %v192 = vpop.xlane.xlu0 %191
    %193 = vadd.xlane.f32.xlu0 %v83
    %v194 = vpop.xlane.xlu0 %193
    %195 = vadd.xlane.f32.xlu0 %v84
    %v196 = vpop.xlane.xlu0 %195
    %197 = vadd.xlane.f32.xlu0 %v85
    %v198 = vpop.xlane.xlu0 %197
    %199 = vadd.xlane.f32.xlu0 %v86
    %v200 = vpop.xlane.xlu0 %199
    %201 = vadd.xlane.f32.xlu0 %v87
    %v202 = vpop.xlane.xlu0 %201
    %203 = vadd.xlane.f32.xlu0 %v88
    %v204 = vpop.xlane.xlu0 %203
    %205 = vadd.xlane.f32.xlu0 %v89
    %v206 = vpop.xlane.xlu0 %205
    %207 = vadd.xlane.f32.xlu0 %v90
    %v208 = vpop.xlane.xlu0 %207
    %209 = vadd.xlane.f32.xlu0 %v91
    %v210 = vpop.xlane.xlu0 %209
    %211 = vadd.xlane.f32.xlu0 %v92
    %v212 = vpop.xlane.xlu0 %211
    %213 = vadd.xlane.f32.xlu0 %v93
    %v214 = vpop.xlane.xlu0 %213
    %215 = vadd.xlane.f32.xlu0 %v94
    %v216 = vpop.xlane.xlu0 %215
    %217 = vadd.xlane.f32.xlu0 %v95
    %v218 = vpop.xlane.xlu0 %217
    %219 = vadd.xlane.f32.xlu0 %v96
    %v220 = vpop.xlane.xlu0 %219
    %221 = vadd.xlane.f32.xlu0 %v97
    %v222 = vpop.xlane.xlu0 %221
    %223 = vadd.xlane.f32.xlu0 %v98
    %v224 = vpop.xlane.xlu0 %223
    %225 = vadd.xlane.f32.xlu0 %v99
    %v226 = vpop.xlane.xlu0 %225
    %227 = vadd.xlane.f32.xlu0 %v100
    %v228 = vpop.xlane.xlu0 %227
    %v229 = vmul.f32 %v102, 0.03125
    %v230 = vmul.f32 %v104, 0.03125
    %v231 = vmul.f32 %v106, 0.03125
    %v232 = vmul.f32 %v108, 0.03125
    %v233 = vmul.f32 %v110, 0.03125
    %v234 = vmul.f32 %v112, 0.03125
    %v235 = vmul.f32 %v114, 0.03125
    %v236 = vmul.f32 %v116, 0.03125
    %v237 = vmul.f32 %v118, 0.03125
    %v238 = vmul.f32 %v120, 0.03125
    %v239 = vmul.f32 %v122, 0.03125
    %v240 = vmul.f32 %v124, 0.03125
    %v241 = vmul.f32 %v126, 0.03125
    %v242 = vmul.f32 %v128, 0.03125
    %v243 = vmul.f32 %v130, 0.03125
    %v244 = vmul.f32 %v132, 0.03125
    %v245 = vmul.f32 %v134, 0.03125
    %v246 = vmul.f32 %v136, 0.03125
    %v247 = vmul.f32 %v138, 0.03125
    %v248 = vmul.f32 %v140, 0.03125
    %v249 = vmul.f32 %v142, 0.03125
    %v250 = vmul.f32 %v144, 0.03125
    %v251 = vmul.f32 %v146, 0.03125
    %v252 = vmul.f32 %v148, 0.03125
    %v253 = vmul.f32 %v150, 0.03125
    %v254 = vmul.f32 %v152, 0.03125
    %v255 = vmul.f32 %v154, 0.03125
    %v256 = vmul.f32 %v156, 0.03125
    %v257 = vmul.f32 %v158, 0.03125
    %v258 = vmul.f32 %v160, 0.03125
    %v259 = vmul.f32 %v162, 0.03125
    %v260 = vmul.f32 %v164, 0.03125
    %v261 = vmul.f32 %v166, 0.03125
    %v262 = vmul.f32 %v168, 0.03125
    %v263 = vmul.f32 %v170, 0.03125
    %v264 = vmul.f32 %v172, 0.03125
    %v265 = vmul.f32 %v174, 0.03125
    %v266 = vmul.f32 %v176, 0.03125
    %v267 = vmul.f32 %v178, 0.03125
    %v268 = vmul.f32 %v180, 0.03125
    %v269 = vmul.f32 %v182, 0.03125
    %v270 = vmul.f32 %v184, 0.03125
    %v271 = vmul.f32 %v186, 0.03125
    %v272 = vmul.f32 %v188, 0.03125
    %v273 = vmul.f32 %v190, 0.03125
    %v274 = vmul.f32 %v192, 0.03125
    %v275 = vmul.f32 %v194, 0.03125
    %v276 = vmul.f32 %v196, 0.03125
    %v277 = vmul.f32 %v198, 0.03125
    %v278 = vmul.f32 %v200, 0.03125
    %v279 = vmul.f32 %v202, 0.03125
    %v280 = vmul.f32 %v204, 0.03125
    %v281 = vmul.f32 %v206, 0.03125
    %v282 = vmul.f32 %v208, 0.03125
    %v283 = vmul.f32 %v210, 0.03125
    %v284 = vmul.f32 %v212, 0.03125
    %v285 = vmul.f32 %v214, 0.03125
    %v286 = vmul.f32 %v216, 0.03125
    %v287 = vmul.f32 %v218, 0.03125
    %v288 = vmul.f32 %v220, 0.03125
    %v289 = vmul.f32 %v222, 0.03125
    %v290 = vmul.f32 %v224, 0.03125
    %v291 = vmul.f32 %v226, 0.03125
    %v292 = vmul.f32 %v228, 0.03125
    %v293 = vmul.f32 %v37, %v37
    %v294 = vmul.f32 %v38, %v38
    %v295 = vmul.f32 %v39, %v39
    %v296 = vmul.f32 %v40, %v40
    %v297 = vmul.f32 %v41, %v41
    %v298 = vmul.f32 %v42, %v42
    %v299 = vmul.f32 %v43, %v43
    %v300 = vmul.f32 %v44, %v44
    %v301 = vmul.f32 %v45, %v45
    %v302 = vmul.f32 %v46, %v46
    %v303 = vmul.f32 %v47, %v47
    %v304 = vmul.f32 %v48, %v48
    %v305 = vmul.f32 %v49, %v49
    %v306 = vmul.f32 %v50, %v50
    %v307 = vmul.f32 %v51, %v51
    %v308 = vmul.f32 %v52, %v52
    %v309 = vmul.f32 %v53, %v53
    %v310 = vmul.f32 %v54, %v54
    %v311 = vmul.f32 %v55, %v55
    %v312 = vmul.f32 %v56, %v56
    %v313 = vmul.f32 %v57, %v57
    %v314 = vmul.f32 %v58, %v58
    %v315 = vmul.f32 %v59, %v59
    %v316 = vmul.f32 %v60, %v60
    %v317 = vmul.f32 %v61, %v61
    %v318 = vmul.f32 %v62, %v62
    %v319 = vmul.f32 %v63, %v63
    %v320 = vmul.f32 %v64, %v64
    %v321 = vmul.f32 %v65, %v65
    %v322 = vmul.f32 %v66, %v66
    %v323 = vmul.f32 %v67, %v67
    %v324 = vmul.f32 %v68, %v68
    %v325 = vmul.f32 %v69, %v69
    %v326 = vmul.f32 %v70, %v70
    %v327 = vmul.f32 %v71, %v71
    %v328 = vmul.f32 %v72, %v72
    %v329 = vmul.f32 %v73, %v73
    %v330 = vmul.f32 %v74, %v74
    %v331 = vmul.f32 %v75, %v75
    %v332 = vmul.f32 %v76, %v76
    %v333 = vmul.f32 %v77, %v77
    %v334 = vmul.f32 %v78, %v78
    %v335 = vmul.f32 %v79, %v79
    %v336 = vmul.f32 %v80, %v80
    %v337 = vmul.f32 %v81, %v81
    %v338 = vmul.f32 %v82, %v82
    %v339 = vmul.f32 %v83, %v83
    %v340 = vmul.f32 %v84, %v84
    %v341 = vmul.f32 %v85, %v85
    %v342 = vmul.f32 %v86, %v86
    %v343 = vmul.f32 %v87, %v87
    %v344 = vmul.f32 %v88, %v88
    %v345 = vmul.f32 %v89, %v89
    %v346 = vmul.f32 %v90, %v90
    %v347 = vmul.f32 %v91, %v91
    %v348 = vmul.f32 %v92, %v92
    %v349 = vmul.f32 %v93, %v93
    %v350 = vmul.f32 %v94, %v94
    %v351 = vmul.f32 %v95, %v95
    %v352 = vmul.f32 %v96, %v96
    %v353 = vmul.f32 %v97, %v97
    %v354 = vmul.f32 %v98, %v98
    %v355 = vmul.f32 %v99, %v99
    %v356 = vmul.f32 %v100, %v100
    %357 = vadd.xlane.f32.xlu0 %v293
    %v358 = vpop.xlane.xlu0 %357
    %359 = vadd.xlane.f32.xlu0 %v294
    %v360 = vpop.xlane.xlu0 %359
    %361 = vadd.xlane.f32.xlu0 %v295
    %v362 = vpop.xlane.xlu0 %361
    %363 = vadd.xlane.f32.xlu0 %v296
    %v364 = vpop.xlane.xlu0 %363
    %365 = vadd.xlane.f32.xlu0 %v297
    %v366 = vpop.xlane.xlu0 %365
    %367 = vadd.xlane.f32.xlu0 %v298
    %v368 = vpop.xlane.xlu0 %367
    %369 = vadd.xlane.f32.xlu0 %v299
    %v370 = vpop.xlane.xlu0 %369
    %371 = vadd.xlane.f32.xlu0 %v300
    %v372 = vpop.xlane.xlu0 %371
    %373 = vadd.xlane.f32.xlu0 %v301
    %v374 = vpop.xlane.xlu0 %373
    %375 = vadd.xlane.f32.xlu0 %v302
    %v376 = vpop.xlane.xlu0 %375
    %377 = vadd.xlane.f32.xlu0 %v303
    %v378 = vpop.xlane.xlu0 %377
    %379 = vadd.xlane.f32.xlu0 %v304
    %v380 = vpop.xlane.xlu0 %379
    %381 = vadd.xlane.f32.xlu0 %v305
    %v382 = vpop.xlane.xlu0 %381
    %383 = vadd.xlane.f32.xlu0 %v306
    %v384 = vpop.xlane.xlu0 %383
    %385 = vadd.xlane.f32.xlu0 %v307
    %v386 = vpop.xlane.xlu0 %385
    %387 = vadd.xlane.f32.xlu0 %v308
    %v388 = vpop.xlane.xlu0 %387
    %389 = vadd.xlane.f32.xlu0 %v309
    %v390 = vpop.xlane.xlu0 %389
    %391 = vadd.xlane.f32.xlu0 %v310
    %v392 = vpop.xlane.xlu0 %391
    %393 = vadd.xlane.f32.xlu0 %v311
    %v394 = vpop.xlane.xlu0 %393
    %395 = vadd.xlane.f32.xlu0 %v312
    %v396 = vpop.xlane.xlu0 %395
    %397 = vadd.xlane.f32.xlu0 %v313
    %v398 = vpop.xlane.xlu0 %397
    %399 = vadd.xlane.f32.xlu0 %v314
    %v400 = vpop.xlane.xlu0 %399
    %401 = vadd.xlane.f32.xlu0 %v315
    %v402 = vpop.xlane.xlu0 %401
    %403 = vadd.xlane.f32.xlu0 %v316
    %v404 = vpop.xlane.xlu0 %403
    %405 = vadd.xlane.f32.xlu0 %v317
    %v406 = vpop.xlane.xlu0 %405
    %407 = vadd.xlane.f32.xlu0 %v318
    %v408 = vpop.xlane.xlu0 %407
    %409 = vadd.xlane.f32.xlu0 %v319
    %v410 = vpop.xlane.xlu0 %409
    %411 = vadd.xlane.f32.xlu0 %v320
    %v412 = vpop.xlane.xlu0 %411
    %413 = vadd.xlane.f32.xlu0 %v321
    %v414 = vpop.xlane.xlu0 %413
    %415 = vadd.xlane.f32.xlu0 %v322
    %v416 = vpop.xlane.xlu0 %415
    %417 = vadd.xlane.f32.xlu0 %v323
    %v418 = vpop.xlane.xlu0 %417
    %419 = vadd.xlane.f32.xlu0 %v324
    %v420 = vpop.xlane.xlu0 %419
    %421 = vadd.xlane.f32.xlu0 %v325
    %v422 = vpop.xlane.xlu0 %421
    %423 = vadd.xlane.f32.xlu0 %v326
    %v424 = vpop.xlane.xlu0 %423
    %425 = vadd.xlane.f32.xlu0 %v327
    %v426 = vpop.xlane.xlu0 %425
    %427 = vadd.xlane.f32.xlu0 %v328
    %v428 = vpop.xlane.xlu0 %427
    %429 = vadd.xlane.f32.xlu0 %v329
    %v430 = vpop.xlane.xlu0 %429
    %431 = vadd.xlane.f32.xlu0 %v330
    %v432 = vpop.xlane.xlu0 %431
    %433 = vadd.xlane.f32.xlu0 %v331
    %v434 = vpop.xlane.xlu0 %433
    %435 = vadd.xlane.f32.xlu0 %v332
    %v436 = vpop.xlane.xlu0 %435
    %437 = vadd.xlane.f32.xlu0 %v333
    %v438 = vpop.xlane.xlu0 %437
    %439 = vadd.xlane.f32.xlu0 %v334
    %v440 = vpop.xlane.xlu0 %439
    %441 = vadd.xlane.f32.xlu0 %v335
    %v442 = vpop.xlane.xlu0 %441
    %443 = vadd.xlane.f32.xlu0 %v336
    %v444 = vpop.xlane.xlu0 %443
    %445 = vadd.xlane.f32.xlu0 %v337
    %v446 = vpop.xlane.xlu0 %445
    %447 = vadd.xlane.f32.xlu0 %v338
    %v448 = vpop.xlane.xlu0 %447
    %449 = vadd.xlane.f32.xlu0 %v339
    %v450 = vpop.xlane.xlu0 %449
    %451 = vadd.xlane.f32.xlu0 %v340
    %v452 = vpop.xlane.xlu0 %451
    %453 = vadd.xlane.f32.xlu0 %v341
    %v454 = vpop.xlane.xlu0 %453
    %455 = vadd.xlane.f32.xlu0 %v342
    %v456 = vpop.xlane.xlu0 %455
    %457 = vadd.xlane.f32.xlu0 %v343
    %v458 = vpop.xlane.xlu0 %457
    %459 = vadd.xlane.f32.xlu0 %v344
    %v460 = vpop.xlane.xlu0 %459
    %461 = vadd.xlane.f32.xlu0 %v345
    %v462 = vpop.xlane.xlu0 %461
    %463 = vadd.xlane.f32.xlu0 %v346
    %v464 = vpop.xlane.xlu0 %463
    %465 = vadd.xlane.f32.xlu0 %v347
    %v466 = vpop.xlane.xlu0 %465
    %467 = vadd.xlane.f32.xlu0 %v348
    %v468 = vpop.xlane.xlu0 %467
    %469 = vadd.xlane.f32.xlu0 %v349
    %v470 = vpop.xlane.xlu0 %469
    %471 = vadd.xlane.f32.xlu0 %v350
    %v472 = vpop.xlane.xlu0 %471
    %473 = vadd.xlane.f32.xlu0 %v351
    %v474 = vpop.xlane.xlu0 %473
    %475 = vadd.xlane.f32.xlu0 %v352
    %v476 = vpop.xlane.xlu0 %475
    %477 = vadd.xlane.f32.xlu0 %v353
    %v478 = vpop.xlane.xlu0 %477
    %479 = vadd.xlane.f32.xlu0 %v354
    %v480 = vpop.xlane.xlu0 %479
    %481 = vadd.xlane.f32.xlu0 %v355
    %v482 = vpop.xlane.xlu0 %481
    %483 = vadd.xlane.f32.xlu0 %v356
    %v484 = vpop.xlane.xlu0 %483
    %v485 = vmul.f32 %v358, 0.03125
    %v486 = vmul.f32 %v360, 0.03125
    %v487 = vmul.f32 %v362, 0.03125
    %v488 = vmul.f32 %v364, 0.03125
    %v489 = vmul.f32 %v366, 0.03125
    %v490 = vmul.f32 %v368, 0.03125
    %v491 = vmul.f32 %v370, 0.03125
    %v492 = vmul.f32 %v372, 0.03125
    %v493 = vmul.f32 %v374, 0.03125
    %v494 = vmul.f32 %v376, 0.03125
    %v495 = vmul.f32 %v378, 0.03125
    %v496 = vmul.f32 %v380, 0.03125
    %v497 = vmul.f32 %v382, 0.03125
    %v498 = vmul.f32 %v384, 0.03125
    %v499 = vmul.f32 %v386, 0.03125
    %v500 = vmul.f32 %v388, 0.03125
    %v501 = vmul.f32 %v390, 0.03125
    %v502 = vmul.f32 %v392, 0.03125
    %v503 = vmul.f32 %v394, 0.03125
    %v504 = vmul.f32 %v396, 0.03125
    %v505 = vmul.f32 %v398, 0.03125
    %v506 = vmul.f32 %v400, 0.03125
    %v507 = vmul.f32 %v402, 0.03125
    %v508 = vmul.f32 %v404, 0.03125
    %v509 = vmul.f32 %v406, 0.03125
    %v510 = vmul.f32 %v408, 0.03125
    %v511 = vmul.f32 %v410, 0.03125
    %v512 = vmul.f32 %v412, 0.03125
    %v513 = vmul.f32 %v414, 0.03125
    %v514 = vmul.f32 %v416, 0.03125
    %v515 = vmul.f32 %v418, 0.03125
    %v516 = vmul.f32 %v420, 0.03125
    %v517 = vmul.f32 %v422, 0.03125
    %v518 = vmul.f32 %v424, 0.03125
    %v519 = vmul.f32 %v426, 0.03125
    %v520 = vmul.f32 %v428, 0.03125
    %v521 = vmul.f32 %v430, 0.03125
    %v522 = vmul.f32 %v432, 0.03125
    %v523 = vmul.f32 %v434, 0.03125
    %v524 = vmul.f32 %v436, 0.03125
    %v525 = vmul.f32 %v438, 0.03125
    %v526 = vmul.f32 %v440, 0.03125
    %v527 = vmul.f32 %v442, 0.03125
    %v528 = vmul.f32 %v444, 0.03125
    %v529 = vmul.f32 %v446, 0.03125
    %v530 = vmul.f32 %v448, 0.03125
    %v531 = vmul.f32 %v450, 0.03125
    %v532 = vmul.f32 %v452, 0.03125
    %v533 = vmul.f32 %v454, 0.03125
    %v534 = vmul.f32 %v456, 0.03125
    %v535 = vmul.f32 %v458, 0.03125
    %v536 = vmul.f32 %v460, 0.03125
    %v537 = vmul.f32 %v462, 0.03125
    %v538 = vmul.f32 %v464, 0.03125
    %v539 = vmul.f32 %v466, 0.03125
    %v540 = vmul.f32 %v468, 0.03125
    %v541 = vmul.f32 %v470, 0.03125
    %v542 = vmul.f32 %v472, 0.03125
    %v543 = vmul.f32 %v474, 0.03125
    %v544 = vmul.f32 %v476, 0.03125
    %v545 = vmul.f32 %v478, 0.03125
    %v546 = vmul.f32 %v480, 0.03125
    %v547 = vmul.f32 %v482, 0.03125
    %v548 = vmul.f32 %v484, 0.03125
    %v549 = vmul.f32 %v229, %v229
    %v550 = vmul.f32 %v230, %v230
    %v551 = vmul.f32 %v231, %v231
    %v552 = vmul.f32 %v232, %v232
    %v553 = vmul.f32 %v233, %v233
    %v554 = vmul.f32 %v234, %v234
    %v555 = vmul.f32 %v235, %v235
    %v556 = vmul.f32 %v236, %v236
    %v557 = vmul.f32 %v237, %v237
    %v558 = vmul.f32 %v238, %v238
    %v559 = vmul.f32 %v239, %v239
    %v560 = vmul.f32 %v240, %v240
    %v561 = vmul.f32 %v241, %v241
    %v562 = vmul.f32 %v242, %v242
    %v563 = vmul.f32 %v243, %v243
    %v564 = vmul.f32 %v244, %v244
    %v565 = vmul.f32 %v245, %v245
    %v566 = vmul.f32 %v246, %v246
    %v567 = vmul.f32 %v247, %v247
    %v568 = vmul.f32 %v248, %v248
    %v569 = vmul.f32 %v249, %v249
    %v570 = vmul.f32 %v250, %v250
    %v571 = vmul.f32 %v251, %v251
    %v572 = vmul.f32 %v252, %v252
    %v573 = vmul.f32 %v253, %v253
    %v574 = vmul.f32 %v254, %v254
    %v575 = vmul.f32 %v255, %v255
    %v576 = vmul.f32 %v256, %v256
    %v577 = vmul.f32 %v257, %v257
    %v578 = vmul.f32 %v258, %v258
    %v579 = vmul.f32 %v259, %v259
    %v580 = vmul.f32 %v260, %v260
    %v581 = vmul.f32 %v261, %v261
    %v582 = vmul.f32 %v262, %v262
    %v583 = vmul.f32 %v263, %v263
    %v584 = vmul.f32 %v264, %v264
    %v585 = vmul.f32 %v265, %v265
    %v586 = vmul.f32 %v266, %v266
    %v587 = vmul.f32 %v267, %v267
    %v588 = vmul.f32 %v268, %v268
    %v589 = vmul.f32 %v269, %v269
    %v590 = vmul.f32 %v270, %v270
    %v591 = vmul.f32 %v271, %v271
    %v592 = vmul.f32 %v272, %v272
    %v593 = vmul.f32 %v273, %v273
    %v594 = vmul.f32 %v274, %v274
    %v595 = vmul.f32 %v275, %v275
    %v596 = vmul.f32 %v276, %v276
    %v597 = vmul.f32 %v277, %v277
    %v598 = vmul.f32 %v278, %v278
    %v599 = vmul.f32 %v279, %v279
    %v600 = vmul.f32 %v280, %v280
    %v601 = vmul.f32 %v281, %v281
    %v602 = vmul.f32 %v282, %v282
    %v603 = vmul.f32 %v283, %v283
    %v604 = vmul.f32 %v284, %v284
    %v605 = vmul.f32 %v285, %v285
    %v606 = vmul.f32 %v286, %v286
    %v607 = vmul.f32 %v287, %v287
    %v608 = vmul.f32 %v288, %v288
    %v609 = vmul.f32 %v289, %v289
    %v610 = vmul.f32 %v290, %v290
    %v611 = vmul.f32 %v291, %v291
    %v612 = vmul.f32 %v292, %v292
    %v613 = vsub.f32 %v485, %v549
    %v614 = vsub.f32 %v486, %v550
    %v615 = vsub.f32 %v487, %v551
    %v616 = vsub.f32 %v488, %v552
    %v617 = vsub.f32 %v489, %v553
    %v618 = vsub.f32 %v490, %v554
    %v619 = vsub.f32 %v491, %v555
    %v620 = vsub.f32 %v492, %v556
    %v621 = vsub.f32 %v493, %v557
    %v622 = vsub.f32 %v494, %v558
    %v623 = vsub.f32 %v495, %v559
    %v624 = vsub.f32 %v496, %v560
    %v625 = vsub.f32 %v497, %v561
    %v626 = vsub.f32 %v498, %v562
    %v627 = vsub.f32 %v499, %v563
    %v628 = vsub.f32 %v500, %v564
    %v629 = vsub.f32 %v501, %v565
    %v630 = vsub.f32 %v502, %v566
    %v631 = vsub.f32 %v503, %v567
    %v632 = vsub.f32 %v504, %v568
    %v633 = vsub.f32 %v505, %v569
    %v634 = vsub.f32 %v506, %v570
    %v635 = vsub.f32 %v507, %v571
    %v636 = vsub.f32 %v508, %v572
    %v637 = vsub.f32 %v509, %v573
    %v638 = vsub.f32 %v510, %v574
    %v639 = vsub.f32 %v511, %v575
    %v640 = vsub.f32 %v512, %v576
    %v641 = vsub.f32 %v513, %v577
    %v642 = vsub.f32 %v514, %v578
    %v643 = vsub.f32 %v515, %v579
    %v644 = vsub.f32 %v516, %v580
    %v645 = vsub.f32 %v517, %v581
    %v646 = vsub.f32 %v518, %v582
    %v647 = vsub.f32 %v519, %v583
    %v648 = vsub.f32 %v520, %v584
    %v649 = vsub.f32 %v521, %v585
    %v650 = vsub.f32 %v522, %v586
    %v651 = vsub.f32 %v523, %v587
    %v652 = vsub.f32 %v524, %v588
    %v653 = vsub.f32 %v525, %v589
    %v654 = vsub.f32 %v526, %v590
    %v655 = vsub.f32 %v527, %v591
    %v656 = vsub.f32 %v528, %v592
    %v657 = vsub.f32 %v529, %v593
    %v658 = vsub.f32 %v530, %v594
    %v659 = vsub.f32 %v531, %v595
    %v660 = vsub.f32 %v532, %v596
    %v661 = vsub.f32 %v533, %v597
    %v662 = vsub.f32 %v534, %v598
    %v663 = vsub.f32 %v535, %v599
    %v664 = vsub.f32 %v536, %v600
    %v665 = vsub.f32 %v537, %v601
    %v666 = vsub.f32 %v538, %v602
    %v667 = vsub.f32 %v539, %v603
    %v668 = vsub.f32 %v540, %v604
    %v669 = vsub.f32 %v541, %v605
    %v670 = vsub.f32 %v542, %v606
    %v671 = vsub.f32 %v543, %v607
    %v672 = vsub.f32 %v544, %v608
    %v673 = vsub.f32 %v545, %v609
    %v674 = vsub.f32 %v546, %v610
    %v675 = vsub.f32 %v547, %v611
    %v676 = vsub.f32 %v548, %v612
    %v677 = vsub.f32 %v37, %v229
    %v678 = vsub.f32 %v38, %v230
    %v679 = vsub.f32 %v39, %v231
    %v680 = vsub.f32 %v40, %v232
    %v681 = vsub.f32 %v41, %v233
    %v682 = vsub.f32 %v42, %v234
    %v683 = vsub.f32 %v43, %v235
    %v684 = vsub.f32 %v44, %v236
    %v685 = vsub.f32 %v45, %v237
    %v686 = vsub.f32 %v46, %v238
    %v687 = vsub.f32 %v47, %v239
    %v688 = vsub.f32 %v48, %v240
    %v689 = vsub.f32 %v49, %v241
    %v690 = vsub.f32 %v50, %v242
    %v691 = vsub.f32 %v51, %v243
    %v692 = vsub.f32 %v52, %v244
    %v693 = vsub.f32 %v53, %v245
    %v694 = vsub.f32 %v54, %v246
    %v695 = vsub.f32 %v55, %v247
    %v696 = vsub.f32 %v56, %v248
    %v697 = vsub.f32 %v57, %v249
    %v698 = vsub.f32 %v58, %v250
    %v699 = vsub.f32 %v59, %v251
    %v700 = vsub.f32 %v60, %v252
    %v701 = vsub.f32 %v61, %v253
    %v702 = vsub.f32 %v62, %v254
    %v703 = vsub.f32 %v63, %v255
    %v704 = vsub.f32 %v64, %v256
    %v705 = vsub.f32 %v65, %v257
    %v706 = vsub.f32 %v66, %v258
    %v707 = vsub.f32 %v67, %v259
    %v708 = vsub.f32 %v68, %v260
    %v709 = vsub.f32 %v69, %v261
    %v710 = vsub.f32 %v70, %v262
    %v711 = vsub.f32 %v71, %v263
    %v712 = vsub.f32 %v72, %v264
    %v713 = vsub.f32 %v73, %v265
    %v714 = vsub.f32 %v74, %v266
    %v715 = vsub.f32 %v75, %v267
    %v716 = vsub.f32 %v76, %v268
    %v717 = vsub.f32 %v77, %v269
    %v718 = vsub.f32 %v78, %v270
    %v719 = vsub.f32 %v79, %v271
    %v720 = vsub.f32 %v80, %v272
    %v721 = vsub.f32 %v81, %v273
    %v722 = vsub.f32 %v82, %v274
    %v723 = vsub.f32 %v83, %v275
    %v724 = vsub.f32 %v84, %v276
    %v725 = vsub.f32 %v85, %v277
    %v726 = vsub.f32 %v86, %v278
    %v727 = vsub.f32 %v87, %v279
    %v728 = vsub.f32 %v88, %v280
    %v729 = vsub.f32 %v89, %v281
    %v730 = vsub.f32 %v90, %v282
    %v731 = vsub.f32 %v91, %v283
    %v732 = vsub.f32 %v92, %v284
    %v733 = vsub.f32 %v93, %v285
    %v734 = vsub.f32 %v94, %v286
    %v735 = vsub.f32 %v95, %v287
    %v736 = vsub.f32 %v96, %v288
    %v737 = vsub.f32 %v97, %v289
    %v738 = vsub.f32 %v98, %v290
    %v739 = vsub.f32 %v99, %v291
    %v740 = vsub.f32 %v100, %v292
    %v741 = vadd.f32 %v613, 1e-05
    %v742 = vadd.f32 %v614, 1e-05
    %v743 = vadd.f32 %v615, 1e-05
    %v744 = vadd.f32 %v616, 1e-05
    %v745 = vadd.f32 %v617, 1e-05
    %v746 = vadd.f32 %v618, 1e-05
    %v747 = vadd.f32 %v619, 1e-05
    %v748 = vadd.f32 %v620, 1e-05
    %v749 = vadd.f32 %v621, 1e-05
    %v750 = vadd.f32 %v622, 1e-05
    %v751 = vadd.f32 %v623, 1e-05
    %v752 = vadd.f32 %v624, 1e-05
    %v753 = vadd.f32 %v625, 1e-05
    %v754 = vadd.f32 %v626, 1e-05
    %v755 = vadd.f32 %v627, 1e-05
    %v756 = vadd.f32 %v628, 1e-05
    %v757 = vadd.f32 %v629, 1e-05
    %v758 = vadd.f32 %v630, 1e-05
    %v759 = vadd.f32 %v631, 1e-05
    %v760 = vadd.f32 %v632, 1e-05
    %v761 = vadd.f32 %v633, 1e-05
    %v762 = vadd.f32 %v634, 1e-05
    %v763 = vadd.f32 %v635, 1e-05
    %v764 = vadd.f32 %v636, 1e-05
    %v765 = vadd.f32 %v637, 1e-05
    %v766 = vadd.f32 %v638, 1e-05
    %v767 = vadd.f32 %v639, 1e-05
    %v768 = vadd.f32 %v640, 1e-05
    %v769 = vadd.f32 %v641, 1e-05
    %v770 = vadd.f32 %v642, 1e-05
    %v771 = vadd.f32 %v643, 1e-05
    %v772 = vadd.f32 %v644, 1e-05
    %v773 = vadd.f32 %v645, 1e-05
    %v774 = vadd.f32 %v646, 1e-05
    %v775 = vadd.f32 %v647, 1e-05
    %v776 = vadd.f32 %v648, 1e-05
    %v777 = vadd.f32 %v649, 1e-05
    %v778 = vadd.f32 %v650, 1e-05
    %v779 = vadd.f32 %v651, 1e-05
    %v780 = vadd.f32 %v652, 1e-05
    %v781 = vadd.f32 %v653, 1e-05
    %v782 = vadd.f32 %v654, 1e-05
    %v783 = vadd.f32 %v655, 1e-05
    %v784 = vadd.f32 %v656, 1e-05
    %v785 = vadd.f32 %v657, 1e-05
    %v786 = vadd.f32 %v658, 1e-05
    %v787 = vadd.f32 %v659, 1e-05
    %v788 = vadd.f32 %v660, 1e-05
    %v789 = vadd.f32 %v661, 1e-05
    %v790 = vadd.f32 %v662, 1e-05
    %v791 = vadd.f32 %v663, 1e-05
    %v792 = vadd.f32 %v664, 1e-05
    %v793 = vadd.f32 %v665, 1e-05
    %v794 = vadd.f32 %v666, 1e-05
    %v795 = vadd.f32 %v667, 1e-05
    %v796 = vadd.f32 %v668, 1e-05
    %v797 = vadd.f32 %v669, 1e-05
    %v798 = vadd.f32 %v670, 1e-05
    %v799 = vadd.f32 %v671, 1e-05
    %v800 = vadd.f32 %v672, 1e-05
    %v801 = vadd.f32 %v673, 1e-05
    %v802 = vadd.f32 %v674, 1e-05
    %v803 = vadd.f32 %v675, 1e-05
    %v804 = vadd.f32 %v676, 1e-05
    %v805 = vrsqrt.pop %v741
    %v806 = vrsqrt.pop %v742
    %v807 = vrsqrt.pop %v743
    %v808 = vrsqrt.pop %v744
    %v809 = vrsqrt.pop %v745
    %v810 = vrsqrt.pop %v746
    %v811 = vrsqrt.pop %v747
    %v812 = vrsqrt.pop %v748
    %v813 = vrsqrt.pop %v749
    %v814 = vrsqrt.pop %v750
    %v815 = vrsqrt.pop %v751
    %v816 = vrsqrt.pop %v752
    %v817 = vrsqrt.pop %v753
    %v818 = vrsqrt.pop %v754
    %v819 = vrsqrt.pop %v755
    %v820 = vrsqrt.pop %v756
    %v821 = vrsqrt.pop %v757
    %v822 = vrsqrt.pop %v758
    %v823 = vrsqrt.pop %v759
    %v824 = vrsqrt.pop %v760
    %v825 = vrsqrt.pop %v761
    %v826 = vrsqrt.pop %v762
    %v827 = vrsqrt.pop %v763
    %v828 = vrsqrt.pop %v764
    %v829 = vrsqrt.pop %v765
    %v830 = vrsqrt.pop %v766
    %v831 = vrsqrt.pop %v767
    %v832 = vrsqrt.pop %v768
    %v833 = vrsqrt.pop %v769
    %v834 = vrsqrt.pop %v770
    %v835 = vrsqrt.pop %v771
    %v836 = vrsqrt.pop %v772
    %v837 = vrsqrt.pop %v773
    %v838 = vrsqrt.pop %v774
    %v839 = vrsqrt.pop %v775
    %v840 = vrsqrt.pop %v776
    %v841 = vrsqrt.pop %v777
    %v842 = vrsqrt.pop %v778
    %v843 = vrsqrt.pop %v779
    %v844 = vrsqrt.pop %v780
    %v845 = vrsqrt.pop %v781
    %v846 = vrsqrt.pop %v782
    %v847 = vrsqrt.pop %v783
    %v848 = vrsqrt.pop %v784
    %v849 = vrsqrt.pop %v785
    %v850 = vrsqrt.pop %v786
    %v851 = vrsqrt.pop %v787
    %v852 = vrsqrt.pop %v788
    %v853 = vrsqrt.pop %v789
    %v854 = vrsqrt.pop %v790
    %v855 = vrsqrt.pop %v791
    %v856 = vrsqrt.pop %v792
    %v857 = vrsqrt.pop %v793
    %v858 = vrsqrt.pop %v794
    %v859 = vrsqrt.pop %v795
    %v860 = vrsqrt.pop %v796
    %v861 = vrsqrt.pop %v797
    %v862 = vrsqrt.pop %v798
    %v863 = vrsqrt.pop %v799
    %v864 = vrsqrt.pop %v800
    %v865 = vrsqrt.pop %v801
    %v866 = vrsqrt.pop %v802
    %v867 = vrsqrt.pop %v803
    %v868 = vrsqrt.pop %v804
    %v869 = vmul.f32 %v677, %v805
    %v870 = vmul.f32 %v678, %v806
    %v871 = vmul.f32 %v679, %v807
    %v872 = vmul.f32 %v680, %v808
    %v873 = vmul.f32 %v681, %v809
    %v874 = vmul.f32 %v682, %v810
    %v875 = vmul.f32 %v683, %v811
    %v876 = vmul.f32 %v684, %v812
    %v877 = vmul.f32 %v685, %v813
    %v878 = vmul.f32 %v686, %v814
    %v879 = vmul.f32 %v687, %v815
    %v880 = vmul.f32 %v688, %v816
    %v881 = vmul.f32 %v689, %v817
    %v882 = vmul.f32 %v690, %v818
    %v883 = vmul.f32 %v691, %v819
    %v884 = vmul.f32 %v692, %v820
    %v885 = vmul.f32 %v693, %v821
    %v886 = vmul.f32 %v694, %v822
    %v887 = vmul.f32 %v695, %v823
    %v888 = vmul.f32 %v696, %v824
    %v889 = vmul.f32 %v697, %v825
    %v890 = vmul.f32 %v698, %v826
    %v891 = vmul.f32 %v699, %v827
    %v892 = vmul.f32 %v700, %v828
    %v893 = vmul.f32 %v701, %v829
    %v894 = vmul.f32 %v702, %v830
    %v895 = vmul.f32 %v703, %v831
    %v896 = vmul.f32 %v704, %v832
    %v897 = vmul.f32 %v705, %v833
    %v898 = vmul.f32 %v706, %v834
    %v899 = vmul.f32 %v707, %v835
    %v900 = vmul.f32 %v708, %v836
    %v901 = vmul.f32 %v709, %v837
    %v902 = vmul.f32 %v710, %v838
    %v903 = vmul.f32 %v711, %v839
    %v904 = vmul.f32 %v712, %v840
    %v905 = vmul.f32 %v713, %v841
    %v906 = vmul.f32 %v714, %v842
    %v907 = vmul.f32 %v715, %v843
    %v908 = vmul.f32 %v716, %v844
    %v909 = vmul.f32 %v717, %v845
    %v910 = vmul.f32 %v718, %v846
    %v911 = vmul.f32 %v719, %v847
    %v912 = vmul.f32 %v720, %v848
    %v913 = vmul.f32 %v721, %v849
    %v914 = vmul.f32 %v722, %v850
    %v915 = vmul.f32 %v723, %v851
    %v916 = vmul.f32 %v724, %v852
    %v917 = vmul.f32 %v725, %v853
    %v918 = vmul.f32 %v726, %v854
    %v919 = vmul.f32 %v727, %v855
    %v920 = vmul.f32 %v728, %v856
    %v921 = vmul.f32 %v729, %v857
    %v922 = vmul.f32 %v730, %v858
    %v923 = vmul.f32 %v731, %v859
    %v924 = vmul.f32 %v732, %v860
    %v925 = vmul.f32 %v733, %v861
    %v926 = vmul.f32 %v734, %v862
    %v927 = vmul.f32 %v735, %v863
    %v928 = vmul.f32 %v736, %v864
    %v929 = vmul.f32 %v737, %v865
    %v930 = vmul.f32 %v738, %v866
    %v931 = vmul.f32 %v739, %v867
    %v932 = vmul.f32 %v740, %v868
    %v933 = vld [vmem:[%s2] sm:$0x1]
    %v935 = vlaneseq
    %v936 = vshrl.u32 %v935, 7
    %v937 = vsub.s32 0, %v936
    %v938 = vrot.slane %v933, %v937
    %v940 = vmul.f32 %v869, %v938
    %v941 = vmul.f32 %v870, %v938
    %v942 = vmul.f32 %v871, %v938
    %v943 = vmul.f32 %v872, %v938
    %v944 = vmul.f32 %v873, %v938
    %v945 = vmul.f32 %v874, %v938
    %v946 = vmul.f32 %v875, %v938
    %v947 = vmul.f32 %v876, %v938
    %v948 = vmul.f32 %v877, %v938
    %v949 = vmul.f32 %v878, %v938
    %v950 = vmul.f32 %v879, %v938
    %v951 = vmul.f32 %v880, %v938
    %v952 = vmul.f32 %v881, %v938
    %v953 = vmul.f32 %v882, %v938
    %v954 = vmul.f32 %v883, %v938
    %v955 = vmul.f32 %v884, %v938
    %v956 = vmul.f32 %v885, %v938
    %v957 = vmul.f32 %v886, %v938
    %v958 = vmul.f32 %v887, %v938
    %v959 = vmul.f32 %v888, %v938
    %v960 = vmul.f32 %v889, %v938
    %v961 = vmul.f32 %v890, %v938
    %v962 = vmul.f32 %v891, %v938
    %v963 = vmul.f32 %v892, %v938
    %v964 = vmul.f32 %v893, %v938
    %v965 = vmul.f32 %v894, %v938
    %v966 = vmul.f32 %v895, %v938
    %v967 = vmul.f32 %v896, %v938
    %v968 = vmul.f32 %v897, %v938
    %v969 = vmul.f32 %v898, %v938
    %v970 = vmul.f32 %v899, %v938
    %v971 = vmul.f32 %v900, %v938
    %v972 = vmul.f32 %v901, %v938
    %v973 = vmul.f32 %v902, %v938
    %v974 = vmul.f32 %v903, %v938
    %v975 = vmul.f32 %v904, %v938
    %v976 = vmul.f32 %v905, %v938
    %v977 = vmul.f32 %v906, %v938
    %v978 = vmul.f32 %v907, %v938
    %v979 = vmul.f32 %v908, %v938
    %v980 = vmul.f32 %v909, %v938
    %v981 = vmul.f32 %v910, %v938
    %v982 = vmul.f32 %v911, %v938
    %v983 = vmul.f32 %v912, %v938
    %v984 = vmul.f32 %v913, %v938
    %v985 = vmul.f32 %v914, %v938
    %v986 = vmul.f32 %v915, %v938
    %v987 = vmul.f32 %v916, %v938
    %v988 = vmul.f32 %v917, %v938
    %v989 = vmul.f32 %v918, %v938
    %v990 = vmul.f32 %v919, %v938
    %v991 = vmul.f32 %v920, %v938
    %v992 = vmul.f32 %v921, %v938
    %v993 = vmul.f32 %v922, %v938
    %v994 = vmul.f32 %v923, %v938
    %v995 = vmul.f32 %v924, %v938
    %v996 = vmul.f32 %v925, %v938
    %v997 = vmul.f32 %v926, %v938
    %v998 = vmul.f32 %v927, %v938
    %v999 = vmul.f32 %v928, %v938
    %v1000 = vmul.f32 %v929, %v938
    %v1001 = vmul.f32 %v930, %v938
    %v1002 = vmul.f32 %v931, %v938
    %v1003 = vmul.f32 %v932, %v938
    %v1004 = vld [vmem:[%s3] sm:$0x1]
    %v1006 = vlaneseq
    %v1007 = vshrl.u32 %v1006, 7
    %v1008 = vsub.s32 0, %v1007
    %v1009 = vrot.slane %v1004, %v1008
    %v1011 = vadd.f32 %v940, %v1009
    %v1012 = vadd.f32 %v941, %v1009
    %v1013 = vadd.f32 %v942, %v1009
    %v1014 = vadd.f32 %v943, %v1009
    %v1015 = vadd.f32 %v944, %v1009
    %v1016 = vadd.f32 %v945, %v1009
    %v1017 = vadd.f32 %v946, %v1009
    %v1018 = vadd.f32 %v947, %v1009
    %v1019 = vadd.f32 %v948, %v1009
    %v1020 = vadd.f32 %v949, %v1009
    %v1021 = vadd.f32 %v950, %v1009
    %v1022 = vadd.f32 %v951, %v1009
    %v1023 = vadd.f32 %v952, %v1009
    %v1024 = vadd.f32 %v953, %v1009
    %v1025 = vadd.f32 %v954, %v1009
    %v1026 = vadd.f32 %v955, %v1009
    %v1027 = vadd.f32 %v956, %v1009
    %v1028 = vadd.f32 %v957, %v1009
    %v1029 = vadd.f32 %v958, %v1009
    %v1030 = vadd.f32 %v959, %v1009
    %v1031 = vadd.f32 %v960, %v1009
    %v1032 = vadd.f32 %v961, %v1009
    %v1033 = vadd.f32 %v962, %v1009
    %v1034 = vadd.f32 %v963, %v1009
    %v1035 = vadd.f32 %v964, %v1009
    %v1036 = vadd.f32 %v965, %v1009
    %v1037 = vadd.f32 %v966, %v1009
    %v1038 = vadd.f32 %v967, %v1009
    %v1039 = vadd.f32 %v968, %v1009
    %v1040 = vadd.f32 %v969, %v1009
    %v1041 = vadd.f32 %v970, %v1009
    %v1042 = vadd.f32 %v971, %v1009
    %v1043 = vadd.f32 %v972, %v1009
    %v1044 = vadd.f32 %v973, %v1009
    %v1045 = vadd.f32 %v974, %v1009
    %v1046 = vadd.f32 %v975, %v1009
    %v1047 = vadd.f32 %v976, %v1009
    %v1048 = vadd.f32 %v977, %v1009
    %v1049 = vadd.f32 %v978, %v1009
    %v1050 = vadd.f32 %v979, %v1009
    %v1051 = vadd.f32 %v980, %v1009
    %v1052 = vadd.f32 %v981, %v1009
    %v1053 = vadd.f32 %v982, %v1009
    %v1054 = vadd.f32 %v983, %v1009
    %v1055 = vadd.f32 %v984, %v1009
    %v1056 = vadd.f32 %v985, %v1009
    %v1057 = vadd.f32 %v986, %v1009
    %v1058 = vadd.f32 %v987, %v1009
    %v1059 = vadd.f32 %v988, %v1009
    %v1060 = vadd.f32 %v989, %v1009
    %v1061 = vadd.f32 %v990, %v1009
    %v1062 = vadd.f32 %v991, %v1009
    %v1063 = vadd.f32 %v992, %v1009
    %v1064 = vadd.f32 %v993, %v1009
    %v1065 = vadd.f32 %v994, %v1009
    %v1066 = vadd.f32 %v995, %v1009
    %v1067 = vadd.f32 %v996, %v1009
    %v1068 = vadd.f32 %v997, %v1009
    %v1069 = vadd.f32 %v998, %v1009
    %v1070 = vadd.f32 %v999, %v1009
    %v1071 = vadd.f32 %v1000, %v1009
    %v1072 = vadd.f32 %v1001, %v1009
    %v1073 = vadd.f32 %v1002, %v1009
    %v1074 = vadd.f32 %v1003, %v1009
    %v1075 = vadd.f32 %v37, %v1011
    %v1076 = vadd.f32 %v38, %v1012
    %v1077 = vadd.f32 %v39, %v1013
    %v1078 = vadd.f32 %v40, %v1014
    %v1079 = vadd.f32 %v41, %v1015
    %v1080 = vadd.f32 %v42, %v1016
    %v1081 = vadd.f32 %v43, %v1017
    %v1082 = vadd.f32 %v44, %v1018
    %v1083 = vadd.f32 %v45, %v1019
    %v1084 = vadd.f32 %v46, %v1020
    %v1085 = vadd.f32 %v47, %v1021
    %v1086 = vadd.f32 %v48, %v1022
    %v1087 = vadd.f32 %v49, %v1023
    %v1088 = vadd.f32 %v50, %v1024
    %v1089 = vadd.f32 %v51, %v1025
    %v1090 = vadd.f32 %v52, %v1026
    %v1091 = vadd.f32 %v53, %v1027
    %v1092 = vadd.f32 %v54, %v1028
    %v1093 = vadd.f32 %v55, %v1029
    %v1094 = vadd.f32 %v56, %v1030
    %v1095 = vadd.f32 %v57, %v1031
    %v1096 = vadd.f32 %v58, %v1032
    %v1097 = vadd.f32 %v59, %v1033
    %v1098 = vadd.f32 %v60, %v1034
    %v1099 = vadd.f32 %v61, %v1035
    %v1100 = vadd.f32 %v62, %v1036
    %v1101 = vadd.f32 %v63, %v1037
    %v1102 = vadd.f32 %v64, %v1038
    %v1103 = vadd.f32 %v65, %v1039
    %v1104 = vadd.f32 %v66, %v1040
    %v1105 = vadd.f32 %v67, %v1041
    %v1106 = vadd.f32 %v68, %v1042
    %v1107 = vadd.f32 %v69, %v1043
    %v1108 = vadd.f32 %v70, %v1044
    %v1109 = vadd.f32 %v71, %v1045
    %v1110 = vadd.f32 %v72, %v1046
    %v1111 = vadd.f32 %v73, %v1047
    %v1112 = vadd.f32 %v74, %v1048
    %v1113 = vadd.f32 %v75, %v1049
    %v1114 = vadd.f32 %v76, %v1050
    %v1115 = vadd.f32 %v77, %v1051
    %v1116 = vadd.f32 %v78, %v1052
    %v1117 = vadd.f32 %v79, %v1053
    %v1118 = vadd.f32 %v80, %v1054
    %v1119 = vadd.f32 %v81, %v1055
    %v1120 = vadd.f32 %v82, %v1056
    %v1121 = vadd.f32 %v83, %v1057
    %v1122 = vadd.f32 %v84, %v1058
    %v1123 = vadd.f32 %v85, %v1059
    %v1124 = vadd.f32 %v86, %v1060
    %v1125 = vadd.f32 %v87, %v1061
    %v1126 = vadd.f32 %v88, %v1062
    %v1127 = vadd.f32 %v89, %v1063
    %v1128 = vadd.f32 %v90, %v1064
    %v1129 = vadd.f32 %v91, %v1065
    %v1130 = vadd.f32 %v92, %v1066
    %v1131 = vadd.f32 %v93, %v1067
    %v1132 = vadd.f32 %v94, %v1068
    %v1133 = vadd.f32 %v95, %v1069
    %v1134 = vadd.f32 %v96, %v1070
    %v1135 = vadd.f32 %v97, %v1071
    %v1136 = vadd.f32 %v98, %v1072
    %v1137 = vadd.f32 %v99, %v1073
    %v1138 = vadd.f32 %v100, %v1074
    %v1139 = vld [vmem:[%s1] sm:$0xff]
    %v1140 = vld [vmem:[%s1 + $0x8] sm:$0xff]
    %v1141 = vld [vmem:[%s1 + $0x10] sm:$0xff]
    %v1142 = vld [vmem:[%s1 + $0x18] sm:$0xff]
    %v1143 = vld [vmem:[%s1 + $0x20] sm:$0xff]
    %v1144 = vld [vmem:[%s1 + $0x28] sm:$0xff]
    %v1145 = vld [vmem:[%s1 + $0x30] sm:$0xff]
    %v1146 = vld [vmem:[%s1 + $0x38] sm:$0xff]
    %v1147 = vld [vmem:[%s1 + $0x40] sm:$0xff]
    %v1148 = vld [vmem:[%s1 + $0x48] sm:$0xff]
    %v1149 = vld [vmem:[%s1 + $0x50] sm:$0xff]
    %v1150 = vld [vmem:[%s1 + $0x58] sm:$0xff]
    %v1151 = vld [vmem:[%s1 + $0x60] sm:$0xff]
    %v1152 = vld [vmem:[%s1 + $0x68] sm:$0xff]
    %v1153 = vld [vmem:[%s1 + $0x70] sm:$0xff]
    %v1154 = vld [vmem:[%s1 + $0x78] sm:$0xff]
    %v1155 = vld [vmem:[%s1 + $0x80] sm:$0xff]
    %v1156 = vld [vmem:[%s1 + $0x88] sm:$0xff]
    %v1157 = vld [vmem:[%s1 + $0x90] sm:$0xff]
    %v1158 = vld [vmem:[%s1 + $0x98] sm:$0xff]
    %v1159 = vld [vmem:[%s1 + $0xa0] sm:$0xff]
    %v1160 = vld [vmem:[%s1 + $0xa8] sm:$0xff]
    %v1161 = vld [vmem:[%s1 + $0xb0] sm:$0xff]
    %v1162 = vld [vmem:[%s1 + $0xb8] sm:$0xff]
    %v1163 = vld [vmem:[%s1 + $0xc0] sm:$0xff]
    %v1164 = vld [vmem:[%s1 + $0xc8] sm:$0xff]
    %v1165 = vld [vmem:[%s1 + $0xd0] sm:$0xff]
    %v1166 = vld [vmem:[%s1 + $0xd8] sm:$0xff]
    %v1167 = vld [vmem:[%s1 + $0xe0] sm:$0xff]
    %v1168 = vld [vmem:[%s1 + $0xe8] sm:$0xff]
    %v1169 = vld [vmem:[%s1 + $0xf0] sm:$0xff]
    %v1170 = vld [vmem:[%s1 + $0xf8] sm:$0xff]
    %v1171 = vld [vmem:[%s1 + $0x100] sm:$0xff]
    %v1172 = vld [vmem:[%s1 + $0x108] sm:$0xff]
    %v1173 = vld [vmem:[%s1 + $0x110] sm:$0xff]
    %v1174 = vld [vmem:[%s1 + $0x118] sm:$0xff]
    %v1175 = vld [vmem:[%s1 + $0x120] sm:$0xff]
    %v1176 = vld [vmem:[%s1 + $0x128] sm:$0xff]
    %v1177 = vld [vmem:[%s1 + $0x130] sm:$0xff]
    %v1178 = vld [vmem:[%s1 + $0x138] sm:$0xff]
    %v1179 = vld [vmem:[%s1 + $0x140] sm:$0xff]
    %v1180 = vld [vmem:[%s1 + $0x148] sm:$0xff]
    %v1181 = vld [vmem:[%s1 + $0x150] sm:$0xff]
    %v1182 = vld [vmem:[%s1 + $0x158] sm:$0xff]
    %v1183 = vld [vmem:[%s1 + $0x160] sm:$0xff]
    %v1184 = vld [vmem:[%s1 + $0x168] sm:$0xff]
    %v1185 = vld [vmem:[%s1 + $0x170] sm:$0xff]
    %v1186 = vld [vmem:[%s1 + $0x178] sm:$0xff]
    %v1187 = vld [vmem:[%s1 + $0x180] sm:$0xff]
    %v1188 = vld [vmem:[%s1 + $0x188] sm:$0xff]
    %v1189 = vld [vmem:[%s1 + $0x190] sm:$0xff]
    %v1190 = vld [vmem:[%s1 + $0x198] sm:$0xff]
    %v1191 = vld [vmem:[%s1 + $0x1a0] sm:$0xff]
    %v1192 = vld [vmem:[%s1 + $0x1a8] sm:$0xff]
    %v1193 = vld [vmem:[%s1 + $0x1b0] sm:$0xff]
    %v1194 = vld [vmem:[%s1 + $0x1b8] sm:$0xff]
    %v1195 = vld [vmem:[%s1 + $0x1c0] sm:$0xff]
    %v1196 = vld [vmem:[%s1 + $0x1c8] sm:$0xff]
    %v1197 = vld [vmem:[%s1 + $0x1d0] sm:$0xff]
    %v1198 = vld [vmem:[%s1 + $0x1d8] sm:$0xff]
    %v1199 = vld [vmem:[%s1 + $0x1e0] sm:$0xff]
    %v1200 = vld [vmem:[%s1 + $0x1e8] sm:$0xff]
    %v1201 = vld [vmem:[%s1 + $0x1f0] sm:$0xff]
    %v1202 = vld [vmem:[%s1 + $0x1f8] sm:$0xff]
    %v1203 = vadd.f32 %v1075, %v1139
    %v1204 = vadd.f32 %v1076, %v1140
    %v1205 = vadd.f32 %v1077, %v1141
    %v1206 = vadd.f32 %v1078, %v1142
    %v1207 = vadd.f32 %v1079, %v1143
    %v1208 = vadd.f32 %v1080, %v1144
    %v1209 = vadd.f32 %v1081, %v1145
    %v1210 = vadd.f32 %v1082, %v1146
    %v1211 = vadd.f32 %v1083, %v1147
    %v1212 = vadd.f32 %v1084, %v1148
    %v1213 = vadd.f32 %v1085, %v1149
    %v1214 = vadd.f32 %v1086, %v1150
    %v1215 = vadd.f32 %v1087, %v1151
    %v1216 = vadd.f32 %v1088, %v1152
    %v1217 = vadd.f32 %v1089, %v1153
    %v1218 = vadd.f32 %v1090, %v1154
    %v1219 = vadd.f32 %v1091, %v1155
    %v1220 = vadd.f32 %v1092, %v1156
    %v1221 = vadd.f32 %v1093, %v1157
    %v1222 = vadd.f32 %v1094, %v1158
    %v1223 = vadd.f32 %v1095, %v1159
    %v1224 = vadd.f32 %v1096, %v1160
    %v1225 = vadd.f32 %v1097, %v1161
    %v1226 = vadd.f32 %v1098, %v1162
    %v1227 = vadd.f32 %v1099, %v1163
    %v1228 = vadd.f32 %v1100, %v1164
    %v1229 = vadd.f32 %v1101, %v1165
    %v1230 = vadd.f32 %v1102, %v1166
    %v1231 = vadd.f32 %v1103, %v1167
    %v1232 = vadd.f32 %v1104, %v1168
    %v1233 = vadd.f32 %v1105, %v1169
    %v1234 = vadd.f32 %v1106, %v1170
    %v1235 = vadd.f32 %v1107, %v1171
    %v1236 = vadd.f32 %v1108, %v1172
    %v1237 = vadd.f32 %v1109, %v1173
    %v1238 = vadd.f32 %v1110, %v1174
    %v1239 = vadd.f32 %v1111, %v1175
    %v1240 = vadd.f32 %v1112, %v1176
    %v1241 = vadd.f32 %v1113, %v1177
    %v1242 = vadd.f32 %v1114, %v1178
    %v1243 = vadd.f32 %v1115, %v1179
    %v1244 = vadd.f32 %v1116, %v1180
    %v1245 = vadd.f32 %v1117, %v1181
    %v1246 = vadd.f32 %v1118, %v1182
    %v1247 = vadd.f32 %v1119, %v1183
    %v1248 = vadd.f32 %v1120, %v1184
    %v1249 = vadd.f32 %v1121, %v1185
    %v1250 = vadd.f32 %v1122, %v1186
    %v1251 = vadd.f32 %v1123, %v1187
    %v1252 = vadd.f32 %v1124, %v1188
    %v1253 = vadd.f32 %v1125, %v1189
    %v1254 = vadd.f32 %v1126, %v1190
    %v1255 = vadd.f32 %v1127, %v1191
    %v1256 = vadd.f32 %v1128, %v1192
    %v1257 = vadd.f32 %v1129, %v1193
    %v1258 = vadd.f32 %v1130, %v1194
    %v1259 = vadd.f32 %v1131, %v1195
    %v1260 = vadd.f32 %v1132, %v1196
    %v1261 = vadd.f32 %v1133, %v1197
    %v1262 = vadd.f32 %v1134, %v1198
    %v1263 = vadd.f32 %v1135, %v1199
    %v1264 = vadd.f32 %v1136, %v1200
    %v1265 = vadd.f32 %v1137, %v1201
    %v1266 = vadd.f32 %v1138, %v1202
    %1267 = vadd.xlane.f32.xlu0 %v1203
    %v1268 = vpop.xlane.xlu0 %1267
    %1269 = vadd.xlane.f32.xlu0 %v1204
    %v1270 = vpop.xlane.xlu0 %1269
    %1271 = vadd.xlane.f32.xlu0 %v1205
    %v1272 = vpop.xlane.xlu0 %1271
    %1273 = vadd.xlane.f32.xlu0 %v1206
    %v1274 = vpop.xlane.xlu0 %1273
    %1275 = vadd.xlane.f32.xlu0 %v1207
    %v1276 = vpop.xlane.xlu0 %1275
    %1277 = vadd.xlane.f32.xlu0 %v1208
    %v1278 = vpop.xlane.xlu0 %1277
    %1279 = vadd.xlane.f32.xlu0 %v1209
    %v1280 = vpop.xlane.xlu0 %1279
    %1281 = vadd.xlane.f32.xlu0 %v1210
    %v1282 = vpop.xlane.xlu0 %1281
    %1283 = vadd.xlane.f32.xlu0 %v1211
    %v1284 = vpop.xlane.xlu0 %1283
    %1285 = vadd.xlane.f32.xlu0 %v1212
    %v1286 = vpop.xlane.xlu0 %1285
    %1287 = vadd.xlane.f32.xlu0 %v1213
    %v1288 = vpop.xlane.xlu0 %1287
    %1289 = vadd.xlane.f32.xlu0 %v1214
    %v1290 = vpop.xlane.xlu0 %1289
    %1291 = vadd.xlane.f32.xlu0 %v1215
    %v1292 = vpop.xlane.xlu0 %1291
    %1293 = vadd.xlane.f32.xlu0 %v1216
    %v1294 = vpop.xlane.xlu0 %1293
    %1295 = vadd.xlane.f32.xlu0 %v1217
    %v1296 = vpop.xlane.xlu0 %1295
    %1297 = vadd.xlane.f32.xlu0 %v1218
    %v1298 = vpop.xlane.xlu0 %1297
    %1299 = vadd.xlane.f32.xlu0 %v1219
    %v1300 = vpop.xlane.xlu0 %1299
    %1301 = vadd.xlane.f32.xlu0 %v1220
    %v1302 = vpop.xlane.xlu0 %1301
    %1303 = vadd.xlane.f32.xlu0 %v1221
    %v1304 = vpop.xlane.xlu0 %1303
    %1305 = vadd.xlane.f32.xlu0 %v1222
    %v1306 = vpop.xlane.xlu0 %1305
    %1307 = vadd.xlane.f32.xlu0 %v1223
    %v1308 = vpop.xlane.xlu0 %1307
    %1309 = vadd.xlane.f32.xlu0 %v1224
    %v1310 = vpop.xlane.xlu0 %1309
    %1311 = vadd.xlane.f32.xlu0 %v1225
    %v1312 = vpop.xlane.xlu0 %1311
    %1313 = vadd.xlane.f32.xlu0 %v1226
    %v1314 = vpop.xlane.xlu0 %1313
    %1315 = vadd.xlane.f32.xlu0 %v1227
    %v1316 = vpop.xlane.xlu0 %1315
    %1317 = vadd.xlane.f32.xlu0 %v1228
    %v1318 = vpop.xlane.xlu0 %1317
    %1319 = vadd.xlane.f32.xlu0 %v1229
    %v1320 = vpop.xlane.xlu0 %1319
    %1321 = vadd.xlane.f32.xlu0 %v1230
    %v1322 = vpop.xlane.xlu0 %1321
    %1323 = vadd.xlane.f32.xlu0 %v1231
    %v1324 = vpop.xlane.xlu0 %1323
    %1325 = vadd.xlane.f32.xlu0 %v1232
    %v1326 = vpop.xlane.xlu0 %1325
    %1327 = vadd.xlane.f32.xlu0 %v1233
    %v1328 = vpop.xlane.xlu0 %1327
    %1329 = vadd.xlane.f32.xlu0 %v1234
    %v1330 = vpop.xlane.xlu0 %1329
    %1331 = vadd.xlane.f32.xlu0 %v1235
    %v1332 = vpop.xlane.xlu0 %1331
    %1333 = vadd.xlane.f32.xlu0 %v1236
    %v1334 = vpop.xlane.xlu0 %1333
    %1335 = vadd.xlane.f32.xlu0 %v1237
    %v1336 = vpop.xlane.xlu0 %1335
    %1337 = vadd.xlane.f32.xlu0 %v1238
    %v1338 = vpop.xlane.xlu0 %1337
    %1339 = vadd.xlane.f32.xlu0 %v1239
    %v1340 = vpop.xlane.xlu0 %1339
    %1341 = vadd.xlane.f32.xlu0 %v1240
    %v1342 = vpop.xlane.xlu0 %1341
    %1343 = vadd.xlane.f32.xlu0 %v1241
    %v1344 = vpop.xlane.xlu0 %1343
    %1345 = vadd.xlane.f32.xlu0 %v1242
    %v1346 = vpop.xlane.xlu0 %1345
    %1347 = vadd.xlane.f32.xlu0 %v1243
    %v1348 = vpop.xlane.xlu0 %1347
    %1349 = vadd.xlane.f32.xlu0 %v1244
    %v1350 = vpop.xlane.xlu0 %1349
    %1351 = vadd.xlane.f32.xlu0 %v1245
    %v1352 = vpop.xlane.xlu0 %1351
    %1353 = vadd.xlane.f32.xlu0 %v1246
    %v1354 = vpop.xlane.xlu0 %1353
    %1355 = vadd.xlane.f32.xlu0 %v1247
    %v1356 = vpop.xlane.xlu0 %1355
    %1357 = vadd.xlane.f32.xlu0 %v1248
    %v1358 = vpop.xlane.xlu0 %1357
    %1359 = vadd.xlane.f32.xlu0 %v1249
    %v1360 = vpop.xlane.xlu0 %1359
    %1361 = vadd.xlane.f32.xlu0 %v1250
    %v1362 = vpop.xlane.xlu0 %1361
    %1363 = vadd.xlane.f32.xlu0 %v1251
    %v1364 = vpop.xlane.xlu0 %1363
    %1365 = vadd.xlane.f32.xlu0 %v1252
    %v1366 = vpop.xlane.xlu0 %1365
    %1367 = vadd.xlane.f32.xlu0 %v1253
    %v1368 = vpop.xlane.xlu0 %1367
    %1369 = vadd.xlane.f32.xlu0 %v1254
    %v1370 = vpop.xlane.xlu0 %1369
    %1371 = vadd.xlane.f32.xlu0 %v1255
    %v1372 = vpop.xlane.xlu0 %1371
    %1373 = vadd.xlane.f32.xlu0 %v1256
    %v1374 = vpop.xlane.xlu0 %1373
    %1375 = vadd.xlane.f32.xlu0 %v1257
    %v1376 = vpop.xlane.xlu0 %1375
    %1377 = vadd.xlane.f32.xlu0 %v1258
    %v1378 = vpop.xlane.xlu0 %1377
    %1379 = vadd.xlane.f32.xlu0 %v1259
    %v1380 = vpop.xlane.xlu0 %1379
    %1381 = vadd.xlane.f32.xlu0 %v1260
    %v1382 = vpop.xlane.xlu0 %1381
    %1383 = vadd.xlane.f32.xlu0 %v1261
    %v1384 = vpop.xlane.xlu0 %1383
    %1385 = vadd.xlane.f32.xlu0 %v1262
    %v1386 = vpop.xlane.xlu0 %1385
    %1387 = vadd.xlane.f32.xlu0 %v1263
    %v1388 = vpop.xlane.xlu0 %1387
    %1389 = vadd.xlane.f32.xlu0 %v1264
    %v1390 = vpop.xlane.xlu0 %1389
    %1391 = vadd.xlane.f32.xlu0 %v1265
    %v1392 = vpop.xlane.xlu0 %1391
    %1393 = vadd.xlane.f32.xlu0 %v1266
    %v1394 = vpop.xlane.xlu0 %1393
    %v1395 = vmul.f32 %v1268, 0.03125
    %v1396 = vmul.f32 %v1270, 0.03125
    %v1397 = vmul.f32 %v1272, 0.03125
    %v1398 = vmul.f32 %v1274, 0.03125
    %v1399 = vmul.f32 %v1276, 0.03125
    %v1400 = vmul.f32 %v1278, 0.03125
    %v1401 = vmul.f32 %v1280, 0.03125
    %v1402 = vmul.f32 %v1282, 0.03125
    %v1403 = vmul.f32 %v1284, 0.03125
    %v1404 = vmul.f32 %v1286, 0.03125
    %v1405 = vmul.f32 %v1288, 0.03125
    %v1406 = vmul.f32 %v1290, 0.03125
    %v1407 = vmul.f32 %v1292, 0.03125
    %v1408 = vmul.f32 %v1294, 0.03125
    %v1409 = vmul.f32 %v1296, 0.03125
    %v1410 = vmul.f32 %v1298, 0.03125
    %v1411 = vmul.f32 %v1300, 0.03125
    %v1412 = vmul.f32 %v1302, 0.03125
    %v1413 = vmul.f32 %v1304, 0.03125
    %v1414 = vmul.f32 %v1306, 0.03125
    %v1415 = vmul.f32 %v1308, 0.03125
    %v1416 = vmul.f32 %v1310, 0.03125
    %v1417 = vmul.f32 %v1312, 0.03125
    %v1418 = vmul.f32 %v1314, 0.03125
    %v1419 = vmul.f32 %v1316, 0.03125
    %v1420 = vmul.f32 %v1318, 0.03125
    %v1421 = vmul.f32 %v1320, 0.03125
    %v1422 = vmul.f32 %v1322, 0.03125
    %v1423 = vmul.f32 %v1324, 0.03125
    %v1424 = vmul.f32 %v1326, 0.03125
    %v1425 = vmul.f32 %v1328, 0.03125
    %v1426 = vmul.f32 %v1330, 0.03125
    %v1427 = vmul.f32 %v1332, 0.03125
    %v1428 = vmul.f32 %v1334, 0.03125
    %v1429 = vmul.f32 %v1336, 0.03125
    %v1430 = vmul.f32 %v1338, 0.03125
    %v1431 = vmul.f32 %v1340, 0.03125
    %v1432 = vmul.f32 %v1342, 0.03125
    %v1433 = vmul.f32 %v1344, 0.03125
    %v1434 = vmul.f32 %v1346, 0.03125
    %v1435 = vmul.f32 %v1348, 0.03125
    %v1436 = vmul.f32 %v1350, 0.03125
    %v1437 = vmul.f32 %v1352, 0.03125
    %v1438 = vmul.f32 %v1354, 0.03125
    %v1439 = vmul.f32 %v1356, 0.03125
    %v1440 = vmul.f32 %v1358, 0.03125
    %v1441 = vmul.f32 %v1360, 0.03125
    %v1442 = vmul.f32 %v1362, 0.03125
    %v1443 = vmul.f32 %v1364, 0.03125
    %v1444 = vmul.f32 %v1366, 0.03125
    %v1445 = vmul.f32 %v1368, 0.03125
    %v1446 = vmul.f32 %v1370, 0.03125
    %v1447 = vmul.f32 %v1372, 0.03125
    %v1448 = vmul.f32 %v1374, 0.03125
    %v1449 = vmul.f32 %v1376, 0.03125
    %v1450 = vmul.f32 %v1378, 0.03125
    %v1451 = vmul.f32 %v1380, 0.03125
    %v1452 = vmul.f32 %v1382, 0.03125
    %v1453 = vmul.f32 %v1384, 0.03125
    %v1454 = vmul.f32 %v1386, 0.03125
    %v1455 = vmul.f32 %v1388, 0.03125
    %v1456 = vmul.f32 %v1390, 0.03125
    %v1457 = vmul.f32 %v1392, 0.03125
    %v1458 = vmul.f32 %v1394, 0.03125
    %v1459 = vmul.f32 %v1203, %v1203
    %v1460 = vmul.f32 %v1204, %v1204
    %v1461 = vmul.f32 %v1205, %v1205
    %v1462 = vmul.f32 %v1206, %v1206
    %v1463 = vmul.f32 %v1207, %v1207
    %v1464 = vmul.f32 %v1208, %v1208
    %v1465 = vmul.f32 %v1209, %v1209
    %v1466 = vmul.f32 %v1210, %v1210
    %v1467 = vmul.f32 %v1211, %v1211
    %v1468 = vmul.f32 %v1212, %v1212
    %v1469 = vmul.f32 %v1213, %v1213
    %v1470 = vmul.f32 %v1214, %v1214
    %v1471 = vmul.f32 %v1215, %v1215
    %v1472 = vmul.f32 %v1216, %v1216
    %v1473 = vmul.f32 %v1217, %v1217
    %v1474 = vmul.f32 %v1218, %v1218
    %v1475 = vmul.f32 %v1219, %v1219
    %v1476 = vmul.f32 %v1220, %v1220
    %v1477 = vmul.f32 %v1221, %v1221
    %v1478 = vmul.f32 %v1222, %v1222
    %v1479 = vmul.f32 %v1223, %v1223
    %v1480 = vmul.f32 %v1224, %v1224
    %v1481 = vmul.f32 %v1225, %v1225
    %v1482 = vmul.f32 %v1226, %v1226
    %v1483 = vmul.f32 %v1227, %v1227
    %v1484 = vmul.f32 %v1228, %v1228
    %v1485 = vmul.f32 %v1229, %v1229
    %v1486 = vmul.f32 %v1230, %v1230
    %v1487 = vmul.f32 %v1231, %v1231
    %v1488 = vmul.f32 %v1232, %v1232
    %v1489 = vmul.f32 %v1233, %v1233
    %v1490 = vmul.f32 %v1234, %v1234
    %v1491 = vmul.f32 %v1235, %v1235
    %v1492 = vmul.f32 %v1236, %v1236
    %v1493 = vmul.f32 %v1237, %v1237
    %v1494 = vmul.f32 %v1238, %v1238
    %v1495 = vmul.f32 %v1239, %v1239
    %v1496 = vmul.f32 %v1240, %v1240
    %v1497 = vmul.f32 %v1241, %v1241
    %v1498 = vmul.f32 %v1242, %v1242
    %v1499 = vmul.f32 %v1243, %v1243
    %v1500 = vmul.f32 %v1244, %v1244
    %v1501 = vmul.f32 %v1245, %v1245
    %v1502 = vmul.f32 %v1246, %v1246
    %v1503 = vmul.f32 %v1247, %v1247
    %v1504 = vmul.f32 %v1248, %v1248
    %v1505 = vmul.f32 %v1249, %v1249
    %v1506 = vmul.f32 %v1250, %v1250
    %v1507 = vmul.f32 %v1251, %v1251
    %v1508 = vmul.f32 %v1252, %v1252
    %v1509 = vmul.f32 %v1253, %v1253
    %v1510 = vmul.f32 %v1254, %v1254
    %v1511 = vmul.f32 %v1255, %v1255
    %v1512 = vmul.f32 %v1256, %v1256
    %v1513 = vmul.f32 %v1257, %v1257
    %v1514 = vmul.f32 %v1258, %v1258
    %v1515 = vmul.f32 %v1259, %v1259
    %v1516 = vmul.f32 %v1260, %v1260
    %v1517 = vmul.f32 %v1261, %v1261
    %v1518 = vmul.f32 %v1262, %v1262
    %v1519 = vmul.f32 %v1263, %v1263
    %v1520 = vmul.f32 %v1264, %v1264
    %v1521 = vmul.f32 %v1265, %v1265
    %v1522 = vmul.f32 %v1266, %v1266
    %1523 = vadd.xlane.f32.xlu0 %v1459
    %v1524 = vpop.xlane.xlu0 %1523
    %1525 = vadd.xlane.f32.xlu0 %v1460
    %v1526 = vpop.xlane.xlu0 %1525
    %1527 = vadd.xlane.f32.xlu0 %v1461
    %v1528 = vpop.xlane.xlu0 %1527
    %1529 = vadd.xlane.f32.xlu0 %v1462
    %v1530 = vpop.xlane.xlu0 %1529
    %1531 = vadd.xlane.f32.xlu0 %v1463
    %v1532 = vpop.xlane.xlu0 %1531
    %1533 = vadd.xlane.f32.xlu0 %v1464
    %v1534 = vpop.xlane.xlu0 %1533
    %1535 = vadd.xlane.f32.xlu0 %v1465
    %v1536 = vpop.xlane.xlu0 %1535
    %1537 = vadd.xlane.f32.xlu0 %v1466
    %v1538 = vpop.xlane.xlu0 %1537
    %1539 = vadd.xlane.f32.xlu0 %v1467
    %v1540 = vpop.xlane.xlu0 %1539
    %1541 = vadd.xlane.f32.xlu0 %v1468
    %v1542 = vpop.xlane.xlu0 %1541
    %1543 = vadd.xlane.f32.xlu0 %v1469
    %v1544 = vpop.xlane.xlu0 %1543
    %1545 = vadd.xlane.f32.xlu0 %v1470
    %v1546 = vpop.xlane.xlu0 %1545
    %1547 = vadd.xlane.f32.xlu0 %v1471
    %v1548 = vpop.xlane.xlu0 %1547
    %1549 = vadd.xlane.f32.xlu0 %v1472
    %v1550 = vpop.xlane.xlu0 %1549
    %1551 = vadd.xlane.f32.xlu0 %v1473
    %v1552 = vpop.xlane.xlu0 %1551
    %1553 = vadd.xlane.f32.xlu0 %v1474
    %v1554 = vpop.xlane.xlu0 %1553
    %1555 = vadd.xlane.f32.xlu0 %v1475
    %v1556 = vpop.xlane.xlu0 %1555
    %1557 = vadd.xlane.f32.xlu0 %v1476
    %v1558 = vpop.xlane.xlu0 %1557
    %1559 = vadd.xlane.f32.xlu0 %v1477
    %v1560 = vpop.xlane.xlu0 %1559
    %1561 = vadd.xlane.f32.xlu0 %v1478
    %v1562 = vpop.xlane.xlu0 %1561
    %1563 = vadd.xlane.f32.xlu0 %v1479
    %v1564 = vpop.xlane.xlu0 %1563
    %1565 = vadd.xlane.f32.xlu0 %v1480
    %v1566 = vpop.xlane.xlu0 %1565
    %1567 = vadd.xlane.f32.xlu0 %v1481
    %v1568 = vpop.xlane.xlu0 %1567
    %1569 = vadd.xlane.f32.xlu0 %v1482
    %v1570 = vpop.xlane.xlu0 %1569
    %1571 = vadd.xlane.f32.xlu0 %v1483
    %v1572 = vpop.xlane.xlu0 %1571
    %1573 = vadd.xlane.f32.xlu0 %v1484
    %v1574 = vpop.xlane.xlu0 %1573
    %1575 = vadd.xlane.f32.xlu0 %v1485
    %v1576 = vpop.xlane.xlu0 %1575
    %1577 = vadd.xlane.f32.xlu0 %v1486
    %v1578 = vpop.xlane.xlu0 %1577
    %1579 = vadd.xlane.f32.xlu0 %v1487
    %v1580 = vpop.xlane.xlu0 %1579
    %1581 = vadd.xlane.f32.xlu0 %v1488
    %v1582 = vpop.xlane.xlu0 %1581
    %1583 = vadd.xlane.f32.xlu0 %v1489
    %v1584 = vpop.xlane.xlu0 %1583
    %1585 = vadd.xlane.f32.xlu0 %v1490
    %v1586 = vpop.xlane.xlu0 %1585
    %1587 = vadd.xlane.f32.xlu0 %v1491
    %v1588 = vpop.xlane.xlu0 %1587
    %1589 = vadd.xlane.f32.xlu0 %v1492
    %v1590 = vpop.xlane.xlu0 %1589
    %1591 = vadd.xlane.f32.xlu0 %v1493
    %v1592 = vpop.xlane.xlu0 %1591
    %1593 = vadd.xlane.f32.xlu0 %v1494
    %v1594 = vpop.xlane.xlu0 %1593
    %1595 = vadd.xlane.f32.xlu0 %v1495
    %v1596 = vpop.xlane.xlu0 %1595
    %1597 = vadd.xlane.f32.xlu0 %v1496
    %v1598 = vpop.xlane.xlu0 %1597
    %1599 = vadd.xlane.f32.xlu0 %v1497
    %v1600 = vpop.xlane.xlu0 %1599
    %1601 = vadd.xlane.f32.xlu0 %v1498
    %v1602 = vpop.xlane.xlu0 %1601
    %1603 = vadd.xlane.f32.xlu0 %v1499
    %v1604 = vpop.xlane.xlu0 %1603
    %1605 = vadd.xlane.f32.xlu0 %v1500
    %v1606 = vpop.xlane.xlu0 %1605
    %1607 = vadd.xlane.f32.xlu0 %v1501
    %v1608 = vpop.xlane.xlu0 %1607
    %1609 = vadd.xlane.f32.xlu0 %v1502
    %v1610 = vpop.xlane.xlu0 %1609
    %1611 = vadd.xlane.f32.xlu0 %v1503
    %v1612 = vpop.xlane.xlu0 %1611
    %1613 = vadd.xlane.f32.xlu0 %v1504
    %v1614 = vpop.xlane.xlu0 %1613
    %1615 = vadd.xlane.f32.xlu0 %v1505
    %v1616 = vpop.xlane.xlu0 %1615
    %1617 = vadd.xlane.f32.xlu0 %v1506
    %v1618 = vpop.xlane.xlu0 %1617
    %1619 = vadd.xlane.f32.xlu0 %v1507
    %v1620 = vpop.xlane.xlu0 %1619
    %1621 = vadd.xlane.f32.xlu0 %v1508
    %v1622 = vpop.xlane.xlu0 %1621
    %1623 = vadd.xlane.f32.xlu0 %v1509
    %v1624 = vpop.xlane.xlu0 %1623
    %1625 = vadd.xlane.f32.xlu0 %v1510
    %v1626 = vpop.xlane.xlu0 %1625
    %1627 = vadd.xlane.f32.xlu0 %v1511
    %v1628 = vpop.xlane.xlu0 %1627
    %1629 = vadd.xlane.f32.xlu0 %v1512
    %v1630 = vpop.xlane.xlu0 %1629
    %1631 = vadd.xlane.f32.xlu0 %v1513
    %v1632 = vpop.xlane.xlu0 %1631
    %1633 = vadd.xlane.f32.xlu0 %v1514
    %v1634 = vpop.xlane.xlu0 %1633
    %1635 = vadd.xlane.f32.xlu0 %v1515
    %v1636 = vpop.xlane.xlu0 %1635
    %1637 = vadd.xlane.f32.xlu0 %v1516
    %v1638 = vpop.xlane.xlu0 %1637
    %1639 = vadd.xlane.f32.xlu0 %v1517
    %v1640 = vpop.xlane.xlu0 %1639
    %1641 = vadd.xlane.f32.xlu0 %v1518
    %v1642 = vpop.xlane.xlu0 %1641
    %1643 = vadd.xlane.f32.xlu0 %v1519
    %v1644 = vpop.xlane.xlu0 %1643
    %1645 = vadd.xlane.f32.xlu0 %v1520
    %v1646 = vpop.xlane.xlu0 %1645
    %1647 = vadd.xlane.f32.xlu0 %v1521
    %v1648 = vpop.xlane.xlu0 %1647
    %1649 = vadd.xlane.f32.xlu0 %v1522
    %v1650 = vpop.xlane.xlu0 %1649
    %v1651 = vmul.f32 %v1524, 0.03125
    %v1652 = vmul.f32 %v1526, 0.03125
    %v1653 = vmul.f32 %v1528, 0.03125
    %v1654 = vmul.f32 %v1530, 0.03125
    %v1655 = vmul.f32 %v1532, 0.03125
    %v1656 = vmul.f32 %v1534, 0.03125
    %v1657 = vmul.f32 %v1536, 0.03125
    %v1658 = vmul.f32 %v1538, 0.03125
    %v1659 = vmul.f32 %v1540, 0.03125
    %v1660 = vmul.f32 %v1542, 0.03125
    %v1661 = vmul.f32 %v1544, 0.03125
    %v1662 = vmul.f32 %v1546, 0.03125
    %v1663 = vmul.f32 %v1548, 0.03125
    %v1664 = vmul.f32 %v1550, 0.03125
    %v1665 = vmul.f32 %v1552, 0.03125
    %v1666 = vmul.f32 %v1554, 0.03125
    %v1667 = vmul.f32 %v1556, 0.03125
    %v1668 = vmul.f32 %v1558, 0.03125
    %v1669 = vmul.f32 %v1560, 0.03125
    %v1670 = vmul.f32 %v1562, 0.03125
    %v1671 = vmul.f32 %v1564, 0.03125
    %v1672 = vmul.f32 %v1566, 0.03125
    %v1673 = vmul.f32 %v1568, 0.03125
    %v1674 = vmul.f32 %v1570, 0.03125
    %v1675 = vmul.f32 %v1572, 0.03125
    %v1676 = vmul.f32 %v1574, 0.03125
    %v1677 = vmul.f32 %v1576, 0.03125
    %v1678 = vmul.f32 %v1578, 0.03125
    %v1679 = vmul.f32 %v1580, 0.03125
    %v1680 = vmul.f32 %v1582, 0.03125
    %v1681 = vmul.f32 %v1584, 0.03125
    %v1682 = vmul.f32 %v1586, 0.03125
    %v1683 = vmul.f32 %v1588, 0.03125
    %v1684 = vmul.f32 %v1590, 0.03125
    %v1685 = vmul.f32 %v1592, 0.03125
    %v1686 = vmul.f32 %v1594, 0.03125
    %v1687 = vmul.f32 %v1596, 0.03125
    %v1688 = vmul.f32 %v1598, 0.03125
    %v1689 = vmul.f32 %v1600, 0.03125
    %v1690 = vmul.f32 %v1602, 0.03125
    %v1691 = vmul.f32 %v1604, 0.03125
    %v1692 = vmul.f32 %v1606, 0.03125
    %v1693 = vmul.f32 %v1608, 0.03125
    %v1694 = vmul.f32 %v1610, 0.03125
    %v1695 = vmul.f32 %v1612, 0.03125
    %v1696 = vmul.f32 %v1614, 0.03125
    %v1697 = vmul.f32 %v1616, 0.03125
    %v1698 = vmul.f32 %v1618, 0.03125
    %v1699 = vmul.f32 %v1620, 0.03125
    %v1700 = vmul.f32 %v1622, 0.03125
    %v1701 = vmul.f32 %v1624, 0.03125
    %v1702 = vmul.f32 %v1626, 0.03125
    %v1703 = vmul.f32 %v1628, 0.03125
    %v1704 = vmul.f32 %v1630, 0.03125
    %v1705 = vmul.f32 %v1632, 0.03125
    %v1706 = vmul.f32 %v1634, 0.03125
    %v1707 = vmul.f32 %v1636, 0.03125
    %v1708 = vmul.f32 %v1638, 0.03125
    %v1709 = vmul.f32 %v1640, 0.03125
    %v1710 = vmul.f32 %v1642, 0.03125
    %v1711 = vmul.f32 %v1644, 0.03125
    %v1712 = vmul.f32 %v1646, 0.03125
    %v1713 = vmul.f32 %v1648, 0.03125
    %v1714 = vmul.f32 %v1650, 0.03125
    %v1715 = vmul.f32 %v1395, %v1395
    %v1716 = vmul.f32 %v1396, %v1396
    %v1717 = vmul.f32 %v1397, %v1397
    %v1718 = vmul.f32 %v1398, %v1398
    %v1719 = vmul.f32 %v1399, %v1399
    %v1720 = vmul.f32 %v1400, %v1400
    %v1721 = vmul.f32 %v1401, %v1401
    %v1722 = vmul.f32 %v1402, %v1402
    %v1723 = vmul.f32 %v1403, %v1403
    %v1724 = vmul.f32 %v1404, %v1404
    %v1725 = vmul.f32 %v1405, %v1405
    %v1726 = vmul.f32 %v1406, %v1406
    %v1727 = vmul.f32 %v1407, %v1407
    %v1728 = vmul.f32 %v1408, %v1408
    %v1729 = vmul.f32 %v1409, %v1409
    %v1730 = vmul.f32 %v1410, %v1410
    %v1731 = vmul.f32 %v1411, %v1411
    %v1732 = vmul.f32 %v1412, %v1412
    %v1733 = vmul.f32 %v1413, %v1413
    %v1734 = vmul.f32 %v1414, %v1414
    %v1735 = vmul.f32 %v1415, %v1415
    %v1736 = vmul.f32 %v1416, %v1416
    %v1737 = vmul.f32 %v1417, %v1417
    %v1738 = vmul.f32 %v1418, %v1418
    %v1739 = vmul.f32 %v1419, %v1419
    %v1740 = vmul.f32 %v1420, %v1420
    %v1741 = vmul.f32 %v1421, %v1421
    %v1742 = vmul.f32 %v1422, %v1422
    %v1743 = vmul.f32 %v1423, %v1423
    %v1744 = vmul.f32 %v1424, %v1424
    %v1745 = vmul.f32 %v1425, %v1425
    %v1746 = vmul.f32 %v1426, %v1426
    %v1747 = vmul.f32 %v1427, %v1427
    %v1748 = vmul.f32 %v1428, %v1428
    %v1749 = vmul.f32 %v1429, %v1429
    %v1750 = vmul.f32 %v1430, %v1430
    %v1751 = vmul.f32 %v1431, %v1431
    %v1752 = vmul.f32 %v1432, %v1432
    %v1753 = vmul.f32 %v1433, %v1433
    %v1754 = vmul.f32 %v1434, %v1434
    %v1755 = vmul.f32 %v1435, %v1435
    %v1756 = vmul.f32 %v1436, %v1436
    %v1757 = vmul.f32 %v1437, %v1437
    %v1758 = vmul.f32 %v1438, %v1438
    %v1759 = vmul.f32 %v1439, %v1439
    %v1760 = vmul.f32 %v1440, %v1440
    %v1761 = vmul.f32 %v1441, %v1441
    %v1762 = vmul.f32 %v1442, %v1442
    %v1763 = vmul.f32 %v1443, %v1443
    %v1764 = vmul.f32 %v1444, %v1444
    %v1765 = vmul.f32 %v1445, %v1445
    %v1766 = vmul.f32 %v1446, %v1446
    %v1767 = vmul.f32 %v1447, %v1447
    %v1768 = vmul.f32 %v1448, %v1448
    %v1769 = vmul.f32 %v1449, %v1449
    %v1770 = vmul.f32 %v1450, %v1450
    %v1771 = vmul.f32 %v1451, %v1451
    %v1772 = vmul.f32 %v1452, %v1452
    %v1773 = vmul.f32 %v1453, %v1453
    %v1774 = vmul.f32 %v1454, %v1454
    %v1775 = vmul.f32 %v1455, %v1455
    %v1776 = vmul.f32 %v1456, %v1456
    %v1777 = vmul.f32 %v1457, %v1457
    %v1778 = vmul.f32 %v1458, %v1458
    %v1779 = vsub.f32 %v1651, %v1715
    %v1780 = vsub.f32 %v1652, %v1716
    %v1781 = vsub.f32 %v1653, %v1717
    %v1782 = vsub.f32 %v1654, %v1718
    %v1783 = vsub.f32 %v1655, %v1719
    %v1784 = vsub.f32 %v1656, %v1720
    %v1785 = vsub.f32 %v1657, %v1721
    %v1786 = vsub.f32 %v1658, %v1722
    %v1787 = vsub.f32 %v1659, %v1723
    %v1788 = vsub.f32 %v1660, %v1724
    %v1789 = vsub.f32 %v1661, %v1725
    %v1790 = vsub.f32 %v1662, %v1726
    %v1791 = vsub.f32 %v1663, %v1727
    %v1792 = vsub.f32 %v1664, %v1728
    %v1793 = vsub.f32 %v1665, %v1729
    %v1794 = vsub.f32 %v1666, %v1730
    %v1795 = vsub.f32 %v1667, %v1731
    %v1796 = vsub.f32 %v1668, %v1732
    %v1797 = vsub.f32 %v1669, %v1733
    %v1798 = vsub.f32 %v1670, %v1734
    %v1799 = vsub.f32 %v1671, %v1735
    %v1800 = vsub.f32 %v1672, %v1736
    %v1801 = vsub.f32 %v1673, %v1737
    %v1802 = vsub.f32 %v1674, %v1738
    %v1803 = vsub.f32 %v1675, %v1739
    %v1804 = vsub.f32 %v1676, %v1740
    %v1805 = vsub.f32 %v1677, %v1741
    %v1806 = vsub.f32 %v1678, %v1742
    %v1807 = vsub.f32 %v1679, %v1743
    %v1808 = vsub.f32 %v1680, %v1744
    %v1809 = vsub.f32 %v1681, %v1745
    %v1810 = vsub.f32 %v1682, %v1746
    %v1811 = vsub.f32 %v1683, %v1747
    %v1812 = vsub.f32 %v1684, %v1748
    %v1813 = vsub.f32 %v1685, %v1749
    %v1814 = vsub.f32 %v1686, %v1750
    %v1815 = vsub.f32 %v1687, %v1751
    %v1816 = vsub.f32 %v1688, %v1752
    %v1817 = vsub.f32 %v1689, %v1753
    %v1818 = vsub.f32 %v1690, %v1754
    %v1819 = vsub.f32 %v1691, %v1755
    %v1820 = vsub.f32 %v1692, %v1756
    %v1821 = vsub.f32 %v1693, %v1757
    %v1822 = vsub.f32 %v1694, %v1758
    %v1823 = vsub.f32 %v1695, %v1759
    %v1824 = vsub.f32 %v1696, %v1760
    %v1825 = vsub.f32 %v1697, %v1761
    %v1826 = vsub.f32 %v1698, %v1762
    %v1827 = vsub.f32 %v1699, %v1763
    %v1828 = vsub.f32 %v1700, %v1764
    %v1829 = vsub.f32 %v1701, %v1765
    %v1830 = vsub.f32 %v1702, %v1766
    %v1831 = vsub.f32 %v1703, %v1767
    %v1832 = vsub.f32 %v1704, %v1768
    %v1833 = vsub.f32 %v1705, %v1769
    %v1834 = vsub.f32 %v1706, %v1770
    %v1835 = vsub.f32 %v1707, %v1771
    %v1836 = vsub.f32 %v1708, %v1772
    %v1837 = vsub.f32 %v1709, %v1773
    %v1838 = vsub.f32 %v1710, %v1774
    %v1839 = vsub.f32 %v1711, %v1775
    %v1840 = vsub.f32 %v1712, %v1776
    %v1841 = vsub.f32 %v1713, %v1777
    %v1842 = vsub.f32 %v1714, %v1778
    %v1843 = vsub.f32 %v1203, %v1395
    %v1844 = vsub.f32 %v1204, %v1396
    %v1845 = vsub.f32 %v1205, %v1397
    %v1846 = vsub.f32 %v1206, %v1398
    %v1847 = vsub.f32 %v1207, %v1399
    %v1848 = vsub.f32 %v1208, %v1400
    %v1849 = vsub.f32 %v1209, %v1401
    %v1850 = vsub.f32 %v1210, %v1402
    %v1851 = vsub.f32 %v1211, %v1403
    %v1852 = vsub.f32 %v1212, %v1404
    %v1853 = vsub.f32 %v1213, %v1405
    %v1854 = vsub.f32 %v1214, %v1406
    %v1855 = vsub.f32 %v1215, %v1407
    %v1856 = vsub.f32 %v1216, %v1408
    %v1857 = vsub.f32 %v1217, %v1409
    %v1858 = vsub.f32 %v1218, %v1410
    %v1859 = vsub.f32 %v1219, %v1411
    %v1860 = vsub.f32 %v1220, %v1412
    %v1861 = vsub.f32 %v1221, %v1413
    %v1862 = vsub.f32 %v1222, %v1414
    %v1863 = vsub.f32 %v1223, %v1415
    %v1864 = vsub.f32 %v1224, %v1416
    %v1865 = vsub.f32 %v1225, %v1417
    %v1866 = vsub.f32 %v1226, %v1418
    %v1867 = vsub.f32 %v1227, %v1419
    %v1868 = vsub.f32 %v1228, %v1420
    %v1869 = vsub.f32 %v1229, %v1421
    %v1870 = vsub.f32 %v1230, %v1422
    %v1871 = vsub.f32 %v1231, %v1423
    %v1872 = vsub.f32 %v1232, %v1424
    %v1873 = vsub.f32 %v1233, %v1425
    %v1874 = vsub.f32 %v1234, %v1426
    %v1875 = vsub.f32 %v1235, %v1427
    %v1876 = vsub.f32 %v1236, %v1428
    %v1877 = vsub.f32 %v1237, %v1429
    %v1878 = vsub.f32 %v1238, %v1430
    %v1879 = vsub.f32 %v1239, %v1431
    %v1880 = vsub.f32 %v1240, %v1432
    %v1881 = vsub.f32 %v1241, %v1433
    %v1882 = vsub.f32 %v1242, %v1434
    %v1883 = vsub.f32 %v1243, %v1435
    %v1884 = vsub.f32 %v1244, %v1436
    %v1885 = vsub.f32 %v1245, %v1437
    %v1886 = vsub.f32 %v1246, %v1438
    %v1887 = vsub.f32 %v1247, %v1439
    %v1888 = vsub.f32 %v1248, %v1440
    %v1889 = vsub.f32 %v1249, %v1441
    %v1890 = vsub.f32 %v1250, %v1442
    %v1891 = vsub.f32 %v1251, %v1443
    %v1892 = vsub.f32 %v1252, %v1444
    %v1893 = vsub.f32 %v1253, %v1445
    %v1894 = vsub.f32 %v1254, %v1446
    %v1895 = vsub.f32 %v1255, %v1447
    %v1896 = vsub.f32 %v1256, %v1448
    %v1897 = vsub.f32 %v1257, %v1449
    %v1898 = vsub.f32 %v1258, %v1450
    %v1899 = vsub.f32 %v1259, %v1451
    %v1900 = vsub.f32 %v1260, %v1452
    %v1901 = vsub.f32 %v1261, %v1453
    %v1902 = vsub.f32 %v1262, %v1454
    %v1903 = vsub.f32 %v1263, %v1455
    %v1904 = vsub.f32 %v1264, %v1456
    %v1905 = vsub.f32 %v1265, %v1457
    %v1906 = vsub.f32 %v1266, %v1458
    %v1907 = vadd.f32 %v1779, 1e-05
    %v1908 = vadd.f32 %v1780, 1e-05
    %v1909 = vadd.f32 %v1781, 1e-05
    %v1910 = vadd.f32 %v1782, 1e-05
    %v1911 = vadd.f32 %v1783, 1e-05
    %v1912 = vadd.f32 %v1784, 1e-05
    %v1913 = vadd.f32 %v1785, 1e-05
    %v1914 = vadd.f32 %v1786, 1e-05
    %v1915 = vadd.f32 %v1787, 1e-05
    %v1916 = vadd.f32 %v1788, 1e-05
    %v1917 = vadd.f32 %v1789, 1e-05
    %v1918 = vadd.f32 %v1790, 1e-05
    %v1919 = vadd.f32 %v1791, 1e-05
    %v1920 = vadd.f32 %v1792, 1e-05
    %v1921 = vadd.f32 %v1793, 1e-05
    %v1922 = vadd.f32 %v1794, 1e-05
    %v1923 = vadd.f32 %v1795, 1e-05
    %v1924 = vadd.f32 %v1796, 1e-05
    %v1925 = vadd.f32 %v1797, 1e-05
    %v1926 = vadd.f32 %v1798, 1e-05
    %v1927 = vadd.f32 %v1799, 1e-05
    %v1928 = vadd.f32 %v1800, 1e-05
    %v1929 = vadd.f32 %v1801, 1e-05
    %v1930 = vadd.f32 %v1802, 1e-05
    %v1931 = vadd.f32 %v1803, 1e-05
    %v1932 = vadd.f32 %v1804, 1e-05
    %v1933 = vadd.f32 %v1805, 1e-05
    %v1934 = vadd.f32 %v1806, 1e-05
    %v1935 = vadd.f32 %v1807, 1e-05
    %v1936 = vadd.f32 %v1808, 1e-05
    %v1937 = vadd.f32 %v1809, 1e-05
    %v1938 = vadd.f32 %v1810, 1e-05
    %v1939 = vadd.f32 %v1811, 1e-05
    %v1940 = vadd.f32 %v1812, 1e-05
    %v1941 = vadd.f32 %v1813, 1e-05
    %v1942 = vadd.f32 %v1814, 1e-05
    %v1943 = vadd.f32 %v1815, 1e-05
    %v1944 = vadd.f32 %v1816, 1e-05
    %v1945 = vadd.f32 %v1817, 1e-05
    %v1946 = vadd.f32 %v1818, 1e-05
    %v1947 = vadd.f32 %v1819, 1e-05
    %v1948 = vadd.f32 %v1820, 1e-05
    %v1949 = vadd.f32 %v1821, 1e-05
    %v1950 = vadd.f32 %v1822, 1e-05
    %v1951 = vadd.f32 %v1823, 1e-05
    %v1952 = vadd.f32 %v1824, 1e-05
    %v1953 = vadd.f32 %v1825, 1e-05
    %v1954 = vadd.f32 %v1826, 1e-05
    %v1955 = vadd.f32 %v1827, 1e-05
    %v1956 = vadd.f32 %v1828, 1e-05
    %v1957 = vadd.f32 %v1829, 1e-05
    %v1958 = vadd.f32 %v1830, 1e-05
    %v1959 = vadd.f32 %v1831, 1e-05
    %v1960 = vadd.f32 %v1832, 1e-05
    %v1961 = vadd.f32 %v1833, 1e-05
    %v1962 = vadd.f32 %v1834, 1e-05
    %v1963 = vadd.f32 %v1835, 1e-05
    %v1964 = vadd.f32 %v1836, 1e-05
    %v1965 = vadd.f32 %v1837, 1e-05
    %v1966 = vadd.f32 %v1838, 1e-05
    %v1967 = vadd.f32 %v1839, 1e-05
    %v1968 = vadd.f32 %v1840, 1e-05
    %v1969 = vadd.f32 %v1841, 1e-05
    %v1970 = vadd.f32 %v1842, 1e-05
    %v1971 = vrsqrt.pop %v1907
    %v1972 = vrsqrt.pop %v1908
    %v1973 = vrsqrt.pop %v1909
    %v1974 = vrsqrt.pop %v1910
    %v1975 = vrsqrt.pop %v1911
    %v1976 = vrsqrt.pop %v1912
    %v1977 = vrsqrt.pop %v1913
    %v1978 = vrsqrt.pop %v1914
    %v1979 = vrsqrt.pop %v1915
    %v1980 = vrsqrt.pop %v1916
    %v1981 = vrsqrt.pop %v1917
    %v1982 = vrsqrt.pop %v1918
    %v1983 = vrsqrt.pop %v1919
    %v1984 = vrsqrt.pop %v1920
    %v1985 = vrsqrt.pop %v1921
    %v1986 = vrsqrt.pop %v1922
    %v1987 = vrsqrt.pop %v1923
    %v1988 = vrsqrt.pop %v1924
    %v1989 = vrsqrt.pop %v1925
    %v1990 = vrsqrt.pop %v1926
    %v1991 = vrsqrt.pop %v1927
    %v1992 = vrsqrt.pop %v1928
    %v1993 = vrsqrt.pop %v1929
    %v1994 = vrsqrt.pop %v1930
    %v1995 = vrsqrt.pop %v1931
    %v1996 = vrsqrt.pop %v1932
    %v1997 = vrsqrt.pop %v1933
    %v1998 = vrsqrt.pop %v1934
    %v1999 = vrsqrt.pop %v1935
    %v2000 = vrsqrt.pop %v1936
    %v2001 = vrsqrt.pop %v1937
    %v2002 = vrsqrt.pop %v1938
    %v2003 = vrsqrt.pop %v1939
    %v2004 = vrsqrt.pop %v1940
    %v2005 = vrsqrt.pop %v1941
    %v2006 = vrsqrt.pop %v1942
    %v2007 = vrsqrt.pop %v1943
    %v2008 = vrsqrt.pop %v1944
    %v2009 = vrsqrt.pop %v1945
    %v2010 = vrsqrt.pop %v1946
    %v2011 = vrsqrt.pop %v1947
    %v2012 = vrsqrt.pop %v1948
    %v2013 = vrsqrt.pop %v1949
    %v2014 = vrsqrt.pop %v1950
    %v2015 = vrsqrt.pop %v1951
    %v2016 = vrsqrt.pop %v1952
    %v2017 = vrsqrt.pop %v1953
    %v2018 = vrsqrt.pop %v1954
    %v2019 = vrsqrt.pop %v1955
    %v2020 = vrsqrt.pop %v1956
    %v2021 = vrsqrt.pop %v1957
    %v2022 = vrsqrt.pop %v1958
    %v2023 = vrsqrt.pop %v1959
    %v2024 = vrsqrt.pop %v1960
    %v2025 = vrsqrt.pop %v1961
    %v2026 = vrsqrt.pop %v1962
    %v2027 = vrsqrt.pop %v1963
    %v2028 = vrsqrt.pop %v1964
    %v2029 = vrsqrt.pop %v1965
    %v2030 = vrsqrt.pop %v1966
    %v2031 = vrsqrt.pop %v1967
    %v2032 = vrsqrt.pop %v1968
    %v2033 = vrsqrt.pop %v1969
    %v2034 = vrsqrt.pop %v1970
    %v2035 = vmul.f32 %v1843, %v1971
    %v2036 = vmul.f32 %v1844, %v1972
    %v2037 = vmul.f32 %v1845, %v1973
    %v2038 = vmul.f32 %v1846, %v1974
    %v2039 = vmul.f32 %v1847, %v1975
    %v2040 = vmul.f32 %v1848, %v1976
    %v2041 = vmul.f32 %v1849, %v1977
    %v2042 = vmul.f32 %v1850, %v1978
    %v2043 = vmul.f32 %v1851, %v1979
    %v2044 = vmul.f32 %v1852, %v1980
    %v2045 = vmul.f32 %v1853, %v1981
    %v2046 = vmul.f32 %v1854, %v1982
    %v2047 = vmul.f32 %v1855, %v1983
    %v2048 = vmul.f32 %v1856, %v1984
    %v2049 = vmul.f32 %v1857, %v1985
    %v2050 = vmul.f32 %v1858, %v1986
    %v2051 = vmul.f32 %v1859, %v1987
    %v2052 = vmul.f32 %v1860, %v1988
    %v2053 = vmul.f32 %v1861, %v1989
    %v2054 = vmul.f32 %v1862, %v1990
    %v2055 = vmul.f32 %v1863, %v1991
    %v2056 = vmul.f32 %v1864, %v1992
    %v2057 = vmul.f32 %v1865, %v1993
    %v2058 = vmul.f32 %v1866, %v1994
    %v2059 = vmul.f32 %v1867, %v1995
    %v2060 = vmul.f32 %v1868, %v1996
    %v2061 = vmul.f32 %v1869, %v1997
    %v2062 = vmul.f32 %v1870, %v1998
    %v2063 = vmul.f32 %v1871, %v1999
    %v2064 = vmul.f32 %v1872, %v2000
    %v2065 = vmul.f32 %v1873, %v2001
    %v2066 = vmul.f32 %v1874, %v2002
    %v2067 = vmul.f32 %v1875, %v2003
    %v2068 = vmul.f32 %v1876, %v2004
    %v2069 = vmul.f32 %v1877, %v2005
    %v2070 = vmul.f32 %v1878, %v2006
    %v2071 = vmul.f32 %v1879, %v2007
    %v2072 = vmul.f32 %v1880, %v2008
    %v2073 = vmul.f32 %v1881, %v2009
    %v2074 = vmul.f32 %v1882, %v2010
    %v2075 = vmul.f32 %v1883, %v2011
    %v2076 = vmul.f32 %v1884, %v2012
    %v2077 = vmul.f32 %v1885, %v2013
    %v2078 = vmul.f32 %v1886, %v2014
    %v2079 = vmul.f32 %v1887, %v2015
    %v2080 = vmul.f32 %v1888, %v2016
    %v2081 = vmul.f32 %v1889, %v2017
    %v2082 = vmul.f32 %v1890, %v2018
    %v2083 = vmul.f32 %v1891, %v2019
    %v2084 = vmul.f32 %v1892, %v2020
    %v2085 = vmul.f32 %v1893, %v2021
    %v2086 = vmul.f32 %v1894, %v2022
    %v2087 = vmul.f32 %v1895, %v2023
    %v2088 = vmul.f32 %v1896, %v2024
    %v2089 = vmul.f32 %v1897, %v2025
    %v2090 = vmul.f32 %v1898, %v2026
    %v2091 = vmul.f32 %v1899, %v2027
    %v2092 = vmul.f32 %v1900, %v2028
    %v2093 = vmul.f32 %v1901, %v2029
    %v2094 = vmul.f32 %v1902, %v2030
    %v2095 = vmul.f32 %v1903, %v2031
    %v2096 = vmul.f32 %v1904, %v2032
    %v2097 = vmul.f32 %v1905, %v2033
    %v2098 = vmul.f32 %v1906, %v2034
    %v2099 = vld [vmem:[%s4] sm:$0x1]
    %v2101 = vlaneseq
    %v2102 = vshrl.u32 %v2101, 7
    %v2103 = vsub.s32 0, %v2102
    %v2104 = vrot.slane %v2099, %v2103
    %v2106 = vmul.f32 %v2035, %v2104
    %v2107 = vmul.f32 %v2036, %v2104
    %v2108 = vmul.f32 %v2037, %v2104
    %v2109 = vmul.f32 %v2038, %v2104
    %v2110 = vmul.f32 %v2039, %v2104
    %v2111 = vmul.f32 %v2040, %v2104
    %v2112 = vmul.f32 %v2041, %v2104
    %v2113 = vmul.f32 %v2042, %v2104
    %v2114 = vmul.f32 %v2043, %v2104
    %v2115 = vmul.f32 %v2044, %v2104
    %v2116 = vmul.f32 %v2045, %v2104
    %v2117 = vmul.f32 %v2046, %v2104
    %v2118 = vmul.f32 %v2047, %v2104
    %v2119 = vmul.f32 %v2048, %v2104
    %v2120 = vmul.f32 %v2049, %v2104
    %v2121 = vmul.f32 %v2050, %v2104
    %v2122 = vmul.f32 %v2051, %v2104
    %v2123 = vmul.f32 %v2052, %v2104
    %v2124 = vmul.f32 %v2053, %v2104
    %v2125 = vmul.f32 %v2054, %v2104
    %v2126 = vmul.f32 %v2055, %v2104
    %v2127 = vmul.f32 %v2056, %v2104
    %v2128 = vmul.f32 %v2057, %v2104
    %v2129 = vmul.f32 %v2058, %v2104
    %v2130 = vmul.f32 %v2059, %v2104
    %v2131 = vmul.f32 %v2060, %v2104
    %v2132 = vmul.f32 %v2061, %v2104
    %v2133 = vmul.f32 %v2062, %v2104
    %v2134 = vmul.f32 %v2063, %v2104
    %v2135 = vmul.f32 %v2064, %v2104
    %v2136 = vmul.f32 %v2065, %v2104
    %v2137 = vmul.f32 %v2066, %v2104
    %v2138 = vmul.f32 %v2067, %v2104
    %v2139 = vmul.f32 %v2068, %v2104
    %v2140 = vmul.f32 %v2069, %v2104
    %v2141 = vmul.f32 %v2070, %v2104
    %v2142 = vmul.f32 %v2071, %v2104
    %v2143 = vmul.f32 %v2072, %v2104
    %v2144 = vmul.f32 %v2073, %v2104
    %v2145 = vmul.f32 %v2074, %v2104
    %v2146 = vmul.f32 %v2075, %v2104
    %v2147 = vmul.f32 %v2076, %v2104
    %v2148 = vmul.f32 %v2077, %v2104
    %v2149 = vmul.f32 %v2078, %v2104
    %v2150 = vmul.f32 %v2079, %v2104
    %v2151 = vmul.f32 %v2080, %v2104
    %v2152 = vmul.f32 %v2081, %v2104
    %v2153 = vmul.f32 %v2082, %v2104
    %v2154 = vmul.f32 %v2083, %v2104
    %v2155 = vmul.f32 %v2084, %v2104
    %v2156 = vmul.f32 %v2085, %v2104
    %v2157 = vmul.f32 %v2086, %v2104
    %v2158 = vmul.f32 %v2087, %v2104
    %v2159 = vmul.f32 %v2088, %v2104
    %v2160 = vmul.f32 %v2089, %v2104
    %v2161 = vmul.f32 %v2090, %v2104
    %v2162 = vmul.f32 %v2091, %v2104
    %v2163 = vmul.f32 %v2092, %v2104
    %v2164 = vmul.f32 %v2093, %v2104
    %v2165 = vmul.f32 %v2094, %v2104
    %v2166 = vmul.f32 %v2095, %v2104
    %v2167 = vmul.f32 %v2096, %v2104
    %v2168 = vmul.f32 %v2097, %v2104
    %v2169 = vmul.f32 %v2098, %v2104
    %v2170 = vld [vmem:[%s5] sm:$0x1]
    %v2172 = vlaneseq
    %v2173 = vshrl.u32 %v2172, 7
    %v2174 = vsub.s32 0, %v2173
    %v2175 = vrot.slane %v2170, %v2174
    %v2177 = vadd.f32 %v2106, %v2175
    %v2178 = vadd.f32 %v2107, %v2175
    %v2179 = vadd.f32 %v2108, %v2175
    %v2180 = vadd.f32 %v2109, %v2175
    %v2181 = vadd.f32 %v2110, %v2175
    %v2182 = vadd.f32 %v2111, %v2175
    %v2183 = vadd.f32 %v2112, %v2175
    %v2184 = vadd.f32 %v2113, %v2175
    %v2185 = vadd.f32 %v2114, %v2175
    %v2186 = vadd.f32 %v2115, %v2175
    %v2187 = vadd.f32 %v2116, %v2175
    %v2188 = vadd.f32 %v2117, %v2175
    %v2189 = vadd.f32 %v2118, %v2175
    %v2190 = vadd.f32 %v2119, %v2175
    %v2191 = vadd.f32 %v2120, %v2175
    %v2192 = vadd.f32 %v2121, %v2175
    %v2193 = vadd.f32 %v2122, %v2175
    %v2194 = vadd.f32 %v2123, %v2175
    %v2195 = vadd.f32 %v2124, %v2175
    %v2196 = vadd.f32 %v2125, %v2175
    %v2197 = vadd.f32 %v2126, %v2175
    %v2198 = vadd.f32 %v2127, %v2175
    %v2199 = vadd.f32 %v2128, %v2175
    %v2200 = vadd.f32 %v2129, %v2175
    %v2201 = vadd.f32 %v2130, %v2175
    %v2202 = vadd.f32 %v2131, %v2175
    %v2203 = vadd.f32 %v2132, %v2175
    %v2204 = vadd.f32 %v2133, %v2175
    %v2205 = vadd.f32 %v2134, %v2175
    %v2206 = vadd.f32 %v2135, %v2175
    %v2207 = vadd.f32 %v2136, %v2175
    %v2208 = vadd.f32 %v2137, %v2175
    %v2209 = vadd.f32 %v2138, %v2175
    %v2210 = vadd.f32 %v2139, %v2175
    %v2211 = vadd.f32 %v2140, %v2175
    %v2212 = vadd.f32 %v2141, %v2175
    %v2213 = vadd.f32 %v2142, %v2175
    %v2214 = vadd.f32 %v2143, %v2175
    %v2215 = vadd.f32 %v2144, %v2175
    %v2216 = vadd.f32 %v2145, %v2175
    %v2217 = vadd.f32 %v2146, %v2175
    %v2218 = vadd.f32 %v2147, %v2175
    %v2219 = vadd.f32 %v2148, %v2175
    %v2220 = vadd.f32 %v2149, %v2175
    %v2221 = vadd.f32 %v2150, %v2175
    %v2222 = vadd.f32 %v2151, %v2175
    %v2223 = vadd.f32 %v2152, %v2175
    %v2224 = vadd.f32 %v2153, %v2175
    %v2225 = vadd.f32 %v2154, %v2175
    %v2226 = vadd.f32 %v2155, %v2175
    %v2227 = vadd.f32 %v2156, %v2175
    %v2228 = vadd.f32 %v2157, %v2175
    %v2229 = vadd.f32 %v2158, %v2175
    %v2230 = vadd.f32 %v2159, %v2175
    %v2231 = vadd.f32 %v2160, %v2175
    %v2232 = vadd.f32 %v2161, %v2175
    %v2233 = vadd.f32 %v2162, %v2175
    %v2234 = vadd.f32 %v2163, %v2175
    %v2235 = vadd.f32 %v2164, %v2175
    %v2236 = vadd.f32 %v2165, %v2175
    %v2237 = vadd.f32 %v2166, %v2175
    %v2238 = vadd.f32 %v2167, %v2175
    %v2239 = vadd.f32 %v2168, %v2175
    %v2240 = vadd.f32 %v2169, %v2175
    %v2241 = vpack.c.bf16 %v2178, %v2177
    %v2242 = vpack.c.bf16 %v2180, %v2179
    %v2243 = vpack.c.bf16 %v2182, %v2181
    %v2244 = vpack.c.bf16 %v2184, %v2183
    %v2245 = vpack.c.bf16 %v2186, %v2185
    %v2246 = vpack.c.bf16 %v2188, %v2187
    %v2247 = vpack.c.bf16 %v2190, %v2189
    %v2248 = vpack.c.bf16 %v2192, %v2191
    %v2249 = vpack.c.bf16 %v2194, %v2193
    %v2250 = vpack.c.bf16 %v2196, %v2195
    %v2251 = vpack.c.bf16 %v2198, %v2197
    %v2252 = vpack.c.bf16 %v2200, %v2199
    %v2253 = vpack.c.bf16 %v2202, %v2201
    %v2254 = vpack.c.bf16 %v2204, %v2203
    %v2255 = vpack.c.bf16 %v2206, %v2205
    %v2256 = vpack.c.bf16 %v2208, %v2207
    %v2257 = vpack.c.bf16 %v2210, %v2209
    %v2258 = vpack.c.bf16 %v2212, %v2211
    %v2259 = vpack.c.bf16 %v2214, %v2213
    %v2260 = vpack.c.bf16 %v2216, %v2215
    %v2261 = vpack.c.bf16 %v2218, %v2217
    %v2262 = vpack.c.bf16 %v2220, %v2219
    %v2263 = vpack.c.bf16 %v2222, %v2221
    %v2264 = vpack.c.bf16 %v2224, %v2223
    %v2265 = vpack.c.bf16 %v2226, %v2225
    %v2266 = vpack.c.bf16 %v2228, %v2227
    %v2267 = vpack.c.bf16 %v2230, %v2229
    %v2268 = vpack.c.bf16 %v2232, %v2231
    %v2269 = vpack.c.bf16 %v2234, %v2233
    %v2270 = vpack.c.bf16 %v2236, %v2235
    %v2271 = vpack.c.bf16 %v2238, %v2237
    %v2272 = vpack.c.bf16 %v2240, %v2239
    %v2273 = vld [vmem:[%s6] sm:$0xf]
    %v2274 = vld [vmem:[%s6 + $0x4] sm:$0xf]
    %v2275 = vld [vmem:[%s6 + $0x8] sm:$0xf]
    %v2276 = vld [vmem:[%s6 + $0xc] sm:$0xf]
    %v2277 = vld [vmem:[%s6 + $0x10] sm:$0xf]
    %v2278 = vld [vmem:[%s6 + $0x14] sm:$0xf]
    %v2279 = vld [vmem:[%s6 + $0x18] sm:$0xf]
    %v2280 = vld [vmem:[%s6 + $0x1c] sm:$0xf]
    %v2281 = vld [vmem:[%s6 + $0x20] sm:$0xf]
    %v2282 = vld [vmem:[%s6 + $0x24] sm:$0xf]
    %v2283 = vld [vmem:[%s6 + $0x28] sm:$0xf]
    %v2284 = vld [vmem:[%s6 + $0x2c] sm:$0xf]
    %v2285 = vld [vmem:[%s6 + $0x30] sm:$0xf]
    %v2286 = vld [vmem:[%s6 + $0x34] sm:$0xf]
    %v2287 = vld [vmem:[%s6 + $0x38] sm:$0xf]
    %v2288 = vld [vmem:[%s6 + $0x3c] sm:$0xf]
    %v2289 = vld [vmem:[%s7] sm:$0x1]
    %v2291 = vlaneseq
    %v2292 = vshrl.u32 %v2291, 7
    %v2293 = vsub.s32 0, %v2292
    %v2294 = vrot.slane %v2289, %v2293
    %v2312 = vunpack.c.l.b16 %v2273
    %v2313 = vunpack.c.l.b16 %v2274
    %v2314 = vunpack.c.l.b16 %v2275
    %v2315 = vunpack.c.l.b16 %v2276
    %v2316 = vunpack.c.l.b16 %v2277
    %v2317 = vunpack.c.l.b16 %v2278
    %v2318 = vunpack.c.l.b16 %v2279
    %v2319 = vunpack.c.l.b16 %v2280
    %v2320 = vunpack.c.l.b16 %v2281
    %v2321 = vunpack.c.l.b16 %v2282
    %v2322 = vunpack.c.l.b16 %v2283
    %v2323 = vunpack.c.l.b16 %v2284
    %v2324 = vunpack.c.l.b16 %v2285
    %v2325 = vunpack.c.l.b16 %v2286
    %v2326 = vunpack.c.l.b16 %v2287
    %v2327 = vunpack.c.l.b16 %v2288
    %v2328 = vpack.c.b16 %v2313, %v2312
    %v2329 = vpack.c.b16 %v2315, %v2314
    %v2330 = vpack.c.b16 %v2317, %v2316
    %v2331 = vpack.c.b16 %v2319, %v2318
    %v2332 = vpack.c.b16 %v2321, %v2320
    %v2333 = vpack.c.b16 %v2323, %v2322
    %v2334 = vpack.c.b16 %v2325, %v2324
    %v2335 = vpack.c.b16 %v2327, %v2326
    %2344 = vmatprep.subr.bf16.mxu0 0
    %2345 = vmatpush1.bf16.msra.mxu0 %v2335
    %2346 = vmatprep.subr.bf16.mxu0 0
    %2347 = vmatpush1.bf16.msra.mxu0 %v2334
    %2348 = vmatprep.subr.bf16.mxu0 0
    %2349 = vmatpush1.bf16.msra.mxu0 %v2333
    %2350 = vmatprep.subr.bf16.mxu0 0
    %2351 = vmatpush1.bf16.msra.mxu0 %v2332
    %2352 = vmatprep.subr.bf16.mxu0 0
    %2353 = vmatpush1.bf16.msra.mxu0 %v2331
    %2354 = vmatprep.subr.bf16.mxu0 0
    %2355 = vmatpush1.bf16.msra.mxu0 %v2330
    %2356 = vmatprep.subr.bf16.mxu0 0
    %2357 = vmatpush1.bf16.msra.mxu0 %v2329
    %2358 = vmatprep.subr.bf16.mxu0 0
    %2359 = vmatpush1.bf16.msra.mxu0 %v2328
    %2360 = vmatprep.subr.bf16.mxu0 0
    %2361 = vmatpush2.bf16.msra.mxu0 0
    %2362 = vmatprep.subr.bf16.mxu0 0
    %2363 = vmatpush2.bf16.msra.mxu0 0
    %2364 = vmatprep.subr.bf16.mxu0 0
    %2365 = vmatpush2.bf16.msra.mxu0 0
    %2366 = vmatprep.subr.bf16.mxu0 0
    %2367 = vmatpush2.bf16.msra.mxu0 0
    %2368 = vmatprep.subr.bf16.mxu0 0
    %2369 = vmatpush2.bf16.msra.mxu0 0
    %2370 = vmatprep.subr.bf16.mxu0 0
    %2371 = vmatpush2.bf16.msra.mxu0 0
    %2372 = vmatprep.subr.bf16.mxu0 0
    %2373 = vmatpush2.bf16.msra.mxu0 0
    %2374 = vmatprep.subr.bf16.mxu0 0
    %2375 = vmatpush2.bf16.msra.mxu0 0
    %2376 = vmatprep.mubr.bf16.mxu0 0
    %2377 = vmatmul.mubr.bf16.gmra.mxu0 %v2241
    %v2378 = vpop.f32.mrf.mxu0
    %v2379 = vadd.f32 %v2294, %v2378
    %v2380 = vpop.f32.mrf.mxu0
    %v2381 = vpop.f32.mrf.mxu0
    %v2382 = vadd.f32 %v2294, %v2381
    %v2383 = vpop.f32.mrf.mxu0
    %2384 = vmatprep.mubr.bf16.mxu0 0
    %2385 = vmatmul.mubr.bf16.gmra.mxu0 %v2242
    %v2386 = vpop.f32.mrf.mxu0
    %v2387 = vadd.f32 %v2294, %v2386
    %v2388 = vpop.f32.mrf.mxu0
    %v2389 = vpop.f32.mrf.mxu0
    %v2390 = vadd.f32 %v2294, %v2389
    %v2391 = vpop.f32.mrf.mxu0
    %2392 = vmatprep.mubr.bf16.mxu0 0
    %2393 = vmatmul.mubr.bf16.gmra.mxu0 %v2243
    %v2394 = vpop.f32.mrf.mxu0
    %v2395 = vadd.f32 %v2294, %v2394
    %v2396 = vpop.f32.mrf.mxu0
    %v2397 = vpop.f32.mrf.mxu0
    %v2398 = vadd.f32 %v2294, %v2397
    %v2399 = vpop.f32.mrf.mxu0
    %2400 = vmatprep.mubr.bf16.mxu0 0
    %2401 = vmatmul.mubr.bf16.gmra.mxu0 %v2244
    %v2402 = vpop.f32.mrf.mxu0
    %v2403 = vadd.f32 %v2294, %v2402
    %v2404 = vpop.f32.mrf.mxu0
    %v2405 = vpop.f32.mrf.mxu0
    %v2406 = vadd.f32 %v2294, %v2405
    %v2407 = vpop.f32.mrf.mxu0
    %2408 = vmatprep.mubr.bf16.mxu0 0
    %2409 = vmatmul.mubr.bf16.gmra.mxu0 %v2245
    %v2410 = vpop.f32.mrf.mxu0
    %v2411 = vadd.f32 %v2294, %v2410
    %v2412 = vpop.f32.mrf.mxu0
    %v2413 = vpop.f32.mrf.mxu0
    %v2414 = vadd.f32 %v2294, %v2413
    %v2415 = vpop.f32.mrf.mxu0
    %2416 = vmatprep.mubr.bf16.mxu0 0
    %2417 = vmatmul.mubr.bf16.gmra.mxu0 %v2246
    %v2418 = vpop.f32.mrf.mxu0
    %v2419 = vadd.f32 %v2294, %v2418
    %v2420 = vpop.f32.mrf.mxu0
    %v2421 = vpop.f32.mrf.mxu0
    %v2422 = vadd.f32 %v2294, %v2421
    %v2423 = vpop.f32.mrf.mxu0
    %2424 = vmatprep.mubr.bf16.mxu0 0
    %2425 = vmatmul.mubr.bf16.gmra.mxu0 %v2247
    %v2426 = vpop.f32.mrf.mxu0
    %v2427 = vadd.f32 %v2294, %v2426
    %v2428 = vpop.f32.mrf.mxu0
    %v2429 = vpop.f32.mrf.mxu0
    %v2430 = vadd.f32 %v2294, %v2429
    %v2431 = vpop.f32.mrf.mxu0
    %2432 = vmatprep.mubr.bf16.mxu0 0
    %2433 = vmatmul.mubr.bf16.gmra.mxu0 %v2248
    %v2434 = vpop.f32.mrf.mxu0
    %v2435 = vadd.f32 %v2294, %v2434
    %v2436 = vpop.f32.mrf.mxu0
    %v2437 = vpop.f32.mrf.mxu0
    %v2438 = vadd.f32 %v2294, %v2437
    %v2439 = vpop.f32.mrf.mxu0
    %2440 = vmatprep.mubr.bf16.mxu0 0
    %2441 = vmatmul.mubr.bf16.gmra.mxu0 %v2249
    %v2442 = vpop.f32.mrf.mxu0
    %v2443 = vadd.f32 %v2294, %v2442
    %v2444 = vpop.f32.mrf.mxu0
    %v2445 = vpop.f32.mrf.mxu0
    %v2446 = vadd.f32 %v2294, %v2445
    %v2447 = vpop.f32.mrf.mxu0
    %2448 = vmatprep.mubr.bf16.mxu0 0
    %2449 = vmatmul.mubr.bf16.gmra.mxu0 %v2250
    %v2450 = vpop.f32.mrf.mxu0
    %v2451 = vadd.f32 %v2294, %v2450
    %v2452 = vpop.f32.mrf.mxu0
    %v2453 = vpop.f32.mrf.mxu0
    %v2454 = vadd.f32 %v2294, %v2453
    %v2455 = vpop.f32.mrf.mxu0
    %2456 = vmatprep.mubr.bf16.mxu0 0
    %2457 = vmatmul.mubr.bf16.gmra.mxu0 %v2251
    %v2458 = vpop.f32.mrf.mxu0
    %v2459 = vadd.f32 %v2294, %v2458
    %v2460 = vpop.f32.mrf.mxu0
    %v2461 = vpop.f32.mrf.mxu0
    %v2462 = vadd.f32 %v2294, %v2461
    %v2463 = vpop.f32.mrf.mxu0
    %2464 = vmatprep.mubr.bf16.mxu0 0
    %2465 = vmatmul.mubr.bf16.gmra.mxu0 %v2252
    %v2466 = vpop.f32.mrf.mxu0
    %v2467 = vadd.f32 %v2294, %v2466
    %v2468 = vpop.f32.mrf.mxu0
    %v2469 = vpop.f32.mrf.mxu0
    %v2470 = vadd.f32 %v2294, %v2469
    %v2471 = vpop.f32.mrf.mxu0
    %2472 = vmatprep.mubr.bf16.mxu0 0
    %2473 = vmatmul.mubr.bf16.gmra.mxu0 %v2253
    %v2474 = vpop.f32.mrf.mxu0
    %v2475 = vadd.f32 %v2294, %v2474
    %v2476 = vpop.f32.mrf.mxu0
    %v2477 = vpop.f32.mrf.mxu0
    %v2478 = vadd.f32 %v2294, %v2477
    %v2479 = vpop.f32.mrf.mxu0
    %2480 = vmatprep.mubr.bf16.mxu0 0
    %2481 = vmatmul.mubr.bf16.gmra.mxu0 %v2254
    %v2482 = vpop.f32.mrf.mxu0
    %v2483 = vadd.f32 %v2294, %v2482
    %v2484 = vpop.f32.mrf.mxu0
    %v2485 = vpop.f32.mrf.mxu0
    %v2486 = vadd.f32 %v2294, %v2485
    %v2487 = vpop.f32.mrf.mxu0
    %2488 = vmatprep.mubr.bf16.mxu0 0
    %2489 = vmatmul.mubr.bf16.gmra.mxu0 %v2255
    %v2490 = vpop.f32.mrf.mxu0
    %v2491 = vadd.f32 %v2294, %v2490
    %v2492 = vpop.f32.mrf.mxu0
    %v2493 = vpop.f32.mrf.mxu0
    %v2494 = vadd.f32 %v2294, %v2493
    %v2495 = vpop.f32.mrf.mxu0
    %2496 = vmatprep.mubr.bf16.mxu0 0
    %2497 = vmatmul.mubr.bf16.gmra.mxu0 %v2256
    %v2498 = vpop.f32.mrf.mxu0
    %v2499 = vadd.f32 %v2294, %v2498
    %v2500 = vpop.f32.mrf.mxu0
    %v2501 = vpop.f32.mrf.mxu0
    %v2502 = vadd.f32 %v2294, %v2501
    %v2503 = vpop.f32.mrf.mxu0
    %2504 = vmatprep.mubr.bf16.mxu0 0
    %2505 = vmatmul.mubr.bf16.gmra.mxu0 %v2257
    %v2506 = vpop.f32.mrf.mxu0
    %v2507 = vadd.f32 %v2294, %v2506
    %v2508 = vpop.f32.mrf.mxu0
    %v2509 = vpop.f32.mrf.mxu0
    %v2510 = vadd.f32 %v2294, %v2509
    %v2511 = vpop.f32.mrf.mxu0
    %2512 = vmatprep.mubr.bf16.mxu0 0
    %2513 = vmatmul.mubr.bf16.gmra.mxu0 %v2258
    %v2514 = vpop.f32.mrf.mxu0
    %v2515 = vadd.f32 %v2294, %v2514
    %v2516 = vpop.f32.mrf.mxu0
    %v2517 = vpop.f32.mrf.mxu0
    %v2518 = vadd.f32 %v2294, %v2517
    %v2519 = vpop.f32.mrf.mxu0
    %2520 = vmatprep.mubr.bf16.mxu0 0
    %2521 = vmatmul.mubr.bf16.gmra.mxu0 %v2259
    %v2522 = vpop.f32.mrf.mxu0
    %v2523 = vadd.f32 %v2294, %v2522
    %v2524 = vpop.f32.mrf.mxu0
    %v2525 = vpop.f32.mrf.mxu0
    %v2526 = vadd.f32 %v2294, %v2525
    %v2527 = vpop.f32.mrf.mxu0
    %2528 = vmatprep.mubr.bf16.mxu0 0
    %2529 = vmatmul.mubr.bf16.gmra.mxu0 %v2260
    %v2530 = vpop.f32.mrf.mxu0
    %v2531 = vadd.f32 %v2294, %v2530
    %v2532 = vpop.f32.mrf.mxu0
    %v2533 = vpop.f32.mrf.mxu0
    %v2534 = vadd.f32 %v2294, %v2533
    %v2535 = vpop.f32.mrf.mxu0
    %2536 = vmatprep.mubr.bf16.mxu0 0
    %2537 = vmatmul.mubr.bf16.gmra.mxu0 %v2261
    %v2538 = vpop.f32.mrf.mxu0
    %v2539 = vadd.f32 %v2294, %v2538
    %v2540 = vpop.f32.mrf.mxu0
    %v2541 = vpop.f32.mrf.mxu0
    %v2542 = vadd.f32 %v2294, %v2541
    %v2543 = vpop.f32.mrf.mxu0
    %2544 = vmatprep.mubr.bf16.mxu0 0
    %2545 = vmatmul.mubr.bf16.gmra.mxu0 %v2262
    %v2546 = vpop.f32.mrf.mxu0
    %v2547 = vadd.f32 %v2294, %v2546
    %v2548 = vpop.f32.mrf.mxu0
    %v2549 = vpop.f32.mrf.mxu0
    %v2550 = vadd.f32 %v2294, %v2549
    %v2551 = vpop.f32.mrf.mxu0
    %2552 = vmatprep.mubr.bf16.mxu0 0
    %2553 = vmatmul.mubr.bf16.gmra.mxu0 %v2263
    %v2554 = vpop.f32.mrf.mxu0
    %v2555 = vadd.f32 %v2294, %v2554
    %v2556 = vpop.f32.mrf.mxu0
    %v2557 = vpop.f32.mrf.mxu0
    %v2558 = vadd.f32 %v2294, %v2557
    %v2559 = vpop.f32.mrf.mxu0
    %2560 = vmatprep.mubr.bf16.mxu0 0
    %2561 = vmatmul.mubr.bf16.gmra.mxu0 %v2264
    %v2562 = vpop.f32.mrf.mxu0
    %v2563 = vadd.f32 %v2294, %v2562
    %v2564 = vpop.f32.mrf.mxu0
    %v2565 = vpop.f32.mrf.mxu0
    %v2566 = vadd.f32 %v2294, %v2565
    %v2567 = vpop.f32.mrf.mxu0
    %2568 = vmatprep.mubr.bf16.mxu0 0
    %2569 = vmatmul.mubr.bf16.gmra.mxu0 %v2265
    %v2570 = vpop.f32.mrf.mxu0
    %v2571 = vadd.f32 %v2294, %v2570
    %v2572 = vpop.f32.mrf.mxu0
    %v2573 = vpop.f32.mrf.mxu0
    %v2574 = vadd.f32 %v2294, %v2573
    %v2575 = vpop.f32.mrf.mxu0
    %2576 = vmatprep.mubr.bf16.mxu0 0
    %2577 = vmatmul.mubr.bf16.gmra.mxu0 %v2266
    %v2578 = vpop.f32.mrf.mxu0
    %v2579 = vadd.f32 %v2294, %v2578
    %v2580 = vpop.f32.mrf.mxu0
    %v2581 = vpop.f32.mrf.mxu0
    %v2582 = vadd.f32 %v2294, %v2581
    %v2583 = vpop.f32.mrf.mxu0
    %2584 = vmatprep.mubr.bf16.mxu0 0
    %2585 = vmatmul.mubr.bf16.gmra.mxu0 %v2267
    %v2586 = vpop.f32.mrf.mxu0
    %v2587 = vadd.f32 %v2294, %v2586
    %v2588 = vpop.f32.mrf.mxu0
    %v2589 = vpop.f32.mrf.mxu0
    %v2590 = vadd.f32 %v2294, %v2589
    %v2591 = vpop.f32.mrf.mxu0
    %2592 = vmatprep.mubr.bf16.mxu0 0
    %2593 = vmatmul.mubr.bf16.gmra.mxu0 %v2268
    %v2594 = vpop.f32.mrf.mxu0
    %v2595 = vadd.f32 %v2294, %v2594
    %v2596 = vpop.f32.mrf.mxu0
    %v2597 = vpop.f32.mrf.mxu0
    %v2598 = vadd.f32 %v2294, %v2597
    %v2599 = vpop.f32.mrf.mxu0
    %2600 = vmatprep.mubr.bf16.mxu0 0
    %2601 = vmatmul.mubr.bf16.gmra.mxu0 %v2269
    %v2602 = vpop.f32.mrf.mxu0
    %v2603 = vadd.f32 %v2294, %v2602
    %v2604 = vpop.f32.mrf.mxu0
    %v2605 = vpop.f32.mrf.mxu0
    %v2606 = vadd.f32 %v2294, %v2605
    %v2607 = vpop.f32.mrf.mxu0
    %2608 = vmatprep.mubr.bf16.mxu0 0
    %2609 = vmatmul.mubr.bf16.gmra.mxu0 %v2270
    %v2610 = vpop.f32.mrf.mxu0
    %v2611 = vadd.f32 %v2294, %v2610
    %v2612 = vpop.f32.mrf.mxu0
    %v2613 = vpop.f32.mrf.mxu0
    %v2614 = vadd.f32 %v2294, %v2613
    %v2615 = vpop.f32.mrf.mxu0
    %2616 = vmatprep.mubr.bf16.mxu0 0
    %2617 = vmatmul.mubr.bf16.gmra.mxu0 %v2271
    %v2618 = vpop.f32.mrf.mxu0
    %v2619 = vadd.f32 %v2294, %v2618
    %v2620 = vpop.f32.mrf.mxu0
    %v2621 = vpop.f32.mrf.mxu0
    %v2622 = vadd.f32 %v2294, %v2621
    %v2623 = vpop.f32.mrf.mxu0
    %2624 = vmatprep.mubr.bf16.mxu0 0
    %2625 = vmatmul.mubr.bf16.gmra.mxu0 %v2272
    %v2626 = vpop.f32.mrf.mxu0
    %v2627 = vadd.f32 %v2294, %v2626
    %v2628 = vpop.f32.mrf.mxu0
    %v2629 = vpop.f32.mrf.mxu0
    %v2630 = vadd.f32 %v2294, %v2629
    %v2631 = vpop.f32.mrf.mxu0
    %2632 = vdwg.mxu0
    %v2633 = vand.u32 2147483647, %v2379
    %v2634 = vand.u32 2147483647, %v2382
    %v2635 = vand.u32 2147483647, %v2387
    %v2636 = vand.u32 2147483647, %v2390
    %v2637 = vand.u32 2147483647, %v2395
    %v2638 = vand.u32 2147483647, %v2398
    %v2639 = vand.u32 2147483647, %v2403
    %v2640 = vand.u32 2147483647, %v2406
    %v2641 = vand.u32 2147483647, %v2411
    %v2642 = vand.u32 2147483647, %v2414
    %v2643 = vand.u32 2147483647, %v2419
    %v2644 = vand.u32 2147483647, %v2422
    %v2645 = vand.u32 2147483647, %v2427
    %v2646 = vand.u32 2147483647, %v2430
    %v2647 = vand.u32 2147483647, %v2435
    %v2648 = vand.u32 2147483647, %v2438
    %v2649 = vand.u32 2147483647, %v2443
    %v2650 = vand.u32 2147483647, %v2446
    %v2651 = vand.u32 2147483647, %v2451
    %v2652 = vand.u32 2147483647, %v2454
    %v2653 = vand.u32 2147483647, %v2459
    %v2654 = vand.u32 2147483647, %v2462
    %v2655 = vand.u32 2147483647, %v2467
    %v2656 = vand.u32 2147483647, %v2470
    %v2657 = vand.u32 2147483647, %v2475
    %v2658 = vand.u32 2147483647, %v2478
    %v2659 = vand.u32 2147483647, %v2483
    %v2660 = vand.u32 2147483647, %v2486
    %v2661 = vand.u32 2147483647, %v2491
    %v2662 = vand.u32 2147483647, %v2494
    %v2663 = vand.u32 2147483647, %v2499
    %v2664 = vand.u32 2147483647, %v2502
    %v2665 = vand.u32 2147483647, %v2507
    %v2666 = vand.u32 2147483647, %v2510
    %v2667 = vand.u32 2147483647, %v2515
    %v2668 = vand.u32 2147483647, %v2518
    %v2669 = vand.u32 2147483647, %v2523
    %v2670 = vand.u32 2147483647, %v2526
    %v2671 = vand.u32 2147483647, %v2531
    %v2672 = vand.u32 2147483647, %v2534
    %v2673 = vand.u32 2147483647, %v2539
    %v2674 = vand.u32 2147483647, %v2542
    %v2675 = vand.u32 2147483647, %v2547
    %v2676 = vand.u32 2147483647, %v2550
    %v2677 = vand.u32 2147483647, %v2555
    %v2678 = vand.u32 2147483647, %v2558
    %v2679 = vand.u32 2147483647, %v2563
    %v2680 = vand.u32 2147483647, %v2566
    %v2681 = vand.u32 2147483647, %v2571
    %v2682 = vand.u32 2147483647, %v2574
    %v2683 = vand.u32 2147483647, %v2579
    %v2684 = vand.u32 2147483647, %v2582
    %v2685 = vand.u32 2147483647, %v2587
    %v2686 = vand.u32 2147483647, %v2590
    %v2687 = vand.u32 2147483647, %v2595
    %v2688 = vand.u32 2147483647, %v2598
    %v2689 = vand.u32 2147483647, %v2603
    %v2690 = vand.u32 2147483647, %v2606
    %v2691 = vand.u32 2147483647, %v2611
    %v2692 = vand.u32 2147483647, %v2614
    %v2693 = vand.u32 2147483647, %v2619
    %v2694 = vand.u32 2147483647, %v2622
    %v2695 = vand.u32 2147483647, %v2627
    %v2696 = vand.u32 2147483647, %v2630
    %v2697 = vmul.f32 %v2633, 0.70710677
    %v2698 = vmul.f32 %v2634, 0.70710677
    %v2699 = vmul.f32 %v2635, 0.70710677
    %v2700 = vmul.f32 %v2636, 0.70710677
    %v2701 = vmul.f32 %v2637, 0.70710677
    %v2702 = vmul.f32 %v2638, 0.70710677
    %v2703 = vmul.f32 %v2639, 0.70710677
    %v2704 = vmul.f32 %v2640, 0.70710677
    %v2705 = vmul.f32 %v2641, 0.70710677
    %v2706 = vmul.f32 %v2642, 0.70710677
    %v2707 = vmul.f32 %v2643, 0.70710677
    %v2708 = vmul.f32 %v2644, 0.70710677
    %v2709 = vmul.f32 %v2645, 0.70710677
    %v2710 = vmul.f32 %v2646, 0.70710677
    %v2711 = vmul.f32 %v2647, 0.70710677
    %v2712 = vmul.f32 %v2648, 0.70710677
    %v2713 = vmul.f32 %v2649, 0.70710677
    %v2714 = vmul.f32 %v2650, 0.70710677
    %v2715 = vmul.f32 %v2651, 0.70710677
    %v2716 = vmul.f32 %v2652, 0.70710677
    %v2717 = vmul.f32 %v2653, 0.70710677
    %v2718 = vmul.f32 %v2654, 0.70710677
    %v2719 = vmul.f32 %v2655, 0.70710677
    %v2720 = vmul.f32 %v2656, 0.70710677
    %v2721 = vmul.f32 %v2657, 0.70710677
    %v2722 = vmul.f32 %v2658, 0.70710677
    %v2723 = vmul.f32 %v2659, 0.70710677
    %v2724 = vmul.f32 %v2660, 0.70710677
    %v2725 = vmul.f32 %v2661, 0.70710677
    %v2726 = vmul.f32 %v2662, 0.70710677
    %v2727 = vmul.f32 %v2663, 0.70710677
    %v2728 = vmul.f32 %v2664, 0.70710677
    %v2729 = vmul.f32 %v2665, 0.70710677
    %v2730 = vmul.f32 %v2666, 0.70710677
    %v2731 = vmul.f32 %v2667, 0.70710677
    %v2732 = vmul.f32 %v2668, 0.70710677
    %v2733 = vmul.f32 %v2669, 0.70710677
    %v2734 = vmul.f32 %v2670, 0.70710677
    %v2735 = vmul.f32 %v2671, 0.70710677
    %v2736 = vmul.f32 %v2672, 0.70710677
    %v2737 = vmul.f32 %v2673, 0.70710677
    %v2738 = vmul.f32 %v2674, 0.70710677
    %v2739 = vmul.f32 %v2675, 0.70710677
    %v2740 = vmul.f32 %v2676, 0.70710677
    %v2741 = vmul.f32 %v2677, 0.70710677
    %v2742 = vmul.f32 %v2678, 0.70710677
    %v2743 = vmul.f32 %v2679, 0.70710677
    %v2744 = vmul.f32 %v2680, 0.70710677
    %v2745 = vmul.f32 %v2681, 0.70710677
    %v2746 = vmul.f32 %v2682, 0.70710677
    %v2747 = vmul.f32 %v2683, 0.70710677
    %v2748 = vmul.f32 %v2684, 0.70710677
    %v2749 = vmul.f32 %v2685, 0.70710677
    %v2750 = vmul.f32 %v2686, 0.70710677
    %v2751 = vmul.f32 %v2687, 0.70710677
    %v2752 = vmul.f32 %v2688, 0.70710677
    %v2753 = vmul.f32 %v2689, 0.70710677
    %v2754 = vmul.f32 %v2690, 0.70710677
    %v2755 = vmul.f32 %v2691, 0.70710677
    %v2756 = vmul.f32 %v2692, 0.70710677
    %v2757 = vmul.f32 %v2693, 0.70710677
    %v2758 = vmul.f32 %v2694, 0.70710677
    %v2759 = vmul.f32 %v2695, 0.70710677
    %v2760 = vmul.f32 %v2696, 0.70710677
    %v2761 = vmul.f32 %v2697, 0.3275911
    %v2762 = vmul.f32 %v2698, 0.3275911
    %v2763 = vmul.f32 %v2699, 0.3275911
    %v2764 = vmul.f32 %v2700, 0.3275911
    %v2765 = vmul.f32 %v2701, 0.3275911
    %v2766 = vmul.f32 %v2702, 0.3275911
    %v2767 = vmul.f32 %v2703, 0.3275911
    %v2768 = vmul.f32 %v2704, 0.3275911
    %v2769 = vmul.f32 %v2705, 0.3275911
    %v2770 = vmul.f32 %v2706, 0.3275911
    %v2771 = vmul.f32 %v2707, 0.3275911
    %v2772 = vmul.f32 %v2708, 0.3275911
    %v2773 = vmul.f32 %v2709, 0.3275911
    %v2774 = vmul.f32 %v2710, 0.3275911
    %v2775 = vmul.f32 %v2711, 0.3275911
    %v2776 = vmul.f32 %v2712, 0.3275911
    %v2777 = vmul.f32 %v2713, 0.3275911
    %v2778 = vmul.f32 %v2714, 0.3275911
    %v2779 = vmul.f32 %v2715, 0.3275911
    %v2780 = vmul.f32 %v2716, 0.3275911
    %v2781 = vmul.f32 %v2717, 0.3275911
    %v2782 = vmul.f32 %v2718, 0.3275911
    %v2783 = vmul.f32 %v2719, 0.3275911
    %v2784 = vmul.f32 %v2720, 0.3275911
    %v2785 = vmul.f32 %v2721, 0.3275911
    %v2786 = vmul.f32 %v2722, 0.3275911
    %v2787 = vmul.f32 %v2723, 0.3275911
    %v2788 = vmul.f32 %v2724, 0.3275911
    %v2789 = vmul.f32 %v2725, 0.3275911
    %v2790 = vmul.f32 %v2726, 0.3275911
    %v2791 = vmul.f32 %v2727, 0.3275911
    %v2792 = vmul.f32 %v2728, 0.3275911
    %v2793 = vmul.f32 %v2729, 0.3275911
    %v2794 = vmul.f32 %v2730, 0.3275911
    %v2795 = vmul.f32 %v2731, 0.3275911
    %v2796 = vmul.f32 %v2732, 0.3275911
    %v2797 = vmul.f32 %v2733, 0.3275911
    %v2798 = vmul.f32 %v2734, 0.3275911
    %v2799 = vmul.f32 %v2735, 0.3275911
    %v2800 = vmul.f32 %v2736, 0.3275911
    %v2801 = vmul.f32 %v2737, 0.3275911
    %v2802 = vmul.f32 %v2738, 0.3275911
    %v2803 = vmul.f32 %v2739, 0.3275911
    %v2804 = vmul.f32 %v2740, 0.3275911
    %v2805 = vmul.f32 %v2741, 0.3275911
    %v2806 = vmul.f32 %v2742, 0.3275911
    %v2807 = vmul.f32 %v2743, 0.3275911
    %v2808 = vmul.f32 %v2744, 0.3275911
    %v2809 = vmul.f32 %v2745, 0.3275911
    %v2810 = vmul.f32 %v2746, 0.3275911
    %v2811 = vmul.f32 %v2747, 0.3275911
    %v2812 = vmul.f32 %v2748, 0.3275911
    %v2813 = vmul.f32 %v2749, 0.3275911
    %v2814 = vmul.f32 %v2750, 0.3275911
    %v2815 = vmul.f32 %v2751, 0.3275911
    %v2816 = vmul.f32 %v2752, 0.3275911
    %v2817 = vmul.f32 %v2753, 0.3275911
    %v2818 = vmul.f32 %v2754, 0.3275911
    %v2819 = vmul.f32 %v2755, 0.3275911
    %v2820 = vmul.f32 %v2756, 0.3275911
    %v2821 = vmul.f32 %v2757, 0.3275911
    %v2822 = vmul.f32 %v2758, 0.3275911
    %v2823 = vmul.f32 %v2759, 0.3275911
    %v2824 = vmul.f32 %v2760, 0.3275911
    %v2825 = vadd.f32 %v2761, 1.0
    %v2826 = vadd.f32 %v2762, 1.0
    %v2827 = vadd.f32 %v2763, 1.0
    %v2828 = vadd.f32 %v2764, 1.0
    %v2829 = vadd.f32 %v2765, 1.0
    %v2830 = vadd.f32 %v2766, 1.0
    %v2831 = vadd.f32 %v2767, 1.0
    %v2832 = vadd.f32 %v2768, 1.0
    %v2833 = vadd.f32 %v2769, 1.0
    %v2834 = vadd.f32 %v2770, 1.0
    %v2835 = vadd.f32 %v2771, 1.0
    %v2836 = vadd.f32 %v2772, 1.0
    %v2837 = vadd.f32 %v2773, 1.0
    %v2838 = vadd.f32 %v2774, 1.0
    %v2839 = vadd.f32 %v2775, 1.0
    %v2840 = vadd.f32 %v2776, 1.0
    %v2841 = vadd.f32 %v2777, 1.0
    %v2842 = vadd.f32 %v2778, 1.0
    %v2843 = vadd.f32 %v2779, 1.0
    %v2844 = vadd.f32 %v2780, 1.0
    %v2845 = vadd.f32 %v2781, 1.0
    %v2846 = vadd.f32 %v2782, 1.0
    %v2847 = vadd.f32 %v2783, 1.0
    %v2848 = vadd.f32 %v2784, 1.0
    %v2849 = vadd.f32 %v2785, 1.0
    %v2850 = vadd.f32 %v2786, 1.0
    %v2851 = vadd.f32 %v2787, 1.0
    %v2852 = vadd.f32 %v2788, 1.0
    %v2853 = vadd.f32 %v2789, 1.0
    %v2854 = vadd.f32 %v2790, 1.0
    %v2855 = vadd.f32 %v2791, 1.0
    %v2856 = vadd.f32 %v2792, 1.0
    %v2857 = vadd.f32 %v2793, 1.0
    %v2858 = vadd.f32 %v2794, 1.0
    %v2859 = vadd.f32 %v2795, 1.0
    %v2860 = vadd.f32 %v2796, 1.0
    %v2861 = vadd.f32 %v2797, 1.0
    %v2862 = vadd.f32 %v2798, 1.0
    %v2863 = vadd.f32 %v2799, 1.0
    %v2864 = vadd.f32 %v2800, 1.0
    %v2865 = vadd.f32 %v2801, 1.0
    %v2866 = vadd.f32 %v2802, 1.0
    %v2867 = vadd.f32 %v2803, 1.0
    %v2868 = vadd.f32 %v2804, 1.0
    %v2869 = vadd.f32 %v2805, 1.0
    %v2870 = vadd.f32 %v2806, 1.0
    %v2871 = vadd.f32 %v2807, 1.0
    %v2872 = vadd.f32 %v2808, 1.0
    %v2873 = vadd.f32 %v2809, 1.0
    %v2874 = vadd.f32 %v2810, 1.0
    %v2875 = vadd.f32 %v2811, 1.0
    %v2876 = vadd.f32 %v2812, 1.0
    %v2877 = vadd.f32 %v2813, 1.0
    %v2878 = vadd.f32 %v2814, 1.0
    %v2879 = vadd.f32 %v2815, 1.0
    %v2880 = vadd.f32 %v2816, 1.0
    %v2881 = vadd.f32 %v2817, 1.0
    %v2882 = vadd.f32 %v2818, 1.0
    %v2883 = vadd.f32 %v2819, 1.0
    %v2884 = vadd.f32 %v2820, 1.0
    %v2885 = vadd.f32 %v2821, 1.0
    %v2886 = vadd.f32 %v2822, 1.0
    %v2887 = vadd.f32 %v2823, 1.0
    %v2888 = vadd.f32 %v2824, 1.0
    %v2889 = vrcp.pop %v2825
    %v2890 = vrcp.pop %v2826
    %v2891 = vrcp.pop %v2827
    %v2892 = vrcp.pop %v2828
    %v2893 = vrcp.pop %v2829
    %v2894 = vrcp.pop %v2830
    %v2895 = vrcp.pop %v2831
    %v2896 = vrcp.pop %v2832
    %v2897 = vrcp.pop %v2833
    %v2898 = vrcp.pop %v2834
    %v2899 = vrcp.pop %v2835
    %v2900 = vrcp.pop %v2836
    %v2901 = vrcp.pop %v2837
    %v2902 = vrcp.pop %v2838
    %v2903 = vrcp.pop %v2839
    %v2904 = vrcp.pop %v2840
    %v2905 = vrcp.pop %v2841
    %v2906 = vrcp.pop %v2842
    %v2907 = vrcp.pop %v2843
    %v2908 = vrcp.pop %v2844
    %v2909 = vrcp.pop %v2845
    %v2910 = vrcp.pop %v2846
    %v2911 = vrcp.pop %v2847
    %v2912 = vrcp.pop %v2848
    %v2913 = vrcp.pop %v2849
    %v2914 = vrcp.pop %v2850
    %v2915 = vrcp.pop %v2851
    %v2916 = vrcp.pop %v2852
    %v2917 = vrcp.pop %v2853
    %v2918 = vrcp.pop %v2854
    %v2919 = vrcp.pop %v2855
    %v2920 = vrcp.pop %v2856
    %v2921 = vrcp.pop %v2857
    %v2922 = vrcp.pop %v2858
    %v2923 = vrcp.pop %v2859
    %v2924 = vrcp.pop %v2860
    %v2925 = vrcp.pop %v2861
    %v2926 = vrcp.pop %v2862
    %v2927 = vrcp.pop %v2863
    %v2928 = vrcp.pop %v2864
    %v2929 = vrcp.pop %v2865
    %v2930 = vrcp.pop %v2866
    %v2931 = vrcp.pop %v2867
    %v2932 = vrcp.pop %v2868
    %v2933 = vrcp.pop %v2869
    %v2934 = vrcp.pop %v2870
    %v2935 = vrcp.pop %v2871
    %v2936 = vrcp.pop %v2872
    %v2937 = vrcp.pop %v2873
    %v2938 = vrcp.pop %v2874
    %v2939 = vrcp.pop %v2875
    %v2940 = vrcp.pop %v2876
    %v2941 = vrcp.pop %v2877
    %v2942 = vrcp.pop %v2878
    %v2943 = vrcp.pop %v2879
    %v2944 = vrcp.pop %v2880
    %v2945 = vrcp.pop %v2881
    %v2946 = vrcp.pop %v2882
    %v2947 = vrcp.pop %v2883
    %v2948 = vrcp.pop %v2884
    %v2949 = vrcp.pop %v2885
    %v2950 = vrcp.pop %v2886
    %v2951 = vrcp.pop %v2887
    %v2952 = vrcp.pop %v2888
    %v2953 = vmul.f32 %v2889, 1.0614054
    %v2954 = vmul.f32 %v2890, 1.0614054
    %v2955 = vmul.f32 %v2891, 1.0614054
    %v2956 = vmul.f32 %v2892, 1.0614054
    %v2957 = vmul.f32 %v2893, 1.0614054
    %v2958 = vmul.f32 %v2894, 1.0614054
    %v2959 = vmul.f32 %v2895, 1.0614054
    %v2960 = vmul.f32 %v2896, 1.0614054
    %v2961 = vmul.f32 %v2897, 1.0614054
    %v2962 = vmul.f32 %v2898, 1.0614054
    %v2963 = vmul.f32 %v2899, 1.0614054
    %v2964 = vmul.f32 %v2900, 1.0614054
    %v2965 = vmul.f32 %v2901, 1.0614054
    %v2966 = vmul.f32 %v2902, 1.0614054
    %v2967 = vmul.f32 %v2903, 1.0614054
    %v2968 = vmul.f32 %v2904, 1.0614054
    %v2969 = vmul.f32 %v2905, 1.0614054
    %v2970 = vmul.f32 %v2906, 1.0614054
    %v2971 = vmul.f32 %v2907, 1.0614054
    %v2972 = vmul.f32 %v2908, 1.0614054
    %v2973 = vmul.f32 %v2909, 1.0614054
    %v2974 = vmul.f32 %v2910, 1.0614054
    %v2975 = vmul.f32 %v2911, 1.0614054
    %v2976 = vmul.f32 %v2912, 1.0614054
    %v2977 = vmul.f32 %v2913, 1.0614054
    %v2978 = vmul.f32 %v2914, 1.0614054
    %v2979 = vmul.f32 %v2915, 1.0614054
    %v2980 = vmul.f32 %v2916, 1.0614054
    %v2981 = vmul.f32 %v2917, 1.0614054
    %v2982 = vmul.f32 %v2918, 1.0614054
    %v2983 = vmul.f32 %v2919, 1.0614054
    %v2984 = vmul.f32 %v2920, 1.0614054
    %v2985 = vmul.f32 %v2921, 1.0614054
    %v2986 = vmul.f32 %v2922, 1.0614054
    %v2987 = vmul.f32 %v2923, 1.0614054
    %v2988 = vmul.f32 %v2924, 1.0614054
    %v2989 = vmul.f32 %v2925, 1.0614054
    %v2990 = vmul.f32 %v2926, 1.0614054
    %v2991 = vmul.f32 %v2927, 1.0614054
    %v2992 = vmul.f32 %v2928, 1.0614054
    %v2993 = vmul.f32 %v2929, 1.0614054
    %v2994 = vmul.f32 %v2930, 1.0614054
    %v2995 = vmul.f32 %v2931, 1.0614054
    %v2996 = vmul.f32 %v2932, 1.0614054
    %v2997 = vmul.f32 %v2933, 1.0614054
    %v2998 = vmul.f32 %v2934, 1.0614054
    %v2999 = vmul.f32 %v2935, 1.0614054
    %v3000 = vmul.f32 %v2936, 1.0614054
    %v3001 = vmul.f32 %v2937, 1.0614054
    %v3002 = vmul.f32 %v2938, 1.0614054
    %v3003 = vmul.f32 %v2939, 1.0614054
    %v3004 = vmul.f32 %v2940, 1.0614054
    %v3005 = vmul.f32 %v2941, 1.0614054
    %v3006 = vmul.f32 %v2942, 1.0614054
    %v3007 = vmul.f32 %v2943, 1.0614054
    %v3008 = vmul.f32 %v2944, 1.0614054
    %v3009 = vmul.f32 %v2945, 1.0614054
    %v3010 = vmul.f32 %v2946, 1.0614054
    %v3011 = vmul.f32 %v2947, 1.0614054
    %v3012 = vmul.f32 %v2948, 1.0614054
    %v3013 = vmul.f32 %v2949, 1.0614054
    %v3014 = vmul.f32 %v2950, 1.0614054
    %v3015 = vmul.f32 %v2951, 1.0614054
    %v3016 = vmul.f32 %v2952, 1.0614054
    %v3017 = vadd.f32 %v2953, -1.4531521
    %v3018 = vadd.f32 %v2954, -1.4531521
    %v3019 = vadd.f32 %v2955, -1.4531521
    %v3020 = vadd.f32 %v2956, -1.4531521
    %v3021 = vadd.f32 %v2957, -1.4531521
    %v3022 = vadd.f32 %v2958, -1.4531521
    %v3023 = vadd.f32 %v2959, -1.4531521
    %v3024 = vadd.f32 %v2960, -1.4531521
    %v3025 = vadd.f32 %v2961, -1.4531521
    %v3026 = vadd.f32 %v2962, -1.4531521
    %v3027 = vadd.f32 %v2963, -1.4531521
    %v3028 = vadd.f32 %v2964, -1.4531521
    %v3029 = vadd.f32 %v2965, -1.4531521
    %v3030 = vadd.f32 %v2966, -1.4531521
    %v3031 = vadd.f32 %v2967, -1.4531521
    %v3032 = vadd.f32 %v2968, -1.4531521
    %v3033 = vadd.f32 %v2969, -1.4531521
    %v3034 = vadd.f32 %v2970, -1.4531521
    %v3035 = vadd.f32 %v2971, -1.4531521
    %v3036 = vadd.f32 %v2972, -1.4531521
    %v3037 = vadd.f32 %v2973, -1.4531521
    %v3038 = vadd.f32 %v2974, -1.4531521
    %v3039 = vadd.f32 %v2975, -1.4531521
    %v3040 = vadd.f32 %v2976, -1.4531521
    %v3041 = vadd.f32 %v2977, -1.4531521
    %v3042 = vadd.f32 %v2978, -1.4531521
    %v3043 = vadd.f32 %v2979, -1.4531521
    %v3044 = vadd.f32 %v2980, -1.4531521
    %v3045 = vadd.f32 %v2981, -1.4531521
    %v3046 = vadd.f32 %v2982, -1.4531521
    %v3047 = vadd.f32 %v2983, -1.4531521
    %v3048 = vadd.f32 %v2984, -1.4531521
    %v3049 = vadd.f32 %v2985, -1.4531521
    %v3050 = vadd.f32 %v2986, -1.4531521
    %v3051 = vadd.f32 %v2987, -1.4531521
    %v3052 = vadd.f32 %v2988, -1.4531521
    %v3053 = vadd.f32 %v2989, -1.4531521
    %v3054 = vadd.f32 %v2990, -1.4531521
    %v3055 = vadd.f32 %v2991, -1.4531521
    %v3056 = vadd.f32 %v2992, -1.4531521
    %v3057 = vadd.f32 %v2993, -1.4531521
    %v3058 = vadd.f32 %v2994, -1.4531521
    %v3059 = vadd.f32 %v2995, -1.4531521
    %v3060 = vadd.f32 %v2996, -1.4531521
    %v3061 = vadd.f32 %v2997, -1.4531521
    %v3062 = vadd.f32 %v2998, -1.4531521
    %v3063 = vadd.f32 %v2999, -1.4531521
    %v3064 = vadd.f32 %v3000, -1.4531521
    %v3065 = vadd.f32 %v3001, -1.4531521
    %v3066 = vadd.f32 %v3002, -1.4531521
    %v3067 = vadd.f32 %v3003, -1.4531521
    %v3068 = vadd.f32 %v3004, -1.4531521
    %v3069 = vadd.f32 %v3005, -1.4531521
    %v3070 = vadd.f32 %v3006, -1.4531521
    %v3071 = vadd.f32 %v3007, -1.4531521
    %v3072 = vadd.f32 %v3008, -1.4531521
    %v3073 = vadd.f32 %v3009, -1.4531521
    %v3074 = vadd.f32 %v3010, -1.4531521
    %v3075 = vadd.f32 %v3011, -1.4531521
    %v3076 = vadd.f32 %v3012, -1.4531521
    %v3077 = vadd.f32 %v3013, -1.4531521
    %v3078 = vadd.f32 %v3014, -1.4531521
    %v3079 = vadd.f32 %v3015, -1.4531521
    %v3080 = vadd.f32 %v3016, -1.4531521
    %v3081 = vmul.f32 %v3017, %v2889
    %v3082 = vmul.f32 %v3018, %v2890
    %v3083 = vmul.f32 %v3019, %v2891
    %v3084 = vmul.f32 %v3020, %v2892
    %v3085 = vmul.f32 %v3021, %v2893
    %v3086 = vmul.f32 %v3022, %v2894
    %v3087 = vmul.f32 %v3023, %v2895
    %v3088 = vmul.f32 %v3024, %v2896
    %v3089 = vmul.f32 %v3025, %v2897
    %v3090 = vmul.f32 %v3026, %v2898
    %v3091 = vmul.f32 %v3027, %v2899
    %v3092 = vmul.f32 %v3028, %v2900
    %v3093 = vmul.f32 %v3029, %v2901
    %v3094 = vmul.f32 %v3030, %v2902
    %v3095 = vmul.f32 %v3031, %v2903
    %v3096 = vmul.f32 %v3032, %v2904
    %v3097 = vmul.f32 %v3033, %v2905
    %v3098 = vmul.f32 %v3034, %v2906
    %v3099 = vmul.f32 %v3035, %v2907
    %v3100 = vmul.f32 %v3036, %v2908
    %v3101 = vmul.f32 %v3037, %v2909
    %v3102 = vmul.f32 %v3038, %v2910
    %v3103 = vmul.f32 %v3039, %v2911
    %v3104 = vmul.f32 %v3040, %v2912
    %v3105 = vmul.f32 %v3041, %v2913
    %v3106 = vmul.f32 %v3042, %v2914
    %v3107 = vmul.f32 %v3043, %v2915
    %v3108 = vmul.f32 %v3044, %v2916
    %v3109 = vmul.f32 %v3045, %v2917
    %v3110 = vmul.f32 %v3046, %v2918
    %v3111 = vmul.f32 %v3047, %v2919
    %v3112 = vmul.f32 %v3048, %v2920
    %v3113 = vmul.f32 %v3049, %v2921
    %v3114 = vmul.f32 %v3050, %v2922
    %v3115 = vmul.f32 %v3051, %v2923
    %v3116 = vmul.f32 %v3052, %v2924
    %v3117 = vmul.f32 %v3053, %v2925
    %v3118 = vmul.f32 %v3054, %v2926
    %v3119 = vmul.f32 %v3055, %v2927
    %v3120 = vmul.f32 %v3056, %v2928
    %v3121 = vmul.f32 %v3057, %v2929
    %v3122 = vmul.f32 %v3058, %v2930
    %v3123 = vmul.f32 %v3059, %v2931
    %v3124 = vmul.f32 %v3060, %v2932
    %v3125 = vmul.f32 %v3061, %v2933
    %v3126 = vmul.f32 %v3062, %v2934
    %v3127 = vmul.f32 %v3063, %v2935
    %v3128 = vmul.f32 %v3064, %v2936
    %v3129 = vmul.f32 %v3065, %v2937
    %v3130 = vmul.f32 %v3066, %v2938
    %v3131 = vmul.f32 %v3067, %v2939
    %v3132 = vmul.f32 %v3068, %v2940
    %v3133 = vmul.f32 %v3069, %v2941
    %v3134 = vmul.f32 %v3070, %v2942
    %v3135 = vmul.f32 %v3071, %v2943
    %v3136 = vmul.f32 %v3072, %v2944
    %v3137 = vmul.f32 %v3073, %v2945
    %v3138 = vmul.f32 %v3074, %v2946
    %v3139 = vmul.f32 %v3075, %v2947
    %v3140 = vmul.f32 %v3076, %v2948
    %v3141 = vmul.f32 %v3077, %v2949
    %v3142 = vmul.f32 %v3078, %v2950
    %v3143 = vmul.f32 %v3079, %v2951
    %v3144 = vmul.f32 %v3080, %v2952
    %v3145 = vadd.f32 %v3081, 1.4214138
    %v3146 = vadd.f32 %v3082, 1.4214138
    %v3147 = vadd.f32 %v3083, 1.4214138
    %v3148 = vadd.f32 %v3084, 1.4214138
    %v3149 = vadd.f32 %v3085, 1.4214138
    %v3150 = vadd.f32 %v3086, 1.4214138
    %v3151 = vadd.f32 %v3087, 1.4214138
    %v3152 = vadd.f32 %v3088, 1.4214138
    %v3153 = vadd.f32 %v3089, 1.4214138
    %v3154 = vadd.f32 %v3090, 1.4214138
    %v3155 = vadd.f32 %v3091, 1.4214138
    %v3156 = vadd.f32 %v3092, 1.4214138
    %v3157 = vadd.f32 %v3093, 1.4214138
    %v3158 = vadd.f32 %v3094, 1.4214138
    %v3159 = vadd.f32 %v3095, 1.4214138
    %v3160 = vadd.f32 %v3096, 1.4214138
    %v3161 = vadd.f32 %v3097, 1.4214138
    %v3162 = vadd.f32 %v3098, 1.4214138
    %v3163 = vadd.f32 %v3099, 1.4214138
    %v3164 = vadd.f32 %v3100, 1.4214138
    %v3165 = vadd.f32 %v3101, 1.4214138
    %v3166 = vadd.f32 %v3102, 1.4214138
    %v3167 = vadd.f32 %v3103, 1.4214138
    %v3168 = vadd.f32 %v3104, 1.4214138
    %v3169 = vadd.f32 %v3105, 1.4214138
    %v3170 = vadd.f32 %v3106, 1.4214138
    %v3171 = vadd.f32 %v3107, 1.4214138
    %v3172 = vadd.f32 %v3108, 1.4214138
    %v3173 = vadd.f32 %v3109, 1.4214138
    %v3174 = vadd.f32 %v3110, 1.4214138
    %v3175 = vadd.f32 %v3111, 1.4214138
    %v3176 = vadd.f32 %v3112, 1.4214138
    %v3177 = vadd.f32 %v3113, 1.4214138
    %v3178 = vadd.f32 %v3114, 1.4214138
    %v3179 = vadd.f32 %v3115, 1.4214138
    %v3180 = vadd.f32 %v3116, 1.4214138
    %v3181 = vadd.f32 %v3117, 1.4214138
    %v3182 = vadd.f32 %v3118, 1.4214138
    %v3183 = vadd.f32 %v3119, 1.4214138
    %v3184 = vadd.f32 %v3120, 1.4214138
    %v3185 = vadd.f32 %v3121, 1.4214138
    %v3186 = vadd.f32 %v3122, 1.4214138
    %v3187 = vadd.f32 %v3123, 1.4214138
    %v3188 = vadd.f32 %v3124, 1.4214138
    %v3189 = vadd.f32 %v3125, 1.4214138
    %v3190 = vadd.f32 %v3126, 1.4214138
    %v3191 = vadd.f32 %v3127, 1.4214138
    %v3192 = vadd.f32 %v3128, 1.4214138
    %v3193 = vadd.f32 %v3129, 1.4214138
    %v3194 = vadd.f32 %v3130, 1.4214138
    %v3195 = vadd.f32 %v3131, 1.4214138
    %v3196 = vadd.f32 %v3132, 1.4214138
    %v3197 = vadd.f32 %v3133, 1.4214138
    %v3198 = vadd.f32 %v3134, 1.4214138
    %v3199 = vadd.f32 %v3135, 1.4214138
    %v3200 = vadd.f32 %v3136, 1.4214138
    %v3201 = vadd.f32 %v3137, 1.4214138
    %v3202 = vadd.f32 %v3138, 1.4214138
    %v3203 = vadd.f32 %v3139, 1.4214138
    %v3204 = vadd.f32 %v3140, 1.4214138
    %v3205 = vadd.f32 %v3141, 1.4214138
    %v3206 = vadd.f32 %v3142, 1.4214138
    %v3207 = vadd.f32 %v3143, 1.4214138
    %v3208 = vadd.f32 %v3144, 1.4214138
    %v3209 = vmul.f32 %v3145, %v2889
    %v3210 = vmul.f32 %v3146, %v2890
    %v3211 = vmul.f32 %v3147, %v2891
    %v3212 = vmul.f32 %v3148, %v2892
    %v3213 = vmul.f32 %v3149, %v2893
    %v3214 = vmul.f32 %v3150, %v2894
    %v3215 = vmul.f32 %v3151, %v2895
    %v3216 = vmul.f32 %v3152, %v2896
    %v3217 = vmul.f32 %v3153, %v2897
    %v3218 = vmul.f32 %v3154, %v2898
    %v3219 = vmul.f32 %v3155, %v2899
    %v3220 = vmul.f32 %v3156, %v2900
    %v3221 = vmul.f32 %v3157, %v2901
    %v3222 = vmul.f32 %v3158, %v2902
    %v3223 = vmul.f32 %v3159, %v2903
    %v3224 = vmul.f32 %v3160, %v2904
    %v3225 = vmul.f32 %v3161, %v2905
    %v3226 = vmul.f32 %v3162, %v2906
    %v3227 = vmul.f32 %v3163, %v2907
    %v3228 = vmul.f32 %v3164, %v2908
    %v3229 = vmul.f32 %v3165, %v2909
    %v3230 = vmul.f32 %v3166, %v2910
    %v3231 = vmul.f32 %v3167, %v2911
    %v3232 = vmul.f32 %v3168, %v2912
    %v3233 = vmul.f32 %v3169, %v2913
    %v3234 = vmul.f32 %v3170, %v2914
    %v3235 = vmul.f32 %v3171, %v2915
    %v3236 = vmul.f32 %v3172, %v2916
    %v3237 = vmul.f32 %v3173, %v2917
    %v3238 = vmul.f32 %v3174, %v2918
    %v3239 = vmul.f32 %v3175, %v2919
    %v3240 = vmul.f32 %v3176, %v2920
    %v3241 = vmul.f32 %v3177, %v2921
    %v3242 = vmul.f32 %v3178, %v2922
    %v3243 = vmul.f32 %v3179, %v2923
    %v3244 = vmul.f32 %v3180, %v2924
    %v3245 = vmul.f32 %v3181, %v2925
    %v3246 = vmul.f32 %v3182, %v2926
    %v3247 = vmul.f32 %v3183, %v2927
    %v3248 = vmul.f32 %v3184, %v2928
    %v3249 = vmul.f32 %v3185, %v2929
    %v3250 = vmul.f32 %v3186, %v2930
    %v3251 = vmul.f32 %v3187, %v2931
    %v3252 = vmul.f32 %v3188, %v2932
    %v3253 = vmul.f32 %v3189, %v2933
    %v3254 = vmul.f32 %v3190, %v2934
    %v3255 = vmul.f32 %v3191, %v2935
    %v3256 = vmul.f32 %v3192, %v2936
    %v3257 = vmul.f32 %v3193, %v2937
    %v3258 = vmul.f32 %v3194, %v2938
    %v3259 = vmul.f32 %v3195, %v2939
    %v3260 = vmul.f32 %v3196, %v2940
    %v3261 = vmul.f32 %v3197, %v2941
    %v3262 = vmul.f32 %v3198, %v2942
    %v3263 = vmul.f32 %v3199, %v2943
    %v3264 = vmul.f32 %v3200, %v2944
    %v3265 = vmul.f32 %v3201, %v2945
    %v3266 = vmul.f32 %v3202, %v2946
    %v3267 = vmul.f32 %v3203, %v2947
    %v3268 = vmul.f32 %v3204, %v2948
    %v3269 = vmul.f32 %v3205, %v2949
    %v3270 = vmul.f32 %v3206, %v2950
    %v3271 = vmul.f32 %v3207, %v2951
    %v3272 = vmul.f32 %v3208, %v2952
    %v3273 = vadd.f32 %v3209, -0.28449672
    %v3274 = vadd.f32 %v3210, -0.28449672
    %v3275 = vadd.f32 %v3211, -0.28449672
    %v3276 = vadd.f32 %v3212, -0.28449672
    %v3277 = vadd.f32 %v3213, -0.28449672
    %v3278 = vadd.f32 %v3214, -0.28449672
    %v3279 = vadd.f32 %v3215, -0.28449672
    %v3280 = vadd.f32 %v3216, -0.28449672
    %v3281 = vadd.f32 %v3217, -0.28449672
    %v3282 = vadd.f32 %v3218, -0.28449672
    %v3283 = vadd.f32 %v3219, -0.28449672
    %v3284 = vadd.f32 %v3220, -0.28449672
    %v3285 = vadd.f32 %v3221, -0.28449672
    %v3286 = vadd.f32 %v3222, -0.28449672
    %v3287 = vadd.f32 %v3223, -0.28449672
    %v3288 = vadd.f32 %v3224, -0.28449672
    %v3289 = vadd.f32 %v3225, -0.28449672
    %v3290 = vadd.f32 %v3226, -0.28449672
    %v3291 = vadd.f32 %v3227, -0.28449672
    %v3292 = vadd.f32 %v3228, -0.28449672
    %v3293 = vadd.f32 %v3229, -0.28449672
    %v3294 = vadd.f32 %v3230, -0.28449672
    %v3295 = vadd.f32 %v3231, -0.28449672
    %v3296 = vadd.f32 %v3232, -0.28449672
    %v3297 = vadd.f32 %v3233, -0.28449672
    %v3298 = vadd.f32 %v3234, -0.28449672
    %v3299 = vadd.f32 %v3235, -0.28449672
    %v3300 = vadd.f32 %v3236, -0.28449672
    %v3301 = vadd.f32 %v3237, -0.28449672
    %v3302 = vadd.f32 %v3238, -0.28449672
    %v3303 = vadd.f32 %v3239, -0.28449672
    %v3304 = vadd.f32 %v3240, -0.28449672
    %v3305 = vadd.f32 %v3241, -0.28449672
    %v3306 = vadd.f32 %v3242, -0.28449672
    %v3307 = vadd.f32 %v3243, -0.28449672
    %v3308 = vadd.f32 %v3244, -0.28449672
    %v3309 = vadd.f32 %v3245, -0.28449672
    %v3310 = vadd.f32 %v3246, -0.28449672
    %v3311 = vadd.f32 %v3247, -0.28449672
    %v3312 = vadd.f32 %v3248, -0.28449672
    %v3313 = vadd.f32 %v3249, -0.28449672
    %v3314 = vadd.f32 %v3250, -0.28449672
    %v3315 = vadd.f32 %v3251, -0.28449672
    %v3316 = vadd.f32 %v3252, -0.28449672
    %v3317 = vadd.f32 %v3253, -0.28449672
    %v3318 = vadd.f32 %v3254, -0.28449672
    %v3319 = vadd.f32 %v3255, -0.28449672
    %v3320 = vadd.f32 %v3256, -0.28449672
    %v3321 = vadd.f32 %v3257, -0.28449672
    %v3322 = vadd.f32 %v3258, -0.28449672
    %v3323 = vadd.f32 %v3259, -0.28449672
    %v3324 = vadd.f32 %v3260, -0.28449672
    %v3325 = vadd.f32 %v3261, -0.28449672
    %v3326 = vadd.f32 %v3262, -0.28449672
    %v3327 = vadd.f32 %v3263, -0.28449672
    %v3328 = vadd.f32 %v3264, -0.28449672
    %v3329 = vadd.f32 %v3265, -0.28449672
    %v3330 = vadd.f32 %v3266, -0.28449672
    %v3331 = vadd.f32 %v3267, -0.28449672
    %v3332 = vadd.f32 %v3268, -0.28449672
    %v3333 = vadd.f32 %v3269, -0.28449672
    %v3334 = vadd.f32 %v3270, -0.28449672
    %v3335 = vadd.f32 %v3271, -0.28449672
    %v3336 = vadd.f32 %v3272, -0.28449672
    %v3337 = vmul.f32 %v3273, %v2889
    %v3338 = vmul.f32 %v3274, %v2890
    %v3339 = vmul.f32 %v3275, %v2891
    %v3340 = vmul.f32 %v3276, %v2892
    %v3341 = vmul.f32 %v3277, %v2893
    %v3342 = vmul.f32 %v3278, %v2894
    %v3343 = vmul.f32 %v3279, %v2895
    %v3344 = vmul.f32 %v3280, %v2896
    %v3345 = vmul.f32 %v3281, %v2897
    %v3346 = vmul.f32 %v3282, %v2898
    %v3347 = vmul.f32 %v3283, %v2899
    %v3348 = vmul.f32 %v3284, %v2900
    %v3349 = vmul.f32 %v3285, %v2901
    %v3350 = vmul.f32 %v3286, %v2902
    %v3351 = vmul.f32 %v3287, %v2903
    %v3352 = vmul.f32 %v3288, %v2904
    %v3353 = vmul.f32 %v3289, %v2905
    %v3354 = vmul.f32 %v3290, %v2906
    %v3355 = vmul.f32 %v3291, %v2907
    %v3356 = vmul.f32 %v3292, %v2908
    %v3357 = vmul.f32 %v3293, %v2909
    %v3358 = vmul.f32 %v3294, %v2910
    %v3359 = vmul.f32 %v3295, %v2911
    %v3360 = vmul.f32 %v3296, %v2912
    %v3361 = vmul.f32 %v3297, %v2913
    %v3362 = vmul.f32 %v3298, %v2914
    %v3363 = vmul.f32 %v3299, %v2915
    %v3364 = vmul.f32 %v3300, %v2916
    %v3365 = vmul.f32 %v3301, %v2917
    %v3366 = vmul.f32 %v3302, %v2918
    %v3367 = vmul.f32 %v3303, %v2919
    %v3368 = vmul.f32 %v3304, %v2920
    %v3369 = vmul.f32 %v3305, %v2921
    %v3370 = vmul.f32 %v3306, %v2922
    %v3371 = vmul.f32 %v3307, %v2923
    %v3372 = vmul.f32 %v3308, %v2924
    %v3373 = vmul.f32 %v3309, %v2925
    %v3374 = vmul.f32 %v3310, %v2926
    %v3375 = vmul.f32 %v3311, %v2927
    %v3376 = vmul.f32 %v3312, %v2928
    %v3377 = vmul.f32 %v3313, %v2929
    %v3378 = vmul.f32 %v3314, %v2930
    %v3379 = vmul.f32 %v3315, %v2931
    %v3380 = vmul.f32 %v3316, %v2932
    %v3381 = vmul.f32 %v3317, %v2933
    %v3382 = vmul.f32 %v3318, %v2934
    %v3383 = vmul.f32 %v3319, %v2935
    %v3384 = vmul.f32 %v3320, %v2936
    %v3385 = vmul.f32 %v3321, %v2937
    %v3386 = vmul.f32 %v3322, %v2938
    %v3387 = vmul.f32 %v3323, %v2939
    %v3388 = vmul.f32 %v3324, %v2940
    %v3389 = vmul.f32 %v3325, %v2941
    %v3390 = vmul.f32 %v3326, %v2942
    %v3391 = vmul.f32 %v3327, %v2943
    %v3392 = vmul.f32 %v3328, %v2944
    %v3393 = vmul.f32 %v3329, %v2945
    %v3394 = vmul.f32 %v3330, %v2946
    %v3395 = vmul.f32 %v3331, %v2947
    %v3396 = vmul.f32 %v3332, %v2948
    %v3397 = vmul.f32 %v3333, %v2949
    %v3398 = vmul.f32 %v3334, %v2950
    %v3399 = vmul.f32 %v3335, %v2951
    %v3400 = vmul.f32 %v3336, %v2952
    %v3401 = vadd.f32 %v3337, 0.2548296
    %v3402 = vadd.f32 %v3338, 0.2548296
    %v3403 = vadd.f32 %v3339, 0.2548296
    %v3404 = vadd.f32 %v3340, 0.2548296
    %v3405 = vadd.f32 %v3341, 0.2548296
    %v3406 = vadd.f32 %v3342, 0.2548296
    %v3407 = vadd.f32 %v3343, 0.2548296
    %v3408 = vadd.f32 %v3344, 0.2548296
    %v3409 = vadd.f32 %v3345, 0.2548296
    %v3410 = vadd.f32 %v3346, 0.2548296
    %v3411 = vadd.f32 %v3347, 0.2548296
    %v3412 = vadd.f32 %v3348, 0.2548296
    %v3413 = vadd.f32 %v3349, 0.2548296
    %v3414 = vadd.f32 %v3350, 0.2548296
    %v3415 = vadd.f32 %v3351, 0.2548296
    %v3416 = vadd.f32 %v3352, 0.2548296
    %v3417 = vadd.f32 %v3353, 0.2548296
    %v3418 = vadd.f32 %v3354, 0.2548296
    %v3419 = vadd.f32 %v3355, 0.2548296
    %v3420 = vadd.f32 %v3356, 0.2548296
    %v3421 = vadd.f32 %v3357, 0.2548296
    %v3422 = vadd.f32 %v3358, 0.2548296
    %v3423 = vadd.f32 %v3359, 0.2548296
    %v3424 = vadd.f32 %v3360, 0.2548296
    %v3425 = vadd.f32 %v3361, 0.2548296
    %v3426 = vadd.f32 %v3362, 0.2548296
    %v3427 = vadd.f32 %v3363, 0.2548296
    %v3428 = vadd.f32 %v3364, 0.2548296
    %v3429 = vadd.f32 %v3365, 0.2548296
    %v3430 = vadd.f32 %v3366, 0.2548296
    %v3431 = vadd.f32 %v3367, 0.2548296
    %v3432 = vadd.f32 %v3368, 0.2548296
    %v3433 = vadd.f32 %v3369, 0.2548296
    %v3434 = vadd.f32 %v3370, 0.2548296
    %v3435 = vadd.f32 %v3371, 0.2548296
    %v3436 = vadd.f32 %v3372, 0.2548296
    %v3437 = vadd.f32 %v3373, 0.2548296
    %v3438 = vadd.f32 %v3374, 0.2548296
    %v3439 = vadd.f32 %v3375, 0.2548296
    %v3440 = vadd.f32 %v3376, 0.2548296
    %v3441 = vadd.f32 %v3377, 0.2548296
    %v3442 = vadd.f32 %v3378, 0.2548296
    %v3443 = vadd.f32 %v3379, 0.2548296
    %v3444 = vadd.f32 %v3380, 0.2548296
    %v3445 = vadd.f32 %v3381, 0.2548296
    %v3446 = vadd.f32 %v3382, 0.2548296
    %v3447 = vadd.f32 %v3383, 0.2548296
    %v3448 = vadd.f32 %v3384, 0.2548296
    %v3449 = vadd.f32 %v3385, 0.2548296
    %v3450 = vadd.f32 %v3386, 0.2548296
    %v3451 = vadd.f32 %v3387, 0.2548296
    %v3452 = vadd.f32 %v3388, 0.2548296
    %v3453 = vadd.f32 %v3389, 0.2548296
    %v3454 = vadd.f32 %v3390, 0.2548296
    %v3455 = vadd.f32 %v3391, 0.2548296
    %v3456 = vadd.f32 %v3392, 0.2548296
    %v3457 = vadd.f32 %v3393, 0.2548296
    %v3458 = vadd.f32 %v3394, 0.2548296
    %v3459 = vadd.f32 %v3395, 0.2548296
    %v3460 = vadd.f32 %v3396, 0.2548296
    %v3461 = vadd.f32 %v3397, 0.2548296
    %v3462 = vadd.f32 %v3398, 0.2548296
    %v3463 = vadd.f32 %v3399, 0.2548296
    %v3464 = vadd.f32 %v3400, 0.2548296
    %v3465 = vmul.f32 %v3401, %v2889
    %v3466 = vmul.f32 %v3402, %v2890
    %v3467 = vmul.f32 %v3403, %v2891
    %v3468 = vmul.f32 %v3404, %v2892
    %v3469 = vmul.f32 %v3405, %v2893
    %v3470 = vmul.f32 %v3406, %v2894
    %v3471 = vmul.f32 %v3407, %v2895
    %v3472 = vmul.f32 %v3408, %v2896
    %v3473 = vmul.f32 %v3409, %v2897
    %v3474 = vmul.f32 %v3410, %v2898
    %v3475 = vmul.f32 %v3411, %v2899
    %v3476 = vmul.f32 %v3412, %v2900
    %v3477 = vmul.f32 %v3413, %v2901
    %v3478 = vmul.f32 %v3414, %v2902
    %v3479 = vmul.f32 %v3415, %v2903
    %v3480 = vmul.f32 %v3416, %v2904
    %v3481 = vmul.f32 %v3417, %v2905
    %v3482 = vmul.f32 %v3418, %v2906
    %v3483 = vmul.f32 %v3419, %v2907
    %v3484 = vmul.f32 %v3420, %v2908
    %v3485 = vmul.f32 %v3421, %v2909
    %v3486 = vmul.f32 %v3422, %v2910
    %v3487 = vmul.f32 %v3423, %v2911
    %v3488 = vmul.f32 %v3424, %v2912
    %v3489 = vmul.f32 %v3425, %v2913
    %v3490 = vmul.f32 %v3426, %v2914
    %v3491 = vmul.f32 %v3427, %v2915
    %v3492 = vmul.f32 %v3428, %v2916
    %v3493 = vmul.f32 %v3429, %v2917
    %v3494 = vmul.f32 %v3430, %v2918
    %v3495 = vmul.f32 %v3431, %v2919
    %v3496 = vmul.f32 %v3432, %v2920
    %v3497 = vmul.f32 %v3433, %v2921
    %v3498 = vmul.f32 %v3434, %v2922
    %v3499 = vmul.f32 %v3435, %v2923
    %v3500 = vmul.f32 %v3436, %v2924
    %v3501 = vmul.f32 %v3437, %v2925
    %v3502 = vmul.f32 %v3438, %v2926
    %v3503 = vmul.f32 %v3439, %v2927
    %v3504 = vmul.f32 %v3440, %v2928
    %v3505 = vmul.f32 %v3441, %v2929
    %v3506 = vmul.f32 %v3442, %v2930
    %v3507 = vmul.f32 %v3443, %v2931
    %v3508 = vmul.f32 %v3444, %v2932
    %v3509 = vmul.f32 %v3445, %v2933
    %v3510 = vmul.f32 %v3446, %v2934
    %v3511 = vmul.f32 %v3447, %v2935
    %v3512 = vmul.f32 %v3448, %v2936
    %v3513 = vmul.f32 %v3449, %v2937
    %v3514 = vmul.f32 %v3450, %v2938
    %v3515 = vmul.f32 %v3451, %v2939
    %v3516 = vmul.f32 %v3452, %v2940
    %v3517 = vmul.f32 %v3453, %v2941
    %v3518 = vmul.f32 %v3454, %v2942
    %v3519 = vmul.f32 %v3455, %v2943
    %v3520 = vmul.f32 %v3456, %v2944
    %v3521 = vmul.f32 %v3457, %v2945
    %v3522 = vmul.f32 %v3458, %v2946
    %v3523 = vmul.f32 %v3459, %v2947
    %v3524 = vmul.f32 %v3460, %v2948
    %v3525 = vmul.f32 %v3461, %v2949
    %v3526 = vmul.f32 %v3462, %v2950
    %v3527 = vmul.f32 %v3463, %v2951
    %v3528 = vmul.f32 %v3464, %v2952
    %v3529 = vsub.f32 0.0, %v2697
    %v3530 = vsub.f32 0.0, %v2698
    %v3531 = vsub.f32 0.0, %v2699
    %v3532 = vsub.f32 0.0, %v2700
    %v3533 = vsub.f32 0.0, %v2701
    %v3534 = vsub.f32 0.0, %v2702
    %v3535 = vsub.f32 0.0, %v2703
    %v3536 = vsub.f32 0.0, %v2704
    %v3537 = vsub.f32 0.0, %v2705
    %v3538 = vsub.f32 0.0, %v2706
    %v3539 = vsub.f32 0.0, %v2707
    %v3540 = vsub.f32 0.0, %v2708
    %v3541 = vsub.f32 0.0, %v2709
    %v3542 = vsub.f32 0.0, %v2710
    %v3543 = vsub.f32 0.0, %v2711
    %v3544 = vsub.f32 0.0, %v2712
    %v3545 = vsub.f32 0.0, %v2713
    %v3546 = vsub.f32 0.0, %v2714
    %v3547 = vsub.f32 0.0, %v2715
    %v3548 = vsub.f32 0.0, %v2716
    %v3549 = vsub.f32 0.0, %v2717
    %v3550 = vsub.f32 0.0, %v2718
    %v3551 = vsub.f32 0.0, %v2719
    %v3552 = vsub.f32 0.0, %v2720
    %v3553 = vsub.f32 0.0, %v2721
    %v3554 = vsub.f32 0.0, %v2722
    %v3555 = vsub.f32 0.0, %v2723
    %v3556 = vsub.f32 0.0, %v2724
    %v3557 = vsub.f32 0.0, %v2725
    %v3558 = vsub.f32 0.0, %v2726
    %v3559 = vsub.f32 0.0, %v2727
    %v3560 = vsub.f32 0.0, %v2728
    %v3561 = vsub.f32 0.0, %v2729
    %v3562 = vsub.f32 0.0, %v2730
    %v3563 = vsub.f32 0.0, %v2731
    %v3564 = vsub.f32 0.0, %v2732
    %v3565 = vsub.f32 0.0, %v2733
    %v3566 = vsub.f32 0.0, %v2734
    %v3567 = vsub.f32 0.0, %v2735
    %v3568 = vsub.f32 0.0, %v2736
    %v3569 = vsub.f32 0.0, %v2737
    %v3570 = vsub.f32 0.0, %v2738
    %v3571 = vsub.f32 0.0, %v2739
    %v3572 = vsub.f32 0.0, %v2740
    %v3573 = vsub.f32 0.0, %v2741
    %v3574 = vsub.f32 0.0, %v2742
    %v3575 = vsub.f32 0.0, %v2743
    %v3576 = vsub.f32 0.0, %v2744
    %v3577 = vsub.f32 0.0, %v2745
    %v3578 = vsub.f32 0.0, %v2746
    %v3579 = vsub.f32 0.0, %v2747
    %v3580 = vsub.f32 0.0, %v2748
    %v3581 = vsub.f32 0.0, %v2749
    %v3582 = vsub.f32 0.0, %v2750
    %v3583 = vsub.f32 0.0, %v2751
    %v3584 = vsub.f32 0.0, %v2752
    %v3585 = vsub.f32 0.0, %v2753
    %v3586 = vsub.f32 0.0, %v2754
    %v3587 = vsub.f32 0.0, %v2755
    %v3588 = vsub.f32 0.0, %v2756
    %v3589 = vsub.f32 0.0, %v2757
    %v3590 = vsub.f32 0.0, %v2758
    %v3591 = vsub.f32 0.0, %v2759
    %v3592 = vsub.f32 0.0, %v2760
    %v3593 = vmul.f32 %v3529, %v2697
    %v3594 = vmul.f32 %v3530, %v2698
    %v3595 = vmul.f32 %v3531, %v2699
    %v3596 = vmul.f32 %v3532, %v2700
    %v3597 = vmul.f32 %v3533, %v2701
    %v3598 = vmul.f32 %v3534, %v2702
    %v3599 = vmul.f32 %v3535, %v2703
    %v3600 = vmul.f32 %v3536, %v2704
    %v3601 = vmul.f32 %v3537, %v2705
    %v3602 = vmul.f32 %v3538, %v2706
    %v3603 = vmul.f32 %v3539, %v2707
    %v3604 = vmul.f32 %v3540, %v2708
    %v3605 = vmul.f32 %v3541, %v2709
    %v3606 = vmul.f32 %v3542, %v2710
    %v3607 = vmul.f32 %v3543, %v2711
    %v3608 = vmul.f32 %v3544, %v2712
    %v3609 = vmul.f32 %v3545, %v2713
    %v3610 = vmul.f32 %v3546, %v2714
    %v3611 = vmul.f32 %v3547, %v2715
    %v3612 = vmul.f32 %v3548, %v2716
    %v3613 = vmul.f32 %v3549, %v2717
    %v3614 = vmul.f32 %v3550, %v2718
    %v3615 = vmul.f32 %v3551, %v2719
    %v3616 = vmul.f32 %v3552, %v2720
    %v3617 = vmul.f32 %v3553, %v2721
    %v3618 = vmul.f32 %v3554, %v2722
    %v3619 = vmul.f32 %v3555, %v2723
    %v3620 = vmul.f32 %v3556, %v2724
    %v3621 = vmul.f32 %v3557, %v2725
    %v3622 = vmul.f32 %v3558, %v2726
    %v3623 = vmul.f32 %v3559, %v2727
    %v3624 = vmul.f32 %v3560, %v2728
    %v3625 = vmul.f32 %v3561, %v2729
    %v3626 = vmul.f32 %v3562, %v2730
    %v3627 = vmul.f32 %v3563, %v2731
    %v3628 = vmul.f32 %v3564, %v2732
    %v3629 = vmul.f32 %v3565, %v2733
    %v3630 = vmul.f32 %v3566, %v2734
    %v3631 = vmul.f32 %v3567, %v2735
    %v3632 = vmul.f32 %v3568, %v2736
    %v3633 = vmul.f32 %v3569, %v2737
    %v3634 = vmul.f32 %v3570, %v2738
    %v3635 = vmul.f32 %v3571, %v2739
    %v3636 = vmul.f32 %v3572, %v2740
    %v3637 = vmul.f32 %v3573, %v2741
    %v3638 = vmul.f32 %v3574, %v2742
    %v3639 = vmul.f32 %v3575, %v2743
    %v3640 = vmul.f32 %v3576, %v2744
    %v3641 = vmul.f32 %v3577, %v2745
    %v3642 = vmul.f32 %v3578, %v2746
    %v3643 = vmul.f32 %v3579, %v2747
    %v3644 = vmul.f32 %v3580, %v2748
    %v3645 = vmul.f32 %v3581, %v2749
    %v3646 = vmul.f32 %v3582, %v2750
    %v3647 = vmul.f32 %v3583, %v2751
    %v3648 = vmul.f32 %v3584, %v2752
    %v3649 = vmul.f32 %v3585, %v2753
    %v3650 = vmul.f32 %v3586, %v2754
    %v3651 = vmul.f32 %v3587, %v2755
    %v3652 = vmul.f32 %v3588, %v2756
    %v3653 = vmul.f32 %v3589, %v2757
    %v3654 = vmul.f32 %v3590, %v2758
    %v3655 = vmul.f32 %v3591, %v2759
    %v3656 = vmul.f32 %v3592, %v2760
    %v3657 = vmul.f32 %v3593, 1.442695
    %v3658 = vpow.pop %v3657
    %v3659 = vmul.f32 %v3594, 1.442695
    %v3660 = vpow.pop %v3659
    %v3661 = vmul.f32 %v3595, 1.442695
    %v3662 = vpow.pop %v3661
    %v3663 = vmul.f32 %v3596, 1.442695
    %v3664 = vpow.pop %v3663
    %v3665 = vmul.f32 %v3597, 1.442695
    %v3666 = vpow.pop %v3665
    %v3667 = vmul.f32 %v3598, 1.442695
    %v3668 = vpow.pop %v3667
    %v3669 = vmul.f32 %v3599, 1.442695
    %v3670 = vpow.pop %v3669
    %v3671 = vmul.f32 %v3600, 1.442695
    %v3672 = vpow.pop %v3671
    %v3673 = vmul.f32 %v3601, 1.442695
    %v3674 = vpow.pop %v3673
    %v3675 = vmul.f32 %v3602, 1.442695
    %v3676 = vpow.pop %v3675
    %v3677 = vmul.f32 %v3603, 1.442695
    %v3678 = vpow.pop %v3677
    %v3679 = vmul.f32 %v3604, 1.442695
    %v3680 = vpow.pop %v3679
    %v3681 = vmul.f32 %v3605, 1.442695
    %v3682 = vpow.pop %v3681
    %v3683 = vmul.f32 %v3606, 1.442695
    %v3684 = vpow.pop %v3683
    %v3685 = vmul.f32 %v3607, 1.442695
    %v3686 = vpow.pop %v3685
    %v3687 = vmul.f32 %v3608, 1.442695
    %v3688 = vpow.pop %v3687
    %v3689 = vmul.f32 %v3609, 1.442695
    %v3690 = vpow.pop %v3689
    %v3691 = vmul.f32 %v3610, 1.442695
    %v3692 = vpow.pop %v3691
    %v3693 = vmul.f32 %v3611, 1.442695
    %v3694 = vpow.pop %v3693
    %v3695 = vmul.f32 %v3612, 1.442695
    %v3696 = vpow.pop %v3695
    %v3697 = vmul.f32 %v3613, 1.442695
    %v3698 = vpow.pop %v3697
    %v3699 = vmul.f32 %v3614, 1.442695
    %v3700 = vpow.pop %v3699
    %v3701 = vmul.f32 %v3615, 1.442695
    %v3702 = vpow.pop %v3701
    %v3703 = vmul.f32 %v3616, 1.442695
    %v3704 = vpow.pop %v3703
    %v3705 = vmul.f32 %v3617, 1.442695
    %v3706 = vpow.pop %v3705
    %v3707 = vmul.f32 %v3618, 1.442695
    %v3708 = vpow.pop %v3707
    %v3709 = vmul.f32 %v3619, 1.442695
    %v3710 = vpow.pop %v3709
    %v3711 = vmul.f32 %v3620, 1.442695
    %v3712 = vpow.pop %v3711
    %v3713 = vmul.f32 %v3621, 1.442695
    %v3714 = vpow.pop %v3713
    %v3715 = vmul.f32 %v3622, 1.442695
    %v3716 = vpow.pop %v3715
    %v3717 = vmul.f32 %v3623, 1.442695
    %v3718 = vpow.pop %v3717
    %v3719 = vmul.f32 %v3624, 1.442695
    %v3720 = vpow.pop %v3719
    %v3721 = vmul.f32 %v3625, 1.442695
    %v3722 = vpow.pop %v3721
    %v3723 = vmul.f32 %v3626, 1.442695
    %v3724 = vpow.pop %v3723
    %v3725 = vmul.f32 %v3627, 1.442695
    %v3726 = vpow.pop %v3725
    %v3727 = vmul.f32 %v3628, 1.442695
    %v3728 = vpow.pop %v3727
    %v3729 = vmul.f32 %v3629, 1.442695
    %v3730 = vpow.pop %v3729
    %v3731 = vmul.f32 %v3630, 1.442695
    %v3732 = vpow.pop %v3731
    %v3733 = vmul.f32 %v3631, 1.442695
    %v3734 = vpow.pop %v3733
    %v3735 = vmul.f32 %v3632, 1.442695
    %v3736 = vpow.pop %v3735
    %v3737 = vmul.f32 %v3633, 1.442695
    %v3738 = vpow.pop %v3737
    %v3739 = vmul.f32 %v3634, 1.442695
    %v3740 = vpow.pop %v3739
    %v3741 = vmul.f32 %v3635, 1.442695
    %v3742 = vpow.pop %v3741
    %v3743 = vmul.f32 %v3636, 1.442695
    %v3744 = vpow.pop %v3743
    %v3745 = vmul.f32 %v3637, 1.442695
    %v3746 = vpow.pop %v3745
    %v3747 = vmul.f32 %v3638, 1.442695
    %v3748 = vpow.pop %v3747
    %v3749 = vmul.f32 %v3639, 1.442695
    %v3750 = vpow.pop %v3749
    %v3751 = vmul.f32 %v3640, 1.442695
    %v3752 = vpow.pop %v3751
    %v3753 = vmul.f32 %v3641, 1.442695
    %v3754 = vpow.pop %v3753
    %v3755 = vmul.f32 %v3642, 1.442695
    %v3756 = vpow.pop %v3755
    %v3757 = vmul.f32 %v3643, 1.442695
    %v3758 = vpow.pop %v3757
    %v3759 = vmul.f32 %v3644, 1.442695
    %v3760 = vpow.pop %v3759
    %v3761 = vmul.f32 %v3645, 1.442695
    %v3762 = vpow.pop %v3761
    %v3763 = vmul.f32 %v3646, 1.442695
    %v3764 = vpow.pop %v3763
    %v3765 = vmul.f32 %v3647, 1.442695
    %v3766 = vpow.pop %v3765
    %v3767 = vmul.f32 %v3648, 1.442695
    %v3768 = vpow.pop %v3767
    %v3769 = vmul.f32 %v3649, 1.442695
    %v3770 = vpow.pop %v3769
    %v3771 = vmul.f32 %v3650, 1.442695
    %v3772 = vpow.pop %v3771
    %v3773 = vmul.f32 %v3651, 1.442695
    %v3774 = vpow.pop %v3773
    %v3775 = vmul.f32 %v3652, 1.442695
    %v3776 = vpow.pop %v3775
    %v3777 = vmul.f32 %v3653, 1.442695
    %v3778 = vpow.pop %v3777
    %v3779 = vmul.f32 %v3654, 1.442695
    %v3780 = vpow.pop %v3779
    %v3781 = vmul.f32 %v3655, 1.442695
    %v3782 = vpow.pop %v3781
    %v3783 = vmul.f32 %v3656, 1.442695
    %v3784 = vpow.pop %v3783
    %v3785 = vmul.f32 %v3465, %v3658
    %v3786 = vmul.f32 %v3466, %v3660
    %v3787 = vmul.f32 %v3467, %v3662
    %v3788 = vmul.f32 %v3468, %v3664
    %v3789 = vmul.f32 %v3469, %v3666
    %v3790 = vmul.f32 %v3470, %v3668
    %v3791 = vmul.f32 %v3471, %v3670
    %v3792 = vmul.f32 %v3472, %v3672
    %v3793 = vmul.f32 %v3473, %v3674
    %v3794 = vmul.f32 %v3474, %v3676
    %v3795 = vmul.f32 %v3475, %v3678
    %v3796 = vmul.f32 %v3476, %v3680
    %v3797 = vmul.f32 %v3477, %v3682
    %v3798 = vmul.f32 %v3478, %v3684
    %v3799 = vmul.f32 %v3479, %v3686
    %v3800 = vmul.f32 %v3480, %v3688
    %v3801 = vmul.f32 %v3481, %v3690
    %v3802 = vmul.f32 %v3482, %v3692
    %v3803 = vmul.f32 %v3483, %v3694
    %v3804 = vmul.f32 %v3484, %v3696
    %v3805 = vmul.f32 %v3485, %v3698
    %v3806 = vmul.f32 %v3486, %v3700
    %v3807 = vmul.f32 %v3487, %v3702
    %v3808 = vmul.f32 %v3488, %v3704
    %v3809 = vmul.f32 %v3489, %v3706
    %v3810 = vmul.f32 %v3490, %v3708
    %v3811 = vmul.f32 %v3491, %v3710
    %v3812 = vmul.f32 %v3492, %v3712
    %v3813 = vmul.f32 %v3493, %v3714
    %v3814 = vmul.f32 %v3494, %v3716
    %v3815 = vmul.f32 %v3495, %v3718
    %v3816 = vmul.f32 %v3496, %v3720
    %v3817 = vmul.f32 %v3497, %v3722
    %v3818 = vmul.f32 %v3498, %v3724
    %v3819 = vmul.f32 %v3499, %v3726
    %v3820 = vmul.f32 %v3500, %v3728
    %v3821 = vmul.f32 %v3501, %v3730
    %v3822 = vmul.f32 %v3502, %v3732
    %v3823 = vmul.f32 %v3503, %v3734
    %v3824 = vmul.f32 %v3504, %v3736
    %v3825 = vmul.f32 %v3505, %v3738
    %v3826 = vmul.f32 %v3506, %v3740
    %v3827 = vmul.f32 %v3507, %v3742
    %v3828 = vmul.f32 %v3508, %v3744
    %v3829 = vmul.f32 %v3509, %v3746
    %v3830 = vmul.f32 %v3510, %v3748
    %v3831 = vmul.f32 %v3511, %v3750
    %v3832 = vmul.f32 %v3512, %v3752
    %v3833 = vmul.f32 %v3513, %v3754
    %v3834 = vmul.f32 %v3514, %v3756
    %v3835 = vmul.f32 %v3515, %v3758
    %v3836 = vmul.f32 %v3516, %v3760
    %v3837 = vmul.f32 %v3517, %v3762
    %v3838 = vmul.f32 %v3518, %v3764
    %v3839 = vmul.f32 %v3519, %v3766
    %v3840 = vmul.f32 %v3520, %v3768
    %v3841 = vmul.f32 %v3521, %v3770
    %v3842 = vmul.f32 %v3522, %v3772
    %v3843 = vmul.f32 %v3523, %v3774
    %v3844 = vmul.f32 %v3524, %v3776
    %v3845 = vmul.f32 %v3525, %v3778
    %v3846 = vmul.f32 %v3526, %v3780
    %v3847 = vmul.f32 %v3527, %v3782
    %v3848 = vmul.f32 %v3528, %v3784
    %v3849 = vsub.f32 1.0, %v3785
    %v3850 = vsub.f32 1.0, %v3786
    %v3851 = vsub.f32 1.0, %v3787
    %v3852 = vsub.f32 1.0, %v3788
    %v3853 = vsub.f32 1.0, %v3789
    %v3854 = vsub.f32 1.0, %v3790
    %v3855 = vsub.f32 1.0, %v3791
    %v3856 = vsub.f32 1.0, %v3792
    %v3857 = vsub.f32 1.0, %v3793
    %v3858 = vsub.f32 1.0, %v3794
    %v3859 = vsub.f32 1.0, %v3795
    %v3860 = vsub.f32 1.0, %v3796
    %v3861 = vsub.f32 1.0, %v3797
    %v3862 = vsub.f32 1.0, %v3798
    %v3863 = vsub.f32 1.0, %v3799
    %v3864 = vsub.f32 1.0, %v3800
    %v3865 = vsub.f32 1.0, %v3801
    %v3866 = vsub.f32 1.0, %v3802
    %v3867 = vsub.f32 1.0, %v3803
    %v3868 = vsub.f32 1.0, %v3804
    %v3869 = vsub.f32 1.0, %v3805
    %v3870 = vsub.f32 1.0, %v3806
    %v3871 = vsub.f32 1.0, %v3807
    %v3872 = vsub.f32 1.0, %v3808
    %v3873 = vsub.f32 1.0, %v3809
    %v3874 = vsub.f32 1.0, %v3810
    %v3875 = vsub.f32 1.0, %v3811
    %v3876 = vsub.f32 1.0, %v3812
    %v3877 = vsub.f32 1.0, %v3813
    %v3878 = vsub.f32 1.0, %v3814
    %v3879 = vsub.f32 1.0, %v3815
    %v3880 = vsub.f32 1.0, %v3816
    %v3881 = vsub.f32 1.0, %v3817
    %v3882 = vsub.f32 1.0, %v3818
    %v3883 = vsub.f32 1.0, %v3819
    %v3884 = vsub.f32 1.0, %v3820
    %v3885 = vsub.f32 1.0, %v3821
    %v3886 = vsub.f32 1.0, %v3822
    %v3887 = vsub.f32 1.0, %v3823
    %v3888 = vsub.f32 1.0, %v3824
    %v3889 = vsub.f32 1.0, %v3825
    %v3890 = vsub.f32 1.0, %v3826
    %v3891 = vsub.f32 1.0, %v3827
    %v3892 = vsub.f32 1.0, %v3828
    %v3893 = vsub.f32 1.0, %v3829
    %v3894 = vsub.f32 1.0, %v3830
    %v3895 = vsub.f32 1.0, %v3831
    %v3896 = vsub.f32 1.0, %v3832
    %v3897 = vsub.f32 1.0, %v3833
    %v3898 = vsub.f32 1.0, %v3834
    %v3899 = vsub.f32 1.0, %v3835
    %v3900 = vsub.f32 1.0, %v3836
    %v3901 = vsub.f32 1.0, %v3837
    %v3902 = vsub.f32 1.0, %v3838
    %v3903 = vsub.f32 1.0, %v3839
    %v3904 = vsub.f32 1.0, %v3840
    %v3905 = vsub.f32 1.0, %v3841
    %v3906 = vsub.f32 1.0, %v3842
    %v3907 = vsub.f32 1.0, %v3843
    %v3908 = vsub.f32 1.0, %v3844
    %v3909 = vsub.f32 1.0, %v3845
    %v3910 = vsub.f32 1.0, %v3846
    %v3911 = vsub.f32 1.0, %v3847
    %v3912 = vsub.f32 1.0, %v3848
    %v3913 = vmul.f32 %v2633, %v3849
    %v3914 = vmul.f32 %v2634, %v3850
    %v3915 = vmul.f32 %v2635, %v3851
    %v3916 = vmul.f32 %v2636, %v3852
    %v3917 = vmul.f32 %v2637, %v3853
    %v3918 = vmul.f32 %v2638, %v3854
    %v3919 = vmul.f32 %v2639, %v3855
    %v3920 = vmul.f32 %v2640, %v3856
    %v3921 = vmul.f32 %v2641, %v3857
    %v3922 = vmul.f32 %v2642, %v3858
    %v3923 = vmul.f32 %v2643, %v3859
    %v3924 = vmul.f32 %v2644, %v3860
    %v3925 = vmul.f32 %v2645, %v3861
    %v3926 = vmul.f32 %v2646, %v3862
    %v3927 = vmul.f32 %v2647, %v3863
    %v3928 = vmul.f32 %v2648, %v3864
    %v3929 = vmul.f32 %v2649, %v3865
    %v3930 = vmul.f32 %v2650, %v3866
    %v3931 = vmul.f32 %v2651, %v3867
    %v3932 = vmul.f32 %v2652, %v3868
    %v3933 = vmul.f32 %v2653, %v3869
    %v3934 = vmul.f32 %v2654, %v3870
    %v3935 = vmul.f32 %v2655, %v3871
    %v3936 = vmul.f32 %v2656, %v3872
    %v3937 = vmul.f32 %v2657, %v3873
    %v3938 = vmul.f32 %v2658, %v3874
    %v3939 = vmul.f32 %v2659, %v3875
    %v3940 = vmul.f32 %v2660, %v3876
    %v3941 = vmul.f32 %v2661, %v3877
    %v3942 = vmul.f32 %v2662, %v3878
    %v3943 = vmul.f32 %v2663, %v3879
    %v3944 = vmul.f32 %v2664, %v3880
    %v3945 = vmul.f32 %v2665, %v3881
    %v3946 = vmul.f32 %v2666, %v3882
    %v3947 = vmul.f32 %v2667, %v3883
    %v3948 = vmul.f32 %v2668, %v3884
    %v3949 = vmul.f32 %v2669, %v3885
    %v3950 = vmul.f32 %v2670, %v3886
    %v3951 = vmul.f32 %v2671, %v3887
    %v3952 = vmul.f32 %v2672, %v3888
    %v3953 = vmul.f32 %v2673, %v3889
    %v3954 = vmul.f32 %v2674, %v3890
    %v3955 = vmul.f32 %v2675, %v3891
    %v3956 = vmul.f32 %v2676, %v3892
    %v3957 = vmul.f32 %v2677, %v3893
    %v3958 = vmul.f32 %v2678, %v3894
    %v3959 = vmul.f32 %v2679, %v3895
    %v3960 = vmul.f32 %v2680, %v3896
    %v3961 = vmul.f32 %v2681, %v3897
    %v3962 = vmul.f32 %v2682, %v3898
    %v3963 = vmul.f32 %v2683, %v3899
    %v3964 = vmul.f32 %v2684, %v3900
    %v3965 = vmul.f32 %v2685, %v3901
    %v3966 = vmul.f32 %v2686, %v3902
    %v3967 = vmul.f32 %v2687, %v3903
    %v3968 = vmul.f32 %v2688, %v3904
    %v3969 = vmul.f32 %v2689, %v3905
    %v3970 = vmul.f32 %v2690, %v3906
    %v3971 = vmul.f32 %v2691, %v3907
    %v3972 = vmul.f32 %v2692, %v3908
    %v3973 = vmul.f32 %v2693, %v3909
    %v3974 = vmul.f32 %v2694, %v3910
    %v3975 = vmul.f32 %v2695, %v3911
    %v3976 = vmul.f32 %v2696, %v3912
    %v3977 = vadd.f32 %v2379, %v3913
    %v3978 = vadd.f32 %v2382, %v3914
    %v3979 = vadd.f32 %v2387, %v3915
    %v3980 = vadd.f32 %v2390, %v3916
    %v3981 = vadd.f32 %v2395, %v3917
    %v3982 = vadd.f32 %v2398, %v3918
    %v3983 = vadd.f32 %v2403, %v3919
    %v3984 = vadd.f32 %v2406, %v3920
    %v3985 = vadd.f32 %v2411, %v3921
    %v3986 = vadd.f32 %v2414, %v3922
    %v3987 = vadd.f32 %v2419, %v3923
    %v3988 = vadd.f32 %v2422, %v3924
    %v3989 = vadd.f32 %v2427, %v3925
    %v3990 = vadd.f32 %v2430, %v3926
    %v3991 = vadd.f32 %v2435, %v3927
    %v3992 = vadd.f32 %v2438, %v3928
    %v3993 = vadd.f32 %v2443, %v3929
    %v3994 = vadd.f32 %v2446, %v3930
    %v3995 = vadd.f32 %v2451, %v3931
    %v3996 = vadd.f32 %v2454, %v3932
    %v3997 = vadd.f32 %v2459, %v3933
    %v3998 = vadd.f32 %v2462, %v3934
    %v3999 = vadd.f32 %v2467, %v3935
    %v4000 = vadd.f32 %v2470, %v3936
    %v4001 = vadd.f32 %v2475, %v3937
    %v4002 = vadd.f32 %v2478, %v3938
    %v4003 = vadd.f32 %v2483, %v3939
    %v4004 = vadd.f32 %v2486, %v3940
    %v4005 = vadd.f32 %v2491, %v3941
    %v4006 = vadd.f32 %v2494, %v3942
    %v4007 = vadd.f32 %v2499, %v3943
    %v4008 = vadd.f32 %v2502, %v3944
    %v4009 = vadd.f32 %v2507, %v3945
    %v4010 = vadd.f32 %v2510, %v3946
    %v4011 = vadd.f32 %v2515, %v3947
    %v4012 = vadd.f32 %v2518, %v3948
    %v4013 = vadd.f32 %v2523, %v3949
    %v4014 = vadd.f32 %v2526, %v3950
    %v4015 = vadd.f32 %v2531, %v3951
    %v4016 = vadd.f32 %v2534, %v3952
    %v4017 = vadd.f32 %v2539, %v3953
    %v4018 = vadd.f32 %v2542, %v3954
    %v4019 = vadd.f32 %v2547, %v3955
    %v4020 = vadd.f32 %v2550, %v3956
    %v4021 = vadd.f32 %v2555, %v3957
    %v4022 = vadd.f32 %v2558, %v3958
    %v4023 = vadd.f32 %v2563, %v3959
    %v4024 = vadd.f32 %v2566, %v3960
    %v4025 = vadd.f32 %v2571, %v3961
    %v4026 = vadd.f32 %v2574, %v3962
    %v4027 = vadd.f32 %v2579, %v3963
    %v4028 = vadd.f32 %v2582, %v3964
    %v4029 = vadd.f32 %v2587, %v3965
    %v4030 = vadd.f32 %v2590, %v3966
    %v4031 = vadd.f32 %v2595, %v3967
    %v4032 = vadd.f32 %v2598, %v3968
    %v4033 = vadd.f32 %v2603, %v3969
    %v4034 = vadd.f32 %v2606, %v3970
    %v4035 = vadd.f32 %v2611, %v3971
    %v4036 = vadd.f32 %v2614, %v3972
    %v4037 = vadd.f32 %v2619, %v3973
    %v4038 = vadd.f32 %v2622, %v3974
    %v4039 = vadd.f32 %v2627, %v3975
    %v4040 = vadd.f32 %v2630, %v3976
    %v4041 = vmul.f32 %v3977, 0.5
    %v4042 = vmul.f32 %v3978, 0.5
    %v4043 = vmul.f32 %v3979, 0.5
    %v4044 = vmul.f32 %v3980, 0.5
    %v4045 = vmul.f32 %v3981, 0.5
    %v4046 = vmul.f32 %v3982, 0.5
    %v4047 = vmul.f32 %v3983, 0.5
    %v4048 = vmul.f32 %v3984, 0.5
    %v4049 = vmul.f32 %v3985, 0.5
    %v4050 = vmul.f32 %v3986, 0.5
    %v4051 = vmul.f32 %v3987, 0.5
    %v4052 = vmul.f32 %v3988, 0.5
    %v4053 = vmul.f32 %v3989, 0.5
    %v4054 = vmul.f32 %v3990, 0.5
    %v4055 = vmul.f32 %v3991, 0.5
    %v4056 = vmul.f32 %v3992, 0.5
    %v4057 = vmul.f32 %v3993, 0.5
    %v4058 = vmul.f32 %v3994, 0.5
    %v4059 = vmul.f32 %v3995, 0.5
    %v4060 = vmul.f32 %v3996, 0.5
    %v4061 = vmul.f32 %v3997, 0.5
    %v4062 = vmul.f32 %v3998, 0.5
    %v4063 = vmul.f32 %v3999, 0.5
    %v4064 = vmul.f32 %v4000, 0.5
    %v4065 = vmul.f32 %v4001, 0.5
    %v4066 = vmul.f32 %v4002, 0.5
    %v4067 = vmul.f32 %v4003, 0.5
    %v4068 = vmul.f32 %v4004, 0.5
    %v4069 = vmul.f32 %v4005, 0.5
    %v4070 = vmul.f32 %v4006, 0.5
    %v4071 = vmul.f32 %v4007, 0.5
    %v4072 = vmul.f32 %v4008, 0.5
    %v4073 = vmul.f32 %v4009, 0.5
    %v4074 = vmul.f32 %v4010, 0.5
    %v4075 = vmul.f32 %v4011, 0.5
    %v4076 = vmul.f32 %v4012, 0.5
    %v4077 = vmul.f32 %v4013, 0.5
    %v4078 = vmul.f32 %v4014, 0.5
    %v4079 = vmul.f32 %v4015, 0.5
    %v4080 = vmul.f32 %v4016, 0.5
    %v4081 = vmul.f32 %v4017, 0.5
    %v4082 = vmul.f32 %v4018, 0.5
    %v4083 = vmul.f32 %v4019, 0.5
    %v4084 = vmul.f32 %v4020, 0.5
    %v4085 = vmul.f32 %v4021, 0.5
    %v4086 = vmul.f32 %v4022, 0.5
    %v4087 = vmul.f32 %v4023, 0.5
    %v4088 = vmul.f32 %v4024, 0.5
    %v4089 = vmul.f32 %v4025, 0.5
    %v4090 = vmul.f32 %v4026, 0.5
    %v4091 = vmul.f32 %v4027, 0.5
    %v4092 = vmul.f32 %v4028, 0.5
    %v4093 = vmul.f32 %v4029, 0.5
    %v4094 = vmul.f32 %v4030, 0.5
    %v4095 = vmul.f32 %v4031, 0.5
    %v4096 = vmul.f32 %v4032, 0.5
    %v4097 = vmul.f32 %v4033, 0.5
    %v4098 = vmul.f32 %v4034, 0.5
    %v4099 = vmul.f32 %v4035, 0.5
    %v4100 = vmul.f32 %v4036, 0.5
    %v4101 = vmul.f32 %v4037, 0.5
    %v4102 = vmul.f32 %v4038, 0.5
    %v4103 = vmul.f32 %v4039, 0.5
    %v4104 = vmul.f32 %v4040, 0.5
    %v4105 = vpack.c.bf16 %v4042, %v4041
    %v4106 = vpack.c.bf16 %v4044, %v4043
    %v4107 = vpack.c.bf16 %v4046, %v4045
    %v4108 = vpack.c.bf16 %v4048, %v4047
    %v4109 = vpack.c.bf16 %v4050, %v4049
    %v4110 = vpack.c.bf16 %v4052, %v4051
    %v4111 = vpack.c.bf16 %v4054, %v4053
    %v4112 = vpack.c.bf16 %v4056, %v4055
    %v4113 = vpack.c.bf16 %v4058, %v4057
    %v4114 = vpack.c.bf16 %v4060, %v4059
    %v4115 = vpack.c.bf16 %v4062, %v4061
    %v4116 = vpack.c.bf16 %v4064, %v4063
    %v4117 = vpack.c.bf16 %v4066, %v4065
    %v4118 = vpack.c.bf16 %v4068, %v4067
    %v4119 = vpack.c.bf16 %v4070, %v4069
    %v4120 = vpack.c.bf16 %v4072, %v4071
    %v4121 = vpack.c.bf16 %v4074, %v4073
    %v4122 = vpack.c.bf16 %v4076, %v4075
    %v4123 = vpack.c.bf16 %v4078, %v4077
    %v4124 = vpack.c.bf16 %v4080, %v4079
    %v4125 = vpack.c.bf16 %v4082, %v4081
    %v4126 = vpack.c.bf16 %v4084, %v4083
    %v4127 = vpack.c.bf16 %v4086, %v4085
    %v4128 = vpack.c.bf16 %v4088, %v4087
    %v4129 = vpack.c.bf16 %v4090, %v4089
    %v4130 = vpack.c.bf16 %v4092, %v4091
    %v4131 = vpack.c.bf16 %v4094, %v4093
    %v4132 = vpack.c.bf16 %v4096, %v4095
    %v4133 = vpack.c.bf16 %v4098, %v4097
    %v4134 = vpack.c.bf16 %v4100, %v4099
    %v4135 = vpack.c.bf16 %v4102, %v4101
    %v4136 = vpack.c.bf16 %v4104, %v4103
    %v4137 = vld [vmem:[%s8] sm:$0xf]
    %v4138 = vld [vmem:[%s8 + $0x4] sm:$0xf]
    %v4139 = vld [vmem:[%s8 + $0x8] sm:$0xf]
    %v4140 = vld [vmem:[%s8 + $0xc] sm:$0xf]
    %v4141 = vld [vmem:[%s8 + $0x10] sm:$0xf]
    %v4142 = vld [vmem:[%s8 + $0x14] sm:$0xf]
    %v4143 = vld [vmem:[%s8 + $0x18] sm:$0xf]
    %v4144 = vld [vmem:[%s8 + $0x1c] sm:$0xf]
    %v4145 = vld [vmem:[%s8 + $0x20] sm:$0xf]
    %v4146 = vld [vmem:[%s8 + $0x24] sm:$0xf]
    %v4147 = vld [vmem:[%s8 + $0x28] sm:$0xf]
    %v4148 = vld [vmem:[%s8 + $0x2c] sm:$0xf]
    %v4149 = vld [vmem:[%s8 + $0x30] sm:$0xf]
    %v4150 = vld [vmem:[%s8 + $0x34] sm:$0xf]
    %v4151 = vld [vmem:[%s8 + $0x38] sm:$0xf]
    %v4152 = vld [vmem:[%s8 + $0x3c] sm:$0xf]
    %v4153 = vld [vmem:[%s9] sm:$0x1]
    %v4155 = vlaneseq
    %v4156 = vshrl.u32 %v4155, 7
    %v4157 = vsub.s32 0, %v4156
    %v4158 = vrot.slane %v4153, %v4157
    %v4176 = vunpack.c.l.b16 %v4137
    %v4177 = vunpack.c.l.b16 %v4138
    %v4178 = vunpack.c.l.b16 %v4139
    %v4179 = vunpack.c.l.b16 %v4140
    %v4180 = vunpack.c.l.b16 %v4141
    %v4181 = vunpack.c.l.b16 %v4142
    %v4182 = vunpack.c.l.b16 %v4143
    %v4183 = vunpack.c.l.b16 %v4144
    %v4184 = vunpack.c.l.b16 %v4145
    %v4185 = vunpack.c.l.b16 %v4146
    %v4186 = vunpack.c.l.b16 %v4147
    %v4187 = vunpack.c.l.b16 %v4148
    %v4188 = vunpack.c.l.b16 %v4149
    %v4189 = vunpack.c.l.b16 %v4150
    %v4190 = vunpack.c.l.b16 %v4151
    %v4191 = vunpack.c.l.b16 %v4152
    %v4192 = vpack.c.b16 %v4177, %v4176
    %v4193 = vpack.c.b16 %v4179, %v4178
    %v4194 = vpack.c.b16 %v4181, %v4180
    %v4195 = vpack.c.b16 %v4183, %v4182
    %v4196 = vpack.c.b16 %v4185, %v4184
    %v4197 = vpack.c.b16 %v4187, %v4186
    %v4198 = vpack.c.b16 %v4189, %v4188
    %v4199 = vpack.c.b16 %v4191, %v4190
    %4208 = vmatprep.subr.bf16.mxu0 0
    %4209 = vmatpush1.bf16.msra.mxu0 %v4199
    %4210 = vmatprep.subr.bf16.mxu0 0
    %4211 = vmatpush1.bf16.msra.mxu0 %v4198
    %4212 = vmatprep.subr.bf16.mxu0 0
    %4213 = vmatpush1.bf16.msra.mxu0 %v4197
    %4214 = vmatprep.subr.bf16.mxu0 0
    %4215 = vmatpush1.bf16.msra.mxu0 %v4196
    %4216 = vmatprep.subr.bf16.mxu0 0
    %4217 = vmatpush1.bf16.msra.mxu0 %v4195
    %4218 = vmatprep.subr.bf16.mxu0 0
    %4219 = vmatpush1.bf16.msra.mxu0 %v4194
    %4220 = vmatprep.subr.bf16.mxu0 0
    %4221 = vmatpush1.bf16.msra.mxu0 %v4193
    %4222 = vmatprep.subr.bf16.mxu0 0
    %4223 = vmatpush1.bf16.msra.mxu0 %v4192
    %4224 = vmatprep.subr.bf16.mxu0 0
    %4225 = vmatpush2.bf16.msra.mxu0 0
    %4226 = vmatprep.subr.bf16.mxu0 0
    %4227 = vmatpush2.bf16.msra.mxu0 0
    %4228 = vmatprep.subr.bf16.mxu0 0
    %4229 = vmatpush2.bf16.msra.mxu0 0
    %4230 = vmatprep.subr.bf16.mxu0 0
    %4231 = vmatpush2.bf16.msra.mxu0 0
    %4232 = vmatprep.subr.bf16.mxu0 0
    %4233 = vmatpush2.bf16.msra.mxu0 0
    %4234 = vmatprep.subr.bf16.mxu0 0
    %4235 = vmatpush2.bf16.msra.mxu0 0
    %4236 = vmatprep.subr.bf16.mxu0 0
    %4237 = vmatpush2.bf16.msra.mxu0 0
    %4238 = vmatprep.subr.bf16.mxu0 0
    %4239 = vmatpush2.bf16.msra.mxu0 0
    %4240 = vmatprep.mubr.bf16.mxu0 0
    %4241 = vmatmul.mubr.bf16.gmra.mxu0 %v4105
    %v4242 = vpop.f32.mrf.mxu0
    %v4243 = vadd.f32 %v4158, %v4242
    %v4244 = vpop.f32.mrf.mxu0
    %v4245 = vpop.f32.mrf.mxu0
    %v4246 = vadd.f32 %v4158, %v4245
    %v4247 = vpop.f32.mrf.mxu0
    %4248 = vmatprep.mubr.bf16.mxu0 0
    %4249 = vmatmul.mubr.bf16.gmra.mxu0 %v4106
    %v4250 = vpop.f32.mrf.mxu0
    %v4251 = vadd.f32 %v4158, %v4250
    %v4252 = vpop.f32.mrf.mxu0
    %v4253 = vpop.f32.mrf.mxu0
    %v4254 = vadd.f32 %v4158, %v4253
    %v4255 = vpop.f32.mrf.mxu0
    %4256 = vmatprep.mubr.bf16.mxu0 0
    %4257 = vmatmul.mubr.bf16.gmra.mxu0 %v4107
    %v4258 = vpop.f32.mrf.mxu0
    %v4259 = vadd.f32 %v4158, %v4258
    %v4260 = vpop.f32.mrf.mxu0
    %v4261 = vpop.f32.mrf.mxu0
    %v4262 = vadd.f32 %v4158, %v4261
    %v4263 = vpop.f32.mrf.mxu0
    %4264 = vmatprep.mubr.bf16.mxu0 0
    %4265 = vmatmul.mubr.bf16.gmra.mxu0 %v4108
    %v4266 = vpop.f32.mrf.mxu0
    %v4267 = vadd.f32 %v4158, %v4266
    %v4268 = vpop.f32.mrf.mxu0
    %v4269 = vpop.f32.mrf.mxu0
    %v4270 = vadd.f32 %v4158, %v4269
    %v4271 = vpop.f32.mrf.mxu0
    %4272 = vmatprep.mubr.bf16.mxu0 0
    %4273 = vmatmul.mubr.bf16.gmra.mxu0 %v4109
    %v4274 = vpop.f32.mrf.mxu0
    %v4275 = vadd.f32 %v4158, %v4274
    %v4276 = vpop.f32.mrf.mxu0
    %v4277 = vpop.f32.mrf.mxu0
    %v4278 = vadd.f32 %v4158, %v4277
    %v4279 = vpop.f32.mrf.mxu0
    %4280 = vmatprep.mubr.bf16.mxu0 0
    %4281 = vmatmul.mubr.bf16.gmra.mxu0 %v4110
    %v4282 = vpop.f32.mrf.mxu0
    %v4283 = vadd.f32 %v4158, %v4282
    %v4284 = vpop.f32.mrf.mxu0
    %v4285 = vpop.f32.mrf.mxu0
    %v4286 = vadd.f32 %v4158, %v4285
    %v4287 = vpop.f32.mrf.mxu0
    %4288 = vmatprep.mubr.bf16.mxu0 0
    %4289 = vmatmul.mubr.bf16.gmra.mxu0 %v4111
    %v4290 = vpop.f32.mrf.mxu0
    %v4291 = vadd.f32 %v4158, %v4290
    %v4292 = vpop.f32.mrf.mxu0
    %v4293 = vpop.f32.mrf.mxu0
    %v4294 = vadd.f32 %v4158, %v4293
    %v4295 = vpop.f32.mrf.mxu0
    %4296 = vmatprep.mubr.bf16.mxu0 0
    %4297 = vmatmul.mubr.bf16.gmra.mxu0 %v4112
    %v4298 = vpop.f32.mrf.mxu0
    %v4299 = vadd.f32 %v4158, %v4298
    %v4300 = vpop.f32.mrf.mxu0
    %v4301 = vpop.f32.mrf.mxu0
    %v4302 = vadd.f32 %v4158, %v4301
    %v4303 = vpop.f32.mrf.mxu0
    %4304 = vmatprep.mubr.bf16.mxu0 0
    %4305 = vmatmul.mubr.bf16.gmra.mxu0 %v4113
    %v4306 = vpop.f32.mrf.mxu0
    %v4307 = vadd.f32 %v4158, %v4306
    %v4308 = vpop.f32.mrf.mxu0
    %v4309 = vpop.f32.mrf.mxu0
    %v4310 = vadd.f32 %v4158, %v4309
    %v4311 = vpop.f32.mrf.mxu0
    %4312 = vmatprep.mubr.bf16.mxu0 0
    %4313 = vmatmul.mubr.bf16.gmra.mxu0 %v4114
    %v4314 = vpop.f32.mrf.mxu0
    %v4315 = vadd.f32 %v4158, %v4314
    %v4316 = vpop.f32.mrf.mxu0
    %v4317 = vpop.f32.mrf.mxu0
    %v4318 = vadd.f32 %v4158, %v4317
    %v4319 = vpop.f32.mrf.mxu0
    %4320 = vmatprep.mubr.bf16.mxu0 0
    %4321 = vmatmul.mubr.bf16.gmra.mxu0 %v4115
    %v4322 = vpop.f32.mrf.mxu0
    %v4323 = vadd.f32 %v4158, %v4322
    %v4324 = vpop.f32.mrf.mxu0
    %v4325 = vpop.f32.mrf.mxu0
    %v4326 = vadd.f32 %v4158, %v4325
    %v4327 = vpop.f32.mrf.mxu0
    %4328 = vmatprep.mubr.bf16.mxu0 0
    %4329 = vmatmul.mubr.bf16.gmra.mxu0 %v4116
    %v4330 = vpop.f32.mrf.mxu0
    %v4331 = vadd.f32 %v4158, %v4330
    %v4332 = vpop.f32.mrf.mxu0
    %v4333 = vpop.f32.mrf.mxu0
    %v4334 = vadd.f32 %v4158, %v4333
    %v4335 = vpop.f32.mrf.mxu0
    %4336 = vmatprep.mubr.bf16.mxu0 0
    %4337 = vmatmul.mubr.bf16.gmra.mxu0 %v4117
    %v4338 = vpop.f32.mrf.mxu0
    %v4339 = vadd.f32 %v4158, %v4338
    %v4340 = vpop.f32.mrf.mxu0
    %v4341 = vpop.f32.mrf.mxu0
    %v4342 = vadd.f32 %v4158, %v4341
    %v4343 = vpop.f32.mrf.mxu0
    %4344 = vmatprep.mubr.bf16.mxu0 0
    %4345 = vmatmul.mubr.bf16.gmra.mxu0 %v4118
    %v4346 = vpop.f32.mrf.mxu0
    %v4347 = vadd.f32 %v4158, %v4346
    %v4348 = vpop.f32.mrf.mxu0
    %v4349 = vpop.f32.mrf.mxu0
    %v4350 = vadd.f32 %v4158, %v4349
    %v4351 = vpop.f32.mrf.mxu0
    %4352 = vmatprep.mubr.bf16.mxu0 0
    %4353 = vmatmul.mubr.bf16.gmra.mxu0 %v4119
    %v4354 = vpop.f32.mrf.mxu0
    %v4355 = vadd.f32 %v4158, %v4354
    %v4356 = vpop.f32.mrf.mxu0
    %v4357 = vpop.f32.mrf.mxu0
    %v4358 = vadd.f32 %v4158, %v4357
    %v4359 = vpop.f32.mrf.mxu0
    %4360 = vmatprep.mubr.bf16.mxu0 0
    %4361 = vmatmul.mubr.bf16.gmra.mxu0 %v4120
    %v4362 = vpop.f32.mrf.mxu0
    %v4363 = vadd.f32 %v4158, %v4362
    %v4364 = vpop.f32.mrf.mxu0
    %v4365 = vpop.f32.mrf.mxu0
    %v4366 = vadd.f32 %v4158, %v4365
    %v4367 = vpop.f32.mrf.mxu0
    %4368 = vmatprep.mubr.bf16.mxu0 0
    %4369 = vmatmul.mubr.bf16.gmra.mxu0 %v4121
    %v4370 = vpop.f32.mrf.mxu0
    %v4371 = vadd.f32 %v4158, %v4370
    %v4372 = vpop.f32.mrf.mxu0
    %v4373 = vpop.f32.mrf.mxu0
    %v4374 = vadd.f32 %v4158, %v4373
    %v4375 = vpop.f32.mrf.mxu0
    %4376 = vmatprep.mubr.bf16.mxu0 0
    %4377 = vmatmul.mubr.bf16.gmra.mxu0 %v4122
    %v4378 = vpop.f32.mrf.mxu0
    %v4379 = vadd.f32 %v4158, %v4378
    %v4380 = vpop.f32.mrf.mxu0
    %v4381 = vpop.f32.mrf.mxu0
    %v4382 = vadd.f32 %v4158, %v4381
    %v4383 = vpop.f32.mrf.mxu0
    %4384 = vmatprep.mubr.bf16.mxu0 0
    %4385 = vmatmul.mubr.bf16.gmra.mxu0 %v4123
    %v4386 = vpop.f32.mrf.mxu0
    %v4387 = vadd.f32 %v4158, %v4386
    %v4388 = vpop.f32.mrf.mxu0
    %v4389 = vpop.f32.mrf.mxu0
    %v4390 = vadd.f32 %v4158, %v4389
    %v4391 = vpop.f32.mrf.mxu0
    %4392 = vmatprep.mubr.bf16.mxu0 0
    %4393 = vmatmul.mubr.bf16.gmra.mxu0 %v4124
    %v4394 = vpop.f32.mrf.mxu0
    %v4395 = vadd.f32 %v4158, %v4394
    %v4396 = vpop.f32.mrf.mxu0
    %v4397 = vpop.f32.mrf.mxu0
    %v4398 = vadd.f32 %v4158, %v4397
    %v4399 = vpop.f32.mrf.mxu0
    %4400 = vmatprep.mubr.bf16.mxu0 0
    %4401 = vmatmul.mubr.bf16.gmra.mxu0 %v4125
    %v4402 = vpop.f32.mrf.mxu0
    %v4403 = vadd.f32 %v4158, %v4402
    %v4404 = vpop.f32.mrf.mxu0
    %v4405 = vpop.f32.mrf.mxu0
    %v4406 = vadd.f32 %v4158, %v4405
    %v4407 = vpop.f32.mrf.mxu0
    %4408 = vmatprep.mubr.bf16.mxu0 0
    %4409 = vmatmul.mubr.bf16.gmra.mxu0 %v4126
    %v4410 = vpop.f32.mrf.mxu0
    %v4411 = vadd.f32 %v4158, %v4410
    %v4412 = vpop.f32.mrf.mxu0
    %v4413 = vpop.f32.mrf.mxu0
    %v4414 = vadd.f32 %v4158, %v4413
    %v4415 = vpop.f32.mrf.mxu0
    %4416 = vmatprep.mubr.bf16.mxu0 0
    %4417 = vmatmul.mubr.bf16.gmra.mxu0 %v4127
    %v4418 = vpop.f32.mrf.mxu0
    %v4419 = vadd.f32 %v4158, %v4418
    %v4420 = vpop.f32.mrf.mxu0
    %v4421 = vpop.f32.mrf.mxu0
    %v4422 = vadd.f32 %v4158, %v4421
    %v4423 = vpop.f32.mrf.mxu0
    %4424 = vmatprep.mubr.bf16.mxu0 0
    %4425 = vmatmul.mubr.bf16.gmra.mxu0 %v4128
    %v4426 = vpop.f32.mrf.mxu0
    %v4427 = vadd.f32 %v4158, %v4426
    %v4428 = vpop.f32.mrf.mxu0
    %v4429 = vpop.f32.mrf.mxu0
    %v4430 = vadd.f32 %v4158, %v4429
    %v4431 = vpop.f32.mrf.mxu0
    %4432 = vmatprep.mubr.bf16.mxu0 0
    %4433 = vmatmul.mubr.bf16.gmra.mxu0 %v4129
    %v4434 = vpop.f32.mrf.mxu0
    %v4435 = vadd.f32 %v4158, %v4434
    %v4436 = vpop.f32.mrf.mxu0
    %v4437 = vpop.f32.mrf.mxu0
    %v4438 = vadd.f32 %v4158, %v4437
    %v4439 = vpop.f32.mrf.mxu0
    %4440 = vmatprep.mubr.bf16.mxu0 0
    %4441 = vmatmul.mubr.bf16.gmra.mxu0 %v4130
    %v4442 = vpop.f32.mrf.mxu0
    %v4443 = vadd.f32 %v4158, %v4442
    %v4444 = vpop.f32.mrf.mxu0
    %v4445 = vpop.f32.mrf.mxu0
    %v4446 = vadd.f32 %v4158, %v4445
    %v4447 = vpop.f32.mrf.mxu0
    %4448 = vmatprep.mubr.bf16.mxu0 0
    %4449 = vmatmul.mubr.bf16.gmra.mxu0 %v4131
    %v4450 = vpop.f32.mrf.mxu0
    %v4451 = vadd.f32 %v4158, %v4450
    %v4452 = vpop.f32.mrf.mxu0
    %v4453 = vpop.f32.mrf.mxu0
    %v4454 = vadd.f32 %v4158, %v4453
    %v4455 = vpop.f32.mrf.mxu0
    %4456 = vmatprep.mubr.bf16.mxu0 0
    %4457 = vmatmul.mubr.bf16.gmra.mxu0 %v4132
    %v4458 = vpop.f32.mrf.mxu0
    %v4459 = vadd.f32 %v4158, %v4458
    %v4460 = vpop.f32.mrf.mxu0
    %v4461 = vpop.f32.mrf.mxu0
    %v4462 = vadd.f32 %v4158, %v4461
    %v4463 = vpop.f32.mrf.mxu0
    %4464 = vmatprep.mubr.bf16.mxu0 0
    %4465 = vmatmul.mubr.bf16.gmra.mxu0 %v4133
    %v4466 = vpop.f32.mrf.mxu0
    %v4467 = vadd.f32 %v4158, %v4466
    %v4468 = vpop.f32.mrf.mxu0
    %v4469 = vpop.f32.mrf.mxu0
    %v4470 = vadd.f32 %v4158, %v4469
    %v4471 = vpop.f32.mrf.mxu0
    %4472 = vmatprep.mubr.bf16.mxu0 0
    %4473 = vmatmul.mubr.bf16.gmra.mxu0 %v4134
    %v4474 = vpop.f32.mrf.mxu0
    %v4475 = vadd.f32 %v4158, %v4474
    %v4476 = vpop.f32.mrf.mxu0
    %v4477 = vpop.f32.mrf.mxu0
    %v4478 = vadd.f32 %v4158, %v4477
    %v4479 = vpop.f32.mrf.mxu0
    %4480 = vmatprep.mubr.bf16.mxu0 0
    %4481 = vmatmul.mubr.bf16.gmra.mxu0 %v4135
    %v4482 = vpop.f32.mrf.mxu0
    %v4483 = vadd.f32 %v4158, %v4482
    %v4484 = vpop.f32.mrf.mxu0
    %v4485 = vpop.f32.mrf.mxu0
    %v4486 = vadd.f32 %v4158, %v4485
    %v4487 = vpop.f32.mrf.mxu0
    %4488 = vmatprep.mubr.bf16.mxu0 0
    %4489 = vmatmul.mubr.bf16.gmra.mxu0 %v4136
    %v4490 = vpop.f32.mrf.mxu0
    %v4491 = vadd.f32 %v4158, %v4490
    %v4492 = vpop.f32.mrf.mxu0
    %v4493 = vpop.f32.mrf.mxu0
    %v4494 = vadd.f32 %v4158, %v4493
    %v4495 = vpop.f32.mrf.mxu0
    %4496 = vdwg.mxu0
    %v4497 = vadd.f32 %v1203, %v4243
    %v4498 = vadd.f32 %v1204, %v4246
    %v4499 = vadd.f32 %v1205, %v4251
    %v4500 = vadd.f32 %v1206, %v4254
    %v4501 = vadd.f32 %v1207, %v4259
    %v4502 = vadd.f32 %v1208, %v4262
    %v4503 = vadd.f32 %v1209, %v4267
    %v4504 = vadd.f32 %v1210, %v4270
    %v4505 = vadd.f32 %v1211, %v4275
    %v4506 = vadd.f32 %v1212, %v4278
    %v4507 = vadd.f32 %v1213, %v4283
    %v4508 = vadd.f32 %v1214, %v4286
    %v4509 = vadd.f32 %v1215, %v4291
    %v4510 = vadd.f32 %v1216, %v4294
    %v4511 = vadd.f32 %v1217, %v4299
    %v4512 = vadd.f32 %v1218, %v4302
    %v4513 = vadd.f32 %v1219, %v4307
    %v4514 = vadd.f32 %v1220, %v4310
    %v4515 = vadd.f32 %v1221, %v4315
    %v4516 = vadd.f32 %v1222, %v4318
    %v4517 = vadd.f32 %v1223, %v4323
    %v4518 = vadd.f32 %v1224, %v4326
    %v4519 = vadd.f32 %v1225, %v4331
    %v4520 = vadd.f32 %v1226, %v4334
    %v4521 = vadd.f32 %v1227, %v4339
    %v4522 = vadd.f32 %v1228, %v4342
    %v4523 = vadd.f32 %v1229, %v4347
    %v4524 = vadd.f32 %v1230, %v4350
    %v4525 = vadd.f32 %v1231, %v4355
    %v4526 = vadd.f32 %v1232, %v4358
    %v4527 = vadd.f32 %v1233, %v4363
    %v4528 = vadd.f32 %v1234, %v4366
    %v4529 = vadd.f32 %v1235, %v4371
    %v4530 = vadd.f32 %v1236, %v4374
    %v4531 = vadd.f32 %v1237, %v4379
    %v4532 = vadd.f32 %v1238, %v4382
    %v4533 = vadd.f32 %v1239, %v4387
    %v4534 = vadd.f32 %v1240, %v4390
    %v4535 = vadd.f32 %v1241, %v4395
    %v4536 = vadd.f32 %v1242, %v4398
    %v4537 = vadd.f32 %v1243, %v4403
    %v4538 = vadd.f32 %v1244, %v4406
    %v4539 = vadd.f32 %v1245, %v4411
    %v4540 = vadd.f32 %v1246, %v4414
    %v4541 = vadd.f32 %v1247, %v4419
    %v4542 = vadd.f32 %v1248, %v4422
    %v4543 = vadd.f32 %v1249, %v4427
    %v4544 = vadd.f32 %v1250, %v4430
    %v4545 = vadd.f32 %v1251, %v4435
    %v4546 = vadd.f32 %v1252, %v4438
    %v4547 = vadd.f32 %v1253, %v4443
    %v4548 = vadd.f32 %v1254, %v4446
    %v4549 = vadd.f32 %v1255, %v4451
    %v4550 = vadd.f32 %v1256, %v4454
    %v4551 = vadd.f32 %v1257, %v4459
    %v4552 = vadd.f32 %v1258, %v4462
    %v4553 = vadd.f32 %v1259, %v4467
    %v4554 = vadd.f32 %v1260, %v4470
    %v4555 = vadd.f32 %v1261, %v4475
    %v4556 = vadd.f32 %v1262, %v4478
    %v4557 = vadd.f32 %v1263, %v4483
    %v4558 = vadd.f32 %v1264, %v4486
    %v4559 = vadd.f32 %v1265, %v4491
    %v4560 = vadd.f32 %v1266, %v4494
    %4561 = vst [vmem:[#allocation2] sm:$0xff] %v4497
    %4562 = vst [vmem:[#allocation2 + $0x8] sm:$0xff] %v4498
    %4563 = vst [vmem:[#allocation2 + $0x10] sm:$0xff] %v4499
    %4564 = vst [vmem:[#allocation2 + $0x18] sm:$0xff] %v4500
    %4565 = vst [vmem:[#allocation2 + $0x20] sm:$0xff] %v4501
    %4566 = vst [vmem:[#allocation2 + $0x28] sm:$0xff] %v4502
    %4567 = vst [vmem:[#allocation2 + $0x30] sm:$0xff] %v4503
    %4568 = vst [vmem:[#allocation2 + $0x38] sm:$0xff] %v4504
    %4569 = vst [vmem:[#allocation2 + $0x40] sm:$0xff] %v4505
    %4570 = vst [vmem:[#allocation2 + $0x48] sm:$0xff] %v4506
    %4571 = vst [vmem:[#allocation2 + $0x50] sm:$0xff] %v4507
    %4572 = vst [vmem:[#allocation2 + $0x58] sm:$0xff] %v4508
    %4573 = vst [vmem:[#allocation2 + $0x60] sm:$0xff] %v4509
    %4574 = vst [vmem:[#allocation2 + $0x68] sm:$0xff] %v4510
    %4575 = vst [vmem:[#allocation2 + $0x70] sm:$0xff] %v4511
    %4576 = vst [vmem:[#allocation2 + $0x78] sm:$0xff] %v4512
    %4577 = vst [vmem:[#allocation2 + $0x80] sm:$0xff] %v4513
    %4578 = vst [vmem:[#allocation2 + $0x88] sm:$0xff] %v4514
    %4579 = vst [vmem:[#allocation2 + $0x90] sm:$0xff] %v4515
    %4580 = vst [vmem:[#allocation2 + $0x98] sm:$0xff] %v4516
    %4581 = vst [vmem:[#allocation2 + $0xa0] sm:$0xff] %v4517
    %4582 = vst [vmem:[#allocation2 + $0xa8] sm:$0xff] %v4518
    %4583 = vst [vmem:[#allocation2 + $0xb0] sm:$0xff] %v4519
    %4584 = vst [vmem:[#allocation2 + $0xb8] sm:$0xff] %v4520
    %4585 = vst [vmem:[#allocation2 + $0xc0] sm:$0xff] %v4521
    %4586 = vst [vmem:[#allocation2 + $0xc8] sm:$0xff] %v4522
    %4587 = vst [vmem:[#allocation2 + $0xd0] sm:$0xff] %v4523
    %4588 = vst [vmem:[#allocation2 + $0xd8] sm:$0xff] %v4524
    %4589 = vst [vmem:[#allocation2 + $0xe0] sm:$0xff] %v4525
    %4590 = vst [vmem:[#allocation2 + $0xe8] sm:$0xff] %v4526
    %4591 = vst [vmem:[#allocation2 + $0xf0] sm:$0xff] %v4527
    %4592 = vst [vmem:[#allocation2 + $0xf8] sm:$0xff] %v4528
    %4593 = vst [vmem:[#allocation2 + $0x100] sm:$0xff] %v4529
    %4594 = vst [vmem:[#allocation2 + $0x108] sm:$0xff] %v4530
    %4595 = vst [vmem:[#allocation2 + $0x110] sm:$0xff] %v4531
    %4596 = vst [vmem:[#allocation2 + $0x118] sm:$0xff] %v4532
    %4597 = vst [vmem:[#allocation2 + $0x120] sm:$0xff] %v4533
    %4598 = vst [vmem:[#allocation2 + $0x128] sm:$0xff] %v4534
    %4599 = vst [vmem:[#allocation2 + $0x130] sm:$0xff] %v4535
    %4600 = vst [vmem:[#allocation2 + $0x138] sm:$0xff] %v4536
    %4601 = vst [vmem:[#allocation2 + $0x140] sm:$0xff] %v4537
    %4602 = vst [vmem:[#allocation2 + $0x148] sm:$0xff] %v4538
    %4603 = vst [vmem:[#allocation2 + $0x150] sm:$0xff] %v4539
    %4604 = vst [vmem:[#allocation2 + $0x158] sm:$0xff] %v4540
    %4605 = vst [vmem:[#allocation2 + $0x160] sm:$0xff] %v4541
    %4606 = vst [vmem:[#allocation2 + $0x168] sm:$0xff] %v4542
    %4607 = vst [vmem:[#allocation2 + $0x170] sm:$0xff] %v4543
    %4608 = vst [vmem:[#allocation2 + $0x178] sm:$0xff] %v4544
    %4609 = vst [vmem:[#allocation2 + $0x180] sm:$0xff] %v4545
    %4610 = vst [vmem:[#allocation2 + $0x188] sm:$0xff] %v4546
    %4611 = vst [vmem:[#allocation2 + $0x190] sm:$0xff] %v4547
    %4612 = vst [vmem:[#allocation2 + $0x198] sm:$0xff] %v4548
    %4613 = vst [vmem:[#allocation2 + $0x1a0] sm:$0xff] %v4549
    %4614 = vst [vmem:[#allocation2 + $0x1a8] sm:$0xff] %v4550
    %4615 = vst [vmem:[#allocation2 + $0x1b0] sm:$0xff] %v4551
    %4616 = vst [vmem:[#allocation2 + $0x1b8] sm:$0xff] %v4552
    %4617 = vst [vmem:[#allocation2 + $0x1c0] sm:$0xff] %v4553
    %4618 = vst [vmem:[#allocation2 + $0x1c8] sm:$0xff] %v4554
    %4619 = vst [vmem:[#allocation2 + $0x1d0] sm:$0xff] %v4555
    %4620 = vst [vmem:[#allocation2 + $0x1d8] sm:$0xff] %v4556
    %4621 = vst [vmem:[#allocation2 + $0x1e0] sm:$0xff] %v4557
    %4622 = vst [vmem:[#allocation2 + $0x1e8] sm:$0xff] %v4558
    %4623 = vst [vmem:[#allocation2 + $0x1f0] sm:$0xff] %v4559
    %4624 = vst [vmem:[#allocation2 + $0x1f8] sm:$0xff] %v4560
    // Predicated region
    $region42: #{run.7} parent=1 // pred_check
      _
    $region43: #{run.7} parent=1 // pred_check_branch
      %4626 = sbr.rel (0) target = $region45
    $region44: #{run.7} parent=1 // pred_region
      %s4628 = ssub.s32 8192, 8192
      %4629 = vsyncadd [#allocation3], %s4628
      %s4630 = sshll.u32 [#allocation2], 4
      %s4631 = int_to_ptr.vmem [resolvable:$true] %s4630
      %4636 = dma.vmem_to_hbm [thread:$0]  %s4631, 8192, %s10, [#allocation3], 128, 128, 8
    $region45: #{run.7} parent=1 // pred_fallthru
      _
    // Predicated region
    $region46: #{run.7} parent=1 // pred_check
      _
    $region47: #{run.7} parent=1 // pred_check_branch
      %4638 = sbr.rel (0) target = $region49
    $region48: #{run.7} parent=1 // pred_region
      %4639 = dma.done [#allocation3], 8192
    $region49: #{run.7} parent=1 // pred_fallthru
      _
    %4640 = vsyncpa [#allocation3], 1

</llo_original>
